<compile_context>
chip_gen: v6e
topology: v6e:2x2x1
jax: 0.10.0
libtpu: 0.0.40
codegen_flags: <defaults>
</compile_context>

<pallas_src>
import functools

import jax
import jax.numpy as jnp
from jax.experimental import pallas as pl
from jax.experimental.pallas import tpu as pltpu


NEG_SLOPE = 0.2          # GATv2Conv default negative_slope
MASK_BIAS = -1e30        # additive mask value for non-edges


# ---------------------------------------------------------------------------
# Kernel
# ---------------------------------------------------------------------------

def _gat_layer(x, w_lr, att, bias, adj_bias, *, heads, out_channels):
    """One GATv2Conv layer (dense additive-masked attention), traced in-kernel."""
    hc = heads * out_channels

    # Fused lin_l|lin_r projection: one wide MXU matmul (bf16 operands, f32 acc).
    xlr = jnp.dot(x.astype(jnp.bfloat16), w_lr.astype(jnp.bfloat16),
                  preferred_element_type=jnp.float32)            # (N, 2*H*C)
    xl = xlr[:, :hc]                                             # source-side feats
    xr = xlr[:, hc:]                                             # target-side feats

    # Head-batched GATv2 scoring: e[h,i,j] = att_h . leaky_relu(xl_h[j] + xr_h[i]).
    # Single full-lane-width (N, N, H*C) elementwise pass for all heads.
    s = xr[:, None, :] + xl[None, :, :]                          # (N_tgt, N_src, H*C)
    s = jnp.where(s > 0.0, s, NEG_SLOPE * s)                     # leaky_relu(0.2)
    sw = s * att[None, :, :]                                     # att: (1, H*C)

    head_outs = []
    for h in range(heads):                                       # static; 128-aligned slices
        lo, hi = h * out_channels, (h + 1) * out_channels
        e = jnp.sum(sw[:, :, lo:hi], axis=-1)                    # (N_tgt, N_src)
        e = e + adj_bias                                         # 0 on edges, -1e30 otherwise
        m = jnp.max(e, axis=-1, keepdims=True)
        p = jnp.exp(e - m)                                       # masked entries underflow to 0
        denom = jnp.sum(p, axis=-1, keepdims=True)               # >= exp(0) via self loops
        alpha = p * pl.reciprocal(denom, approx=True)            # softmax over source nodes
        head_outs.append(
            jnp.dot(alpha.astype(jnp.bfloat16), xl[:, lo:hi].astype(jnp.bfloat16),
                    preferred_element_type=jnp.float32))         # (N, C)

    # Single lane-dense (N, H*C) assembly + one bias add.
    return jnp.concatenate(head_outs, axis=-1) + bias


def make_fused_forward_kernel(heads, hidden_dim):
    H, C = heads, hidden_dim

    def kernel(x_ref, adj_ref,
               w_lr1_ref, att1_ref, b1_ref,
               w_lr2_ref, att2_ref, b2_ref,
               w_mp1_ref, b_mp1_ref, w_mp2_ref, b_mp2_ref,
               out_ref):
        adj_bias = adj_ref[...]                                  # (N, N) additive mask

        # conv1 + ReLU (dropout = identity in eval mode)
        h1 = _gat_layer(x_ref[...], w_lr1_ref[...], att1_ref[...], b1_ref[...],
                        adj_bias, heads=H, out_channels=C)
        h1 = jnp.maximum(h1, 0.0)

        # conv2 + ReLU
        h2 = _gat_layer(h1, w_lr2_ref[...], att2_ref[...], b2_ref[...],
                        adj_bias, heads=H, out_channels=C)
        h2 = jnp.maximum(h2, 0.0)

        # post_mp MLP (Linear -> Dropout(identity) -> Linear) + sigmoid, fused epilogue.
        h3 = jnp.dot(h2.astype(jnp.bfloat16), w_mp1_ref[...].astype(jnp.bfloat16),
                     preferred_element_type=jnp.float32) + b_mp1_ref[...]
        y = jnp.dot(h3.astype(jnp.bfloat16), w_mp2_ref[...].astype(jnp.bfloat16),
                    preferred_element_type=jnp.float32) + b_mp2_ref[...]
        out_ref[...] = 1.0 / (1.0 + jnp.exp(-y))                 # sigmoid

    return kernel


# ---------------------------------------------------------------------------
# Wrapper
# ---------------------------------------------------------------------------

@functools.partial(jax.jit, static_argnames=("heads", "hidden_dim"))
def gatv2_forward(params, x, adj_bias, *, heads, hidden_dim):
    n = x.shape[0]
    output_dim = params["w_mp2"].shape[1]
    kernel = make_fused_forward_kernel(heads, hidden_dim)
    vmem = pl.BlockSpec(memory_space=pltpu.MemorySpace.VMEM)
    return pl.pallas_call(
        kernel,
        out_shape=jax.ShapeDtypeStruct((n, output_dim), jnp.float32),
        in_specs=[vmem] * 12,
        out_specs=vmem,
        compiler_params=pltpu.CompilerParams(vmem_limit_bytes=32 * 1024 * 1024),
    )(x, adj_bias,
      params["w_lr1"], params["att1"], params["b1"],
      params["w_lr2"], params["att2"], params["b2"],
      params["w_mp1"], params["b_mp1"], params["w_mp2"], params["b_mp2"])


# ---------------------------------------------------------------------------
# Parameter init (deterministic, glorot-ish) and graph prep
# ---------------------------------------------------------------------------

def glorot(key, shape):
    fan_in, fan_out = shape[0], shape[-1]
    limit = jnp.sqrt(6.0 / (fan_in + fan_out))
    return jax.random.uniform(key, shape, jnp.float32, -limit, limit)


def init_params(key, input_dim, hidden_dim, output_dim, heads):
    hc = heads * hidden_dim
    ks = jax.random.split(key, 8)
    p = {}
    # conv1: fused [lin_l | lin_r] weight; att laid out head-major (head h -> cols h*C:(h+1)*C)
    p["w_lr1"] = glorot(ks[0], (input_dim, 2 * hc))
    p["att1"] = glorot(ks[1], (1, hc))
    p["b1"] = jnp.zeros((1, hc), jnp.float32)
    # conv2
    p["w_lr2"] = glorot(ks[2], (hc, 2 * hc))
    p["att2"] = glorot(ks[3], (1, hc))
    p["b2"] = jnp.zeros((1, hc), jnp.float32)
    # post_mp: Linear(H*C, hidden) -> Dropout -> Linear(hidden, out)
    p["w_mp1"] = glorot(ks[4], (hc, hidden_dim))
    p["b_mp1"] = jax.random.uniform(ks[5], (1, hidden_dim), jnp.float32, -0.05, 0.05)
    p["w_mp2"] = glorot(ks[6], (hidden_dim, output_dim))
    p["b_mp2"] = jax.random.uniform(ks[7], (1, output_dim), jnp.float32, -0.05, 0.05)
    return p


def build_adj_bias(edge_index, n_nodes):
    """Additive attention mask: 0 where edge j->i exists (incl. self loops), -1e30 otherwise.

    Note: duplicate edges collapse to one (PyG would softmax-count multi-edges
    separately); self loops guarantee every row has at least one valid entry.
    """
    src, dst = edge_index[0], edge_index[1]
    adj = jnp.zeros((n_nodes, n_nodes), jnp.float32).at[dst, src].set(1.0)
    adj = jnp.maximum(adj, jnp.eye(n_nodes, dtype=jnp.float32))
    return jnp.where(adj > 0.0, 0.0, MASK_BIAS).astype(jnp.float32)


# ---------------------------------------------------------------------------
# Demo
# ---------------------------------------------------------------------------

if __name__ == "__main__":
    N_NODES = 16
    INPUT_DIM = 16
    HIDDEN_DIM = 128      # args['hidden_dim']
    OUTPUT_DIM = 4
    HEADS = 2             # args['heads']

    key = jax.random.PRNGKey(0)
    k_x, k_p = jax.random.split(key)

    # deterministic node features
    x = jax.random.normal(k_x, (N_NODES, INPUT_DIM), jnp.float32)

    # deterministic ring graph (bidirectional edges)
    src = jnp.concatenate([jnp.arange(N_NODES), jnp.arange(N_NODES)])
    dst = jnp.concatenate([(jnp.arange(N_NODES) + 1) % N_NODES,
                           (jnp.arange(N_NODES) - 1) % N_NODES])
    edge_index = jnp.stack([src, dst]).astype(jnp.int32)          # (2, 32)
    adj_bias = build_adj_bias(edge_index, N_NODES)

    params = init_params(k_p, INPUT_DIM, HIDDEN_DIM, OUTPUT_DIM, HEADS)

    out = gatv2_forward(params, x, adj_bias, heads=HEADS, hidden_dim=HIDDEN_DIM)
    out = jax.block_until_ready(out)
    assert out.shape == (N_NODES, OUTPUT_DIM)
    assert bool(jnp.all(jnp.isfinite(out)))
    assert bool(jnp.all((out >= 0.0) & (out <= 1.0)))
    print("KERNEL_OK")
</pallas_src>

<mosaic_0001>
module attributes {stable_mosaic.version = 11 : i64} {
  func.func @kernel(%arg0: memref<16x16xf32, #tpu.memory_space<vmem>>, %arg1: memref<16x16xf32, #tpu.memory_space<vmem>>, %arg2: memref<16x512xf32, #tpu.memory_space<vmem>>, %arg3: memref<1x256xf32, #tpu.memory_space<vmem>>, %arg4: memref<1x256xf32, #tpu.memory_space<vmem>>, %arg5: memref<256x512xf32, #tpu.memory_space<vmem>>, %arg6: memref<1x256xf32, #tpu.memory_space<vmem>>, %arg7: memref<1x256xf32, #tpu.memory_space<vmem>>, %arg8: memref<256x128xf32, #tpu.memory_space<vmem>>, %arg9: memref<1x128xf32, #tpu.memory_space<vmem>>, %arg10: memref<128x4xf32, #tpu.memory_space<vmem>>, %arg11: memref<1x4xf32, #tpu.memory_space<vmem>>, %arg12: memref<16x4xf32, #tpu.memory_space<vmem>>) attributes {dimension_semantics = [], scalar_prefetch = 0 : i64, scratch_operands = 0 : i64, tpu.core_type = #tpu.core_type<tc>} {
    %c0 = arith.constant 0 : index
    %c0_0 = arith.constant 0 : index
    %0 = vector.load %arg1[%c0, %c0_0] : memref<16x16xf32, #tpu.memory_space<vmem>>, vector<16x16xf32>
    %c0_1 = arith.constant 0 : index
    %c0_2 = arith.constant 0 : index
    %1 = vector.load %arg0[%c0_1, %c0_2] : memref<16x16xf32, #tpu.memory_space<vmem>>, vector<16x16xf32>
    %c0_3 = arith.constant 0 : index
    %c0_4 = arith.constant 0 : index
    %2 = vector.load %arg2[%c0_3, %c0_4] : memref<16x512xf32, #tpu.memory_space<vmem>>, vector<16x512xf32>
    %c0_5 = arith.constant 0 : index
    %c0_6 = arith.constant 0 : index
    %3 = vector.load %arg3[%c0_5, %c0_6] : memref<1x256xf32, #tpu.memory_space<vmem>>, vector<1x256xf32>
    %c0_7 = arith.constant 0 : index
    %c0_8 = arith.constant 0 : index
    %4 = vector.load %arg4[%c0_7, %c0_8] : memref<1x256xf32, #tpu.memory_space<vmem>>, vector<1x256xf32>
    %5 = arith.truncf %1 : vector<16x16xf32> to vector<16x16xbf16>
    %6 = arith.truncf %2 : vector<16x512xf32> to vector<16x512xbf16>
    %cst = arith.constant dense<0.000000e+00> : vector<16x512xf32>
    %7 = tpu.matmul %5, %6, %cst {dimension_numbers = #tpu.dot_dimension_numbers<[1], [0], [0], [1], [0, 0, 1, 1], [], []>} : vector<16x16xbf16>, vector<16x512xbf16>, vector<16x512xf32> -> vector<16x512xf32>
    %8 = vector.extract_strided_slice %7 {offsets = [0, 0], sizes = [16, 256], strides = [1, 1]} : vector<16x512xf32> to vector<16x256xf32>
    %9 = vector.extract_strided_slice %7 {offsets = [0, 256], sizes = [16, 256], strides = [1, 1]} : vector<16x512xf32> to vector<16x256xf32>
    %10 = vector.shape_cast %9 : vector<16x256xf32> to vector<16x1x256xf32>
    %11 = vector.shape_cast %8 : vector<16x256xf32> to vector<1x16x256xf32>
    %12 = vector.broadcast %10 : vector<16x1x256xf32> to vector<16x16x256xf32>
    %13 = vector.broadcast %11 : vector<1x16x256xf32> to vector<16x16x256xf32>
    %14 = arith.addf %12, %13 : vector<16x16x256xf32>
    %cst_9 = arith.constant 0.000000e+00 : f32
    %15 = vector.broadcast %cst_9 : f32 to vector<16x16x256xf32>
    %16 = arith.cmpf ogt, %14, %15 : vector<16x16x256xf32>
    %cst_10 = arith.constant 2.000000e-01 : f32
    %17 = vector.broadcast %cst_10 : f32 to vector<16x16x256xf32>
    %18 = arith.mulf %17, %14 : vector<16x16x256xf32>
    %19 = arith.select %16, %14, %18 : vector<16x16x256xi1>, vector<16x16x256xf32>
    %20 = vector.shape_cast %3 : vector<1x256xf32> to vector<1x1x256xf32>
    %21 = vector.broadcast %20 : vector<1x1x256xf32> to vector<16x16x256xf32>
    %22 = arith.mulf %19, %21 : vector<16x16x256xf32>
    %23 = vector.extract_strided_slice %22 {offsets = [0, 0, 0], sizes = [16, 16, 128], strides = [1, 1, 1]} : vector<16x16x256xf32> to vector<16x16x128xf32>
    %cst_11 = arith.constant dense<0.000000e+00> : vector<16x16xf32>
    %24 = vector.multi_reduction <add>, %23, %cst_11 [2] : vector<16x16x128xf32> to vector<16x16xf32>
    %25 = arith.addf %24, %0 : vector<16x16xf32>
    %cst_12 = arith.constant dense<0xFF800000> : vector<16xf32>
    %26 = vector.multi_reduction <maximumf>, %25, %cst_12 [1] : vector<16x16xf32> to vector<16xf32>
    %27 = vector.shape_cast %26 : vector<16xf32> to vector<16x1xf32>
    %28 = vector.broadcast %27 : vector<16x1xf32> to vector<16x16xf32>
    %29 = arith.subf %25, %28 : vector<16x16xf32>
    %30 = math.exp %29 : vector<16x16xf32>
    %cst_13 = arith.constant dense<0.000000e+00> : vector<16xf32>
    %31 = vector.multi_reduction <add>, %30, %cst_13 [1] : vector<16x16xf32> to vector<16xf32>
    %32 = vector.shape_cast %31 : vector<16xf32> to vector<16x1xf32>
    %33 = tpu.reciprocal %32 {approx = true} : vector<16x1xf32> -> vector<16x1xf32>
    %34 = vector.broadcast %33 : vector<16x1xf32> to vector<16x16xf32>
    %35 = arith.mulf %30, %34 : vector<16x16xf32>
    %36 = arith.truncf %35 : vector<16x16xf32> to vector<16x16xbf16>
    %37 = vector.extract_strided_slice %8 {offsets = [0, 0], sizes = [16, 128], strides = [1, 1]} : vector<16x256xf32> to vector<16x128xf32>
    %38 = arith.truncf %37 : vector<16x128xf32> to vector<16x128xbf16>
    %cst_14 = arith.constant dense<0.000000e+00> : vector<16x128xf32>
    %39 = tpu.matmul %36, %38, %cst_14 {dimension_numbers = #tpu.dot_dimension_numbers<[1], [0], [0], [1], [0, 0, 1, 1], [], []>} : vector<16x16xbf16>, vector<16x128xbf16>, vector<16x128xf32> -> vector<16x128xf32>
    %40 = vector.extract_strided_slice %22 {offsets = [0, 0, 128], sizes = [16, 16, 128], strides = [1, 1, 1]} : vector<16x16x256xf32> to vector<16x16x128xf32>
    %cst_15 = arith.constant dense<0.000000e+00> : vector<16x16xf32>
    %41 = vector.multi_reduction <add>, %40, %cst_15 [2] : vector<16x16x128xf32> to vector<16x16xf32>
    %42 = arith.addf %41, %0 : vector<16x16xf32>
    %cst_16 = arith.constant dense<0xFF800000> : vector<16xf32>
    %43 = vector.multi_reduction <maximumf>, %42, %cst_16 [1] : vector<16x16xf32> to vector<16xf32>
    %44 = vector.shape_cast %43 : vector<16xf32> to vector<16x1xf32>
    %45 = vector.broadcast %44 : vector<16x1xf32> to vector<16x16xf32>
    %46 = arith.subf %42, %45 : vector<16x16xf32>
    %47 = math.exp %46 : vector<16x16xf32>
    %cst_17 = arith.constant dense<0.000000e+00> : vector<16xf32>
    %48 = vector.multi_reduction <add>, %47, %cst_17 [1] : vector<16x16xf32> to vector<16xf32>
    %49 = vector.shape_cast %48 : vector<16xf32> to vector<16x1xf32>
    %50 = tpu.reciprocal %49 {approx = true} : vector<16x1xf32> -> vector<16x1xf32>
    %51 = vector.broadcast %50 : vector<16x1xf32> to vector<16x16xf32>
    %52 = arith.mulf %47, %51 : vector<16x16xf32>
    %53 = arith.truncf %52 : vector<16x16xf32> to vector<16x16xbf16>
    %54 = vector.extract_strided_slice %8 {offsets = [0, 128], sizes = [16, 128], strides = [1, 1]} : vector<16x256xf32> to vector<16x128xf32>
    %55 = arith.truncf %54 : vector<16x128xf32> to vector<16x128xbf16>
    %cst_18 = arith.constant dense<0.000000e+00> : vector<16x128xf32>
    %56 = tpu.matmul %53, %55, %cst_18 {dimension_numbers = #tpu.dot_dimension_numbers<[1], [0], [0], [1], [0, 0, 1, 1], [], []>} : vector<16x16xbf16>, vector<16x128xbf16>, vector<16x128xf32> -> vector<16x128xf32>
    %57 = tpu.concatenate %39, %56 in 1 : vector<16x128xf32>, vector<16x128xf32> -> vector<16x256xf32>
    %58 = vector.broadcast %4 : vector<1x256xf32> to vector<16x256xf32>
    %59 = arith.addf %57, %58 : vector<16x256xf32>
    %cst_19 = arith.constant 0.000000e+00 : f32
    %60 = vector.broadcast %cst_19 : f32 to vector<16x256xf32>
    %61 = arith.maximumf %59, %60 : vector<16x256xf32>
    %c0_20 = arith.constant 0 : index
    %c0_21 = arith.constant 0 : index
    %62 = vector.load %arg5[%c0_20, %c0_21] : memref<256x512xf32, #tpu.memory_space<vmem>>, vector<256x512xf32>
    %c0_22 = arith.constant 0 : index
    %c0_23 = arith.constant 0 : index
    %63 = vector.load %arg6[%c0_22, %c0_23] : memref<1x256xf32, #tpu.memory_space<vmem>>, vector<1x256xf32>
    %c0_24 = arith.constant 0 : index
    %c0_25 = arith.constant 0 : index
    %64 = vector.load %arg7[%c0_24, %c0_25] : memref<1x256xf32, #tpu.memory_space<vmem>>, vector<1x256xf32>
    %65 = arith.truncf %61 : vector<16x256xf32> to vector<16x256xbf16>
    %66 = arith.truncf %62 : vector<256x512xf32> to vector<256x512xbf16>
    %cst_26 = arith.constant dense<0.000000e+00> : vector<16x512xf32>
    %67 = tpu.matmul %65, %66, %cst_26 {dimension_numbers = #tpu.dot_dimension_numbers<[1], [0], [0], [1], [0, 0, 1, 1], [], []>} : vector<16x256xbf16>, vector<256x512xbf16>, vector<16x512xf32> -> vector<16x512xf32>
    %68 = vector.extract_strided_slice %67 {offsets = [0, 0], sizes = [16, 256], strides = [1, 1]} : vector<16x512xf32> to vector<16x256xf32>
    %69 = vector.extract_strided_slice %67 {offsets = [0, 256], sizes = [16, 256], strides = [1, 1]} : vector<16x512xf32> to vector<16x256xf32>
    %70 = vector.shape_cast %69 : vector<16x256xf32> to vector<16x1x256xf32>
    %71 = vector.shape_cast %68 : vector<16x256xf32> to vector<1x16x256xf32>
    %72 = vector.broadcast %70 : vector<16x1x256xf32> to vector<16x16x256xf32>
    %73 = vector.broadcast %71 : vector<1x16x256xf32> to vector<16x16x256xf32>
    %74 = arith.addf %72, %73 : vector<16x16x256xf32>
    %cst_27 = arith.constant 0.000000e+00 : f32
    %75 = vector.broadcast %cst_27 : f32 to vector<16x16x256xf32>
    %76 = arith.cmpf ogt, %74, %75 : vector<16x16x256xf32>
    %cst_28 = arith.constant 2.000000e-01 : f32
    %77 = vector.broadcast %cst_28 : f32 to vector<16x16x256xf32>
    %78 = arith.mulf %77, %74 : vector<16x16x256xf32>
    %79 = arith.select %76, %74, %78 : vector<16x16x256xi1>, vector<16x16x256xf32>
    %80 = vector.shape_cast %63 : vector<1x256xf32> to vector<1x1x256xf32>
    %81 = vector.broadcast %80 : vector<1x1x256xf32> to vector<16x16x256xf32>
    %82 = arith.mulf %79, %81 : vector<16x16x256xf32>
    %83 = vector.extract_strided_slice %82 {offsets = [0, 0, 0], sizes = [16, 16, 128], strides = [1, 1, 1]} : vector<16x16x256xf32> to vector<16x16x128xf32>
    %cst_29 = arith.constant dense<0.000000e+00> : vector<16x16xf32>
    %84 = vector.multi_reduction <add>, %83, %cst_29 [2] : vector<16x16x128xf32> to vector<16x16xf32>
    %85 = arith.addf %84, %0 : vector<16x16xf32>
    %cst_30 = arith.constant dense<0xFF800000> : vector<16xf32>
    %86 = vector.multi_reduction <maximumf>, %85, %cst_30 [1] : vector<16x16xf32> to vector<16xf32>
    %87 = vector.shape_cast %86 : vector<16xf32> to vector<16x1xf32>
    %88 = vector.broadcast %87 : vector<16x1xf32> to vector<16x16xf32>
    %89 = arith.subf %85, %88 : vector<16x16xf32>
    %90 = math.exp %89 : vector<16x16xf32>
    %cst_31 = arith.constant dense<0.000000e+00> : vector<16xf32>
    %91 = vector.multi_reduction <add>, %90, %cst_31 [1] : vector<16x16xf32> to vector<16xf32>
    %92 = vector.shape_cast %91 : vector<16xf32> to vector<16x1xf32>
    %93 = tpu.reciprocal %92 {approx = true} : vector<16x1xf32> -> vector<16x1xf32>
    %94 = vector.broadcast %93 : vector<16x1xf32> to vector<16x16xf32>
    %95 = arith.mulf %90, %94 : vector<16x16xf32>
    %96 = arith.truncf %95 : vector<16x16xf32> to vector<16x16xbf16>
    %97 = vector.extract_strided_slice %68 {offsets = [0, 0], sizes = [16, 128], strides = [1, 1]} : vector<16x256xf32> to vector<16x128xf32>
    %98 = arith.truncf %97 : vector<16x128xf32> to vector<16x128xbf16>
    %cst_32 = arith.constant dense<0.000000e+00> : vector<16x128xf32>
    %99 = tpu.matmul %96, %98, %cst_32 {dimension_numbers = #tpu.dot_dimension_numbers<[1], [0], [0], [1], [0, 0, 1, 1], [], []>} : vector<16x16xbf16>, vector<16x128xbf16>, vector<16x128xf32> -> vector<16x128xf32>
    %100 = vector.extract_strided_slice %82 {offsets = [0, 0, 128], sizes = [16, 16, 128], strides = [1, 1, 1]} : vector<16x16x256xf32> to vector<16x16x128xf32>
    %cst_33 = arith.constant dense<0.000000e+00> : vector<16x16xf32>
    %101 = vector.multi_reduction <add>, %100, %cst_33 [2] : vector<16x16x128xf32> to vector<16x16xf32>
    %102 = arith.addf %101, %0 : vector<16x16xf32>
    %cst_34 = arith.constant dense<0xFF800000> : vector<16xf32>
    %103 = vector.multi_reduction <maximumf>, %102, %cst_34 [1] : vector<16x16xf32> to vector<16xf32>
    %104 = vector.shape_cast %103 : vector<16xf32> to vector<16x1xf32>
    %105 = vector.broadcast %104 : vector<16x1xf32> to vector<16x16xf32>
    %106 = arith.subf %102, %105 : vector<16x16xf32>
    %107 = math.exp %106 : vector<16x16xf32>
    %cst_35 = arith.constant dense<0.000000e+00> : vector<16xf32>
    %108 = vector.multi_reduction <add>, %107, %cst_35 [1] : vector<16x16xf32> to vector<16xf32>
    %109 = vector.shape_cast %108 : vector<16xf32> to vector<16x1xf32>
    %110 = tpu.reciprocal %109 {approx = true} : vector<16x1xf32> -> vector<16x1xf32>
    %111 = vector.broadcast %110 : vector<16x1xf32> to vector<16x16xf32>
    %112 = arith.mulf %107, %111 : vector<16x16xf32>
    %113 = arith.truncf %112 : vector<16x16xf32> to vector<16x16xbf16>
    %114 = vector.extract_strided_slice %68 {offsets = [0, 128], sizes = [16, 128], strides = [1, 1]} : vector<16x256xf32> to vector<16x128xf32>
    %115 = arith.truncf %114 : vector<16x128xf32> to vector<16x128xbf16>
    %cst_36 = arith.constant dense<0.000000e+00> : vector<16x128xf32>
    %116 = tpu.matmul %113, %115, %cst_36 {dimension_numbers = #tpu.dot_dimension_numbers<[1], [0], [0], [1], [0, 0, 1, 1], [], []>} : vector<16x16xbf16>, vector<16x128xbf16>, vector<16x128xf32> -> vector<16x128xf32>
    %117 = tpu.concatenate %99, %116 in 1 : vector<16x128xf32>, vector<16x128xf32> -> vector<16x256xf32>
    %118 = vector.broadcast %64 : vector<1x256xf32> to vector<16x256xf32>
    %119 = arith.addf %117, %118 : vector<16x256xf32>
    %cst_37 = arith.constant 0.000000e+00 : f32
    %120 = vector.broadcast %cst_37 : f32 to vector<16x256xf32>
    %121 = arith.maximumf %119, %120 : vector<16x256xf32>
    %122 = arith.truncf %121 : vector<16x256xf32> to vector<16x256xbf16>
    %c0_38 = arith.constant 0 : index
    %c0_39 = arith.constant 0 : index
    %123 = vector.load %arg8[%c0_38, %c0_39] : memref<256x128xf32, #tpu.memory_space<vmem>>, vector<256x128xf32>
    %124 = arith.truncf %123 : vector<256x128xf32> to vector<256x128xbf16>
    %cst_40 = arith.constant dense<0.000000e+00> : vector<16x128xf32>
    %125 = tpu.matmul %122, %124, %cst_40 {dimension_numbers = #tpu.dot_dimension_numbers<[1], [0], [0], [1], [0, 0, 1, 1], [], []>} : vector<16x256xbf16>, vector<256x128xbf16>, vector<16x128xf32> -> vector<16x128xf32>
    %c0_41 = arith.constant 0 : index
    %c0_42 = arith.constant 0 : index
    %126 = vector.load %arg9[%c0_41, %c0_42] : memref<1x128xf32, #tpu.memory_space<vmem>>, vector<1x128xf32>
    %127 = vector.broadcast %126 : vector<1x128xf32> to vector<16x128xf32>
    %128 = arith.addf %125, %127 : vector<16x128xf32>
    %129 = arith.truncf %128 : vector<16x128xf32> to vector<16x128xbf16>
    %c0_43 = arith.constant 0 : index
    %c0_44 = arith.constant 0 : index
    %130 = vector.load %arg10[%c0_43, %c0_44] : memref<128x4xf32, #tpu.memory_space<vmem>>, vector<128x4xf32>
    %131 = arith.truncf %130 : vector<128x4xf32> to vector<128x4xbf16>
    %cst_45 = arith.constant dense<0.000000e+00> : vector<16x4xf32>
    %132 = tpu.matmul %129, %131, %cst_45 {dimension_numbers = #tpu.dot_dimension_numbers<[1], [0], [0], [1], [0, 0, 1, 1], [], []>} : vector<16x128xbf16>, vector<128x4xbf16>, vector<16x4xf32> -> vector<16x4xf32>
    %c0_46 = arith.constant 0 : index
    %c0_47 = arith.constant 0 : index
    %133 = vector.load %arg11[%c0_46, %c0_47] : memref<1x4xf32, #tpu.memory_space<vmem>>, vector<1x4xf32>
    %134 = vector.broadcast %133 : vector<1x4xf32> to vector<16x4xf32>
    %135 = arith.addf %132, %134 : vector<16x4xf32>
    %cst_48 = arith.constant 0.000000e+00 : f32
    %136 = vector.broadcast %cst_48 : f32 to vector<16x4xf32>
    %137 = arith.subf %136, %135 : vector<16x4xf32>
    %138 = math.exp %137 : vector<16x4xf32>
    %cst_49 = arith.constant 1.000000e+00 : f32
    %139 = vector.broadcast %cst_49 : f32 to vector<16x4xf32>
    %140 = arith.addf %139, %138 : vector<16x4xf32>
    %cst_50 = arith.constant 1.000000e+00 : f32
    %141 = vector.broadcast %cst_50 : f32 to vector<16x4xf32>
    %142 = arith.divf %141, %140 : vector<16x4xf32>
    %c0_51 = arith.constant 0 : index
    %c0_52 = arith.constant 0 : index
    %143 = vector.load %arg12[%c0_51, %c0_52] : memref<16x4xf32, #tpu.memory_space<vmem>>, vector<16x4xf32>
    tpu.vector_store %arg12[%c0_51, %c0_52], %142 {strides = array<i32>} : memref<16x4xf32, #tpu.memory_space<vmem>>, vector<16x4xf32>,
    return
  }
}

</mosaic_0001>

<llo_original>
// kernel: gatv2_forward.1
$region0: #{gatv2_forward.1}
  #allocation0 [shape = 'u32[]', space=smem, size = 0x4, offset = 0x4, fixed_abs, tag = 'smem constant byte address 0x4 - core index']
  #allocation1 [shape = 'u32[144,128]{1,0:T(1,128)}', space=vmem, size = 0x12000, scoped, tag = 'internal scratch']
  %s0 = inlined_call_operand.vmem [shape: f32[16,16], index: 0, kind: input, shape index: {}]
  %s1 = inlined_call_operand.vmem [shape: f32[16,16], index: 1, kind: input, shape index: {}]
  %s2 = inlined_call_operand.vmem [shape: f32[16,512], index: 2, kind: input, shape index: {}]
  %s3 = inlined_call_operand.vmem [shape: f32[1,256], index: 3, kind: input, shape index: {}]
  %s4 = inlined_call_operand.vmem [shape: f32[1,256], index: 4, kind: input, shape index: {}]
  %s5 = inlined_call_operand.hbm [shape: f32[256,512], index: 5, kind: input, shape index: {}]
  %s6 = inlined_call_operand.vmem [shape: f32[1,256], index: 6, kind: input, shape index: {}]
  %s7 = inlined_call_operand.vmem [shape: f32[1,256], index: 7, kind: input, shape index: {}]
  %s8 = inlined_call_operand.hbm [shape: f32[256,128], index: 8, kind: input, shape index: {}]
  %s9 = inlined_call_operand.vmem [shape: f32[1,128], index: 9, kind: input, shape index: {}]
  %s10 = inlined_call_operand.vmem [shape: f32[128,4], index: 10, kind: input, shape index: {}]
  %s11 = inlined_call_operand.vmem [shape: f32[1,4], index: 11, kind: input, shape index: {}]
  %s12 = inlined_call_operand.vmem [shape: f32[16,4], index: 12, kind: output, shape index: {}]
  %s13 = sld [smem:[#allocation0]]
  $region66: #{gatv2_forward.1} parent=0
    _
  %s15 = ssub.s32 1, %s13
  %s16 = scalar_select 0, %s15, %s13
  $region1: #{gatv2_forward.1} parent=0
    #allocation2 [shape = 'u8[524288]{0}', space=vmem, size = 0x80000, scoped, tag = 'input window, operand 5, single buffered']
    #allocation3 [shape = 's32[1]{0}', space=sflag, size = 0x4, scoped, tag = 'scoped memory for gatv2_forward.1']
    #allocation4 [shape = 'u8[131072]{0}', space=vmem, size = 0x20000, scoped, tag = 'input window, operand 8, single buffered']
    #allocation5 [shape = 's32[1]{0}', space=sflag, size = 0x4, scoped, tag = 'scoped memory for gatv2_forward.1']
    %17 = vsyncpa [#allocation3], 0
    %18 = vsyncpa [#allocation5], 0
    // Predicated region
    $region2: #{gatv2_forward.1} parent=1 // pred_check
      _
    $region3: #{gatv2_forward.1} parent=1 // pred_check_branch
      %20 = sbr.rel (0) target = $region5
    $region4: #{gatv2_forward.1} parent=1 // pred_region
      _
    $region5: #{gatv2_forward.1} parent=1 // pred_fallthru
      _
    // Predicated region
    $region6: #{gatv2_forward.1} parent=1 // pred_check
      _
    $region7: #{gatv2_forward.1} parent=1 // pred_check_branch
      %22 = sbr.rel (0) target = $region9
    $region8: #{gatv2_forward.1} parent=1 // pred_region
      _
    $region9: #{gatv2_forward.1} parent=1 // pred_fallthru
      _
    // Predicated region
    $region10: #{gatv2_forward.1} parent=1 // pred_check
      _
    $region11: #{gatv2_forward.1} parent=1 // pred_check_branch
      %24 = sbr.rel (0) target = $region13
    $region12: #{gatv2_forward.1} parent=1 // pred_region
      _
    $region13: #{gatv2_forward.1} parent=1 // pred_fallthru
      _
    // Predicated region
    $region14: #{gatv2_forward.1} parent=1 // pred_check
      _
    $region15: #{gatv2_forward.1} parent=1 // pred_check_branch
      %26 = sbr.rel (0) target = $region17
    $region16: #{gatv2_forward.1} parent=1 // pred_region
      _
    $region17: #{gatv2_forward.1} parent=1 // pred_fallthru
      _
    // Predicated region
    $region18: #{gatv2_forward.1} parent=1 // pred_check
      _
    $region19: #{gatv2_forward.1} parent=1 // pred_check_branch
      %28 = sbr.rel (0) target = $region21
    $region20: #{gatv2_forward.1} parent=1 // pred_region
      _
    $region21: #{gatv2_forward.1} parent=1 // pred_fallthru
      _
    // Predicated region
    $region22: #{gatv2_forward.1} parent=1 // pred_check
      _
    $region23: #{gatv2_forward.1} parent=1 // pred_check_branch
      %30 = sbr.rel (0) target = $region25
    $region24: #{gatv2_forward.1} parent=1 // pred_region
      %s32 = ssub.s32 16384, 16384
      %33 = vsyncadd [#allocation3], %s32
      %s34 = sshll.u32 [#allocation2], 4
      %s35 = int_to_ptr.vmem [resolvable:$true] %s34
      %40 = dma.hbm_to_vmem [thread:$0]  %s5, 16384, %s35, [#allocation3], 512, 512, 32
    $region25: #{gatv2_forward.1} parent=1 // pred_fallthru
      _
    // Predicated region
    $region26: #{gatv2_forward.1} parent=1 // pred_check
      _
    $region27: #{gatv2_forward.1} parent=1 // pred_check_branch
      %42 = sbr.rel (0) target = $region29
    $region28: #{gatv2_forward.1} parent=1 // pred_region
      _
    $region29: #{gatv2_forward.1} parent=1 // pred_fallthru
      _
    // Predicated region
    $region30: #{gatv2_forward.1} parent=1 // pred_check
      _
    $region31: #{gatv2_forward.1} parent=1 // pred_check_branch
      %44 = sbr.rel (0) target = $region33
    $region32: #{gatv2_forward.1} parent=1 // pred_region
      _
    $region33: #{gatv2_forward.1} parent=1 // pred_fallthru
      _
    // Predicated region
    $region34: #{gatv2_forward.1} parent=1 // pred_check
      _
    $region35: #{gatv2_forward.1} parent=1 // pred_check_branch
      %46 = sbr.rel (0) target = $region37
    $region36: #{gatv2_forward.1} parent=1 // pred_region
      %s48 = ssub.s32 4096, 4096
      %49 = vsyncadd [#allocation5], %s48
      %s50 = sshll.u32 [#allocation4], 4
      %s51 = int_to_ptr.vmem [resolvable:$true] %s50
      %56 = dma.hbm_to_vmem [thread:$0]  %s8, 4096, %s51, [#allocation5], 128, 128, 8
    $region37: #{gatv2_forward.1} parent=1 // pred_fallthru
      _
    // Predicated region
    $region38: #{gatv2_forward.1} parent=1 // pred_check
      _
    $region39: #{gatv2_forward.1} parent=1 // pred_check_branch
      %58 = sbr.rel (0) target = $region41
    $region40: #{gatv2_forward.1} parent=1 // pred_region
      _
    $region41: #{gatv2_forward.1} parent=1 // pred_fallthru
      _
    // Predicated region
    $region42: #{gatv2_forward.1} parent=1 // pred_check
      _
    $region43: #{gatv2_forward.1} parent=1 // pred_check_branch
      %60 = sbr.rel (0) target = $region45
    $region44: #{gatv2_forward.1} parent=1 // pred_region
      _
    $region45: #{gatv2_forward.1} parent=1 // pred_fallthru
      _
    // Predicated region
    $region46: #{gatv2_forward.1} parent=1 // pred_check
      _
    $region47: #{gatv2_forward.1} parent=1 // pred_check_branch
      %62 = sbr.rel (0) target = $region49
    $region48: #{gatv2_forward.1} parent=1 // pred_region
      _
    $region49: #{gatv2_forward.1} parent=1 // pred_fallthru
      _
    // Predicated region
    $region50: #{gatv2_forward.1} parent=1 // pred_check
      _
    $region51: #{gatv2_forward.1} parent=1 // pred_check_branch
      %64 = sbr.rel (0) target = $region53
    $region52: #{gatv2_forward.1} parent=1 // pred_region
      %65 = dma.done [#allocation3], 16384
    $region53: #{gatv2_forward.1} parent=1 // pred_fallthru
      _
    // Predicated region
    $region54: #{gatv2_forward.1} parent=1 // pred_check
      _
    $region55: #{gatv2_forward.1} parent=1 // pred_check_branch
      %67 = sbr.rel (0) target = $region57
    $region56: #{gatv2_forward.1} parent=1 // pred_region
      %68 = dma.done [#allocation5], 4096
    $region57: #{gatv2_forward.1} parent=1 // pred_fallthru
      _
    %v70 = vld [vmem:[%s1] sm:$0xff]
    %v71 = vld [vmem:[%s1 + $0x8] sm:$0xff]
    %v72 = vld [vmem:[%s0] sm:$0xff]
    %v73 = vld [vmem:[%s0 + $0x8] sm:$0xff]
    %v74 = vld [vmem:[%s2] sm:$0xff]
    %v75 = vld [vmem:[%s2 + $0x8] sm:$0xff]
    %v76 = vld [vmem:[%s2 + $0x10] sm:$0xff]
    %v77 = vld [vmem:[%s2 + $0x18] sm:$0xff]
    %v78 = vld [vmem:[%s2 + $0x20] sm:$0xff]
    %v79 = vld [vmem:[%s2 + $0x28] sm:$0xff]
    %v80 = vld [vmem:[%s2 + $0x30] sm:$0xff]
    %v81 = vld [vmem:[%s2 + $0x38] sm:$0xff]
    %v82 = vld [vmem:[%s3] sm:$0x3]
    %v83 = vld [vmem:[%s4] sm:$0x3]
    %v84 = vpack.c.bf16 %v73, %v72
    %v85 = vpack.c.bf16 %v78, %v74
    %v86 = vpack.c.bf16 %v79, %v75
    %v87 = vpack.c.bf16 %v80, %v76
    %v88 = vpack.c.bf16 %v81, %v77
    %vm89 = vcmask 130048
    %v91 = vsel %vm89, %v84, 0
    %93 = vmatprep.subr.bf16.mxu0 0
    %94 = vmatpush1.bf16.msra.mxu0 0
    %95 = vmatprep.subr.bf16.mxu0 0
    %96 = vmatpush1.bf16.msra.mxu0 0
    %97 = vmatprep.subr.bf16.mxu0 0
    %98 = vmatpush1.bf16.msra.mxu0 0
    %99 = vmatprep.subr.bf16.mxu0 0
    %100 = vmatpush1.bf16.msra.mxu0 0
    %101 = vmatprep.subr.bf16.mxu0 0
    %102 = vmatpush1.bf16.msra.mxu0 0
    %103 = vmatprep.subr.bf16.mxu0 0
    %104 = vmatpush1.bf16.msra.mxu0 0
    %105 = vmatprep.subr.bf16.mxu0 0
    %106 = vmatpush1.bf16.msra.mxu0 0
    %107 = vmatprep.subr.bf16.mxu0 %v86
    %108 = vmatpush1.bf16.msra.mxu0 %v85
    %109 = vmatprep.subr.bf16.mxu0 0
    %110 = vmatpush2.bf16.msra.mxu0 0
    %111 = vmatprep.subr.bf16.mxu0 0
    %112 = vmatpush2.bf16.msra.mxu0 0
    %113 = vmatprep.subr.bf16.mxu0 0
    %114 = vmatpush2.bf16.msra.mxu0 0
    %115 = vmatprep.subr.bf16.mxu0 0
    %116 = vmatpush2.bf16.msra.mxu0 0
    %117 = vmatprep.subr.bf16.mxu0 0
    %118 = vmatpush2.bf16.msra.mxu0 0
    %119 = vmatprep.subr.bf16.mxu0 0
    %120 = vmatpush2.bf16.msra.mxu0 0
    %121 = vmatprep.subr.bf16.mxu0 0
    %122 = vmatpush2.bf16.msra.mxu0 0
    %123 = vmatprep.subr.bf16.mxu0 0
    %124 = vmatpush2.bf16.msra.mxu0 0
    %125 = vmatprep.mubr.bf16.mxu0 0
    %126 = vmatmul.mubr.bf16.gmra.mxu0 %v91
    %v127 = vpop.f32.mrf.mxu0
    %v128 = vadd.f32 0.0, %v127
    %v129 = vpop.f32.mrf.mxu0
    %v130 = vadd.f32 0.0, %v129
    %v131 = vpop.f32.mrf.mxu0
    %v132 = vadd.f32 0.0, %v131
    %v133 = vpop.f32.mrf.mxu0
    %v134 = vadd.f32 0.0, %v133
    %135 = vdwg.mxu0
    %136 = vmatprep.subr.bf16.mxu0 0
    %137 = vmatpush1.bf16.msra.mxu0 0
    %138 = vmatprep.subr.bf16.mxu0 0
    %139 = vmatpush1.bf16.msra.mxu0 0
    %140 = vmatprep.subr.bf16.mxu0 0
    %141 = vmatpush1.bf16.msra.mxu0 0
    %142 = vmatprep.subr.bf16.mxu0 0
    %143 = vmatpush1.bf16.msra.mxu0 0
    %144 = vmatprep.subr.bf16.mxu0 0
    %145 = vmatpush1.bf16.msra.mxu0 0
    %146 = vmatprep.subr.bf16.mxu0 0
    %147 = vmatpush1.bf16.msra.mxu0 0
    %148 = vmatprep.subr.bf16.mxu0 0
    %149 = vmatpush1.bf16.msra.mxu0 0
    %150 = vmatprep.subr.bf16.mxu0 %v88
    %151 = vmatpush1.bf16.msra.mxu0 %v87
    %152 = vmatprep.subr.bf16.mxu0 0
    %153 = vmatpush2.bf16.msra.mxu0 0
    %154 = vmatprep.subr.bf16.mxu0 0
    %155 = vmatpush2.bf16.msra.mxu0 0
    %156 = vmatprep.subr.bf16.mxu0 0
    %157 = vmatpush2.bf16.msra.mxu0 0
    %158 = vmatprep.subr.bf16.mxu0 0
    %159 = vmatpush2.bf16.msra.mxu0 0
    %160 = vmatprep.subr.bf16.mxu0 0
    %161 = vmatpush2.bf16.msra.mxu0 0
    %162 = vmatprep.subr.bf16.mxu0 0
    %163 = vmatpush2.bf16.msra.mxu0 0
    %164 = vmatprep.subr.bf16.mxu0 0
    %165 = vmatpush2.bf16.msra.mxu0 0
    %166 = vmatprep.subr.bf16.mxu0 0
    %167 = vmatpush2.bf16.msra.mxu0 0
    %168 = vmatprep.mubr.bf16.mxu0 0
    %169 = vmatmul.mubr.bf16.gmra.mxu0 %v91
    %v170 = vpop.f32.mrf.mxu0
    %v171 = vadd.f32 0.0, %v170
    %v172 = vpop.f32.mrf.mxu0
    %v173 = vadd.f32 0.0, %v172
    %v174 = vpop.f32.mrf.mxu0
    %v175 = vadd.f32 0.0, %v174
    %v176 = vpop.f32.mrf.mxu0
    %v177 = vadd.f32 0.0, %v176
    %178 = vdwg.mxu0
    %v183 = vcombine.low %v171, %v173
    %v184 = vcombine.high %v171, %v173
    %v186 = vunpack.c.l.s4 1966171168
    %v187 = vunpack.c.0.s8 %v186
    %v188 = vlaneseq
    %v189 = vshrl.u32 %v188, 7
    %v190 = vsub.s32 %v187, %v189
    %v191 = vrot.slane %v183, %v190
    %v193 = vunpack.c.l.s4 1966171168
    %v194 = vunpack.c.0.s8 %v193
    %v195 = vlaneseq
    %v196 = vshrl.u32 %v195, 7
    %v197 = vsub.s32 %v194, %v196
    %v198 = vrot.slane %v184, %v197
    %v199 = vcombine.high %v191, %v191
    %v200 = vcombine.high %v198, %v198
    %v202 = vunpack.c.l.s4 1966171168
    %v203 = vunpack.c.0.s8 %v202
    %v204 = vlaneseq
    %v205 = vshrl.u32 %v204, 7
    %v206 = vsub.s32 %v203, %v205
    %v207 = vrot.slane %v191, %v206
    %v209 = vunpack.c.l.s4 1966171168
    %v210 = vunpack.c.0.s8 %v209
    %v211 = vlaneseq
    %v212 = vshrl.u32 %v211, 7
    %v213 = vsub.s32 %v210, %v212
    %v214 = vrot.slane %v198, %v213
    %v216 = vunpack.c.l.s4 1966171168
    %v217 = vunpack.c.0.s8 %v216
    %v218 = vlaneseq
    %v219 = vshrl.u32 %v218, 7
    %v220 = vsub.s32 %v217, %v219
    %v221 = vrot.slane %v199, %v220
    %v223 = vunpack.c.l.s4 1966171168
    %v224 = vunpack.c.0.s8 %v223
    %v225 = vlaneseq
    %v226 = vshrl.u32 %v225, 7
    %v227 = vsub.s32 %v224, %v226
    %v228 = vrot.slane %v200, %v227
    %v229 = vcombine.high %v207, %v207
    %v230 = vcombine.high %v214, %v214
    %v231 = vcombine.high %v221, %v221
    %v232 = vcombine.high %v228, %v228
    %v233 = vcombine.low %v175, %v177
    %v234 = vcombine.high %v175, %v177
    %v236 = vunpack.c.l.s4 1966171168
    %v237 = vunpack.c.0.s8 %v236
    %v238 = vlaneseq
    %v239 = vshrl.u32 %v238, 7
    %v240 = vsub.s32 %v237, %v239
    %v241 = vrot.slane %v233, %v240
    %v243 = vunpack.c.l.s4 1966171168
    %v244 = vunpack.c.0.s8 %v243
    %v245 = vlaneseq
    %v246 = vshrl.u32 %v245, 7
    %v247 = vsub.s32 %v244, %v246
    %v248 = vrot.slane %v234, %v247
    %v249 = vcombine.high %v241, %v241
    %v250 = vcombine.high %v248, %v248
    %v252 = vunpack.c.l.s4 1966171168
    %v253 = vunpack.c.0.s8 %v252
    %v254 = vlaneseq
    %v255 = vshrl.u32 %v254, 7
    %v256 = vsub.s32 %v253, %v255
    %v257 = vrot.slane %v241, %v256
    %v259 = vunpack.c.l.s4 1966171168
    %v260 = vunpack.c.0.s8 %v259
    %v261 = vlaneseq
    %v262 = vshrl.u32 %v261, 7
    %v263 = vsub.s32 %v260, %v262
    %v264 = vrot.slane %v248, %v263
    %v266 = vunpack.c.l.s4 1966171168
    %v267 = vunpack.c.0.s8 %v266
    %v268 = vlaneseq
    %v269 = vshrl.u32 %v268, 7
    %v270 = vsub.s32 %v267, %v269
    %v271 = vrot.slane %v249, %v270
    %v273 = vunpack.c.l.s4 1966171168
    %v274 = vunpack.c.0.s8 %v273
    %v275 = vlaneseq
    %v276 = vshrl.u32 %v275, 7
    %v277 = vsub.s32 %v274, %v276
    %v278 = vrot.slane %v250, %v277
    %v279 = vcombine.high %v257, %v257
    %v280 = vcombine.high %v264, %v264
    %v281 = vcombine.high %v271, %v271
    %v282 = vcombine.high %v278, %v278
    %v283 = vlaneseq
    %v284 = vshrl.u32 %v283, 7
    %v285 = vsub.s32 0, %v284
    %v286 = vrot.slane %v207, %v285
    %v287 = vlaneseq
    %v288 = vshrl.u32 %v287, 7
    %v289 = vsub.s32 1, %v288
    %v290 = vrot.slane %v207, %v289
    %v291 = vlaneseq
    %v292 = vshrl.u32 %v291, 7
    %v293 = vsub.s32 0, %v292
    %v294 = vrot.slane %v221, %v293
    %v295 = vlaneseq
    %v296 = vshrl.u32 %v295, 7
    %v297 = vsub.s32 1, %v296
    %v298 = vrot.slane %v221, %v297
    %v299 = vlaneseq
    %v300 = vshrl.u32 %v299, 7
    %v301 = vsub.s32 0, %v300
    %v302 = vrot.slane %v229, %v301
    %v303 = vlaneseq
    %v304 = vshrl.u32 %v303, 7
    %v305 = vsub.s32 1, %v304
    %v306 = vrot.slane %v229, %v305
    %v307 = vlaneseq
    %v308 = vshrl.u32 %v307, 7
    %v309 = vsub.s32 0, %v308
    %v310 = vrot.slane %v231, %v309
    %v311 = vlaneseq
    %v312 = vshrl.u32 %v311, 7
    %v313 = vsub.s32 1, %v312
    %v314 = vrot.slane %v231, %v313
    %v315 = vlaneseq
    %v316 = vshrl.u32 %v315, 7
    %v317 = vsub.s32 0, %v316
    %v318 = vrot.slane %v214, %v317
    %v319 = vlaneseq
    %v320 = vshrl.u32 %v319, 7
    %v321 = vsub.s32 1, %v320
    %v322 = vrot.slane %v214, %v321
    %v323 = vlaneseq
    %v324 = vshrl.u32 %v323, 7
    %v325 = vsub.s32 0, %v324
    %v326 = vrot.slane %v228, %v325
    %v327 = vlaneseq
    %v328 = vshrl.u32 %v327, 7
    %v329 = vsub.s32 1, %v328
    %v330 = vrot.slane %v228, %v329
    %v331 = vlaneseq
    %v332 = vshrl.u32 %v331, 7
    %v333 = vsub.s32 0, %v332
    %v334 = vrot.slane %v230, %v333
    %v335 = vlaneseq
    %v336 = vshrl.u32 %v335, 7
    %v337 = vsub.s32 1, %v336
    %v338 = vrot.slane %v230, %v337
    %v339 = vlaneseq
    %v340 = vshrl.u32 %v339, 7
    %v341 = vsub.s32 0, %v340
    %v342 = vrot.slane %v232, %v341
    %v343 = vlaneseq
    %v344 = vshrl.u32 %v343, 7
    %v345 = vsub.s32 1, %v344
    %v346 = vrot.slane %v232, %v345
    %v347 = vlaneseq
    %v348 = vshrl.u32 %v347, 7
    %v349 = vsub.s32 0, %v348
    %v350 = vrot.slane %v257, %v349
    %v351 = vlaneseq
    %v352 = vshrl.u32 %v351, 7
    %v353 = vsub.s32 1, %v352
    %v354 = vrot.slane %v257, %v353
    %v355 = vlaneseq
    %v356 = vshrl.u32 %v355, 7
    %v357 = vsub.s32 0, %v356
    %v358 = vrot.slane %v271, %v357
    %v359 = vlaneseq
    %v360 = vshrl.u32 %v359, 7
    %v361 = vsub.s32 1, %v360
    %v362 = vrot.slane %v271, %v361
    %v363 = vlaneseq
    %v364 = vshrl.u32 %v363, 7
    %v365 = vsub.s32 0, %v364
    %v366 = vrot.slane %v279, %v365
    %v367 = vlaneseq
    %v368 = vshrl.u32 %v367, 7
    %v369 = vsub.s32 1, %v368
    %v370 = vrot.slane %v279, %v369
    %v371 = vlaneseq
    %v372 = vshrl.u32 %v371, 7
    %v373 = vsub.s32 0, %v372
    %v374 = vrot.slane %v281, %v373
    %v375 = vlaneseq
    %v376 = vshrl.u32 %v375, 7
    %v377 = vsub.s32 1, %v376
    %v378 = vrot.slane %v281, %v377
    %v379 = vlaneseq
    %v380 = vshrl.u32 %v379, 7
    %v381 = vsub.s32 0, %v380
    %v382 = vrot.slane %v264, %v381
    %v383 = vlaneseq
    %v384 = vshrl.u32 %v383, 7
    %v385 = vsub.s32 1, %v384
    %v386 = vrot.slane %v264, %v385
    %v387 = vlaneseq
    %v388 = vshrl.u32 %v387, 7
    %v389 = vsub.s32 0, %v388
    %v390 = vrot.slane %v278, %v389
    %v391 = vlaneseq
    %v392 = vshrl.u32 %v391, 7
    %v393 = vsub.s32 1, %v392
    %v394 = vrot.slane %v278, %v393
    %v395 = vlaneseq
    %v396 = vshrl.u32 %v395, 7
    %v397 = vsub.s32 0, %v396
    %v398 = vrot.slane %v280, %v397
    %v399 = vlaneseq
    %v400 = vshrl.u32 %v399, 7
    %v401 = vsub.s32 1, %v400
    %v402 = vrot.slane %v280, %v401
    %v403 = vlaneseq
    %v404 = vshrl.u32 %v403, 7
    %v405 = vsub.s32 0, %v404
    %v406 = vrot.slane %v282, %v405
    %v407 = vlaneseq
    %v408 = vshrl.u32 %v407, 7
    %v409 = vsub.s32 1, %v408
    %v410 = vrot.slane %v282, %v409
    %v443 = vadd.f32 %v286, %v128
    %v444 = vadd.f32 %v290, %v130
    %v445 = vadd.f32 %v286, %v132
    %v446 = vadd.f32 %v290, %v134
    %v447 = vadd.f32 %v294, %v128
    %v448 = vadd.f32 %v298, %v130
    %v449 = vadd.f32 %v294, %v132
    %v450 = vadd.f32 %v298, %v134
    %v451 = vadd.f32 %v302, %v128
    %v452 = vadd.f32 %v306, %v130
    %v453 = vadd.f32 %v302, %v132
    %v454 = vadd.f32 %v306, %v134
    %v455 = vadd.f32 %v310, %v128
    %v456 = vadd.f32 %v314, %v130
    %v457 = vadd.f32 %v310, %v132
    %v458 = vadd.f32 %v314, %v134
    %v459 = vadd.f32 %v318, %v128
    %v460 = vadd.f32 %v322, %v130
    %v461 = vadd.f32 %v318, %v132
    %v462 = vadd.f32 %v322, %v134
    %v463 = vadd.f32 %v326, %v128
    %v464 = vadd.f32 %v330, %v130
    %v465 = vadd.f32 %v326, %v132
    %v466 = vadd.f32 %v330, %v134
    %v467 = vadd.f32 %v334, %v128
    %v468 = vadd.f32 %v338, %v130
    %v469 = vadd.f32 %v334, %v132
    %v470 = vadd.f32 %v338, %v134
    %v471 = vadd.f32 %v342, %v128
    %v472 = vadd.f32 %v346, %v130
    %v473 = vadd.f32 %v342, %v132
    %v474 = vadd.f32 %v346, %v134
    %v475 = vadd.f32 %v350, %v128
    %v476 = vadd.f32 %v354, %v130
    %v477 = vadd.f32 %v350, %v132
    %v478 = vadd.f32 %v354, %v134
    %v479 = vadd.f32 %v358, %v128
    %v480 = vadd.f32 %v362, %v130
    %v481 = vadd.f32 %v358, %v132
    %v482 = vadd.f32 %v362, %v134
    %v483 = vadd.f32 %v366, %v128
    %v484 = vadd.f32 %v370, %v130
    %v485 = vadd.f32 %v366, %v132
    %v486 = vadd.f32 %v370, %v134
    %v487 = vadd.f32 %v374, %v128
    %v488 = vadd.f32 %v378, %v130
    %v489 = vadd.f32 %v374, %v132
    %v490 = vadd.f32 %v378, %v134
    %v491 = vadd.f32 %v382, %v128
    %v492 = vadd.f32 %v386, %v130
    %v493 = vadd.f32 %v382, %v132
    %v494 = vadd.f32 %v386, %v134
    %v495 = vadd.f32 %v390, %v128
    %v496 = vadd.f32 %v394, %v130
    %v497 = vadd.f32 %v390, %v132
    %v498 = vadd.f32 %v394, %v134
    %v499 = vadd.f32 %v398, %v128
    %v500 = vadd.f32 %v402, %v130
    %v501 = vadd.f32 %v398, %v132
    %v502 = vadd.f32 %v402, %v134
    %v503 = vadd.f32 %v406, %v128
    %v504 = vadd.f32 %v410, %v130
    %v505 = vadd.f32 %v406, %v132
    %v506 = vadd.f32 %v410, %v134
    %vm507 = vcmp.gt.f32.partialorder %v443, 0.0
    %vm508 = vcmp.gt.f32.partialorder %v444, 0.0
    %vm509 = vcmp.gt.f32.partialorder %v445, 0.0
    %vm510 = vcmp.gt.f32.partialorder %v446, 0.0
    %vm511 = vcmp.gt.f32.partialorder %v447, 0.0
    %vm512 = vcmp.gt.f32.partialorder %v448, 0.0
    %vm513 = vcmp.gt.f32.partialorder %v449, 0.0
    %vm514 = vcmp.gt.f32.partialorder %v450, 0.0
    %vm515 = vcmp.gt.f32.partialorder %v451, 0.0
    %vm516 = vcmp.gt.f32.partialorder %v452, 0.0
    %vm517 = vcmp.gt.f32.partialorder %v453, 0.0
    %vm518 = vcmp.gt.f32.partialorder %v454, 0.0
    %vm519 = vcmp.gt.f32.partialorder %v455, 0.0
    %vm520 = vcmp.gt.f32.partialorder %v456, 0.0
    %vm521 = vcmp.gt.f32.partialorder %v457, 0.0
    %vm522 = vcmp.gt.f32.partialorder %v458, 0.0
    %vm523 = vcmp.gt.f32.partialorder %v459, 0.0
    %vm524 = vcmp.gt.f32.partialorder %v460, 0.0
    %vm525 = vcmp.gt.f32.partialorder %v461, 0.0
    %vm526 = vcmp.gt.f32.partialorder %v462, 0.0
    %vm527 = vcmp.gt.f32.partialorder %v463, 0.0
    %vm528 = vcmp.gt.f32.partialorder %v464, 0.0
    %vm529 = vcmp.gt.f32.partialorder %v465, 0.0
    %vm530 = vcmp.gt.f32.partialorder %v466, 0.0
    %vm531 = vcmp.gt.f32.partialorder %v467, 0.0
    %vm532 = vcmp.gt.f32.partialorder %v468, 0.0
    %vm533 = vcmp.gt.f32.partialorder %v469, 0.0
    %vm534 = vcmp.gt.f32.partialorder %v470, 0.0
    %vm535 = vcmp.gt.f32.partialorder %v471, 0.0
    %vm536 = vcmp.gt.f32.partialorder %v472, 0.0
    %vm537 = vcmp.gt.f32.partialorder %v473, 0.0
    %vm538 = vcmp.gt.f32.partialorder %v474, 0.0
    %vm539 = vcmp.gt.f32.partialorder %v475, 0.0
    %vm540 = vcmp.gt.f32.partialorder %v476, 0.0
    %vm541 = vcmp.gt.f32.partialorder %v477, 0.0
    %vm542 = vcmp.gt.f32.partialorder %v478, 0.0
    %vm543 = vcmp.gt.f32.partialorder %v479, 0.0
    %vm544 = vcmp.gt.f32.partialorder %v480, 0.0
    %vm545 = vcmp.gt.f32.partialorder %v481, 0.0
    %vm546 = vcmp.gt.f32.partialorder %v482, 0.0
    %vm547 = vcmp.gt.f32.partialorder %v483, 0.0
    %vm548 = vcmp.gt.f32.partialorder %v484, 0.0
    %vm549 = vcmp.gt.f32.partialorder %v485, 0.0
    %vm550 = vcmp.gt.f32.partialorder %v486, 0.0
    %vm551 = vcmp.gt.f32.partialorder %v487, 0.0
    %vm552 = vcmp.gt.f32.partialorder %v488, 0.0
    %vm553 = vcmp.gt.f32.partialorder %v489, 0.0
    %vm554 = vcmp.gt.f32.partialorder %v490, 0.0
    %vm555 = vcmp.gt.f32.partialorder %v491, 0.0
    %vm556 = vcmp.gt.f32.partialorder %v492, 0.0
    %vm557 = vcmp.gt.f32.partialorder %v493, 0.0
    %vm558 = vcmp.gt.f32.partialorder %v494, 0.0
    %vm559 = vcmp.gt.f32.partialorder %v495, 0.0
    %vm560 = vcmp.gt.f32.partialorder %v496, 0.0
    %vm561 = vcmp.gt.f32.partialorder %v497, 0.0
    %vm562 = vcmp.gt.f32.partialorder %v498, 0.0
    %vm563 = vcmp.gt.f32.partialorder %v499, 0.0
    %vm564 = vcmp.gt.f32.partialorder %v500, 0.0
    %vm565 = vcmp.gt.f32.partialorder %v501, 0.0
    %vm566 = vcmp.gt.f32.partialorder %v502, 0.0
    %vm567 = vcmp.gt.f32.partialorder %v503, 0.0
    %vm568 = vcmp.gt.f32.partialorder %v504, 0.0
    %vm569 = vcmp.gt.f32.partialorder %v505, 0.0
    %vm570 = vcmp.gt.f32.partialorder %v506, 0.0
    %v571 = vmul.f32 %v443, 0.2
    %v572 = vmul.f32 %v444, 0.2
    %v573 = vmul.f32 %v445, 0.2
    %v574 = vmul.f32 %v446, 0.2
    %v575 = vmul.f32 %v447, 0.2
    %v576 = vmul.f32 %v448, 0.2
    %v577 = vmul.f32 %v449, 0.2
    %v578 = vmul.f32 %v450, 0.2
    %v579 = vmul.f32 %v451, 0.2
    %v580 = vmul.f32 %v452, 0.2
    %v581 = vmul.f32 %v453, 0.2
    %v582 = vmul.f32 %v454, 0.2
    %v583 = vmul.f32 %v455, 0.2
    %v584 = vmul.f32 %v456, 0.2
    %v585 = vmul.f32 %v457, 0.2
    %v586 = vmul.f32 %v458, 0.2
    %v587 = vmul.f32 %v459, 0.2
    %v588 = vmul.f32 %v460, 0.2
    %v589 = vmul.f32 %v461, 0.2
    %v590 = vmul.f32 %v462, 0.2
    %v591 = vmul.f32 %v463, 0.2
    %v592 = vmul.f32 %v464, 0.2
    %v593 = vmul.f32 %v465, 0.2
    %v594 = vmul.f32 %v466, 0.2
    %v595 = vmul.f32 %v467, 0.2
    %v596 = vmul.f32 %v468, 0.2
    %v597 = vmul.f32 %v469, 0.2
    %v598 = vmul.f32 %v470, 0.2
    %v599 = vmul.f32 %v471, 0.2
    %v600 = vmul.f32 %v472, 0.2
    %v601 = vmul.f32 %v473, 0.2
    %v602 = vmul.f32 %v474, 0.2
    %v603 = vmul.f32 %v475, 0.2
    %v604 = vmul.f32 %v476, 0.2
    %v605 = vmul.f32 %v477, 0.2
    %v606 = vmul.f32 %v478, 0.2
    %v607 = vmul.f32 %v479, 0.2
    %v608 = vmul.f32 %v480, 0.2
    %v609 = vmul.f32 %v481, 0.2
    %v610 = vmul.f32 %v482, 0.2
    %v611 = vmul.f32 %v483, 0.2
    %v612 = vmul.f32 %v484, 0.2
    %v613 = vmul.f32 %v485, 0.2
    %v614 = vmul.f32 %v486, 0.2
    %v615 = vmul.f32 %v487, 0.2
    %v616 = vmul.f32 %v488, 0.2
    %v617 = vmul.f32 %v489, 0.2
    %v618 = vmul.f32 %v490, 0.2
    %v619 = vmul.f32 %v491, 0.2
    %v620 = vmul.f32 %v492, 0.2
    %v621 = vmul.f32 %v493, 0.2
    %v622 = vmul.f32 %v494, 0.2
    %v623 = vmul.f32 %v495, 0.2
    %v624 = vmul.f32 %v496, 0.2
    %v625 = vmul.f32 %v497, 0.2
    %v626 = vmul.f32 %v498, 0.2
    %v627 = vmul.f32 %v499, 0.2
    %v628 = vmul.f32 %v500, 0.2
    %v629 = vmul.f32 %v501, 0.2
    %v630 = vmul.f32 %v502, 0.2
    %v631 = vmul.f32 %v503, 0.2
    %v632 = vmul.f32 %v504, 0.2
    %v633 = vmul.f32 %v505, 0.2
    %v634 = vmul.f32 %v506, 0.2
    %v635 = vsel %vm507, %v443, %v571
    %v636 = vsel %vm508, %v444, %v572
    %v637 = vsel %vm509, %v445, %v573
    %v638 = vsel %vm510, %v446, %v574
    %v639 = vsel %vm511, %v447, %v575
    %v640 = vsel %vm512, %v448, %v576
    %v641 = vsel %vm513, %v449, %v577
    %v642 = vsel %vm514, %v450, %v578
    %v643 = vsel %vm515, %v451, %v579
    %v644 = vsel %vm516, %v452, %v580
    %v645 = vsel %vm517, %v453, %v581
    %v646 = vsel %vm518, %v454, %v582
    %v647 = vsel %vm519, %v455, %v583
    %v648 = vsel %vm520, %v456, %v584
    %v649 = vsel %vm521, %v457, %v585
    %v650 = vsel %vm522, %v458, %v586
    %v651 = vsel %vm523, %v459, %v587
    %v652 = vsel %vm524, %v460, %v588
    %v653 = vsel %vm525, %v461, %v589
    %v654 = vsel %vm526, %v462, %v590
    %v655 = vsel %vm527, %v463, %v591
    %v656 = vsel %vm528, %v464, %v592
    %v657 = vsel %vm529, %v465, %v593
    %v658 = vsel %vm530, %v466, %v594
    %v659 = vsel %vm531, %v467, %v595
    %v660 = vsel %vm532, %v468, %v596
    %v661 = vsel %vm533, %v469, %v597
    %v662 = vsel %vm534, %v470, %v598
    %v663 = vsel %vm535, %v471, %v599
    %v664 = vsel %vm536, %v472, %v600
    %v665 = vsel %vm537, %v473, %v601
    %v666 = vsel %vm538, %v474, %v602
    %v667 = vsel %vm539, %v475, %v603
    %v668 = vsel %vm540, %v476, %v604
    %v669 = vsel %vm541, %v477, %v605
    %v670 = vsel %vm542, %v478, %v606
    %v671 = vsel %vm543, %v479, %v607
    %v672 = vsel %vm544, %v480, %v608
    %v673 = vsel %vm545, %v481, %v609
    %v674 = vsel %vm546, %v482, %v610
    %v675 = vsel %vm547, %v483, %v611
    %v676 = vsel %vm548, %v484, %v612
    %v677 = vsel %vm549, %v485, %v613
    %v678 = vsel %vm550, %v486, %v614
    %v679 = vsel %vm551, %v487, %v615
    %v680 = vsel %vm552, %v488, %v616
    %v681 = vsel %vm553, %v489, %v617
    %v682 = vsel %vm554, %v490, %v618
    %v683 = vsel %vm555, %v491, %v619
    %v684 = vsel %vm556, %v492, %v620
    %v685 = vsel %vm557, %v493, %v621
    %v686 = vsel %vm558, %v494, %v622
    %v687 = vsel %vm559, %v495, %v623
    %v688 = vsel %vm560, %v496, %v624
    %v689 = vsel %vm561, %v497, %v625
    %v690 = vsel %vm562, %v498, %v626
    %v691 = vsel %vm563, %v499, %v627
    %v692 = vsel %vm564, %v500, %v628
    %v693 = vsel %vm565, %v501, %v629
    %v694 = vsel %vm566, %v502, %v630
    %v695 = vsel %vm567, %v503, %v631
    %v696 = vsel %vm568, %v504, %v632
    %v697 = vsel %vm569, %v505, %v633
    %v698 = vsel %vm570, %v506, %v634
    %v700 = vlaneseq
    %v701 = vshrl.u32 %v700, 7
    %v702 = vsub.s32 0, %v701
    %v703 = vrot.slane %v82, %v702
    %v704 = vlaneseq
    %v705 = vshrl.u32 %v704, 7
    %v706 = vsub.s32 1, %v705
    %v707 = vrot.slane %v82, %v706
    %v710 = vmul.f32 %v635, %v703
    %v711 = vmul.f32 %v636, %v707
    %v712 = vmul.f32 %v637, %v703
    %v713 = vmul.f32 %v638, %v707
    %v714 = vmul.f32 %v639, %v703
    %v715 = vmul.f32 %v640, %v707
    %v716 = vmul.f32 %v641, %v703
    %v717 = vmul.f32 %v642, %v707
    %v718 = vmul.f32 %v643, %v703
    %v719 = vmul.f32 %v644, %v707
    %v720 = vmul.f32 %v645, %v703
    %v721 = vmul.f32 %v646, %v707
    %v722 = vmul.f32 %v647, %v703
    %v723 = vmul.f32 %v648, %v707
    %v724 = vmul.f32 %v649, %v703
    %v725 = vmul.f32 %v650, %v707
    %v726 = vmul.f32 %v651, %v703
    %v727 = vmul.f32 %v652, %v707
    %v728 = vmul.f32 %v653, %v703
    %v729 = vmul.f32 %v654, %v707
    %v730 = vmul.f32 %v655, %v703
    %v731 = vmul.f32 %v656, %v707
    %v732 = vmul.f32 %v657, %v703
    %v733 = vmul.f32 %v658, %v707
    %v734 = vmul.f32 %v659, %v703
    %v735 = vmul.f32 %v660, %v707
    %v736 = vmul.f32 %v661, %v703
    %v737 = vmul.f32 %v662, %v707
    %v738 = vmul.f32 %v663, %v703
    %v739 = vmul.f32 %v664, %v707
    %v740 = vmul.f32 %v665, %v703
    %v741 = vmul.f32 %v666, %v707
    %v742 = vmul.f32 %v667, %v703
    %v743 = vmul.f32 %v668, %v707
    %v744 = vmul.f32 %v669, %v703
    %v745 = vmul.f32 %v670, %v707
    %v746 = vmul.f32 %v671, %v703
    %v747 = vmul.f32 %v672, %v707
    %v748 = vmul.f32 %v673, %v703
    %v749 = vmul.f32 %v674, %v707
    %v750 = vmul.f32 %v675, %v703
    %v751 = vmul.f32 %v676, %v707
    %v752 = vmul.f32 %v677, %v703
    %v753 = vmul.f32 %v678, %v707
    %v754 = vmul.f32 %v679, %v703
    %v755 = vmul.f32 %v680, %v707
    %v756 = vmul.f32 %v681, %v703
    %v757 = vmul.f32 %v682, %v707
    %v758 = vmul.f32 %v683, %v703
    %v759 = vmul.f32 %v684, %v707
    %v760 = vmul.f32 %v685, %v703
    %v761 = vmul.f32 %v686, %v707
    %v762 = vmul.f32 %v687, %v703
    %v763 = vmul.f32 %v688, %v707
    %v764 = vmul.f32 %v689, %v703
    %v765 = vmul.f32 %v690, %v707
    %v766 = vmul.f32 %v691, %v703
    %v767 = vmul.f32 %v692, %v707
    %v768 = vmul.f32 %v693, %v703
    %v769 = vmul.f32 %v694, %v707
    %v770 = vmul.f32 %v695, %v703
    %v771 = vmul.f32 %v696, %v707
    %v772 = vmul.f32 %v697, %v703
    %v773 = vmul.f32 %v698, %v707
    %774 = vadd.xlane.f32.xlu0 %v710
    %v775 = vpop.xlane.xlu0 %774
    %776 = vadd.xlane.f32.xlu0 %v712
    %v777 = vpop.xlane.xlu0 %776
    %778 = vadd.xlane.f32.xlu0 %v714
    %v779 = vpop.xlane.xlu0 %778
    %780 = vadd.xlane.f32.xlu0 %v716
    %v781 = vpop.xlane.xlu0 %780
    %782 = vadd.xlane.f32.xlu0 %v718
    %v783 = vpop.xlane.xlu0 %782
    %784 = vadd.xlane.f32.xlu0 %v720
    %v785 = vpop.xlane.xlu0 %784
    %786 = vadd.xlane.f32.xlu0 %v722
    %v787 = vpop.xlane.xlu0 %786
    %788 = vadd.xlane.f32.xlu0 %v724
    %v789 = vpop.xlane.xlu0 %788
    %790 = vadd.xlane.f32.xlu0 %v726
    %v791 = vpop.xlane.xlu0 %790
    %792 = vadd.xlane.f32.xlu0 %v728
    %v793 = vpop.xlane.xlu0 %792
    %794 = vadd.xlane.f32.xlu0 %v730
    %v795 = vpop.xlane.xlu0 %794
    %796 = vadd.xlane.f32.xlu0 %v732
    %v797 = vpop.xlane.xlu0 %796
    %798 = vadd.xlane.f32.xlu0 %v734
    %v799 = vpop.xlane.xlu0 %798
    %800 = vadd.xlane.f32.xlu0 %v736
    %v801 = vpop.xlane.xlu0 %800
    %802 = vadd.xlane.f32.xlu0 %v738
    %v803 = vpop.xlane.xlu0 %802
    %804 = vadd.xlane.f32.xlu0 %v740
    %v805 = vpop.xlane.xlu0 %804
    %806 = vadd.xlane.f32.xlu0 %v742
    %v807 = vpop.xlane.xlu0 %806
    %808 = vadd.xlane.f32.xlu0 %v744
    %v809 = vpop.xlane.xlu0 %808
    %810 = vadd.xlane.f32.xlu0 %v746
    %v811 = vpop.xlane.xlu0 %810
    %812 = vadd.xlane.f32.xlu0 %v748
    %v813 = vpop.xlane.xlu0 %812
    %814 = vadd.xlane.f32.xlu0 %v750
    %v815 = vpop.xlane.xlu0 %814
    %816 = vadd.xlane.f32.xlu0 %v752
    %v817 = vpop.xlane.xlu0 %816
    %818 = vadd.xlane.f32.xlu0 %v754
    %v819 = vpop.xlane.xlu0 %818
    %820 = vadd.xlane.f32.xlu0 %v756
    %v821 = vpop.xlane.xlu0 %820
    %822 = vadd.xlane.f32.xlu0 %v758
    %v823 = vpop.xlane.xlu0 %822
    %824 = vadd.xlane.f32.xlu0 %v760
    %v825 = vpop.xlane.xlu0 %824
    %826 = vadd.xlane.f32.xlu0 %v762
    %v827 = vpop.xlane.xlu0 %826
    %828 = vadd.xlane.f32.xlu0 %v764
    %v829 = vpop.xlane.xlu0 %828
    %830 = vadd.xlane.f32.xlu0 %v766
    %v831 = vpop.xlane.xlu0 %830
    %832 = vadd.xlane.f32.xlu0 %v768
    %v833 = vpop.xlane.xlu0 %832
    %834 = vadd.xlane.f32.xlu0 %v770
    %v835 = vpop.xlane.xlu0 %834
    %836 = vadd.xlane.f32.xlu0 %v772
    %v837 = vpop.xlane.xlu0 %836
    %v840 = vlaneseq
    %v841 = vshrl.u32 %v840, 7
    %v842 = vsub.s32 0, %v841
    %v843 = vrot.slane %v70, %v842
    %845 = vbcast.lane.b32.xlu0 %v843, 256
    %v846 = vpop.permute.xlu0 %845
    %s848 = sor.u32 256, 8
    %849 = vbcast.lane.b32.xlu0 %v843, %s848
    %v850 = vpop.permute.xlu0 %849
    %v851 = vlaneseq
    %v852 = vshrl.u32 %v851, 7
    %v853 = vsub.s32 1, %v852
    %v854 = vrot.slane %v70, %v853
    %856 = vbcast.lane.b32.xlu0 %v854, 256
    %v857 = vpop.permute.xlu0 %856
    %s859 = sor.u32 256, 8
    %860 = vbcast.lane.b32.xlu0 %v854, %s859
    %v861 = vpop.permute.xlu0 %860
    %v862 = vlaneseq
    %v863 = vshrl.u32 %v862, 7
    %v864 = vsub.s32 2, %v863
    %v865 = vrot.slane %v70, %v864
    %867 = vbcast.lane.b32.xlu0 %v865, 256
    %v868 = vpop.permute.xlu0 %867
    %s870 = sor.u32 256, 8
    %871 = vbcast.lane.b32.xlu0 %v865, %s870
    %v872 = vpop.permute.xlu0 %871
    %v873 = vlaneseq
    %v874 = vshrl.u32 %v873, 7
    %v875 = vsub.s32 3, %v874
    %v876 = vrot.slane %v70, %v875
    %878 = vbcast.lane.b32.xlu0 %v876, 256
    %v879 = vpop.permute.xlu0 %878
    %s881 = sor.u32 256, 8
    %882 = vbcast.lane.b32.xlu0 %v876, %s881
    %v883 = vpop.permute.xlu0 %882
    %v884 = vlaneseq
    %v885 = vshrl.u32 %v884, 7
    %v886 = vsub.s32 4, %v885
    %v887 = vrot.slane %v70, %v886
    %889 = vbcast.lane.b32.xlu0 %v887, 256
    %v890 = vpop.permute.xlu0 %889
    %s892 = sor.u32 256, 8
    %893 = vbcast.lane.b32.xlu0 %v887, %s892
    %v894 = vpop.permute.xlu0 %893
    %v895 = vlaneseq
    %v896 = vshrl.u32 %v895, 7
    %v897 = vsub.s32 5, %v896
    %v898 = vrot.slane %v70, %v897
    %900 = vbcast.lane.b32.xlu0 %v898, 256
    %v901 = vpop.permute.xlu0 %900
    %s903 = sor.u32 256, 8
    %904 = vbcast.lane.b32.xlu0 %v898, %s903
    %v905 = vpop.permute.xlu0 %904
    %v906 = vlaneseq
    %v907 = vshrl.u32 %v906, 7
    %v908 = vsub.s32 6, %v907
    %v909 = vrot.slane %v70, %v908
    %911 = vbcast.lane.b32.xlu0 %v909, 256
    %v912 = vpop.permute.xlu0 %911
    %s914 = sor.u32 256, 8
    %915 = vbcast.lane.b32.xlu0 %v909, %s914
    %v916 = vpop.permute.xlu0 %915
    %v917 = vlaneseq
    %v918 = vshrl.u32 %v917, 7
    %v919 = vsub.s32 7, %v918
    %v920 = vrot.slane %v70, %v919
    %922 = vbcast.lane.b32.xlu0 %v920, 256
    %v923 = vpop.permute.xlu0 %922
    %s925 = sor.u32 256, 8
    %926 = vbcast.lane.b32.xlu0 %v920, %s925
    %v927 = vpop.permute.xlu0 %926
    %v928 = vlaneseq
    %v929 = vshrl.u32 %v928, 7
    %v930 = vsub.s32 0, %v929
    %v931 = vrot.slane %v71, %v930
    %933 = vbcast.lane.b32.xlu0 %v931, 256
    %v934 = vpop.permute.xlu0 %933
    %s936 = sor.u32 256, 8
    %937 = vbcast.lane.b32.xlu0 %v931, %s936
    %v938 = vpop.permute.xlu0 %937
    %v939 = vlaneseq
    %v940 = vshrl.u32 %v939, 7
    %v941 = vsub.s32 1, %v940
    %v942 = vrot.slane %v71, %v941
    %944 = vbcast.lane.b32.xlu0 %v942, 256
    %v945 = vpop.permute.xlu0 %944
    %s947 = sor.u32 256, 8
    %948 = vbcast.lane.b32.xlu0 %v942, %s947
    %v949 = vpop.permute.xlu0 %948
    %v950 = vlaneseq
    %v951 = vshrl.u32 %v950, 7
    %v952 = vsub.s32 2, %v951
    %v953 = vrot.slane %v71, %v952
    %955 = vbcast.lane.b32.xlu0 %v953, 256
    %v956 = vpop.permute.xlu0 %955
    %s958 = sor.u32 256, 8
    %959 = vbcast.lane.b32.xlu0 %v953, %s958
    %v960 = vpop.permute.xlu0 %959
    %v961 = vlaneseq
    %v962 = vshrl.u32 %v961, 7
    %v963 = vsub.s32 3, %v962
    %v964 = vrot.slane %v71, %v963
    %966 = vbcast.lane.b32.xlu0 %v964, 256
    %v967 = vpop.permute.xlu0 %966
    %s969 = sor.u32 256, 8
    %970 = vbcast.lane.b32.xlu0 %v964, %s969
    %v971 = vpop.permute.xlu0 %970
    %v972 = vlaneseq
    %v973 = vshrl.u32 %v972, 7
    %v974 = vsub.s32 4, %v973
    %v975 = vrot.slane %v71, %v974
    %977 = vbcast.lane.b32.xlu0 %v975, 256
    %v978 = vpop.permute.xlu0 %977
    %s980 = sor.u32 256, 8
    %981 = vbcast.lane.b32.xlu0 %v975, %s980
    %v982 = vpop.permute.xlu0 %981
    %v983 = vlaneseq
    %v984 = vshrl.u32 %v983, 7
    %v985 = vsub.s32 5, %v984
    %v986 = vrot.slane %v71, %v985
    %988 = vbcast.lane.b32.xlu0 %v986, 256
    %v989 = vpop.permute.xlu0 %988
    %s991 = sor.u32 256, 8
    %992 = vbcast.lane.b32.xlu0 %v986, %s991
    %v993 = vpop.permute.xlu0 %992
    %v994 = vlaneseq
    %v995 = vshrl.u32 %v994, 7
    %v996 = vsub.s32 6, %v995
    %v997 = vrot.slane %v71, %v996
    %999 = vbcast.lane.b32.xlu0 %v997, 256
    %v1000 = vpop.permute.xlu0 %999
    %s1002 = sor.u32 256, 8
    %1003 = vbcast.lane.b32.xlu0 %v997, %s1002
    %v1004 = vpop.permute.xlu0 %1003
    %v1005 = vlaneseq
    %v1006 = vshrl.u32 %v1005, 7
    %v1007 = vsub.s32 7, %v1006
    %v1008 = vrot.slane %v71, %v1007
    %1010 = vbcast.lane.b32.xlu0 %v1008, 256
    %v1011 = vpop.permute.xlu0 %1010
    %s1013 = sor.u32 256, 8
    %1014 = vbcast.lane.b32.xlu0 %v1008, %s1013
    %v1015 = vpop.permute.xlu0 %1014
    %v1048 = vadd.f32 %v775, %v846
    %v1049 = vadd.f32 %v777, %v850
    %v1050 = vadd.f32 %v779, %v857
    %v1051 = vadd.f32 %v781, %v861
    %v1052 = vadd.f32 %v783, %v868
    %v1053 = vadd.f32 %v785, %v872
    %v1054 = vadd.f32 %v787, %v879
    %v1055 = vadd.f32 %v789, %v883
    %v1056 = vadd.f32 %v791, %v890
    %v1057 = vadd.f32 %v793, %v894
    %v1058 = vadd.f32 %v795, %v901
    %v1059 = vadd.f32 %v797, %v905
    %v1060 = vadd.f32 %v799, %v912
    %v1061 = vadd.f32 %v801, %v916
    %v1062 = vadd.f32 %v803, %v923
    %v1063 = vadd.f32 %v805, %v927
    %v1064 = vadd.f32 %v807, %v934
    %v1065 = vadd.f32 %v809, %v938
    %v1066 = vadd.f32 %v811, %v945
    %v1067 = vadd.f32 %v813, %v949
    %v1068 = vadd.f32 %v815, %v956
    %v1069 = vadd.f32 %v817, %v960
    %v1070 = vadd.f32 %v819, %v967
    %v1071 = vadd.f32 %v821, %v971
    %v1072 = vadd.f32 %v823, %v978
    %v1073 = vadd.f32 %v825, %v982
    %v1074 = vadd.f32 %v827, %v989
    %v1075 = vadd.f32 %v829, %v993
    %v1076 = vadd.f32 %v831, %v1000
    %v1077 = vadd.f32 %v833, %v1004
    %v1078 = vadd.f32 %v835, %v1011
    %v1079 = vadd.f32 %v837, %v1015
    %1112 = vset.pattern.permute.xlu0 0
    %1113 = vperm.xlu0 %1112, %v1048
    %v1114 = vpop.permute.xlu0 %1113
    %1115 = vset.pattern.permute.xlu0 0
    %1116 = vperm.xlu0 %1115, %v1049
    %v1117 = vpop.permute.xlu0 %1116
    %1118 = vset.pattern.permute.xlu0 0
    %1119 = vperm.xlu0 %1118, %v1050
    %v1120 = vpop.permute.xlu0 %1119
    %1121 = vset.pattern.permute.xlu0 0
    %1122 = vperm.xlu0 %1121, %v1051
    %v1123 = vpop.permute.xlu0 %1122
    %1124 = vset.pattern.permute.xlu0 0
    %1125 = vperm.xlu0 %1124, %v1052
    %v1126 = vpop.permute.xlu0 %1125
    %1127 = vset.pattern.permute.xlu0 0
    %1128 = vperm.xlu0 %1127, %v1053
    %v1129 = vpop.permute.xlu0 %1128
    %1130 = vset.pattern.permute.xlu0 0
    %1131 = vperm.xlu0 %1130, %v1054
    %v1132 = vpop.permute.xlu0 %1131
    %1133 = vset.pattern.permute.xlu0 0
    %1134 = vperm.xlu0 %1133, %v1055
    %v1135 = vpop.permute.xlu0 %1134
    %1136 = vset.pattern.permute.xlu0 0
    %1137 = vperm.xlu0 %1136, %v1056
    %v1138 = vpop.permute.xlu0 %1137
    %1139 = vset.pattern.permute.xlu0 0
    %1140 = vperm.xlu0 %1139, %v1057
    %v1141 = vpop.permute.xlu0 %1140
    %1142 = vset.pattern.permute.xlu0 0
    %1143 = vperm.xlu0 %1142, %v1058
    %v1144 = vpop.permute.xlu0 %1143
    %1145 = vset.pattern.permute.xlu0 0
    %1146 = vperm.xlu0 %1145, %v1059
    %v1147 = vpop.permute.xlu0 %1146
    %1148 = vset.pattern.permute.xlu0 0
    %1149 = vperm.xlu0 %1148, %v1060
    %v1150 = vpop.permute.xlu0 %1149
    %1151 = vset.pattern.permute.xlu0 0
    %1152 = vperm.xlu0 %1151, %v1061
    %v1153 = vpop.permute.xlu0 %1152
    %1154 = vset.pattern.permute.xlu0 0
    %1155 = vperm.xlu0 %1154, %v1062
    %v1156 = vpop.permute.xlu0 %1155
    %1157 = vset.pattern.permute.xlu0 0
    %1158 = vperm.xlu0 %1157, %v1063
    %v1159 = vpop.permute.xlu0 %1158
    %1160 = vset.pattern.permute.xlu0 0
    %1161 = vperm.xlu0 %1160, %v1064
    %v1162 = vpop.permute.xlu0 %1161
    %1163 = vset.pattern.permute.xlu0 0
    %1164 = vperm.xlu0 %1163, %v1065
    %v1165 = vpop.permute.xlu0 %1164
    %1166 = vset.pattern.permute.xlu0 0
    %1167 = vperm.xlu0 %1166, %v1066
    %v1168 = vpop.permute.xlu0 %1167
    %1169 = vset.pattern.permute.xlu0 0
    %1170 = vperm.xlu0 %1169, %v1067
    %v1171 = vpop.permute.xlu0 %1170
    %1172 = vset.pattern.permute.xlu0 0
    %1173 = vperm.xlu0 %1172, %v1068
    %v1174 = vpop.permute.xlu0 %1173
    %1175 = vset.pattern.permute.xlu0 0
    %1176 = vperm.xlu0 %1175, %v1069
    %v1177 = vpop.permute.xlu0 %1176
    %1178 = vset.pattern.permute.xlu0 0
    %1179 = vperm.xlu0 %1178, %v1070
    %v1180 = vpop.permute.xlu0 %1179
    %1181 = vset.pattern.permute.xlu0 0
    %1182 = vperm.xlu0 %1181, %v1071
    %v1183 = vpop.permute.xlu0 %1182
    %1184 = vset.pattern.permute.xlu0 0
    %1185 = vperm.xlu0 %1184, %v1072
    %v1186 = vpop.permute.xlu0 %1185
    %1187 = vset.pattern.permute.xlu0 0
    %1188 = vperm.xlu0 %1187, %v1073
    %v1189 = vpop.permute.xlu0 %1188
    %1190 = vset.pattern.permute.xlu0 0
    %1191 = vperm.xlu0 %1190, %v1074
    %v1192 = vpop.permute.xlu0 %1191
    %1193 = vset.pattern.permute.xlu0 0
    %1194 = vperm.xlu0 %1193, %v1075
    %v1195 = vpop.permute.xlu0 %1194
    %1196 = vset.pattern.permute.xlu0 0
    %1197 = vperm.xlu0 %1196, %v1076
    %v1198 = vpop.permute.xlu0 %1197
    %1199 = vset.pattern.permute.xlu0 0
    %1200 = vperm.xlu0 %1199, %v1077
    %v1201 = vpop.permute.xlu0 %1200
    %1202 = vset.pattern.permute.xlu0 0
    %1203 = vperm.xlu0 %1202, %v1078
    %v1204 = vpop.permute.xlu0 %1203
    %1205 = vset.pattern.permute.xlu0 0
    %1206 = vperm.xlu0 %1205, %v1079
    %v1207 = vpop.permute.xlu0 %1206
    %v1208 = vlaneseq
    %v1209 = vand.u32 %v1208, 127
    %v1210 = vlaneseq
    %v1211 = vshrl.u32 %v1210, 7
    %v1212 = vsub.s32 %v1209, %v1211
    %v1213 = vrot.slane %v1114, %v1212
    %v1214 = vadd.s32 %v1209, 4294967288
    %v1215 = vlaneseq
    %v1216 = vshrl.u32 %v1215, 7
    %v1217 = vsub.s32 %v1214, %v1216
    %v1218 = vrot.slane %v1117, %v1217
    %vm1219 = vcmask 130112
    %v1220 = vsel %vm1219, %v1218, %v1213
    %v1221 = vlaneseq
    %v1222 = vshrl.u32 %v1221, 7
    %v1223 = vsub.s32 %v1209, %v1222
    %v1224 = vrot.slane %v1120, %v1223
    %v1225 = vlaneseq
    %v1226 = vshrl.u32 %v1225, 7
    %v1227 = vsub.s32 %v1214, %v1226
    %v1228 = vrot.slane %v1123, %v1227
    %v1229 = vsel %vm1219, %v1228, %v1224
    %v1230 = vlaneseq
    %v1231 = vshrl.u32 %v1230, 7
    %v1232 = vsub.s32 %v1209, %v1231
    %v1233 = vrot.slane %v1126, %v1232
    %v1234 = vlaneseq
    %v1235 = vshrl.u32 %v1234, 7
    %v1236 = vsub.s32 %v1214, %v1235
    %v1237 = vrot.slane %v1129, %v1236
    %v1238 = vsel %vm1219, %v1237, %v1233
    %v1239 = vlaneseq
    %v1240 = vshrl.u32 %v1239, 7
    %v1241 = vsub.s32 %v1209, %v1240
    %v1242 = vrot.slane %v1132, %v1241
    %v1243 = vlaneseq
    %v1244 = vshrl.u32 %v1243, 7
    %v1245 = vsub.s32 %v1214, %v1244
    %v1246 = vrot.slane %v1135, %v1245
    %v1247 = vsel %vm1219, %v1246, %v1242
    %v1248 = vlaneseq
    %v1249 = vshrl.u32 %v1248, 7
    %v1250 = vsub.s32 %v1209, %v1249
    %v1251 = vrot.slane %v1138, %v1250
    %v1252 = vlaneseq
    %v1253 = vshrl.u32 %v1252, 7
    %v1254 = vsub.s32 %v1214, %v1253
    %v1255 = vrot.slane %v1141, %v1254
    %v1256 = vsel %vm1219, %v1255, %v1251
    %v1257 = vlaneseq
    %v1258 = vshrl.u32 %v1257, 7
    %v1259 = vsub.s32 %v1209, %v1258
    %v1260 = vrot.slane %v1144, %v1259
    %v1261 = vlaneseq
    %v1262 = vshrl.u32 %v1261, 7
    %v1263 = vsub.s32 %v1214, %v1262
    %v1264 = vrot.slane %v1147, %v1263
    %v1265 = vsel %vm1219, %v1264, %v1260
    %v1266 = vlaneseq
    %v1267 = vshrl.u32 %v1266, 7
    %v1268 = vsub.s32 %v1209, %v1267
    %v1269 = vrot.slane %v1150, %v1268
    %v1270 = vlaneseq
    %v1271 = vshrl.u32 %v1270, 7
    %v1272 = vsub.s32 %v1214, %v1271
    %v1273 = vrot.slane %v1153, %v1272
    %v1274 = vsel %vm1219, %v1273, %v1269
    %v1275 = vlaneseq
    %v1276 = vshrl.u32 %v1275, 7
    %v1277 = vsub.s32 %v1209, %v1276
    %v1278 = vrot.slane %v1156, %v1277
    %v1279 = vlaneseq
    %v1280 = vshrl.u32 %v1279, 7
    %v1281 = vsub.s32 %v1214, %v1280
    %v1282 = vrot.slane %v1159, %v1281
    %v1283 = vsel %vm1219, %v1282, %v1278
    %v1284 = vlaneseq
    %v1285 = vshrl.u32 %v1284, 7
    %v1286 = vsub.s32 %v1209, %v1285
    %v1287 = vrot.slane %v1162, %v1286
    %v1288 = vlaneseq
    %v1289 = vshrl.u32 %v1288, 7
    %v1290 = vsub.s32 %v1214, %v1289
    %v1291 = vrot.slane %v1165, %v1290
    %v1292 = vsel %vm1219, %v1291, %v1287
    %v1293 = vlaneseq
    %v1294 = vshrl.u32 %v1293, 7
    %v1295 = vsub.s32 %v1209, %v1294
    %v1296 = vrot.slane %v1168, %v1295
    %v1297 = vlaneseq
    %v1298 = vshrl.u32 %v1297, 7
    %v1299 = vsub.s32 %v1214, %v1298
    %v1300 = vrot.slane %v1171, %v1299
    %v1301 = vsel %vm1219, %v1300, %v1296
    %v1302 = vlaneseq
    %v1303 = vshrl.u32 %v1302, 7
    %v1304 = vsub.s32 %v1209, %v1303
    %v1305 = vrot.slane %v1174, %v1304
    %v1306 = vlaneseq
    %v1307 = vshrl.u32 %v1306, 7
    %v1308 = vsub.s32 %v1214, %v1307
    %v1309 = vrot.slane %v1177, %v1308
    %v1310 = vsel %vm1219, %v1309, %v1305
    %v1311 = vlaneseq
    %v1312 = vshrl.u32 %v1311, 7
    %v1313 = vsub.s32 %v1209, %v1312
    %v1314 = vrot.slane %v1180, %v1313
    %v1315 = vlaneseq
    %v1316 = vshrl.u32 %v1315, 7
    %v1317 = vsub.s32 %v1214, %v1316
    %v1318 = vrot.slane %v1183, %v1317
    %v1319 = vsel %vm1219, %v1318, %v1314
    %v1320 = vlaneseq
    %v1321 = vshrl.u32 %v1320, 7
    %v1322 = vsub.s32 %v1209, %v1321
    %v1323 = vrot.slane %v1186, %v1322
    %v1324 = vlaneseq
    %v1325 = vshrl.u32 %v1324, 7
    %v1326 = vsub.s32 %v1214, %v1325
    %v1327 = vrot.slane %v1189, %v1326
    %v1328 = vsel %vm1219, %v1327, %v1323
    %v1329 = vlaneseq
    %v1330 = vshrl.u32 %v1329, 7
    %v1331 = vsub.s32 %v1209, %v1330
    %v1332 = vrot.slane %v1192, %v1331
    %v1333 = vlaneseq
    %v1334 = vshrl.u32 %v1333, 7
    %v1335 = vsub.s32 %v1214, %v1334
    %v1336 = vrot.slane %v1195, %v1335
    %v1337 = vsel %vm1219, %v1336, %v1332
    %v1338 = vlaneseq
    %v1339 = vshrl.u32 %v1338, 7
    %v1340 = vsub.s32 %v1209, %v1339
    %v1341 = vrot.slane %v1198, %v1340
    %v1342 = vlaneseq
    %v1343 = vshrl.u32 %v1342, 7
    %v1344 = vsub.s32 %v1214, %v1343
    %v1345 = vrot.slane %v1201, %v1344
    %v1346 = vsel %vm1219, %v1345, %v1341
    %v1347 = vlaneseq
    %v1348 = vshrl.u32 %v1347, 7
    %v1349 = vsub.s32 %v1209, %v1348
    %v1350 = vrot.slane %v1204, %v1349
    %v1351 = vlaneseq
    %v1352 = vshrl.u32 %v1351, 7
    %v1353 = vsub.s32 %v1214, %v1352
    %v1354 = vrot.slane %v1207, %v1353
    %v1355 = vsel %vm1219, %v1354, %v1350
    %vm1356 = vcmask 1041409
    %v1357 = vsel %vm1356, %v1229, %v1220
    %vm1358 = vcmask 1042434
    %v1359 = vsel %vm1358, %v1238, %v1357
    %vm1360 = vcmask 1043459
    %v1361 = vsel %vm1360, %v1247, %v1359
    %vm1362 = vcmask 1044484
    %v1363 = vsel %vm1362, %v1256, %v1361
    %vm1364 = vcmask 1045509
    %v1365 = vsel %vm1364, %v1265, %v1363
    %vm1366 = vcmask 1046534
    %v1367 = vsel %vm1366, %v1274, %v1365
    %vm1368 = vcmask 1047559
    %v1369 = vsel %vm1368, %v1283, %v1367
    %v1370 = vsel %vm1356, %v1301, %v1292
    %v1371 = vsel %vm1358, %v1310, %v1370
    %v1372 = vsel %vm1360, %v1319, %v1371
    %v1373 = vsel %vm1362, %v1328, %v1372
    %v1374 = vsel %vm1364, %v1337, %v1373
    %v1375 = vsel %vm1366, %v1346, %v1374
    %v1376 = vsel %vm1368, %v1355, %v1375
    %v1379 = vsel %vm89, %v1369, -inf
    %1380 = vmax.xlane.f32.xlu0 %v1379
    %v1381 = vpop.xlane.xlu0 %1380
    %v1382 = vsel %vm89, %v1376, -inf
    %1383 = vmax.xlane.f32.xlu0 %v1382
    %v1384 = vpop.xlane.xlu0 %1383
    %v1387 = vlaneseq
    %v1388 = vshrl.u32 %v1387, 7
    %v1389 = vsub.s32 0, %v1388
    %v1390 = vrot.slane %v1381, %v1389
    %v1391 = vlaneseq
    %v1392 = vshrl.u32 %v1391, 7
    %v1393 = vsub.s32 1, %v1392
    %v1394 = vrot.slane %v1381, %v1393
    %v1395 = vlaneseq
    %v1396 = vshrl.u32 %v1395, 7
    %v1397 = vsub.s32 2, %v1396
    %v1398 = vrot.slane %v1381, %v1397
    %v1399 = vlaneseq
    %v1400 = vshrl.u32 %v1399, 7
    %v1401 = vsub.s32 3, %v1400
    %v1402 = vrot.slane %v1381, %v1401
    %v1403 = vlaneseq
    %v1404 = vshrl.u32 %v1403, 7
    %v1405 = vsub.s32 4, %v1404
    %v1406 = vrot.slane %v1381, %v1405
    %v1407 = vlaneseq
    %v1408 = vshrl.u32 %v1407, 7
    %v1409 = vsub.s32 5, %v1408
    %v1410 = vrot.slane %v1381, %v1409
    %v1411 = vlaneseq
    %v1412 = vshrl.u32 %v1411, 7
    %v1413 = vsub.s32 6, %v1412
    %v1414 = vrot.slane %v1381, %v1413
    %v1415 = vlaneseq
    %v1416 = vshrl.u32 %v1415, 7
    %v1417 = vsub.s32 7, %v1416
    %v1418 = vrot.slane %v1381, %v1417
    %v1419 = vlaneseq
    %v1420 = vshrl.u32 %v1419, 7
    %v1421 = vsub.s32 0, %v1420
    %v1422 = vrot.slane %v1384, %v1421
    %v1423 = vlaneseq
    %v1424 = vshrl.u32 %v1423, 7
    %v1425 = vsub.s32 1, %v1424
    %v1426 = vrot.slane %v1384, %v1425
    %v1427 = vlaneseq
    %v1428 = vshrl.u32 %v1427, 7
    %v1429 = vsub.s32 2, %v1428
    %v1430 = vrot.slane %v1384, %v1429
    %v1431 = vlaneseq
    %v1432 = vshrl.u32 %v1431, 7
    %v1433 = vsub.s32 3, %v1432
    %v1434 = vrot.slane %v1384, %v1433
    %v1435 = vlaneseq
    %v1436 = vshrl.u32 %v1435, 7
    %v1437 = vsub.s32 4, %v1436
    %v1438 = vrot.slane %v1384, %v1437
    %v1439 = vlaneseq
    %v1440 = vshrl.u32 %v1439, 7
    %v1441 = vsub.s32 5, %v1440
    %v1442 = vrot.slane %v1384, %v1441
    %v1443 = vlaneseq
    %v1444 = vshrl.u32 %v1443, 7
    %v1445 = vsub.s32 6, %v1444
    %v1446 = vrot.slane %v1384, %v1445
    %v1447 = vlaneseq
    %v1448 = vshrl.u32 %v1447, 7
    %v1449 = vsub.s32 7, %v1448
    %v1450 = vrot.slane %v1384, %v1449
    %v1467 = vsub.f32 %v1048, %v1390
    %v1468 = vsub.f32 %v1049, %v1390
    %v1469 = vsub.f32 %v1050, %v1394
    %v1470 = vsub.f32 %v1051, %v1394
    %v1471 = vsub.f32 %v1052, %v1398
    %v1472 = vsub.f32 %v1053, %v1398
    %v1473 = vsub.f32 %v1054, %v1402
    %v1474 = vsub.f32 %v1055, %v1402
    %v1475 = vsub.f32 %v1056, %v1406
    %v1476 = vsub.f32 %v1057, %v1406
    %v1477 = vsub.f32 %v1058, %v1410
    %v1478 = vsub.f32 %v1059, %v1410
    %v1479 = vsub.f32 %v1060, %v1414
    %v1480 = vsub.f32 %v1061, %v1414
    %v1481 = vsub.f32 %v1062, %v1418
    %v1482 = vsub.f32 %v1063, %v1418
    %v1483 = vsub.f32 %v1064, %v1422
    %v1484 = vsub.f32 %v1065, %v1422
    %v1485 = vsub.f32 %v1066, %v1426
    %v1486 = vsub.f32 %v1067, %v1426
    %v1487 = vsub.f32 %v1068, %v1430
    %v1488 = vsub.f32 %v1069, %v1430
    %v1489 = vsub.f32 %v1070, %v1434
    %v1490 = vsub.f32 %v1071, %v1434
    %v1491 = vsub.f32 %v1072, %v1438
    %v1492 = vsub.f32 %v1073, %v1438
    %v1493 = vsub.f32 %v1074, %v1442
    %v1494 = vsub.f32 %v1075, %v1442
    %v1495 = vsub.f32 %v1076, %v1446
    %v1496 = vsub.f32 %v1077, %v1446
    %v1497 = vsub.f32 %v1078, %v1450
    %v1498 = vsub.f32 %v1079, %v1450
    %v1499 = vmul.f32 %v1467, 1.442695
    %v1500 = vpow.pop %v1499
    %v1501 = vmul.f32 %v1468, 1.442695
    %v1502 = vpow.pop %v1501
    %v1503 = vmul.f32 %v1469, 1.442695
    %v1504 = vpow.pop %v1503
    %v1505 = vmul.f32 %v1470, 1.442695
    %v1506 = vpow.pop %v1505
    %v1507 = vmul.f32 %v1471, 1.442695
    %v1508 = vpow.pop %v1507
    %v1509 = vmul.f32 %v1472, 1.442695
    %v1510 = vpow.pop %v1509
    %v1511 = vmul.f32 %v1473, 1.442695
    %v1512 = vpow.pop %v1511
    %v1513 = vmul.f32 %v1474, 1.442695
    %v1514 = vpow.pop %v1513
    %v1515 = vmul.f32 %v1475, 1.442695
    %v1516 = vpow.pop %v1515
    %v1517 = vmul.f32 %v1476, 1.442695
    %v1518 = vpow.pop %v1517
    %v1519 = vmul.f32 %v1477, 1.442695
    %v1520 = vpow.pop %v1519
    %v1521 = vmul.f32 %v1478, 1.442695
    %v1522 = vpow.pop %v1521
    %v1523 = vmul.f32 %v1479, 1.442695
    %v1524 = vpow.pop %v1523
    %v1525 = vmul.f32 %v1480, 1.442695
    %v1526 = vpow.pop %v1525
    %v1527 = vmul.f32 %v1481, 1.442695
    %v1528 = vpow.pop %v1527
    %v1529 = vmul.f32 %v1482, 1.442695
    %v1530 = vpow.pop %v1529
    %v1531 = vmul.f32 %v1483, 1.442695
    %v1532 = vpow.pop %v1531
    %v1533 = vmul.f32 %v1484, 1.442695
    %v1534 = vpow.pop %v1533
    %v1535 = vmul.f32 %v1485, 1.442695
    %v1536 = vpow.pop %v1535
    %v1537 = vmul.f32 %v1486, 1.442695
    %v1538 = vpow.pop %v1537
    %v1539 = vmul.f32 %v1487, 1.442695
    %v1540 = vpow.pop %v1539
    %v1541 = vmul.f32 %v1488, 1.442695
    %v1542 = vpow.pop %v1541
    %v1543 = vmul.f32 %v1489, 1.442695
    %v1544 = vpow.pop %v1543
    %v1545 = vmul.f32 %v1490, 1.442695
    %v1546 = vpow.pop %v1545
    %v1547 = vmul.f32 %v1491, 1.442695
    %v1548 = vpow.pop %v1547
    %v1549 = vmul.f32 %v1492, 1.442695
    %v1550 = vpow.pop %v1549
    %v1551 = vmul.f32 %v1493, 1.442695
    %v1552 = vpow.pop %v1551
    %v1553 = vmul.f32 %v1494, 1.442695
    %v1554 = vpow.pop %v1553
    %v1555 = vmul.f32 %v1495, 1.442695
    %v1556 = vpow.pop %v1555
    %v1557 = vmul.f32 %v1496, 1.442695
    %v1558 = vpow.pop %v1557
    %v1559 = vmul.f32 %v1497, 1.442695
    %v1560 = vpow.pop %v1559
    %v1561 = vmul.f32 %v1498, 1.442695
    %v1562 = vpow.pop %v1561
    %1595 = vset.pattern.permute.xlu0 0
    %1596 = vperm.xlu0 %1595, %v1500
    %v1597 = vpop.permute.xlu0 %1596
    %1598 = vset.pattern.permute.xlu0 0
    %1599 = vperm.xlu0 %1598, %v1502
    %v1600 = vpop.permute.xlu0 %1599
    %1601 = vset.pattern.permute.xlu0 0
    %1602 = vperm.xlu0 %1601, %v1504
    %v1603 = vpop.permute.xlu0 %1602
    %1604 = vset.pattern.permute.xlu0 0
    %1605 = vperm.xlu0 %1604, %v1506
    %v1606 = vpop.permute.xlu0 %1605
    %1607 = vset.pattern.permute.xlu0 0
    %1608 = vperm.xlu0 %1607, %v1508
    %v1609 = vpop.permute.xlu0 %1608
    %1610 = vset.pattern.permute.xlu0 0
    %1611 = vperm.xlu0 %1610, %v1510
    %v1612 = vpop.permute.xlu0 %1611
    %1613 = vset.pattern.permute.xlu0 0
    %1614 = vperm.xlu0 %1613, %v1512
    %v1615 = vpop.permute.xlu0 %1614
    %1616 = vset.pattern.permute.xlu0 0
    %1617 = vperm.xlu0 %1616, %v1514
    %v1618 = vpop.permute.xlu0 %1617
    %1619 = vset.pattern.permute.xlu0 0
    %1620 = vperm.xlu0 %1619, %v1516
    %v1621 = vpop.permute.xlu0 %1620
    %1622 = vset.pattern.permute.xlu0 0
    %1623 = vperm.xlu0 %1622, %v1518
    %v1624 = vpop.permute.xlu0 %1623
    %1625 = vset.pattern.permute.xlu0 0
    %1626 = vperm.xlu0 %1625, %v1520
    %v1627 = vpop.permute.xlu0 %1626
    %1628 = vset.pattern.permute.xlu0 0
    %1629 = vperm.xlu0 %1628, %v1522
    %v1630 = vpop.permute.xlu0 %1629
    %1631 = vset.pattern.permute.xlu0 0
    %1632 = vperm.xlu0 %1631, %v1524
    %v1633 = vpop.permute.xlu0 %1632
    %1634 = vset.pattern.permute.xlu0 0
    %1635 = vperm.xlu0 %1634, %v1526
    %v1636 = vpop.permute.xlu0 %1635
    %1637 = vset.pattern.permute.xlu0 0
    %1638 = vperm.xlu0 %1637, %v1528
    %v1639 = vpop.permute.xlu0 %1638
    %1640 = vset.pattern.permute.xlu0 0
    %1641 = vperm.xlu0 %1640, %v1530
    %v1642 = vpop.permute.xlu0 %1641
    %1643 = vset.pattern.permute.xlu0 0
    %1644 = vperm.xlu0 %1643, %v1532
    %v1645 = vpop.permute.xlu0 %1644
    %1646 = vset.pattern.permute.xlu0 0
    %1647 = vperm.xlu0 %1646, %v1534
    %v1648 = vpop.permute.xlu0 %1647
    %1649 = vset.pattern.permute.xlu0 0
    %1650 = vperm.xlu0 %1649, %v1536
    %v1651 = vpop.permute.xlu0 %1650
    %1652 = vset.pattern.permute.xlu0 0
    %1653 = vperm.xlu0 %1652, %v1538
    %v1654 = vpop.permute.xlu0 %1653
    %1655 = vset.pattern.permute.xlu0 0
    %1656 = vperm.xlu0 %1655, %v1540
    %v1657 = vpop.permute.xlu0 %1656
    %1658 = vset.pattern.permute.xlu0 0
    %1659 = vperm.xlu0 %1658, %v1542
    %v1660 = vpop.permute.xlu0 %1659
    %1661 = vset.pattern.permute.xlu0 0
    %1662 = vperm.xlu0 %1661, %v1544
    %v1663 = vpop.permute.xlu0 %1662
    %1664 = vset.pattern.permute.xlu0 0
    %1665 = vperm.xlu0 %1664, %v1546
    %v1666 = vpop.permute.xlu0 %1665
    %1667 = vset.pattern.permute.xlu0 0
    %1668 = vperm.xlu0 %1667, %v1548
    %v1669 = vpop.permute.xlu0 %1668
    %1670 = vset.pattern.permute.xlu0 0
    %1671 = vperm.xlu0 %1670, %v1550
    %v1672 = vpop.permute.xlu0 %1671
    %1673 = vset.pattern.permute.xlu0 0
    %1674 = vperm.xlu0 %1673, %v1552
    %v1675 = vpop.permute.xlu0 %1674
    %1676 = vset.pattern.permute.xlu0 0
    %1677 = vperm.xlu0 %1676, %v1554
    %v1678 = vpop.permute.xlu0 %1677
    %1679 = vset.pattern.permute.xlu0 0
    %1680 = vperm.xlu0 %1679, %v1556
    %v1681 = vpop.permute.xlu0 %1680
    %1682 = vset.pattern.permute.xlu0 0
    %1683 = vperm.xlu0 %1682, %v1558
    %v1684 = vpop.permute.xlu0 %1683
    %1685 = vset.pattern.permute.xlu0 0
    %1686 = vperm.xlu0 %1685, %v1560
    %v1687 = vpop.permute.xlu0 %1686
    %1688 = vset.pattern.permute.xlu0 0
    %1689 = vperm.xlu0 %1688, %v1562
    %v1690 = vpop.permute.xlu0 %1689
    %v1691 = vlaneseq
    %v1692 = vshrl.u32 %v1691, 7
    %v1693 = vsub.s32 %v1209, %v1692
    %v1694 = vrot.slane %v1597, %v1693
    %v1695 = vlaneseq
    %v1696 = vshrl.u32 %v1695, 7
    %v1697 = vsub.s32 %v1214, %v1696
    %v1698 = vrot.slane %v1600, %v1697
    %v1699 = vsel %vm1219, %v1698, %v1694
    %v1700 = vlaneseq
    %v1701 = vshrl.u32 %v1700, 7
    %v1702 = vsub.s32 %v1209, %v1701
    %v1703 = vrot.slane %v1603, %v1702
    %v1704 = vlaneseq
    %v1705 = vshrl.u32 %v1704, 7
    %v1706 = vsub.s32 %v1214, %v1705
    %v1707 = vrot.slane %v1606, %v1706
    %v1708 = vsel %vm1219, %v1707, %v1703
    %v1709 = vlaneseq
    %v1710 = vshrl.u32 %v1709, 7
    %v1711 = vsub.s32 %v1209, %v1710
    %v1712 = vrot.slane %v1609, %v1711
    %v1713 = vlaneseq
    %v1714 = vshrl.u32 %v1713, 7
    %v1715 = vsub.s32 %v1214, %v1714
    %v1716 = vrot.slane %v1612, %v1715
    %v1717 = vsel %vm1219, %v1716, %v1712
    %v1718 = vlaneseq
    %v1719 = vshrl.u32 %v1718, 7
    %v1720 = vsub.s32 %v1209, %v1719
    %v1721 = vrot.slane %v1615, %v1720
    %v1722 = vlaneseq
    %v1723 = vshrl.u32 %v1722, 7
    %v1724 = vsub.s32 %v1214, %v1723
    %v1725 = vrot.slane %v1618, %v1724
    %v1726 = vsel %vm1219, %v1725, %v1721
    %v1727 = vlaneseq
    %v1728 = vshrl.u32 %v1727, 7
    %v1729 = vsub.s32 %v1209, %v1728
    %v1730 = vrot.slane %v1621, %v1729
    %v1731 = vlaneseq
    %v1732 = vshrl.u32 %v1731, 7
    %v1733 = vsub.s32 %v1214, %v1732
    %v1734 = vrot.slane %v1624, %v1733
    %v1735 = vsel %vm1219, %v1734, %v1730
    %v1736 = vlaneseq
    %v1737 = vshrl.u32 %v1736, 7
    %v1738 = vsub.s32 %v1209, %v1737
    %v1739 = vrot.slane %v1627, %v1738
    %v1740 = vlaneseq
    %v1741 = vshrl.u32 %v1740, 7
    %v1742 = vsub.s32 %v1214, %v1741
    %v1743 = vrot.slane %v1630, %v1742
    %v1744 = vsel %vm1219, %v1743, %v1739
    %v1745 = vlaneseq
    %v1746 = vshrl.u32 %v1745, 7
    %v1747 = vsub.s32 %v1209, %v1746
    %v1748 = vrot.slane %v1633, %v1747
    %v1749 = vlaneseq
    %v1750 = vshrl.u32 %v1749, 7
    %v1751 = vsub.s32 %v1214, %v1750
    %v1752 = vrot.slane %v1636, %v1751
    %v1753 = vsel %vm1219, %v1752, %v1748
    %v1754 = vlaneseq
    %v1755 = vshrl.u32 %v1754, 7
    %v1756 = vsub.s32 %v1209, %v1755
    %v1757 = vrot.slane %v1639, %v1756
    %v1758 = vlaneseq
    %v1759 = vshrl.u32 %v1758, 7
    %v1760 = vsub.s32 %v1214, %v1759
    %v1761 = vrot.slane %v1642, %v1760
    %v1762 = vsel %vm1219, %v1761, %v1757
    %v1763 = vlaneseq
    %v1764 = vshrl.u32 %v1763, 7
    %v1765 = vsub.s32 %v1209, %v1764
    %v1766 = vrot.slane %v1645, %v1765
    %v1767 = vlaneseq
    %v1768 = vshrl.u32 %v1767, 7
    %v1769 = vsub.s32 %v1214, %v1768
    %v1770 = vrot.slane %v1648, %v1769
    %v1771 = vsel %vm1219, %v1770, %v1766
    %v1772 = vlaneseq
    %v1773 = vshrl.u32 %v1772, 7
    %v1774 = vsub.s32 %v1209, %v1773
    %v1775 = vrot.slane %v1651, %v1774
    %v1776 = vlaneseq
    %v1777 = vshrl.u32 %v1776, 7
    %v1778 = vsub.s32 %v1214, %v1777
    %v1779 = vrot.slane %v1654, %v1778
    %v1780 = vsel %vm1219, %v1779, %v1775
    %v1781 = vlaneseq
    %v1782 = vshrl.u32 %v1781, 7
    %v1783 = vsub.s32 %v1209, %v1782
    %v1784 = vrot.slane %v1657, %v1783
    %v1785 = vlaneseq
    %v1786 = vshrl.u32 %v1785, 7
    %v1787 = vsub.s32 %v1214, %v1786
    %v1788 = vrot.slane %v1660, %v1787
    %v1789 = vsel %vm1219, %v1788, %v1784
    %v1790 = vlaneseq
    %v1791 = vshrl.u32 %v1790, 7
    %v1792 = vsub.s32 %v1209, %v1791
    %v1793 = vrot.slane %v1663, %v1792
    %v1794 = vlaneseq
    %v1795 = vshrl.u32 %v1794, 7
    %v1796 = vsub.s32 %v1214, %v1795
    %v1797 = vrot.slane %v1666, %v1796
    %v1798 = vsel %vm1219, %v1797, %v1793
    %v1799 = vlaneseq
    %v1800 = vshrl.u32 %v1799, 7
    %v1801 = vsub.s32 %v1209, %v1800
    %v1802 = vrot.slane %v1669, %v1801
    %v1803 = vlaneseq
    %v1804 = vshrl.u32 %v1803, 7
    %v1805 = vsub.s32 %v1214, %v1804
    %v1806 = vrot.slane %v1672, %v1805
    %v1807 = vsel %vm1219, %v1806, %v1802
    %v1808 = vlaneseq
    %v1809 = vshrl.u32 %v1808, 7
    %v1810 = vsub.s32 %v1209, %v1809
    %v1811 = vrot.slane %v1675, %v1810
    %v1812 = vlaneseq
    %v1813 = vshrl.u32 %v1812, 7
    %v1814 = vsub.s32 %v1214, %v1813
    %v1815 = vrot.slane %v1678, %v1814
    %v1816 = vsel %vm1219, %v1815, %v1811
    %v1817 = vlaneseq
    %v1818 = vshrl.u32 %v1817, 7
    %v1819 = vsub.s32 %v1209, %v1818
    %v1820 = vrot.slane %v1681, %v1819
    %v1821 = vlaneseq
    %v1822 = vshrl.u32 %v1821, 7
    %v1823 = vsub.s32 %v1214, %v1822
    %v1824 = vrot.slane %v1684, %v1823
    %v1825 = vsel %vm1219, %v1824, %v1820
    %v1826 = vlaneseq
    %v1827 = vshrl.u32 %v1826, 7
    %v1828 = vsub.s32 %v1209, %v1827
    %v1829 = vrot.slane %v1687, %v1828
    %v1830 = vlaneseq
    %v1831 = vshrl.u32 %v1830, 7
    %v1832 = vsub.s32 %v1214, %v1831
    %v1833 = vrot.slane %v1690, %v1832
    %v1834 = vsel %vm1219, %v1833, %v1829
    %v1835 = vsel %vm1356, %v1708, %v1699
    %v1836 = vsel %vm1358, %v1717, %v1835
    %v1837 = vsel %vm1360, %v1726, %v1836
    %v1838 = vsel %vm1362, %v1735, %v1837
    %v1839 = vsel %vm1364, %v1744, %v1838
    %v1840 = vsel %vm1366, %v1753, %v1839
    %v1841 = vsel %vm1368, %v1762, %v1840
    %v1842 = vsel %vm1356, %v1780, %v1771
    %v1843 = vsel %vm1358, %v1789, %v1842
    %v1844 = vsel %vm1360, %v1798, %v1843
    %v1845 = vsel %vm1362, %v1807, %v1844
    %v1846 = vsel %vm1364, %v1816, %v1845
    %v1847 = vsel %vm1366, %v1825, %v1846
    %v1848 = vsel %vm1368, %v1834, %v1847
    %v1851 = vsel %vm89, %v1841, 0.0
    %1852 = vadd.xlane.f32.xlu0 %v1851
    %v1853 = vpop.xlane.xlu0 %1852
    %v1854 = vsel %vm89, %v1848, 0.0
    %1855 = vadd.xlane.f32.xlu0 %v1854
    %v1856 = vpop.xlane.xlu0 %1855
    %v1857 = vrcp.pop %v1853
    %v1858 = vrcp.pop %v1856
    %v1861 = vlaneseq
    %v1862 = vshrl.u32 %v1861, 7
    %v1863 = vsub.s32 0, %v1862
    %v1864 = vrot.slane %v1857, %v1863
    %v1865 = vlaneseq
    %v1866 = vshrl.u32 %v1865, 7
    %v1867 = vsub.s32 1, %v1866
    %v1868 = vrot.slane %v1857, %v1867
    %v1869 = vlaneseq
    %v1870 = vshrl.u32 %v1869, 7
    %v1871 = vsub.s32 2, %v1870
    %v1872 = vrot.slane %v1857, %v1871
    %v1873 = vlaneseq
    %v1874 = vshrl.u32 %v1873, 7
    %v1875 = vsub.s32 3, %v1874
    %v1876 = vrot.slane %v1857, %v1875
    %v1877 = vlaneseq
    %v1878 = vshrl.u32 %v1877, 7
    %v1879 = vsub.s32 4, %v1878
    %v1880 = vrot.slane %v1857, %v1879
    %v1881 = vlaneseq
    %v1882 = vshrl.u32 %v1881, 7
    %v1883 = vsub.s32 5, %v1882
    %v1884 = vrot.slane %v1857, %v1883
    %v1885 = vlaneseq
    %v1886 = vshrl.u32 %v1885, 7
    %v1887 = vsub.s32 6, %v1886
    %v1888 = vrot.slane %v1857, %v1887
    %v1889 = vlaneseq
    %v1890 = vshrl.u32 %v1889, 7
    %v1891 = vsub.s32 7, %v1890
    %v1892 = vrot.slane %v1857, %v1891
    %v1893 = vlaneseq
    %v1894 = vshrl.u32 %v1893, 7
    %v1895 = vsub.s32 0, %v1894
    %v1896 = vrot.slane %v1858, %v1895
    %v1897 = vlaneseq
    %v1898 = vshrl.u32 %v1897, 7
    %v1899 = vsub.s32 1, %v1898
    %v1900 = vrot.slane %v1858, %v1899
    %v1901 = vlaneseq
    %v1902 = vshrl.u32 %v1901, 7
    %v1903 = vsub.s32 2, %v1902
    %v1904 = vrot.slane %v1858, %v1903
    %v1905 = vlaneseq
    %v1906 = vshrl.u32 %v1905, 7
    %v1907 = vsub.s32 3, %v1906
    %v1908 = vrot.slane %v1858, %v1907
    %v1909 = vlaneseq
    %v1910 = vshrl.u32 %v1909, 7
    %v1911 = vsub.s32 4, %v1910
    %v1912 = vrot.slane %v1858, %v1911
    %v1913 = vlaneseq
    %v1914 = vshrl.u32 %v1913, 7
    %v1915 = vsub.s32 5, %v1914
    %v1916 = vrot.slane %v1858, %v1915
    %v1917 = vlaneseq
    %v1918 = vshrl.u32 %v1917, 7
    %v1919 = vsub.s32 6, %v1918
    %v1920 = vrot.slane %v1858, %v1919
    %v1921 = vlaneseq
    %v1922 = vshrl.u32 %v1921, 7
    %v1923 = vsub.s32 7, %v1922
    %v1924 = vrot.slane %v1858, %v1923
    %v1941 = vmul.f32 %v1500, %v1864
    %v1942 = vmul.f32 %v1502, %v1864
    %v1943 = vmul.f32 %v1504, %v1868
    %v1944 = vmul.f32 %v1506, %v1868
    %v1945 = vmul.f32 %v1508, %v1872
    %v1946 = vmul.f32 %v1510, %v1872
    %v1947 = vmul.f32 %v1512, %v1876
    %v1948 = vmul.f32 %v1514, %v1876
    %v1949 = vmul.f32 %v1516, %v1880
    %v1950 = vmul.f32 %v1518, %v1880
    %v1951 = vmul.f32 %v1520, %v1884
    %v1952 = vmul.f32 %v1522, %v1884
    %v1953 = vmul.f32 %v1524, %v1888
    %v1954 = vmul.f32 %v1526, %v1888
    %v1955 = vmul.f32 %v1528, %v1892
    %v1956 = vmul.f32 %v1530, %v1892
    %v1957 = vmul.f32 %v1532, %v1896
    %v1958 = vmul.f32 %v1534, %v1896
    %v1959 = vmul.f32 %v1536, %v1900
    %v1960 = vmul.f32 %v1538, %v1900
    %v1961 = vmul.f32 %v1540, %v1904
    %v1962 = vmul.f32 %v1542, %v1904
    %v1963 = vmul.f32 %v1544, %v1908
    %v1964 = vmul.f32 %v1546, %v1908
    %v1965 = vmul.f32 %v1548, %v1912
    %v1966 = vmul.f32 %v1550, %v1912
    %v1967 = vmul.f32 %v1552, %v1916
    %v1968 = vmul.f32 %v1554, %v1916
    %v1969 = vmul.f32 %v1556, %v1920
    %v1970 = vmul.f32 %v1558, %v1920
    %v1971 = vmul.f32 %v1560, %v1924
    %v1972 = vmul.f32 %v1562, %v1924
    %v1973 = vpack.c.bf16 %v1942, %v1941
    %v1974 = vpack.c.bf16 %v1944, %v1943
    %v1975 = vpack.c.bf16 %v1946, %v1945
    %v1976 = vpack.c.bf16 %v1948, %v1947
    %v1977 = vpack.c.bf16 %v1950, %v1949
    %v1978 = vpack.c.bf16 %v1952, %v1951
    %v1979 = vpack.c.bf16 %v1954, %v1953
    %v1980 = vpack.c.bf16 %v1956, %v1955
    %v1981 = vpack.c.bf16 %v1958, %v1957
    %v1982 = vpack.c.bf16 %v1960, %v1959
    %v1983 = vpack.c.bf16 %v1962, %v1961
    %v1984 = vpack.c.bf16 %v1964, %v1963
    %v1985 = vpack.c.bf16 %v1966, %v1965
    %v1986 = vpack.c.bf16 %v1968, %v1967
    %v1987 = vpack.c.bf16 %v1970, %v1969
    %v1988 = vpack.c.bf16 %v1972, %v1971
    %v1989 = vpack.c.bf16 %v132, %v128
    %v2006 = vunpack.c.l.b16 %v1973
    %v2007 = vunpack.c.h.b16 %v1973
    %v2008 = vunpack.c.l.b16 %v1974
    %v2009 = vunpack.c.h.b16 %v1974
    %v2010 = vunpack.c.l.b16 %v1975
    %v2011 = vunpack.c.h.b16 %v1975
    %v2012 = vunpack.c.l.b16 %v1976
    %v2013 = vunpack.c.h.b16 %v1976
    %v2014 = vunpack.c.l.b16 %v1977
    %v2015 = vunpack.c.h.b16 %v1977
    %v2016 = vunpack.c.l.b16 %v1978
    %v2017 = vunpack.c.h.b16 %v1978
    %v2018 = vunpack.c.l.b16 %v1979
    %v2019 = vunpack.c.h.b16 %v1979
    %v2020 = vunpack.c.l.b16 %v1980
    %v2021 = vunpack.c.h.b16 %v1980
    %v2022 = vunpack.c.l.b16 %v1981
    %v2023 = vunpack.c.h.b16 %v1981
    %v2024 = vunpack.c.l.b16 %v1982
    %v2025 = vunpack.c.h.b16 %v1982
    %v2026 = vunpack.c.l.b16 %v1983
    %v2027 = vunpack.c.h.b16 %v1983
    %v2028 = vunpack.c.l.b16 %v1984
    %v2029 = vunpack.c.h.b16 %v1984
    %v2030 = vunpack.c.l.b16 %v1985
    %v2031 = vunpack.c.h.b16 %v1985
    %v2032 = vunpack.c.l.b16 %v1986
    %v2033 = vunpack.c.h.b16 %v1986
    %v2034 = vunpack.c.l.b16 %v1987
    %v2035 = vunpack.c.h.b16 %v1987
    %v2036 = vunpack.c.l.b16 %v1988
    %v2037 = vunpack.c.h.b16 %v1988
    %2038 = vset.pattern.permute.xlu0 0
    %2039 = vperm.xlu0 %2038, %v2006
    %v2040 = vpop.permute.xlu0 %2039
    %2041 = vset.pattern.permute.xlu0 0
    %2042 = vperm.xlu0 %2041, %v2007
    %v2043 = vpop.permute.xlu0 %2042
    %2044 = vset.pattern.permute.xlu0 0
    %2045 = vperm.xlu0 %2044, %v2008
    %v2046 = vpop.permute.xlu0 %2045
    %2047 = vset.pattern.permute.xlu0 0
    %2048 = vperm.xlu0 %2047, %v2009
    %v2049 = vpop.permute.xlu0 %2048
    %2050 = vset.pattern.permute.xlu0 0
    %2051 = vperm.xlu0 %2050, %v2010
    %v2052 = vpop.permute.xlu0 %2051
    %2053 = vset.pattern.permute.xlu0 0
    %2054 = vperm.xlu0 %2053, %v2011
    %v2055 = vpop.permute.xlu0 %2054
    %2056 = vset.pattern.permute.xlu0 0
    %2057 = vperm.xlu0 %2056, %v2012
    %v2058 = vpop.permute.xlu0 %2057
    %2059 = vset.pattern.permute.xlu0 0
    %2060 = vperm.xlu0 %2059, %v2013
    %v2061 = vpop.permute.xlu0 %2060
    %2062 = vset.pattern.permute.xlu0 0
    %2063 = vperm.xlu0 %2062, %v2014
    %v2064 = vpop.permute.xlu0 %2063
    %2065 = vset.pattern.permute.xlu0 0
    %2066 = vperm.xlu0 %2065, %v2015
    %v2067 = vpop.permute.xlu0 %2066
    %2068 = vset.pattern.permute.xlu0 0
    %2069 = vperm.xlu0 %2068, %v2016
    %v2070 = vpop.permute.xlu0 %2069
    %2071 = vset.pattern.permute.xlu0 0
    %2072 = vperm.xlu0 %2071, %v2017
    %v2073 = vpop.permute.xlu0 %2072
    %2074 = vset.pattern.permute.xlu0 0
    %2075 = vperm.xlu0 %2074, %v2018
    %v2076 = vpop.permute.xlu0 %2075
    %2077 = vset.pattern.permute.xlu0 0
    %2078 = vperm.xlu0 %2077, %v2019
    %v2079 = vpop.permute.xlu0 %2078
    %2080 = vset.pattern.permute.xlu0 0
    %2081 = vperm.xlu0 %2080, %v2020
    %v2082 = vpop.permute.xlu0 %2081
    %2083 = vset.pattern.permute.xlu0 0
    %2084 = vperm.xlu0 %2083, %v2021
    %v2085 = vpop.permute.xlu0 %2084
    %2086 = vset.pattern.permute.xlu0 0
    %2087 = vperm.xlu0 %2086, %v2022
    %v2088 = vpop.permute.xlu0 %2087
    %2089 = vset.pattern.permute.xlu0 0
    %2090 = vperm.xlu0 %2089, %v2023
    %v2091 = vpop.permute.xlu0 %2090
    %2092 = vset.pattern.permute.xlu0 0
    %2093 = vperm.xlu0 %2092, %v2024
    %v2094 = vpop.permute.xlu0 %2093
    %2095 = vset.pattern.permute.xlu0 0
    %2096 = vperm.xlu0 %2095, %v2025
    %v2097 = vpop.permute.xlu0 %2096
    %2098 = vset.pattern.permute.xlu0 0
    %2099 = vperm.xlu0 %2098, %v2026
    %v2100 = vpop.permute.xlu0 %2099
    %2101 = vset.pattern.permute.xlu0 0
    %2102 = vperm.xlu0 %2101, %v2027
    %v2103 = vpop.permute.xlu0 %2102
    %2104 = vset.pattern.permute.xlu0 0
    %2105 = vperm.xlu0 %2104, %v2028
    %v2106 = vpop.permute.xlu0 %2105
    %2107 = vset.pattern.permute.xlu0 0
    %2108 = vperm.xlu0 %2107, %v2029
    %v2109 = vpop.permute.xlu0 %2108
    %2110 = vset.pattern.permute.xlu0 0
    %2111 = vperm.xlu0 %2110, %v2030
    %v2112 = vpop.permute.xlu0 %2111
    %2113 = vset.pattern.permute.xlu0 0
    %2114 = vperm.xlu0 %2113, %v2031
    %v2115 = vpop.permute.xlu0 %2114
    %2116 = vset.pattern.permute.xlu0 0
    %2117 = vperm.xlu0 %2116, %v2032
    %v2118 = vpop.permute.xlu0 %2117
    %2119 = vset.pattern.permute.xlu0 0
    %2120 = vperm.xlu0 %2119, %v2033
    %v2121 = vpop.permute.xlu0 %2120
    %2122 = vset.pattern.permute.xlu0 0
    %2123 = vperm.xlu0 %2122, %v2034
    %v2124 = vpop.permute.xlu0 %2123
    %2125 = vset.pattern.permute.xlu0 0
    %2126 = vperm.xlu0 %2125, %v2035
    %v2127 = vpop.permute.xlu0 %2126
    %2128 = vset.pattern.permute.xlu0 0
    %2129 = vperm.xlu0 %2128, %v2036
    %v2130 = vpop.permute.xlu0 %2129
    %2131 = vset.pattern.permute.xlu0 0
    %2132 = vperm.xlu0 %2131, %v2037
    %v2133 = vpop.permute.xlu0 %2132
    %v2134 = vlaneseq
    %v2135 = vshrl.u32 %v2134, 7
    %v2136 = vsub.s32 %v1209, %v2135
    %v2137 = vrot.slane %v2040, %v2136
    %v2138 = vlaneseq
    %v2139 = vshrl.u32 %v2138, 7
    %v2140 = vsub.s32 %v1214, %v2139
    %v2141 = vrot.slane %v2043, %v2140
    %v2142 = vsel %vm1219, %v2141, %v2137
    %v2143 = vlaneseq
    %v2144 = vshrl.u32 %v2143, 7
    %v2145 = vsub.s32 %v1209, %v2144
    %v2146 = vrot.slane %v2046, %v2145
    %v2147 = vlaneseq
    %v2148 = vshrl.u32 %v2147, 7
    %v2149 = vsub.s32 %v1214, %v2148
    %v2150 = vrot.slane %v2049, %v2149
    %v2151 = vsel %vm1219, %v2150, %v2146
    %v2152 = vlaneseq
    %v2153 = vshrl.u32 %v2152, 7
    %v2154 = vsub.s32 %v1209, %v2153
    %v2155 = vrot.slane %v2052, %v2154
    %v2156 = vlaneseq
    %v2157 = vshrl.u32 %v2156, 7
    %v2158 = vsub.s32 %v1214, %v2157
    %v2159 = vrot.slane %v2055, %v2158
    %v2160 = vsel %vm1219, %v2159, %v2155
    %v2161 = vlaneseq
    %v2162 = vshrl.u32 %v2161, 7
    %v2163 = vsub.s32 %v1209, %v2162
    %v2164 = vrot.slane %v2058, %v2163
    %v2165 = vlaneseq
    %v2166 = vshrl.u32 %v2165, 7
    %v2167 = vsub.s32 %v1214, %v2166
    %v2168 = vrot.slane %v2061, %v2167
    %v2169 = vsel %vm1219, %v2168, %v2164
    %v2170 = vlaneseq
    %v2171 = vshrl.u32 %v2170, 7
    %v2172 = vsub.s32 %v1209, %v2171
    %v2173 = vrot.slane %v2064, %v2172
    %v2174 = vlaneseq
    %v2175 = vshrl.u32 %v2174, 7
    %v2176 = vsub.s32 %v1214, %v2175
    %v2177 = vrot.slane %v2067, %v2176
    %v2178 = vsel %vm1219, %v2177, %v2173
    %v2179 = vlaneseq
    %v2180 = vshrl.u32 %v2179, 7
    %v2181 = vsub.s32 %v1209, %v2180
    %v2182 = vrot.slane %v2070, %v2181
    %v2183 = vlaneseq
    %v2184 = vshrl.u32 %v2183, 7
    %v2185 = vsub.s32 %v1214, %v2184
    %v2186 = vrot.slane %v2073, %v2185
    %v2187 = vsel %vm1219, %v2186, %v2182
    %v2188 = vlaneseq
    %v2189 = vshrl.u32 %v2188, 7
    %v2190 = vsub.s32 %v1209, %v2189
    %v2191 = vrot.slane %v2076, %v2190
    %v2192 = vlaneseq
    %v2193 = vshrl.u32 %v2192, 7
    %v2194 = vsub.s32 %v1214, %v2193
    %v2195 = vrot.slane %v2079, %v2194
    %v2196 = vsel %vm1219, %v2195, %v2191
    %v2197 = vlaneseq
    %v2198 = vshrl.u32 %v2197, 7
    %v2199 = vsub.s32 %v1209, %v2198
    %v2200 = vrot.slane %v2082, %v2199
    %v2201 = vlaneseq
    %v2202 = vshrl.u32 %v2201, 7
    %v2203 = vsub.s32 %v1214, %v2202
    %v2204 = vrot.slane %v2085, %v2203
    %v2205 = vsel %vm1219, %v2204, %v2200
    %v2206 = vlaneseq
    %v2207 = vshrl.u32 %v2206, 7
    %v2208 = vsub.s32 %v1209, %v2207
    %v2209 = vrot.slane %v2088, %v2208
    %v2210 = vlaneseq
    %v2211 = vshrl.u32 %v2210, 7
    %v2212 = vsub.s32 %v1214, %v2211
    %v2213 = vrot.slane %v2091, %v2212
    %v2214 = vsel %vm1219, %v2213, %v2209
    %v2215 = vlaneseq
    %v2216 = vshrl.u32 %v2215, 7
    %v2217 = vsub.s32 %v1209, %v2216
    %v2218 = vrot.slane %v2094, %v2217
    %v2219 = vlaneseq
    %v2220 = vshrl.u32 %v2219, 7
    %v2221 = vsub.s32 %v1214, %v2220
    %v2222 = vrot.slane %v2097, %v2221
    %v2223 = vsel %vm1219, %v2222, %v2218
    %v2224 = vlaneseq
    %v2225 = vshrl.u32 %v2224, 7
    %v2226 = vsub.s32 %v1209, %v2225
    %v2227 = vrot.slane %v2100, %v2226
    %v2228 = vlaneseq
    %v2229 = vshrl.u32 %v2228, 7
    %v2230 = vsub.s32 %v1214, %v2229
    %v2231 = vrot.slane %v2103, %v2230
    %v2232 = vsel %vm1219, %v2231, %v2227
    %v2233 = vlaneseq
    %v2234 = vshrl.u32 %v2233, 7
    %v2235 = vsub.s32 %v1209, %v2234
    %v2236 = vrot.slane %v2106, %v2235
    %v2237 = vlaneseq
    %v2238 = vshrl.u32 %v2237, 7
    %v2239 = vsub.s32 %v1214, %v2238
    %v2240 = vrot.slane %v2109, %v2239
    %v2241 = vsel %vm1219, %v2240, %v2236
    %v2242 = vlaneseq
    %v2243 = vshrl.u32 %v2242, 7
    %v2244 = vsub.s32 %v1209, %v2243
    %v2245 = vrot.slane %v2112, %v2244
    %v2246 = vlaneseq
    %v2247 = vshrl.u32 %v2246, 7
    %v2248 = vsub.s32 %v1214, %v2247
    %v2249 = vrot.slane %v2115, %v2248
    %v2250 = vsel %vm1219, %v2249, %v2245
    %v2251 = vlaneseq
    %v2252 = vshrl.u32 %v2251, 7
    %v2253 = vsub.s32 %v1209, %v2252
    %v2254 = vrot.slane %v2118, %v2253
    %v2255 = vlaneseq
    %v2256 = vshrl.u32 %v2255, 7
    %v2257 = vsub.s32 %v1214, %v2256
    %v2258 = vrot.slane %v2121, %v2257
    %v2259 = vsel %vm1219, %v2258, %v2254
    %v2260 = vlaneseq
    %v2261 = vshrl.u32 %v2260, 7
    %v2262 = vsub.s32 %v1209, %v2261
    %v2263 = vrot.slane %v2124, %v2262
    %v2264 = vlaneseq
    %v2265 = vshrl.u32 %v2264, 7
    %v2266 = vsub.s32 %v1214, %v2265
    %v2267 = vrot.slane %v2127, %v2266
    %v2268 = vsel %vm1219, %v2267, %v2263
    %v2269 = vlaneseq
    %v2270 = vshrl.u32 %v2269, 7
    %v2271 = vsub.s32 %v1209, %v2270
    %v2272 = vrot.slane %v2130, %v2271
    %v2273 = vlaneseq
    %v2274 = vshrl.u32 %v2273, 7
    %v2275 = vsub.s32 %v1214, %v2274
    %v2276 = vrot.slane %v2133, %v2275
    %v2277 = vsel %vm1219, %v2276, %v2272
    %v2278 = vsel %vm1356, %v2151, %v2142
    %v2279 = vsel %vm1358, %v2160, %v2278
    %v2280 = vsel %vm1360, %v2169, %v2279
    %v2281 = vsel %vm1362, %v2178, %v2280
    %v2282 = vsel %vm1364, %v2187, %v2281
    %v2283 = vsel %vm1366, %v2196, %v2282
    %v2284 = vsel %vm1368, %v2205, %v2283
    %v2285 = vsel %vm1356, %v2223, %v2214
    %v2286 = vsel %vm1358, %v2232, %v2285
    %v2287 = vsel %vm1360, %v2241, %v2286
    %v2288 = vsel %vm1362, %v2250, %v2287
    %v2289 = vsel %vm1364, %v2259, %v2288
    %v2290 = vsel %vm1366, %v2268, %v2289
    %v2291 = vsel %vm1368, %v2277, %v2290
    %v2292 = vpack.c.b16 %v2291, %v2284
    %v2294 = vsel %vm89, %v2292, 0
    %2296 = vmatprep.subr.bf16.mxu0 0
    %2297 = vmatpush1.bf16.msra.mxu0 0
    %2298 = vmatprep.subr.bf16.mxu0 0
    %2299 = vmatpush1.bf16.msra.mxu0 0
    %2300 = vmatprep.subr.bf16.mxu0 0
    %2301 = vmatpush1.bf16.msra.mxu0 0
    %2302 = vmatprep.subr.bf16.mxu0 0
    %2303 = vmatpush1.bf16.msra.mxu0 0
    %2304 = vmatprep.subr.bf16.mxu0 0
    %2305 = vmatpush1.bf16.msra.mxu0 0
    %2306 = vmatprep.subr.bf16.mxu0 0
    %2307 = vmatpush1.bf16.msra.mxu0 0
    %2308 = vmatprep.subr.bf16.mxu0 0
    %2309 = vmatpush1.bf16.msra.mxu0 0
    %2310 = vmatprep.subr.bf16.mxu0 0
    %2311 = vmatpush1.bf16.msra.mxu0 %v1989
    %2312 = vmatprep.subr.bf16.mxu0 0
    %2313 = vmatpush2.bf16.msra.mxu0 0
    %2314 = vmatprep.subr.bf16.mxu0 0
    %2315 = vmatpush2.bf16.msra.mxu0 0
    %2316 = vmatprep.subr.bf16.mxu0 0
    %2317 = vmatpush2.bf16.msra.mxu0 0
    %2318 = vmatprep.subr.bf16.mxu0 0
    %2319 = vmatpush2.bf16.msra.mxu0 0
    %2320 = vmatprep.subr.bf16.mxu0 0
    %2321 = vmatpush2.bf16.msra.mxu0 0
    %2322 = vmatprep.subr.bf16.mxu0 0
    %2323 = vmatpush2.bf16.msra.mxu0 0
    %2324 = vmatprep.subr.bf16.mxu0 0
    %2325 = vmatpush2.bf16.msra.mxu0 0
    %2326 = vmatprep.subr.bf16.mxu0 0
    %2327 = vmatpush2.bf16.msra.mxu0 0
    %2328 = vmatprep.mubr.bf16.mxu0 0
    %2329 = vmatmul.mubr.bf16.gmra.mxu0 %v2294
    %v2330 = vpop.f32.mrf.mxu0
    %v2331 = vadd.f32 0.0, %v2330
    %v2332 = vpop.f32.mrf.mxu0
    %v2333 = vpop.f32.mrf.mxu0
    %v2334 = vadd.f32 0.0, %v2333
    %v2335 = vpop.f32.mrf.mxu0
    %2336 = vdwg.mxu0
    %2337 = vadd.xlane.f32.xlu0 %v711
    %v2338 = vpop.xlane.xlu0 %2337
    %2339 = vadd.xlane.f32.xlu0 %v713
    %v2340 = vpop.xlane.xlu0 %2339
    %2341 = vadd.xlane.f32.xlu0 %v715
    %v2342 = vpop.xlane.xlu0 %2341
    %2343 = vadd.xlane.f32.xlu0 %v717
    %v2344 = vpop.xlane.xlu0 %2343
    %2345 = vadd.xlane.f32.xlu0 %v719
    %v2346 = vpop.xlane.xlu0 %2345
    %2347 = vadd.xlane.f32.xlu0 %v721
    %v2348 = vpop.xlane.xlu0 %2347
    %2349 = vadd.xlane.f32.xlu0 %v723
    %v2350 = vpop.xlane.xlu0 %2349
    %2351 = vadd.xlane.f32.xlu0 %v725
    %v2352 = vpop.xlane.xlu0 %2351
    %2353 = vadd.xlane.f32.xlu0 %v727
    %v2354 = vpop.xlane.xlu0 %2353
    %2355 = vadd.xlane.f32.xlu0 %v729
    %v2356 = vpop.xlane.xlu0 %2355
    %2357 = vadd.xlane.f32.xlu0 %v731
    %v2358 = vpop.xlane.xlu0 %2357
    %2359 = vadd.xlane.f32.xlu0 %v733
    %v2360 = vpop.xlane.xlu0 %2359
    %2361 = vadd.xlane.f32.xlu0 %v735
    %v2362 = vpop.xlane.xlu0 %2361
    %2363 = vadd.xlane.f32.xlu0 %v737
    %v2364 = vpop.xlane.xlu0 %2363
    %2365 = vadd.xlane.f32.xlu0 %v739
    %v2366 = vpop.xlane.xlu0 %2365
    %2367 = vadd.xlane.f32.xlu0 %v741
    %v2368 = vpop.xlane.xlu0 %2367
    %2369 = vadd.xlane.f32.xlu0 %v743
    %v2370 = vpop.xlane.xlu0 %2369
    %2371 = vadd.xlane.f32.xlu0 %v745
    %v2372 = vpop.xlane.xlu0 %2371
    %2373 = vadd.xlane.f32.xlu0 %v747
    %v2374 = vpop.xlane.xlu0 %2373
    %2375 = vadd.xlane.f32.xlu0 %v749
    %v2376 = vpop.xlane.xlu0 %2375
    %2377 = vadd.xlane.f32.xlu0 %v751
    %v2378 = vpop.xlane.xlu0 %2377
    %2379 = vadd.xlane.f32.xlu0 %v753
    %v2380 = vpop.xlane.xlu0 %2379
    %2381 = vadd.xlane.f32.xlu0 %v755
    %v2382 = vpop.xlane.xlu0 %2381
    %2383 = vadd.xlane.f32.xlu0 %v757
    %v2384 = vpop.xlane.xlu0 %2383
    %2385 = vadd.xlane.f32.xlu0 %v759
    %v2386 = vpop.xlane.xlu0 %2385
    %2387 = vadd.xlane.f32.xlu0 %v761
    %v2388 = vpop.xlane.xlu0 %2387
    %2389 = vadd.xlane.f32.xlu0 %v763
    %v2390 = vpop.xlane.xlu0 %2389
    %2391 = vadd.xlane.f32.xlu0 %v765
    %v2392 = vpop.xlane.xlu0 %2391
    %2393 = vadd.xlane.f32.xlu0 %v767
    %v2394 = vpop.xlane.xlu0 %2393
    %2395 = vadd.xlane.f32.xlu0 %v769
    %v2396 = vpop.xlane.xlu0 %2395
    %2397 = vadd.xlane.f32.xlu0 %v771
    %v2398 = vpop.xlane.xlu0 %2397
    %2399 = vadd.xlane.f32.xlu0 %v773
    %v2400 = vpop.xlane.xlu0 %2399
    %v2401 = vadd.f32 %v2338, %v846
    %v2402 = vadd.f32 %v2340, %v850
    %v2403 = vadd.f32 %v2342, %v857
    %v2404 = vadd.f32 %v2344, %v861
    %v2405 = vadd.f32 %v2346, %v868
    %v2406 = vadd.f32 %v2348, %v872
    %v2407 = vadd.f32 %v2350, %v879
    %v2408 = vadd.f32 %v2352, %v883
    %v2409 = vadd.f32 %v2354, %v890
    %v2410 = vadd.f32 %v2356, %v894
    %v2411 = vadd.f32 %v2358, %v901
    %v2412 = vadd.f32 %v2360, %v905
    %v2413 = vadd.f32 %v2362, %v912
    %v2414 = vadd.f32 %v2364, %v916
    %v2415 = vadd.f32 %v2366, %v923
    %v2416 = vadd.f32 %v2368, %v927
    %v2417 = vadd.f32 %v2370, %v934
    %v2418 = vadd.f32 %v2372, %v938
    %v2419 = vadd.f32 %v2374, %v945
    %v2420 = vadd.f32 %v2376, %v949
    %v2421 = vadd.f32 %v2378, %v956
    %v2422 = vadd.f32 %v2380, %v960
    %v2423 = vadd.f32 %v2382, %v967
    %v2424 = vadd.f32 %v2384, %v971
    %v2425 = vadd.f32 %v2386, %v978
    %v2426 = vadd.f32 %v2388, %v982
    %v2427 = vadd.f32 %v2390, %v989
    %v2428 = vadd.f32 %v2392, %v993
    %v2429 = vadd.f32 %v2394, %v1000
    %v2430 = vadd.f32 %v2396, %v1004
    %v2431 = vadd.f32 %v2398, %v1011
    %v2432 = vadd.f32 %v2400, %v1015
    %2465 = vset.pattern.permute.xlu0 0
    %2466 = vperm.xlu0 %2465, %v2401
    %v2467 = vpop.permute.xlu0 %2466
    %2468 = vset.pattern.permute.xlu0 0
    %2469 = vperm.xlu0 %2468, %v2402
    %v2470 = vpop.permute.xlu0 %2469
    %2471 = vset.pattern.permute.xlu0 0
    %2472 = vperm.xlu0 %2471, %v2403
    %v2473 = vpop.permute.xlu0 %2472
    %2474 = vset.pattern.permute.xlu0 0
    %2475 = vperm.xlu0 %2474, %v2404
    %v2476 = vpop.permute.xlu0 %2475
    %2477 = vset.pattern.permute.xlu0 0
    %2478 = vperm.xlu0 %2477, %v2405
    %v2479 = vpop.permute.xlu0 %2478
    %2480 = vset.pattern.permute.xlu0 0
    %2481 = vperm.xlu0 %2480, %v2406
    %v2482 = vpop.permute.xlu0 %2481
    %2483 = vset.pattern.permute.xlu0 0
    %2484 = vperm.xlu0 %2483, %v2407
    %v2485 = vpop.permute.xlu0 %2484
    %2486 = vset.pattern.permute.xlu0 0
    %2487 = vperm.xlu0 %2486, %v2408
    %v2488 = vpop.permute.xlu0 %2487
    %2489 = vset.pattern.permute.xlu0 0
    %2490 = vperm.xlu0 %2489, %v2409
    %v2491 = vpop.permute.xlu0 %2490
    %2492 = vset.pattern.permute.xlu0 0
    %2493 = vperm.xlu0 %2492, %v2410
    %v2494 = vpop.permute.xlu0 %2493
    %2495 = vset.pattern.permute.xlu0 0
    %2496 = vperm.xlu0 %2495, %v2411
    %v2497 = vpop.permute.xlu0 %2496
    %2498 = vset.pattern.permute.xlu0 0
    %2499 = vperm.xlu0 %2498, %v2412
    %v2500 = vpop.permute.xlu0 %2499
    %2501 = vset.pattern.permute.xlu0 0
    %2502 = vperm.xlu0 %2501, %v2413
    %v2503 = vpop.permute.xlu0 %2502
    %2504 = vset.pattern.permute.xlu0 0
    %2505 = vperm.xlu0 %2504, %v2414
    %v2506 = vpop.permute.xlu0 %2505
    %2507 = vset.pattern.permute.xlu0 0
    %2508 = vperm.xlu0 %2507, %v2415
    %v2509 = vpop.permute.xlu0 %2508
    %2510 = vset.pattern.permute.xlu0 0
    %2511 = vperm.xlu0 %2510, %v2416
    %v2512 = vpop.permute.xlu0 %2511
    %2513 = vset.pattern.permute.xlu0 0
    %2514 = vperm.xlu0 %2513, %v2417
    %v2515 = vpop.permute.xlu0 %2514
    %2516 = vset.pattern.permute.xlu0 0
    %2517 = vperm.xlu0 %2516, %v2418
    %v2518 = vpop.permute.xlu0 %2517
    %2519 = vset.pattern.permute.xlu0 0
    %2520 = vperm.xlu0 %2519, %v2419
    %v2521 = vpop.permute.xlu0 %2520
    %2522 = vset.pattern.permute.xlu0 0
    %2523 = vperm.xlu0 %2522, %v2420
    %v2524 = vpop.permute.xlu0 %2523
    %2525 = vset.pattern.permute.xlu0 0
    %2526 = vperm.xlu0 %2525, %v2421
    %v2527 = vpop.permute.xlu0 %2526
    %2528 = vset.pattern.permute.xlu0 0
    %2529 = vperm.xlu0 %2528, %v2422
    %v2530 = vpop.permute.xlu0 %2529
    %2531 = vset.pattern.permute.xlu0 0
    %2532 = vperm.xlu0 %2531, %v2423
    %v2533 = vpop.permute.xlu0 %2532
    %2534 = vset.pattern.permute.xlu0 0
    %2535 = vperm.xlu0 %2534, %v2424
    %v2536 = vpop.permute.xlu0 %2535
    %2537 = vset.pattern.permute.xlu0 0
    %2538 = vperm.xlu0 %2537, %v2425
    %v2539 = vpop.permute.xlu0 %2538
    %2540 = vset.pattern.permute.xlu0 0
    %2541 = vperm.xlu0 %2540, %v2426
    %v2542 = vpop.permute.xlu0 %2541
    %2543 = vset.pattern.permute.xlu0 0
    %2544 = vperm.xlu0 %2543, %v2427
    %v2545 = vpop.permute.xlu0 %2544
    %2546 = vset.pattern.permute.xlu0 0
    %2547 = vperm.xlu0 %2546, %v2428
    %v2548 = vpop.permute.xlu0 %2547
    %2549 = vset.pattern.permute.xlu0 0
    %2550 = vperm.xlu0 %2549, %v2429
    %v2551 = vpop.permute.xlu0 %2550
    %2552 = vset.pattern.permute.xlu0 0
    %2553 = vperm.xlu0 %2552, %v2430
    %v2554 = vpop.permute.xlu0 %2553
    %2555 = vset.pattern.permute.xlu0 0
    %2556 = vperm.xlu0 %2555, %v2431
    %v2557 = vpop.permute.xlu0 %2556
    %2558 = vset.pattern.permute.xlu0 0
    %2559 = vperm.xlu0 %2558, %v2432
    %v2560 = vpop.permute.xlu0 %2559
    %v2561 = vlaneseq
    %v2562 = vshrl.u32 %v2561, 7
    %v2563 = vsub.s32 %v1209, %v2562
    %v2564 = vrot.slane %v2467, %v2563
    %v2565 = vlaneseq
    %v2566 = vshrl.u32 %v2565, 7
    %v2567 = vsub.s32 %v1214, %v2566
    %v2568 = vrot.slane %v2470, %v2567
    %v2569 = vsel %vm1219, %v2568, %v2564
    %v2570 = vlaneseq
    %v2571 = vshrl.u32 %v2570, 7
    %v2572 = vsub.s32 %v1209, %v2571
    %v2573 = vrot.slane %v2473, %v2572
    %v2574 = vlaneseq
    %v2575 = vshrl.u32 %v2574, 7
    %v2576 = vsub.s32 %v1214, %v2575
    %v2577 = vrot.slane %v2476, %v2576
    %v2578 = vsel %vm1219, %v2577, %v2573
    %v2579 = vlaneseq
    %v2580 = vshrl.u32 %v2579, 7
    %v2581 = vsub.s32 %v1209, %v2580
    %v2582 = vrot.slane %v2479, %v2581
    %v2583 = vlaneseq
    %v2584 = vshrl.u32 %v2583, 7
    %v2585 = vsub.s32 %v1214, %v2584
    %v2586 = vrot.slane %v2482, %v2585
    %v2587 = vsel %vm1219, %v2586, %v2582
    %v2588 = vlaneseq
    %v2589 = vshrl.u32 %v2588, 7
    %v2590 = vsub.s32 %v1209, %v2589
    %v2591 = vrot.slane %v2485, %v2590
    %v2592 = vlaneseq
    %v2593 = vshrl.u32 %v2592, 7
    %v2594 = vsub.s32 %v1214, %v2593
    %v2595 = vrot.slane %v2488, %v2594
    %v2596 = vsel %vm1219, %v2595, %v2591
    %v2597 = vlaneseq
    %v2598 = vshrl.u32 %v2597, 7
    %v2599 = vsub.s32 %v1209, %v2598
    %v2600 = vrot.slane %v2491, %v2599
    %v2601 = vlaneseq
    %v2602 = vshrl.u32 %v2601, 7
    %v2603 = vsub.s32 %v1214, %v2602
    %v2604 = vrot.slane %v2494, %v2603
    %v2605 = vsel %vm1219, %v2604, %v2600
    %v2606 = vlaneseq
    %v2607 = vshrl.u32 %v2606, 7
    %v2608 = vsub.s32 %v1209, %v2607
    %v2609 = vrot.slane %v2497, %v2608
    %v2610 = vlaneseq
    %v2611 = vshrl.u32 %v2610, 7
    %v2612 = vsub.s32 %v1214, %v2611
    %v2613 = vrot.slane %v2500, %v2612
    %v2614 = vsel %vm1219, %v2613, %v2609
    %v2615 = vlaneseq
    %v2616 = vshrl.u32 %v2615, 7
    %v2617 = vsub.s32 %v1209, %v2616
    %v2618 = vrot.slane %v2503, %v2617
    %v2619 = vlaneseq
    %v2620 = vshrl.u32 %v2619, 7
    %v2621 = vsub.s32 %v1214, %v2620
    %v2622 = vrot.slane %v2506, %v2621
    %v2623 = vsel %vm1219, %v2622, %v2618
    %v2624 = vlaneseq
    %v2625 = vshrl.u32 %v2624, 7
    %v2626 = vsub.s32 %v1209, %v2625
    %v2627 = vrot.slane %v2509, %v2626
    %v2628 = vlaneseq
    %v2629 = vshrl.u32 %v2628, 7
    %v2630 = vsub.s32 %v1214, %v2629
    %v2631 = vrot.slane %v2512, %v2630
    %v2632 = vsel %vm1219, %v2631, %v2627
    %v2633 = vlaneseq
    %v2634 = vshrl.u32 %v2633, 7
    %v2635 = vsub.s32 %v1209, %v2634
    %v2636 = vrot.slane %v2515, %v2635
    %v2637 = vlaneseq
    %v2638 = vshrl.u32 %v2637, 7
    %v2639 = vsub.s32 %v1214, %v2638
    %v2640 = vrot.slane %v2518, %v2639
    %v2641 = vsel %vm1219, %v2640, %v2636
    %v2642 = vlaneseq
    %v2643 = vshrl.u32 %v2642, 7
    %v2644 = vsub.s32 %v1209, %v2643
    %v2645 = vrot.slane %v2521, %v2644
    %v2646 = vlaneseq
    %v2647 = vshrl.u32 %v2646, 7
    %v2648 = vsub.s32 %v1214, %v2647
    %v2649 = vrot.slane %v2524, %v2648
    %v2650 = vsel %vm1219, %v2649, %v2645
    %v2651 = vlaneseq
    %v2652 = vshrl.u32 %v2651, 7
    %v2653 = vsub.s32 %v1209, %v2652
    %v2654 = vrot.slane %v2527, %v2653
    %v2655 = vlaneseq
    %v2656 = vshrl.u32 %v2655, 7
    %v2657 = vsub.s32 %v1214, %v2656
    %v2658 = vrot.slane %v2530, %v2657
    %v2659 = vsel %vm1219, %v2658, %v2654
    %v2660 = vlaneseq
    %v2661 = vshrl.u32 %v2660, 7
    %v2662 = vsub.s32 %v1209, %v2661
    %v2663 = vrot.slane %v2533, %v2662
    %v2664 = vlaneseq
    %v2665 = vshrl.u32 %v2664, 7
    %v2666 = vsub.s32 %v1214, %v2665
    %v2667 = vrot.slane %v2536, %v2666
    %v2668 = vsel %vm1219, %v2667, %v2663
    %v2669 = vlaneseq
    %v2670 = vshrl.u32 %v2669, 7
    %v2671 = vsub.s32 %v1209, %v2670
    %v2672 = vrot.slane %v2539, %v2671
    %v2673 = vlaneseq
    %v2674 = vshrl.u32 %v2673, 7
    %v2675 = vsub.s32 %v1214, %v2674
    %v2676 = vrot.slane %v2542, %v2675
    %v2677 = vsel %vm1219, %v2676, %v2672
    %v2678 = vlaneseq
    %v2679 = vshrl.u32 %v2678, 7
    %v2680 = vsub.s32 %v1209, %v2679
    %v2681 = vrot.slane %v2545, %v2680
    %v2682 = vlaneseq
    %v2683 = vshrl.u32 %v2682, 7
    %v2684 = vsub.s32 %v1214, %v2683
    %v2685 = vrot.slane %v2548, %v2684
    %v2686 = vsel %vm1219, %v2685, %v2681
    %v2687 = vlaneseq
    %v2688 = vshrl.u32 %v2687, 7
    %v2689 = vsub.s32 %v1209, %v2688
    %v2690 = vrot.slane %v2551, %v2689
    %v2691 = vlaneseq
    %v2692 = vshrl.u32 %v2691, 7
    %v2693 = vsub.s32 %v1214, %v2692
    %v2694 = vrot.slane %v2554, %v2693
    %v2695 = vsel %vm1219, %v2694, %v2690
    %v2696 = vlaneseq
    %v2697 = vshrl.u32 %v2696, 7
    %v2698 = vsub.s32 %v1209, %v2697
    %v2699 = vrot.slane %v2557, %v2698
    %v2700 = vlaneseq
    %v2701 = vshrl.u32 %v2700, 7
    %v2702 = vsub.s32 %v1214, %v2701
    %v2703 = vrot.slane %v2560, %v2702
    %v2704 = vsel %vm1219, %v2703, %v2699
    %v2705 = vsel %vm1356, %v2578, %v2569
    %v2706 = vsel %vm1358, %v2587, %v2705
    %v2707 = vsel %vm1360, %v2596, %v2706
    %v2708 = vsel %vm1362, %v2605, %v2707
    %v2709 = vsel %vm1364, %v2614, %v2708
    %v2710 = vsel %vm1366, %v2623, %v2709
    %v2711 = vsel %vm1368, %v2632, %v2710
    %v2712 = vsel %vm1356, %v2650, %v2641
    %v2713 = vsel %vm1358, %v2659, %v2712
    %v2714 = vsel %vm1360, %v2668, %v2713
    %v2715 = vsel %vm1362, %v2677, %v2714
    %v2716 = vsel %vm1364, %v2686, %v2715
    %v2717 = vsel %vm1366, %v2695, %v2716
    %v2718 = vsel %vm1368, %v2704, %v2717
    %v2721 = vsel %vm89, %v2711, -inf
    %2722 = vmax.xlane.f32.xlu0 %v2721
    %v2723 = vpop.xlane.xlu0 %2722
    %v2724 = vsel %vm89, %v2718, -inf
    %2725 = vmax.xlane.f32.xlu0 %v2724
    %v2726 = vpop.xlane.xlu0 %2725
    %v2729 = vlaneseq
    %v2730 = vshrl.u32 %v2729, 7
    %v2731 = vsub.s32 0, %v2730
    %v2732 = vrot.slane %v2723, %v2731
    %v2733 = vlaneseq
    %v2734 = vshrl.u32 %v2733, 7
    %v2735 = vsub.s32 1, %v2734
    %v2736 = vrot.slane %v2723, %v2735
    %v2737 = vlaneseq
    %v2738 = vshrl.u32 %v2737, 7
    %v2739 = vsub.s32 2, %v2738
    %v2740 = vrot.slane %v2723, %v2739
    %v2741 = vlaneseq
    %v2742 = vshrl.u32 %v2741, 7
    %v2743 = vsub.s32 3, %v2742
    %v2744 = vrot.slane %v2723, %v2743
    %v2745 = vlaneseq
    %v2746 = vshrl.u32 %v2745, 7
    %v2747 = vsub.s32 4, %v2746
    %v2748 = vrot.slane %v2723, %v2747
    %v2749 = vlaneseq
    %v2750 = vshrl.u32 %v2749, 7
    %v2751 = vsub.s32 5, %v2750
    %v2752 = vrot.slane %v2723, %v2751
    %v2753 = vlaneseq
    %v2754 = vshrl.u32 %v2753, 7
    %v2755 = vsub.s32 6, %v2754
    %v2756 = vrot.slane %v2723, %v2755
    %v2757 = vlaneseq
    %v2758 = vshrl.u32 %v2757, 7
    %v2759 = vsub.s32 7, %v2758
    %v2760 = vrot.slane %v2723, %v2759
    %v2761 = vlaneseq
    %v2762 = vshrl.u32 %v2761, 7
    %v2763 = vsub.s32 0, %v2762
    %v2764 = vrot.slane %v2726, %v2763
    %v2765 = vlaneseq
    %v2766 = vshrl.u32 %v2765, 7
    %v2767 = vsub.s32 1, %v2766
    %v2768 = vrot.slane %v2726, %v2767
    %v2769 = vlaneseq
    %v2770 = vshrl.u32 %v2769, 7
    %v2771 = vsub.s32 2, %v2770
    %v2772 = vrot.slane %v2726, %v2771
    %v2773 = vlaneseq
    %v2774 = vshrl.u32 %v2773, 7
    %v2775 = vsub.s32 3, %v2774
    %v2776 = vrot.slane %v2726, %v2775
    %v2777 = vlaneseq
    %v2778 = vshrl.u32 %v2777, 7
    %v2779 = vsub.s32 4, %v2778
    %v2780 = vrot.slane %v2726, %v2779
    %v2781 = vlaneseq
    %v2782 = vshrl.u32 %v2781, 7
    %v2783 = vsub.s32 5, %v2782
    %v2784 = vrot.slane %v2726, %v2783
    %v2785 = vlaneseq
    %v2786 = vshrl.u32 %v2785, 7
    %v2787 = vsub.s32 6, %v2786
    %v2788 = vrot.slane %v2726, %v2787
    %v2789 = vlaneseq
    %v2790 = vshrl.u32 %v2789, 7
    %v2791 = vsub.s32 7, %v2790
    %v2792 = vrot.slane %v2726, %v2791
    %v2809 = vsub.f32 %v2401, %v2732
    %v2810 = vsub.f32 %v2402, %v2732
    %v2811 = vsub.f32 %v2403, %v2736
    %v2812 = vsub.f32 %v2404, %v2736
    %v2813 = vsub.f32 %v2405, %v2740
    %v2814 = vsub.f32 %v2406, %v2740
    %v2815 = vsub.f32 %v2407, %v2744
    %v2816 = vsub.f32 %v2408, %v2744
    %v2817 = vsub.f32 %v2409, %v2748
    %v2818 = vsub.f32 %v2410, %v2748
    %v2819 = vsub.f32 %v2411, %v2752
    %v2820 = vsub.f32 %v2412, %v2752
    %v2821 = vsub.f32 %v2413, %v2756
    %v2822 = vsub.f32 %v2414, %v2756
    %v2823 = vsub.f32 %v2415, %v2760
    %v2824 = vsub.f32 %v2416, %v2760
    %v2825 = vsub.f32 %v2417, %v2764
    %v2826 = vsub.f32 %v2418, %v2764
    %v2827 = vsub.f32 %v2419, %v2768
    %v2828 = vsub.f32 %v2420, %v2768
    %v2829 = vsub.f32 %v2421, %v2772
    %v2830 = vsub.f32 %v2422, %v2772
    %v2831 = vsub.f32 %v2423, %v2776
    %v2832 = vsub.f32 %v2424, %v2776
    %v2833 = vsub.f32 %v2425, %v2780
    %v2834 = vsub.f32 %v2426, %v2780
    %v2835 = vsub.f32 %v2427, %v2784
    %v2836 = vsub.f32 %v2428, %v2784
    %v2837 = vsub.f32 %v2429, %v2788
    %v2838 = vsub.f32 %v2430, %v2788
    %v2839 = vsub.f32 %v2431, %v2792
    %v2840 = vsub.f32 %v2432, %v2792
    %v2841 = vmul.f32 %v2809, 1.442695
    %v2842 = vpow.pop %v2841
    %v2843 = vmul.f32 %v2810, 1.442695
    %v2844 = vpow.pop %v2843
    %v2845 = vmul.f32 %v2811, 1.442695
    %v2846 = vpow.pop %v2845
    %v2847 = vmul.f32 %v2812, 1.442695
    %v2848 = vpow.pop %v2847
    %v2849 = vmul.f32 %v2813, 1.442695
    %v2850 = vpow.pop %v2849
    %v2851 = vmul.f32 %v2814, 1.442695
    %v2852 = vpow.pop %v2851
    %v2853 = vmul.f32 %v2815, 1.442695
    %v2854 = vpow.pop %v2853
    %v2855 = vmul.f32 %v2816, 1.442695
    %v2856 = vpow.pop %v2855
    %v2857 = vmul.f32 %v2817, 1.442695
    %v2858 = vpow.pop %v2857
    %v2859 = vmul.f32 %v2818, 1.442695
    %v2860 = vpow.pop %v2859
    %v2861 = vmul.f32 %v2819, 1.442695
    %v2862 = vpow.pop %v2861
    %v2863 = vmul.f32 %v2820, 1.442695
    %v2864 = vpow.pop %v2863
    %v2865 = vmul.f32 %v2821, 1.442695
    %v2866 = vpow.pop %v2865
    %v2867 = vmul.f32 %v2822, 1.442695
    %v2868 = vpow.pop %v2867
    %v2869 = vmul.f32 %v2823, 1.442695
    %v2870 = vpow.pop %v2869
    %v2871 = vmul.f32 %v2824, 1.442695
    %v2872 = vpow.pop %v2871
    %v2873 = vmul.f32 %v2825, 1.442695
    %v2874 = vpow.pop %v2873
    %v2875 = vmul.f32 %v2826, 1.442695
    %v2876 = vpow.pop %v2875
    %v2877 = vmul.f32 %v2827, 1.442695
    %v2878 = vpow.pop %v2877
    %v2879 = vmul.f32 %v2828, 1.442695
    %v2880 = vpow.pop %v2879
    %v2881 = vmul.f32 %v2829, 1.442695
    %v2882 = vpow.pop %v2881
    %v2883 = vmul.f32 %v2830, 1.442695
    %v2884 = vpow.pop %v2883
    %v2885 = vmul.f32 %v2831, 1.442695
    %v2886 = vpow.pop %v2885
    %v2887 = vmul.f32 %v2832, 1.442695
    %v2888 = vpow.pop %v2887
    %v2889 = vmul.f32 %v2833, 1.442695
    %v2890 = vpow.pop %v2889
    %v2891 = vmul.f32 %v2834, 1.442695
    %v2892 = vpow.pop %v2891
    %v2893 = vmul.f32 %v2835, 1.442695
    %v2894 = vpow.pop %v2893
    %v2895 = vmul.f32 %v2836, 1.442695
    %v2896 = vpow.pop %v2895
    %v2897 = vmul.f32 %v2837, 1.442695
    %v2898 = vpow.pop %v2897
    %v2899 = vmul.f32 %v2838, 1.442695
    %v2900 = vpow.pop %v2899
    %v2901 = vmul.f32 %v2839, 1.442695
    %v2902 = vpow.pop %v2901
    %v2903 = vmul.f32 %v2840, 1.442695
    %v2904 = vpow.pop %v2903
    %2937 = vset.pattern.permute.xlu0 0
    %2938 = vperm.xlu0 %2937, %v2842
    %v2939 = vpop.permute.xlu0 %2938
    %2940 = vset.pattern.permute.xlu0 0
    %2941 = vperm.xlu0 %2940, %v2844
    %v2942 = vpop.permute.xlu0 %2941
    %2943 = vset.pattern.permute.xlu0 0
    %2944 = vperm.xlu0 %2943, %v2846
    %v2945 = vpop.permute.xlu0 %2944
    %2946 = vset.pattern.permute.xlu0 0
    %2947 = vperm.xlu0 %2946, %v2848
    %v2948 = vpop.permute.xlu0 %2947
    %2949 = vset.pattern.permute.xlu0 0
    %2950 = vperm.xlu0 %2949, %v2850
    %v2951 = vpop.permute.xlu0 %2950
    %2952 = vset.pattern.permute.xlu0 0
    %2953 = vperm.xlu0 %2952, %v2852
    %v2954 = vpop.permute.xlu0 %2953
    %2955 = vset.pattern.permute.xlu0 0
    %2956 = vperm.xlu0 %2955, %v2854
    %v2957 = vpop.permute.xlu0 %2956
    %2958 = vset.pattern.permute.xlu0 0
    %2959 = vperm.xlu0 %2958, %v2856
    %v2960 = vpop.permute.xlu0 %2959
    %2961 = vset.pattern.permute.xlu0 0
    %2962 = vperm.xlu0 %2961, %v2858
    %v2963 = vpop.permute.xlu0 %2962
    %2964 = vset.pattern.permute.xlu0 0
    %2965 = vperm.xlu0 %2964, %v2860
    %v2966 = vpop.permute.xlu0 %2965
    %2967 = vset.pattern.permute.xlu0 0
    %2968 = vperm.xlu0 %2967, %v2862
    %v2969 = vpop.permute.xlu0 %2968
    %2970 = vset.pattern.permute.xlu0 0
    %2971 = vperm.xlu0 %2970, %v2864
    %v2972 = vpop.permute.xlu0 %2971
    %2973 = vset.pattern.permute.xlu0 0
    %2974 = vperm.xlu0 %2973, %v2866
    %v2975 = vpop.permute.xlu0 %2974
    %2976 = vset.pattern.permute.xlu0 0
    %2977 = vperm.xlu0 %2976, %v2868
    %v2978 = vpop.permute.xlu0 %2977
    %2979 = vset.pattern.permute.xlu0 0
    %2980 = vperm.xlu0 %2979, %v2870
    %v2981 = vpop.permute.xlu0 %2980
    %2982 = vset.pattern.permute.xlu0 0
    %2983 = vperm.xlu0 %2982, %v2872
    %v2984 = vpop.permute.xlu0 %2983
    %2985 = vset.pattern.permute.xlu0 0
    %2986 = vperm.xlu0 %2985, %v2874
    %v2987 = vpop.permute.xlu0 %2986
    %2988 = vset.pattern.permute.xlu0 0
    %2989 = vperm.xlu0 %2988, %v2876
    %v2990 = vpop.permute.xlu0 %2989
    %2991 = vset.pattern.permute.xlu0 0
    %2992 = vperm.xlu0 %2991, %v2878
    %v2993 = vpop.permute.xlu0 %2992
    %2994 = vset.pattern.permute.xlu0 0
    %2995 = vperm.xlu0 %2994, %v2880
    %v2996 = vpop.permute.xlu0 %2995
    %2997 = vset.pattern.permute.xlu0 0
    %2998 = vperm.xlu0 %2997, %v2882
    %v2999 = vpop.permute.xlu0 %2998
    %3000 = vset.pattern.permute.xlu0 0
    %3001 = vperm.xlu0 %3000, %v2884
    %v3002 = vpop.permute.xlu0 %3001
    %3003 = vset.pattern.permute.xlu0 0
    %3004 = vperm.xlu0 %3003, %v2886
    %v3005 = vpop.permute.xlu0 %3004
    %3006 = vset.pattern.permute.xlu0 0
    %3007 = vperm.xlu0 %3006, %v2888
    %v3008 = vpop.permute.xlu0 %3007
    %3009 = vset.pattern.permute.xlu0 0
    %3010 = vperm.xlu0 %3009, %v2890
    %v3011 = vpop.permute.xlu0 %3010
    %3012 = vset.pattern.permute.xlu0 0
    %3013 = vperm.xlu0 %3012, %v2892
    %v3014 = vpop.permute.xlu0 %3013
    %3015 = vset.pattern.permute.xlu0 0
    %3016 = vperm.xlu0 %3015, %v2894
    %v3017 = vpop.permute.xlu0 %3016
    %3018 = vset.pattern.permute.xlu0 0
    %3019 = vperm.xlu0 %3018, %v2896
    %v3020 = vpop.permute.xlu0 %3019
    %3021 = vset.pattern.permute.xlu0 0
    %3022 = vperm.xlu0 %3021, %v2898
    %v3023 = vpop.permute.xlu0 %3022
    %3024 = vset.pattern.permute.xlu0 0
    %3025 = vperm.xlu0 %3024, %v2900
    %v3026 = vpop.permute.xlu0 %3025
    %3027 = vset.pattern.permute.xlu0 0
    %3028 = vperm.xlu0 %3027, %v2902
    %v3029 = vpop.permute.xlu0 %3028
    %3030 = vset.pattern.permute.xlu0 0
    %3031 = vperm.xlu0 %3030, %v2904
    %v3032 = vpop.permute.xlu0 %3031
    %v3033 = vlaneseq
    %v3034 = vshrl.u32 %v3033, 7
    %v3035 = vsub.s32 %v1209, %v3034
    %v3036 = vrot.slane %v2939, %v3035
    %v3037 = vlaneseq
    %v3038 = vshrl.u32 %v3037, 7
    %v3039 = vsub.s32 %v1214, %v3038
    %v3040 = vrot.slane %v2942, %v3039
    %v3041 = vsel %vm1219, %v3040, %v3036
    %v3042 = vlaneseq
    %v3043 = vshrl.u32 %v3042, 7
    %v3044 = vsub.s32 %v1209, %v3043
    %v3045 = vrot.slane %v2945, %v3044
    %v3046 = vlaneseq
    %v3047 = vshrl.u32 %v3046, 7
    %v3048 = vsub.s32 %v1214, %v3047
    %v3049 = vrot.slane %v2948, %v3048
    %v3050 = vsel %vm1219, %v3049, %v3045
    %v3051 = vlaneseq
    %v3052 = vshrl.u32 %v3051, 7
    %v3053 = vsub.s32 %v1209, %v3052
    %v3054 = vrot.slane %v2951, %v3053
    %v3055 = vlaneseq
    %v3056 = vshrl.u32 %v3055, 7
    %v3057 = vsub.s32 %v1214, %v3056
    %v3058 = vrot.slane %v2954, %v3057
    %v3059 = vsel %vm1219, %v3058, %v3054
    %v3060 = vlaneseq
    %v3061 = vshrl.u32 %v3060, 7
    %v3062 = vsub.s32 %v1209, %v3061
    %v3063 = vrot.slane %v2957, %v3062
    %v3064 = vlaneseq
    %v3065 = vshrl.u32 %v3064, 7
    %v3066 = vsub.s32 %v1214, %v3065
    %v3067 = vrot.slane %v2960, %v3066
    %v3068 = vsel %vm1219, %v3067, %v3063
    %v3069 = vlaneseq
    %v3070 = vshrl.u32 %v3069, 7
    %v3071 = vsub.s32 %v1209, %v3070
    %v3072 = vrot.slane %v2963, %v3071
    %v3073 = vlaneseq
    %v3074 = vshrl.u32 %v3073, 7
    %v3075 = vsub.s32 %v1214, %v3074
    %v3076 = vrot.slane %v2966, %v3075
    %v3077 = vsel %vm1219, %v3076, %v3072
    %v3078 = vlaneseq
    %v3079 = vshrl.u32 %v3078, 7
    %v3080 = vsub.s32 %v1209, %v3079
    %v3081 = vrot.slane %v2969, %v3080
    %v3082 = vlaneseq
    %v3083 = vshrl.u32 %v3082, 7
    %v3084 = vsub.s32 %v1214, %v3083
    %v3085 = vrot.slane %v2972, %v3084
    %v3086 = vsel %vm1219, %v3085, %v3081
    %v3087 = vlaneseq
    %v3088 = vshrl.u32 %v3087, 7
    %v3089 = vsub.s32 %v1209, %v3088
    %v3090 = vrot.slane %v2975, %v3089
    %v3091 = vlaneseq
    %v3092 = vshrl.u32 %v3091, 7
    %v3093 = vsub.s32 %v1214, %v3092
    %v3094 = vrot.slane %v2978, %v3093
    %v3095 = vsel %vm1219, %v3094, %v3090
    %v3096 = vlaneseq
    %v3097 = vshrl.u32 %v3096, 7
    %v3098 = vsub.s32 %v1209, %v3097
    %v3099 = vrot.slane %v2981, %v3098
    %v3100 = vlaneseq
    %v3101 = vshrl.u32 %v3100, 7
    %v3102 = vsub.s32 %v1214, %v3101
    %v3103 = vrot.slane %v2984, %v3102
    %v3104 = vsel %vm1219, %v3103, %v3099
    %v3105 = vlaneseq
    %v3106 = vshrl.u32 %v3105, 7
    %v3107 = vsub.s32 %v1209, %v3106
    %v3108 = vrot.slane %v2987, %v3107
    %v3109 = vlaneseq
    %v3110 = vshrl.u32 %v3109, 7
    %v3111 = vsub.s32 %v1214, %v3110
    %v3112 = vrot.slane %v2990, %v3111
    %v3113 = vsel %vm1219, %v3112, %v3108
    %v3114 = vlaneseq
    %v3115 = vshrl.u32 %v3114, 7
    %v3116 = vsub.s32 %v1209, %v3115
    %v3117 = vrot.slane %v2993, %v3116
    %v3118 = vlaneseq
    %v3119 = vshrl.u32 %v3118, 7
    %v3120 = vsub.s32 %v1214, %v3119
    %v3121 = vrot.slane %v2996, %v3120
    %v3122 = vsel %vm1219, %v3121, %v3117
    %v3123 = vlaneseq
    %v3124 = vshrl.u32 %v3123, 7
    %v3125 = vsub.s32 %v1209, %v3124
    %v3126 = vrot.slane %v2999, %v3125
    %v3127 = vlaneseq
    %v3128 = vshrl.u32 %v3127, 7
    %v3129 = vsub.s32 %v1214, %v3128
    %v3130 = vrot.slane %v3002, %v3129
    %v3131 = vsel %vm1219, %v3130, %v3126
    %v3132 = vlaneseq
    %v3133 = vshrl.u32 %v3132, 7
    %v3134 = vsub.s32 %v1209, %v3133
    %v3135 = vrot.slane %v3005, %v3134
    %v3136 = vlaneseq
    %v3137 = vshrl.u32 %v3136, 7
    %v3138 = vsub.s32 %v1214, %v3137
    %v3139 = vrot.slane %v3008, %v3138
    %v3140 = vsel %vm1219, %v3139, %v3135
    %v3141 = vlaneseq
    %v3142 = vshrl.u32 %v3141, 7
    %v3143 = vsub.s32 %v1209, %v3142
    %v3144 = vrot.slane %v3011, %v3143
    %v3145 = vlaneseq
    %v3146 = vshrl.u32 %v3145, 7
    %v3147 = vsub.s32 %v1214, %v3146
    %v3148 = vrot.slane %v3014, %v3147
    %v3149 = vsel %vm1219, %v3148, %v3144
    %v3150 = vlaneseq
    %v3151 = vshrl.u32 %v3150, 7
    %v3152 = vsub.s32 %v1209, %v3151
    %v3153 = vrot.slane %v3017, %v3152
    %v3154 = vlaneseq
    %v3155 = vshrl.u32 %v3154, 7
    %v3156 = vsub.s32 %v1214, %v3155
    %v3157 = vrot.slane %v3020, %v3156
    %v3158 = vsel %vm1219, %v3157, %v3153
    %v3159 = vlaneseq
    %v3160 = vshrl.u32 %v3159, 7
    %v3161 = vsub.s32 %v1209, %v3160
    %v3162 = vrot.slane %v3023, %v3161
    %v3163 = vlaneseq
    %v3164 = vshrl.u32 %v3163, 7
    %v3165 = vsub.s32 %v1214, %v3164
    %v3166 = vrot.slane %v3026, %v3165
    %v3167 = vsel %vm1219, %v3166, %v3162
    %v3168 = vlaneseq
    %v3169 = vshrl.u32 %v3168, 7
    %v3170 = vsub.s32 %v1209, %v3169
    %v3171 = vrot.slane %v3029, %v3170
    %v3172 = vlaneseq
    %v3173 = vshrl.u32 %v3172, 7
    %v3174 = vsub.s32 %v1214, %v3173
    %v3175 = vrot.slane %v3032, %v3174
    %v3176 = vsel %vm1219, %v3175, %v3171
    %v3177 = vsel %vm1356, %v3050, %v3041
    %v3178 = vsel %vm1358, %v3059, %v3177
    %v3179 = vsel %vm1360, %v3068, %v3178
    %v3180 = vsel %vm1362, %v3077, %v3179
    %v3181 = vsel %vm1364, %v3086, %v3180
    %v3182 = vsel %vm1366, %v3095, %v3181
    %v3183 = vsel %vm1368, %v3104, %v3182
    %v3184 = vsel %vm1356, %v3122, %v3113
    %v3185 = vsel %vm1358, %v3131, %v3184
    %v3186 = vsel %vm1360, %v3140, %v3185
    %v3187 = vsel %vm1362, %v3149, %v3186
    %v3188 = vsel %vm1364, %v3158, %v3187
    %v3189 = vsel %vm1366, %v3167, %v3188
    %v3190 = vsel %vm1368, %v3176, %v3189
    %v3193 = vsel %vm89, %v3183, 0.0
    %3194 = vadd.xlane.f32.xlu0 %v3193
    %v3195 = vpop.xlane.xlu0 %3194
    %v3196 = vsel %vm89, %v3190, 0.0
    %3197 = vadd.xlane.f32.xlu0 %v3196
    %v3198 = vpop.xlane.xlu0 %3197
    %v3199 = vrcp.pop %v3195
    %v3200 = vrcp.pop %v3198
    %v3203 = vlaneseq
    %v3204 = vshrl.u32 %v3203, 7
    %v3205 = vsub.s32 0, %v3204
    %v3206 = vrot.slane %v3199, %v3205
    %v3207 = vlaneseq
    %v3208 = vshrl.u32 %v3207, 7
    %v3209 = vsub.s32 1, %v3208
    %v3210 = vrot.slane %v3199, %v3209
    %v3211 = vlaneseq
    %v3212 = vshrl.u32 %v3211, 7
    %v3213 = vsub.s32 2, %v3212
    %v3214 = vrot.slane %v3199, %v3213
    %v3215 = vlaneseq
    %v3216 = vshrl.u32 %v3215, 7
    %v3217 = vsub.s32 3, %v3216
    %v3218 = vrot.slane %v3199, %v3217
    %v3219 = vlaneseq
    %v3220 = vshrl.u32 %v3219, 7
    %v3221 = vsub.s32 4, %v3220
    %v3222 = vrot.slane %v3199, %v3221
    %v3223 = vlaneseq
    %v3224 = vshrl.u32 %v3223, 7
    %v3225 = vsub.s32 5, %v3224
    %v3226 = vrot.slane %v3199, %v3225
    %v3227 = vlaneseq
    %v3228 = vshrl.u32 %v3227, 7
    %v3229 = vsub.s32 6, %v3228
    %v3230 = vrot.slane %v3199, %v3229
    %v3231 = vlaneseq
    %v3232 = vshrl.u32 %v3231, 7
    %v3233 = vsub.s32 7, %v3232
    %v3234 = vrot.slane %v3199, %v3233
    %v3235 = vlaneseq
    %v3236 = vshrl.u32 %v3235, 7
    %v3237 = vsub.s32 0, %v3236
    %v3238 = vrot.slane %v3200, %v3237
    %v3239 = vlaneseq
    %v3240 = vshrl.u32 %v3239, 7
    %v3241 = vsub.s32 1, %v3240
    %v3242 = vrot.slane %v3200, %v3241
    %v3243 = vlaneseq
    %v3244 = vshrl.u32 %v3243, 7
    %v3245 = vsub.s32 2, %v3244
    %v3246 = vrot.slane %v3200, %v3245
    %v3247 = vlaneseq
    %v3248 = vshrl.u32 %v3247, 7
    %v3249 = vsub.s32 3, %v3248
    %v3250 = vrot.slane %v3200, %v3249
    %v3251 = vlaneseq
    %v3252 = vshrl.u32 %v3251, 7
    %v3253 = vsub.s32 4, %v3252
    %v3254 = vrot.slane %v3200, %v3253
    %v3255 = vlaneseq
    %v3256 = vshrl.u32 %v3255, 7
    %v3257 = vsub.s32 5, %v3256
    %v3258 = vrot.slane %v3200, %v3257
    %v3259 = vlaneseq
    %v3260 = vshrl.u32 %v3259, 7
    %v3261 = vsub.s32 6, %v3260
    %v3262 = vrot.slane %v3200, %v3261
    %v3263 = vlaneseq
    %v3264 = vshrl.u32 %v3263, 7
    %v3265 = vsub.s32 7, %v3264
    %v3266 = vrot.slane %v3200, %v3265
    %v3283 = vmul.f32 %v2842, %v3206
    %v3284 = vmul.f32 %v2844, %v3206
    %v3285 = vmul.f32 %v2846, %v3210
    %v3286 = vmul.f32 %v2848, %v3210
    %v3287 = vmul.f32 %v2850, %v3214
    %v3288 = vmul.f32 %v2852, %v3214
    %v3289 = vmul.f32 %v2854, %v3218
    %v3290 = vmul.f32 %v2856, %v3218
    %v3291 = vmul.f32 %v2858, %v3222
    %v3292 = vmul.f32 %v2860, %v3222
    %v3293 = vmul.f32 %v2862, %v3226
    %v3294 = vmul.f32 %v2864, %v3226
    %v3295 = vmul.f32 %v2866, %v3230
    %v3296 = vmul.f32 %v2868, %v3230
    %v3297 = vmul.f32 %v2870, %v3234
    %v3298 = vmul.f32 %v2872, %v3234
    %v3299 = vmul.f32 %v2874, %v3238
    %v3300 = vmul.f32 %v2876, %v3238
    %v3301 = vmul.f32 %v2878, %v3242
    %v3302 = vmul.f32 %v2880, %v3242
    %v3303 = vmul.f32 %v2882, %v3246
    %v3304 = vmul.f32 %v2884, %v3246
    %v3305 = vmul.f32 %v2886, %v3250
    %v3306 = vmul.f32 %v2888, %v3250
    %v3307 = vmul.f32 %v2890, %v3254
    %v3308 = vmul.f32 %v2892, %v3254
    %v3309 = vmul.f32 %v2894, %v3258
    %v3310 = vmul.f32 %v2896, %v3258
    %v3311 = vmul.f32 %v2898, %v3262
    %v3312 = vmul.f32 %v2900, %v3262
    %v3313 = vmul.f32 %v2902, %v3266
    %v3314 = vmul.f32 %v2904, %v3266
    %v3315 = vpack.c.bf16 %v3284, %v3283
    %v3316 = vpack.c.bf16 %v3286, %v3285
    %v3317 = vpack.c.bf16 %v3288, %v3287
    %v3318 = vpack.c.bf16 %v3290, %v3289
    %v3319 = vpack.c.bf16 %v3292, %v3291
    %v3320 = vpack.c.bf16 %v3294, %v3293
    %v3321 = vpack.c.bf16 %v3296, %v3295
    %v3322 = vpack.c.bf16 %v3298, %v3297
    %v3323 = vpack.c.bf16 %v3300, %v3299
    %v3324 = vpack.c.bf16 %v3302, %v3301
    %v3325 = vpack.c.bf16 %v3304, %v3303
    %v3326 = vpack.c.bf16 %v3306, %v3305
    %v3327 = vpack.c.bf16 %v3308, %v3307
    %v3328 = vpack.c.bf16 %v3310, %v3309
    %v3329 = vpack.c.bf16 %v3312, %v3311
    %v3330 = vpack.c.bf16 %v3314, %v3313
    %v3331 = vpack.c.bf16 %v134, %v130
    %v3348 = vunpack.c.l.b16 %v3315
    %v3349 = vunpack.c.h.b16 %v3315
    %v3350 = vunpack.c.l.b16 %v3316
    %v3351 = vunpack.c.h.b16 %v3316
    %v3352 = vunpack.c.l.b16 %v3317
    %v3353 = vunpack.c.h.b16 %v3317
    %v3354 = vunpack.c.l.b16 %v3318
    %v3355 = vunpack.c.h.b16 %v3318
    %v3356 = vunpack.c.l.b16 %v3319
    %v3357 = vunpack.c.h.b16 %v3319
    %v3358 = vunpack.c.l.b16 %v3320
    %v3359 = vunpack.c.h.b16 %v3320
    %v3360 = vunpack.c.l.b16 %v3321
    %v3361 = vunpack.c.h.b16 %v3321
    %v3362 = vunpack.c.l.b16 %v3322
    %v3363 = vunpack.c.h.b16 %v3322
    %v3364 = vunpack.c.l.b16 %v3323
    %v3365 = vunpack.c.h.b16 %v3323
    %v3366 = vunpack.c.l.b16 %v3324
    %v3367 = vunpack.c.h.b16 %v3324
    %v3368 = vunpack.c.l.b16 %v3325
    %v3369 = vunpack.c.h.b16 %v3325
    %v3370 = vunpack.c.l.b16 %v3326
    %v3371 = vunpack.c.h.b16 %v3326
    %v3372 = vunpack.c.l.b16 %v3327
    %v3373 = vunpack.c.h.b16 %v3327
    %v3374 = vunpack.c.l.b16 %v3328
    %v3375 = vunpack.c.h.b16 %v3328
    %v3376 = vunpack.c.l.b16 %v3329
    %v3377 = vunpack.c.h.b16 %v3329
    %v3378 = vunpack.c.l.b16 %v3330
    %v3379 = vunpack.c.h.b16 %v3330
    %3380 = vset.pattern.permute.xlu0 0
    %3381 = vperm.xlu0 %3380, %v3348
    %v3382 = vpop.permute.xlu0 %3381
    %3383 = vset.pattern.permute.xlu0 0
    %3384 = vperm.xlu0 %3383, %v3349
    %v3385 = vpop.permute.xlu0 %3384
    %3386 = vset.pattern.permute.xlu0 0
    %3387 = vperm.xlu0 %3386, %v3350
    %v3388 = vpop.permute.xlu0 %3387
    %3389 = vset.pattern.permute.xlu0 0
    %3390 = vperm.xlu0 %3389, %v3351
    %v3391 = vpop.permute.xlu0 %3390
    %3392 = vset.pattern.permute.xlu0 0
    %3393 = vperm.xlu0 %3392, %v3352
    %v3394 = vpop.permute.xlu0 %3393
    %3395 = vset.pattern.permute.xlu0 0
    %3396 = vperm.xlu0 %3395, %v3353
    %v3397 = vpop.permute.xlu0 %3396
    %3398 = vset.pattern.permute.xlu0 0
    %3399 = vperm.xlu0 %3398, %v3354
    %v3400 = vpop.permute.xlu0 %3399
    %3401 = vset.pattern.permute.xlu0 0
    %3402 = vperm.xlu0 %3401, %v3355
    %v3403 = vpop.permute.xlu0 %3402
    %3404 = vset.pattern.permute.xlu0 0
    %3405 = vperm.xlu0 %3404, %v3356
    %v3406 = vpop.permute.xlu0 %3405
    %3407 = vset.pattern.permute.xlu0 0
    %3408 = vperm.xlu0 %3407, %v3357
    %v3409 = vpop.permute.xlu0 %3408
    %3410 = vset.pattern.permute.xlu0 0
    %3411 = vperm.xlu0 %3410, %v3358
    %v3412 = vpop.permute.xlu0 %3411
    %3413 = vset.pattern.permute.xlu0 0
    %3414 = vperm.xlu0 %3413, %v3359
    %v3415 = vpop.permute.xlu0 %3414
    %3416 = vset.pattern.permute.xlu0 0
    %3417 = vperm.xlu0 %3416, %v3360
    %v3418 = vpop.permute.xlu0 %3417
    %3419 = vset.pattern.permute.xlu0 0
    %3420 = vperm.xlu0 %3419, %v3361
    %v3421 = vpop.permute.xlu0 %3420
    %3422 = vset.pattern.permute.xlu0 0
    %3423 = vperm.xlu0 %3422, %v3362
    %v3424 = vpop.permute.xlu0 %3423
    %3425 = vset.pattern.permute.xlu0 0
    %3426 = vperm.xlu0 %3425, %v3363
    %v3427 = vpop.permute.xlu0 %3426
    %3428 = vset.pattern.permute.xlu0 0
    %3429 = vperm.xlu0 %3428, %v3364
    %v3430 = vpop.permute.xlu0 %3429
    %3431 = vset.pattern.permute.xlu0 0
    %3432 = vperm.xlu0 %3431, %v3365
    %v3433 = vpop.permute.xlu0 %3432
    %3434 = vset.pattern.permute.xlu0 0
    %3435 = vperm.xlu0 %3434, %v3366
    %v3436 = vpop.permute.xlu0 %3435
    %3437 = vset.pattern.permute.xlu0 0
    %3438 = vperm.xlu0 %3437, %v3367
    %v3439 = vpop.permute.xlu0 %3438
    %3440 = vset.pattern.permute.xlu0 0
    %3441 = vperm.xlu0 %3440, %v3368
    %v3442 = vpop.permute.xlu0 %3441
    %3443 = vset.pattern.permute.xlu0 0
    %3444 = vperm.xlu0 %3443, %v3369
    %v3445 = vpop.permute.xlu0 %3444
    %3446 = vset.pattern.permute.xlu0 0
    %3447 = vperm.xlu0 %3446, %v3370
    %v3448 = vpop.permute.xlu0 %3447
    %3449 = vset.pattern.permute.xlu0 0
    %3450 = vperm.xlu0 %3449, %v3371
    %v3451 = vpop.permute.xlu0 %3450
    %3452 = vset.pattern.permute.xlu0 0
    %3453 = vperm.xlu0 %3452, %v3372
    %v3454 = vpop.permute.xlu0 %3453
    %3455 = vset.pattern.permute.xlu0 0
    %3456 = vperm.xlu0 %3455, %v3373
    %v3457 = vpop.permute.xlu0 %3456
    %3458 = vset.pattern.permute.xlu0 0
    %3459 = vperm.xlu0 %3458, %v3374
    %v3460 = vpop.permute.xlu0 %3459
    %3461 = vset.pattern.permute.xlu0 0
    %3462 = vperm.xlu0 %3461, %v3375
    %v3463 = vpop.permute.xlu0 %3462
    %3464 = vset.pattern.permute.xlu0 0
    %3465 = vperm.xlu0 %3464, %v3376
    %v3466 = vpop.permute.xlu0 %3465
    %3467 = vset.pattern.permute.xlu0 0
    %3468 = vperm.xlu0 %3467, %v3377
    %v3469 = vpop.permute.xlu0 %3468
    %3470 = vset.pattern.permute.xlu0 0
    %3471 = vperm.xlu0 %3470, %v3378
    %v3472 = vpop.permute.xlu0 %3471
    %3473 = vset.pattern.permute.xlu0 0
    %3474 = vperm.xlu0 %3473, %v3379
    %v3475 = vpop.permute.xlu0 %3474
    %v3476 = vlaneseq
    %v3477 = vshrl.u32 %v3476, 7
    %v3478 = vsub.s32 %v1209, %v3477
    %v3479 = vrot.slane %v3382, %v3478
    %v3480 = vlaneseq
    %v3481 = vshrl.u32 %v3480, 7
    %v3482 = vsub.s32 %v1214, %v3481
    %v3483 = vrot.slane %v3385, %v3482
    %v3484 = vsel %vm1219, %v3483, %v3479
    %v3485 = vlaneseq
    %v3486 = vshrl.u32 %v3485, 7
    %v3487 = vsub.s32 %v1209, %v3486
    %v3488 = vrot.slane %v3388, %v3487
    %v3489 = vlaneseq
    %v3490 = vshrl.u32 %v3489, 7
    %v3491 = vsub.s32 %v1214, %v3490
    %v3492 = vrot.slane %v3391, %v3491
    %v3493 = vsel %vm1219, %v3492, %v3488
    %v3494 = vlaneseq
    %v3495 = vshrl.u32 %v3494, 7
    %v3496 = vsub.s32 %v1209, %v3495
    %v3497 = vrot.slane %v3394, %v3496
    %v3498 = vlaneseq
    %v3499 = vshrl.u32 %v3498, 7
    %v3500 = vsub.s32 %v1214, %v3499
    %v3501 = vrot.slane %v3397, %v3500
    %v3502 = vsel %vm1219, %v3501, %v3497
    %v3503 = vlaneseq
    %v3504 = vshrl.u32 %v3503, 7
    %v3505 = vsub.s32 %v1209, %v3504
    %v3506 = vrot.slane %v3400, %v3505
    %v3507 = vlaneseq
    %v3508 = vshrl.u32 %v3507, 7
    %v3509 = vsub.s32 %v1214, %v3508
    %v3510 = vrot.slane %v3403, %v3509
    %v3511 = vsel %vm1219, %v3510, %v3506
    %v3512 = vlaneseq
    %v3513 = vshrl.u32 %v3512, 7
    %v3514 = vsub.s32 %v1209, %v3513
    %v3515 = vrot.slane %v3406, %v3514
    %v3516 = vlaneseq
    %v3517 = vshrl.u32 %v3516, 7
    %v3518 = vsub.s32 %v1214, %v3517
    %v3519 = vrot.slane %v3409, %v3518
    %v3520 = vsel %vm1219, %v3519, %v3515
    %v3521 = vlaneseq
    %v3522 = vshrl.u32 %v3521, 7
    %v3523 = vsub.s32 %v1209, %v3522
    %v3524 = vrot.slane %v3412, %v3523
    %v3525 = vlaneseq
    %v3526 = vshrl.u32 %v3525, 7
    %v3527 = vsub.s32 %v1214, %v3526
    %v3528 = vrot.slane %v3415, %v3527
    %v3529 = vsel %vm1219, %v3528, %v3524
    %v3530 = vlaneseq
    %v3531 = vshrl.u32 %v3530, 7
    %v3532 = vsub.s32 %v1209, %v3531
    %v3533 = vrot.slane %v3418, %v3532
    %v3534 = vlaneseq
    %v3535 = vshrl.u32 %v3534, 7
    %v3536 = vsub.s32 %v1214, %v3535
    %v3537 = vrot.slane %v3421, %v3536
    %v3538 = vsel %vm1219, %v3537, %v3533
    %v3539 = vlaneseq
    %v3540 = vshrl.u32 %v3539, 7
    %v3541 = vsub.s32 %v1209, %v3540
    %v3542 = vrot.slane %v3424, %v3541
    %v3543 = vlaneseq
    %v3544 = vshrl.u32 %v3543, 7
    %v3545 = vsub.s32 %v1214, %v3544
    %v3546 = vrot.slane %v3427, %v3545
    %v3547 = vsel %vm1219, %v3546, %v3542
    %v3548 = vlaneseq
    %v3549 = vshrl.u32 %v3548, 7
    %v3550 = vsub.s32 %v1209, %v3549
    %v3551 = vrot.slane %v3430, %v3550
    %v3552 = vlaneseq
    %v3553 = vshrl.u32 %v3552, 7
    %v3554 = vsub.s32 %v1214, %v3553
    %v3555 = vrot.slane %v3433, %v3554
    %v3556 = vsel %vm1219, %v3555, %v3551
    %v3557 = vlaneseq
    %v3558 = vshrl.u32 %v3557, 7
    %v3559 = vsub.s32 %v1209, %v3558
    %v3560 = vrot.slane %v3436, %v3559
    %v3561 = vlaneseq
    %v3562 = vshrl.u32 %v3561, 7
    %v3563 = vsub.s32 %v1214, %v3562
    %v3564 = vrot.slane %v3439, %v3563
    %v3565 = vsel %vm1219, %v3564, %v3560
    %v3566 = vlaneseq
    %v3567 = vshrl.u32 %v3566, 7
    %v3568 = vsub.s32 %v1209, %v3567
    %v3569 = vrot.slane %v3442, %v3568
    %v3570 = vlaneseq
    %v3571 = vshrl.u32 %v3570, 7
    %v3572 = vsub.s32 %v1214, %v3571
    %v3573 = vrot.slane %v3445, %v3572
    %v3574 = vsel %vm1219, %v3573, %v3569
    %v3575 = vlaneseq
    %v3576 = vshrl.u32 %v3575, 7
    %v3577 = vsub.s32 %v1209, %v3576
    %v3578 = vrot.slane %v3448, %v3577
    %v3579 = vlaneseq
    %v3580 = vshrl.u32 %v3579, 7
    %v3581 = vsub.s32 %v1214, %v3580
    %v3582 = vrot.slane %v3451, %v3581
    %v3583 = vsel %vm1219, %v3582, %v3578
    %v3584 = vlaneseq
    %v3585 = vshrl.u32 %v3584, 7
    %v3586 = vsub.s32 %v1209, %v3585
    %v3587 = vrot.slane %v3454, %v3586
    %v3588 = vlaneseq
    %v3589 = vshrl.u32 %v3588, 7
    %v3590 = vsub.s32 %v1214, %v3589
    %v3591 = vrot.slane %v3457, %v3590
    %v3592 = vsel %vm1219, %v3591, %v3587
    %v3593 = vlaneseq
    %v3594 = vshrl.u32 %v3593, 7
    %v3595 = vsub.s32 %v1209, %v3594
    %v3596 = vrot.slane %v3460, %v3595
    %v3597 = vlaneseq
    %v3598 = vshrl.u32 %v3597, 7
    %v3599 = vsub.s32 %v1214, %v3598
    %v3600 = vrot.slane %v3463, %v3599
    %v3601 = vsel %vm1219, %v3600, %v3596
    %v3602 = vlaneseq
    %v3603 = vshrl.u32 %v3602, 7
    %v3604 = vsub.s32 %v1209, %v3603
    %v3605 = vrot.slane %v3466, %v3604
    %v3606 = vlaneseq
    %v3607 = vshrl.u32 %v3606, 7
    %v3608 = vsub.s32 %v1214, %v3607
    %v3609 = vrot.slane %v3469, %v3608
    %v3610 = vsel %vm1219, %v3609, %v3605
    %v3611 = vlaneseq
    %v3612 = vshrl.u32 %v3611, 7
    %v3613 = vsub.s32 %v1209, %v3612
    %v3614 = vrot.slane %v3472, %v3613
    %v3615 = vlaneseq
    %v3616 = vshrl.u32 %v3615, 7
    %v3617 = vsub.s32 %v1214, %v3616
    %v3618 = vrot.slane %v3475, %v3617
    %v3619 = vsel %vm1219, %v3618, %v3614
    %v3620 = vsel %vm1356, %v3493, %v3484
    %v3621 = vsel %vm1358, %v3502, %v3620
    %v3622 = vsel %vm1360, %v3511, %v3621
    %v3623 = vsel %vm1362, %v3520, %v3622
    %v3624 = vsel %vm1364, %v3529, %v3623
    %v3625 = vsel %vm1366, %v3538, %v3624
    %v3626 = vsel %vm1368, %v3547, %v3625
    %v3627 = vsel %vm1356, %v3565, %v3556
    %v3628 = vsel %vm1358, %v3574, %v3627
    %v3629 = vsel %vm1360, %v3583, %v3628
    %v3630 = vsel %vm1362, %v3592, %v3629
    %v3631 = vsel %vm1364, %v3601, %v3630
    %v3632 = vsel %vm1366, %v3610, %v3631
    %v3633 = vsel %vm1368, %v3619, %v3632
    %v3634 = vpack.c.b16 %v3633, %v3626
    %v3636 = vsel %vm89, %v3634, 0
    %3638 = vmatprep.subr.bf16.mxu0 0
    %3639 = vmatpush1.bf16.msra.mxu0 0
    %3640 = vmatprep.subr.bf16.mxu0 0
    %3641 = vmatpush1.bf16.msra.mxu0 0
    %3642 = vmatprep.subr.bf16.mxu0 0
    %3643 = vmatpush1.bf16.msra.mxu0 0
    %3644 = vmatprep.subr.bf16.mxu0 0
    %3645 = vmatpush1.bf16.msra.mxu0 0
    %3646 = vmatprep.subr.bf16.mxu0 0
    %3647 = vmatpush1.bf16.msra.mxu0 0
    %3648 = vmatprep.subr.bf16.mxu0 0
    %3649 = vmatpush1.bf16.msra.mxu0 0
    %3650 = vmatprep.subr.bf16.mxu0 0
    %3651 = vmatpush1.bf16.msra.mxu0 0
    %3652 = vmatprep.subr.bf16.mxu0 0
    %3653 = vmatpush1.bf16.msra.mxu0 %v3331
    %3654 = vmatprep.subr.bf16.mxu0 0
    %3655 = vmatpush2.bf16.msra.mxu0 0
    %3656 = vmatprep.subr.bf16.mxu0 0
    %3657 = vmatpush2.bf16.msra.mxu0 0
    %3658 = vmatprep.subr.bf16.mxu0 0
    %3659 = vmatpush2.bf16.msra.mxu0 0
    %3660 = vmatprep.subr.bf16.mxu0 0
    %3661 = vmatpush2.bf16.msra.mxu0 0
    %3662 = vmatprep.subr.bf16.mxu0 0
    %3663 = vmatpush2.bf16.msra.mxu0 0
    %3664 = vmatprep.subr.bf16.mxu0 0
    %3665 = vmatpush2.bf16.msra.mxu0 0
    %3666 = vmatprep.subr.bf16.mxu0 0
    %3667 = vmatpush2.bf16.msra.mxu0 0
    %3668 = vmatprep.subr.bf16.mxu0 0
    %3669 = vmatpush2.bf16.msra.mxu0 0
    %3670 = vmatprep.mubr.bf16.mxu0 0
    %3671 = vmatmul.mubr.bf16.gmra.mxu0 %v3636
    %v3672 = vpop.f32.mrf.mxu0
    %v3673 = vadd.f32 0.0, %v3672
    %v3674 = vpop.f32.mrf.mxu0
    %v3675 = vpop.f32.mrf.mxu0
    %v3676 = vadd.f32 0.0, %v3675
    %v3677 = vpop.f32.mrf.mxu0
    %3678 = vdwg.mxu0
    %v3680 = vlaneseq
    %v3681 = vshrl.u32 %v3680, 7
    %v3682 = vsub.s32 0, %v3681
    %v3683 = vrot.slane %v83, %v3682
    %v3684 = vlaneseq
    %v3685 = vshrl.u32 %v3684, 7
    %v3686 = vsub.s32 1, %v3685
    %v3687 = vrot.slane %v83, %v3686
    %v3690 = vadd.f32 %v2331, %v3683
    %v3691 = vadd.f32 %v3673, %v3687
    %v3692 = vadd.f32 %v2334, %v3683
    %v3693 = vadd.f32 %v3676, %v3687
    %v3694 = vmax.f32 %v3690, 0.0
    %v3695 = vmax.f32 %v3691, 0.0
    %v3696 = vmax.f32 %v3692, 0.0
    %v3697 = vmax.f32 %v3693, 0.0
    %v3698 = vld [vmem:[#allocation2] sm:$0xff]
    %v3699 = vld [vmem:[#allocation2 + $0x8] sm:$0xff]
    %v3700 = vld [vmem:[#allocation2 + $0x10] sm:$0xff]
    %v3701 = vld [vmem:[#allocation2 + $0x18] sm:$0xff]
    %v3702 = vld [vmem:[#allocation2 + $0x20] sm:$0xff]
    %v3703 = vld [vmem:[#allocation2 + $0x28] sm:$0xff]
    %v3704 = vld [vmem:[#allocation2 + $0x30] sm:$0xff]
    %v3705 = vld [vmem:[#allocation2 + $0x38] sm:$0xff]
    %v3706 = vld [vmem:[#allocation2 + $0x40] sm:$0xff]
    %v3707 = vld [vmem:[#allocation2 + $0x48] sm:$0xff]
    %v3708 = vld [vmem:[#allocation2 + $0x50] sm:$0xff]
    %v3709 = vld [vmem:[#allocation2 + $0x58] sm:$0xff]
    %v3710 = vld [vmem:[#allocation2 + $0x60] sm:$0xff]
    %v3711 = vld [vmem:[#allocation2 + $0x68] sm:$0xff]
    %v3712 = vld [vmem:[#allocation2 + $0x70] sm:$0xff]
    %v3713 = vld [vmem:[#allocation2 + $0x78] sm:$0xff]
    %v3714 = vld [vmem:[#allocation2 + $0x80] sm:$0xff]
    %v3715 = vld [vmem:[#allocation2 + $0x88] sm:$0xff]
    %v3716 = vld [vmem:[#allocation2 + $0x90] sm:$0xff]
    %v3717 = vld [vmem:[#allocation2 + $0x98] sm:$0xff]
    %v3718 = vld [vmem:[#allocation2 + $0xa0] sm:$0xff]
    %v3719 = vld [vmem:[#allocation2 + $0xa8] sm:$0xff]
    %v3720 = vld [vmem:[#allocation2 + $0xb0] sm:$0xff]
    %v3721 = vld [vmem:[#allocation2 + $0xb8] sm:$0xff]
    %v3722 = vld [vmem:[#allocation2 + $0xc0] sm:$0xff]
    %v3723 = vld [vmem:[#allocation2 + $0xc8] sm:$0xff]
    %v3724 = vld [vmem:[#allocation2 + $0xd0] sm:$0xff]
    %v3725 = vld [vmem:[#allocation2 + $0xd8] sm:$0xff]
    %v3726 = vld [vmem:[#allocation2 + $0xe0] sm:$0xff]
    %v3727 = vld [vmem:[#allocation2 + $0xe8] sm:$0xff]
    %v3728 = vld [vmem:[#allocation2 + $0xf0] sm:$0xff]
    %v3729 = vld [vmem:[#allocation2 + $0xf8] sm:$0xff]
    %v3730 = vld [vmem:[#allocation2 + $0x100] sm:$0xff]
    %v3731 = vld [vmem:[#allocation2 + $0x108] sm:$0xff]
    %v3732 = vld [vmem:[#allocation2 + $0x110] sm:$0xff]
    %v3733 = vld [vmem:[#allocation2 + $0x118] sm:$0xff]
    %v3734 = vld [vmem:[#allocation2 + $0x120] sm:$0xff]
    %v3735 = vld [vmem:[#allocation2 + $0x128] sm:$0xff]
    %v3736 = vld [vmem:[#allocation2 + $0x130] sm:$0xff]
    %v3737 = vld [vmem:[#allocation2 + $0x138] sm:$0xff]
    %v3738 = vld [vmem:[#allocation2 + $0x140] sm:$0xff]
    %v3739 = vld [vmem:[#allocation2 + $0x148] sm:$0xff]
    %v3740 = vld [vmem:[#allocation2 + $0x150] sm:$0xff]
    %v3741 = vld [vmem:[#allocation2 + $0x158] sm:$0xff]
    %v3742 = vld [vmem:[#allocation2 + $0x160] sm:$0xff]
    %v3743 = vld [vmem:[#allocation2 + $0x168] sm:$0xff]
    %v3744 = vld [vmem:[#allocation2 + $0x170] sm:$0xff]
    %v3745 = vld [vmem:[#allocation2 + $0x178] sm:$0xff]
    %v3746 = vld [vmem:[#allocation2 + $0x180] sm:$0xff]
    %v3747 = vld [vmem:[#allocation2 + $0x188] sm:$0xff]
    %v3748 = vld [vmem:[#allocation2 + $0x190] sm:$0xff]
    %v3749 = vld [vmem:[#allocation2 + $0x198] sm:$0xff]
    %v3750 = vld [vmem:[#allocation2 + $0x1a0] sm:$0xff]
    %v3751 = vld [vmem:[#allocation2 + $0x1a8] sm:$0xff]
    %v3752 = vld [vmem:[#allocation2 + $0x1b0] sm:$0xff]
    %v3753 = vld [vmem:[#allocation2 + $0x1b8] sm:$0xff]
    %v3754 = vld [vmem:[#allocation2 + $0x1c0] sm:$0xff]
    %v3755 = vld [vmem:[#allocation2 + $0x1c8] sm:$0xff]
    %v3756 = vld [vmem:[#allocation2 + $0x1d0] sm:$0xff]
    %v3757 = vld [vmem:[#allocation2 + $0x1d8] sm:$0xff]
    %v3758 = vld [vmem:[#allocation2 + $0x1e0] sm:$0xff]
    %v3759 = vld [vmem:[#allocation2 + $0x1e8] sm:$0xff]
    %v3760 = vld [vmem:[#allocation2 + $0x1f0] sm:$0xff]
    %v3761 = vld [vmem:[#allocation2 + $0x1f8] sm:$0xff]
    %v3762 = vld [vmem:[#allocation2 + $0x200] sm:$0xff]
    %v3763 = vld [vmem:[#allocation2 + $0x208] sm:$0xff]
    %v3764 = vld [vmem:[#allocation2 + $0x210] sm:$0xff]
    %v3765 = vld [vmem:[#allocation2 + $0x218] sm:$0xff]
    %v3766 = vld [vmem:[#allocation2 + $0x220] sm:$0xff]
    %v3767 = vld [vmem:[#allocation2 + $0x228] sm:$0xff]
    %v3768 = vld [vmem:[#allocation2 + $0x230] sm:$0xff]
    %v3769 = vld [vmem:[#allocation2 + $0x238] sm:$0xff]
    %v3770 = vld [vmem:[#allocation2 + $0x240] sm:$0xff]
    %v3771 = vld [vmem:[#allocation2 + $0x248] sm:$0xff]
    %v3772 = vld [vmem:[#allocation2 + $0x250] sm:$0xff]
    %v3773 = vld [vmem:[#allocation2 + $0x258] sm:$0xff]
    %v3774 = vld [vmem:[#allocation2 + $0x260] sm:$0xff]
    %v3775 = vld [vmem:[#allocation2 + $0x268] sm:$0xff]
    %v3776 = vld [vmem:[#allocation2 + $0x270] sm:$0xff]
    %v3777 = vld [vmem:[#allocation2 + $0x278] sm:$0xff]
    %v3778 = vld [vmem:[#allocation2 + $0x280] sm:$0xff]
    %v3779 = vld [vmem:[#allocation2 + $0x288] sm:$0xff]
    %v3780 = vld [vmem:[#allocation2 + $0x290] sm:$0xff]
    %v3781 = vld [vmem:[#allocation2 + $0x298] sm:$0xff]
    %v3782 = vld [vmem:[#allocation2 + $0x2a0] sm:$0xff]
    %v3783 = vld [vmem:[#allocation2 + $0x2a8] sm:$0xff]
    %v3784 = vld [vmem:[#allocation2 + $0x2b0] sm:$0xff]
    %v3785 = vld [vmem:[#allocation2 + $0x2b8] sm:$0xff]
    %v3786 = vld [vmem:[#allocation2 + $0x2c0] sm:$0xff]
    %v3787 = vld [vmem:[#allocation2 + $0x2c8] sm:$0xff]
    %v3788 = vld [vmem:[#allocation2 + $0x2d0] sm:$0xff]
    %v3789 = vld [vmem:[#allocation2 + $0x2d8] sm:$0xff]
    %v3790 = vld [vmem:[#allocation2 + $0x2e0] sm:$0xff]
    %v3791 = vld [vmem:[#allocation2 + $0x2e8] sm:$0xff]
    %v3792 = vld [vmem:[#allocation2 + $0x2f0] sm:$0xff]
    %v3793 = vld [vmem:[#allocation2 + $0x2f8] sm:$0xff]
    %v3794 = vld [vmem:[#allocation2 + $0x300] sm:$0xff]
    %v3795 = vld [vmem:[#allocation2 + $0x308] sm:$0xff]
    %v3796 = vld [vmem:[#allocation2 + $0x310] sm:$0xff]
    %v3797 = vld [vmem:[#allocation2 + $0x318] sm:$0xff]
    %v3798 = vld [vmem:[#allocation2 + $0x320] sm:$0xff]
    %v3799 = vld [vmem:[#allocation2 + $0x328] sm:$0xff]
    %v3800 = vld [vmem:[#allocation2 + $0x330] sm:$0xff]
    %v3801 = vld [vmem:[#allocation2 + $0x338] sm:$0xff]
    %v3802 = vld [vmem:[#allocation2 + $0x340] sm:$0xff]
    %v3803 = vld [vmem:[#allocation2 + $0x348] sm:$0xff]
    %v3804 = vld [vmem:[#allocation2 + $0x350] sm:$0xff]
    %v3805 = vld [vmem:[#allocation2 + $0x358] sm:$0xff]
    %v3806 = vld [vmem:[#allocation2 + $0x360] sm:$0xff]
    %v3807 = vld [vmem:[#allocation2 + $0x368] sm:$0xff]
    %v3808 = vld [vmem:[#allocation2 + $0x370] sm:$0xff]
    %v3809 = vld [vmem:[#allocation2 + $0x378] sm:$0xff]
    %v3810 = vld [vmem:[#allocation2 + $0x380] sm:$0xff]
    %v3811 = vld [vmem:[#allocation2 + $0x388] sm:$0xff]
    %v3812 = vld [vmem:[#allocation2 + $0x390] sm:$0xff]
    %v3813 = vld [vmem:[#allocation2 + $0x398] sm:$0xff]
    %v3814 = vld [vmem:[#allocation2 + $0x3a0] sm:$0xff]
    %v3815 = vld [vmem:[#allocation2 + $0x3a8] sm:$0xff]
    %v3816 = vld [vmem:[#allocation2 + $0x3b0] sm:$0xff]
    %v3817 = vld [vmem:[#allocation2 + $0x3b8] sm:$0xff]
    %v3818 = vld [vmem:[#allocation2 + $0x3c0] sm:$0xff]
    %v3819 = vld [vmem:[#allocation2 + $0x3c8] sm:$0xff]
    %v3820 = vld [vmem:[#allocation2 + $0x3d0] sm:$0xff]
    %v3821 = vld [vmem:[#allocation2 + $0x3d8] sm:$0xff]
    %v3822 = vld [vmem:[#allocation2 + $0x3e0] sm:$0xff]
    %v3823 = vld [vmem:[#allocation2 + $0x3e8] sm:$0xff]
    %v3824 = vld [vmem:[#allocation2 + $0x3f0] sm:$0xff]
    %v3825 = vld [vmem:[#allocation2 + $0x3f8] sm:$0xff]
    %v3826 = vld [vmem:[%s6] sm:$0x3]
    %v3827 = vld [vmem:[%s7] sm:$0x3]
    %v3828 = vpack.c.bf16 %v3696, %v3694
    %v3829 = vpack.c.bf16 %v3697, %v3695
    %v3830 = vpack.c.bf16 %v3702, %v3698
    %v3831 = vpack.c.bf16 %v3703, %v3699
    %v3832 = vpack.c.bf16 %v3704, %v3700
    %v3833 = vpack.c.bf16 %v3705, %v3701
    %v3834 = vpack.c.bf16 %v3710, %v3706
    %v3835 = vpack.c.bf16 %v3711, %v3707
    %v3836 = vpack.c.bf16 %v3712, %v3708
    %v3837 = vpack.c.bf16 %v3713, %v3709
    %v3838 = vpack.c.bf16 %v3718, %v3714
    %v3839 = vpack.c.bf16 %v3719, %v3715
    %v3840 = vpack.c.bf16 %v3720, %v3716
    %v3841 = vpack.c.bf16 %v3721, %v3717
    %v3842 = vpack.c.bf16 %v3726, %v3722
    %v3843 = vpack.c.bf16 %v3727, %v3723
    %v3844 = vpack.c.bf16 %v3728, %v3724
    %v3845 = vpack.c.bf16 %v3729, %v3725
    %v3846 = vpack.c.bf16 %v3734, %v3730
    %v3847 = vpack.c.bf16 %v3735, %v3731
    %v3848 = vpack.c.bf16 %v3736, %v3732
    %v3849 = vpack.c.bf16 %v3737, %v3733
    %v3850 = vpack.c.bf16 %v3742, %v3738
    %v3851 = vpack.c.bf16 %v3743, %v3739
    %v3852 = vpack.c.bf16 %v3744, %v3740
    %v3853 = vpack.c.bf16 %v3745, %v3741
    %v3854 = vpack.c.bf16 %v3750, %v3746
    %v3855 = vpack.c.bf16 %v3751, %v3747
    %v3856 = vpack.c.bf16 %v3752, %v3748
    %v3857 = vpack.c.bf16 %v3753, %v3749
    %v3858 = vpack.c.bf16 %v3758, %v3754
    %v3859 = vpack.c.bf16 %v3759, %v3755
    %v3860 = vpack.c.bf16 %v3760, %v3756
    %v3861 = vpack.c.bf16 %v3761, %v3757
    %v3862 = vpack.c.bf16 %v3766, %v3762
    %v3863 = vpack.c.bf16 %v3767, %v3763
    %v3864 = vpack.c.bf16 %v3768, %v3764
    %v3865 = vpack.c.bf16 %v3769, %v3765
    %v3866 = vpack.c.bf16 %v3774, %v3770
    %v3867 = vpack.c.bf16 %v3775, %v3771
    %v3868 = vpack.c.bf16 %v3776, %v3772
    %v3869 = vpack.c.bf16 %v3777, %v3773
    %v3870 = vpack.c.bf16 %v3782, %v3778
    %v3871 = vpack.c.bf16 %v3783, %v3779
    %v3872 = vpack.c.bf16 %v3784, %v3780
    %v3873 = vpack.c.bf16 %v3785, %v3781
    %v3874 = vpack.c.bf16 %v3790, %v3786
    %v3875 = vpack.c.bf16 %v3791, %v3787
    %v3876 = vpack.c.bf16 %v3792, %v3788
    %v3877 = vpack.c.bf16 %v3793, %v3789
    %v3878 = vpack.c.bf16 %v3798, %v3794
    %v3879 = vpack.c.bf16 %v3799, %v3795
    %v3880 = vpack.c.bf16 %v3800, %v3796
    %v3881 = vpack.c.bf16 %v3801, %v3797
    %v3882 = vpack.c.bf16 %v3806, %v3802
    %v3883 = vpack.c.bf16 %v3807, %v3803
    %v3884 = vpack.c.bf16 %v3808, %v3804
    %v3885 = vpack.c.bf16 %v3809, %v3805
    %v3886 = vpack.c.bf16 %v3814, %v3810
    %v3887 = vpack.c.bf16 %v3815, %v3811
    %v3888 = vpack.c.bf16 %v3816, %v3812
    %v3889 = vpack.c.bf16 %v3817, %v3813
    %v3890 = vpack.c.bf16 %v3822, %v3818
    %v3891 = vpack.c.bf16 %v3823, %v3819
    %v3892 = vpack.c.bf16 %v3824, %v3820
    %v3893 = vpack.c.bf16 %v3825, %v3821
    %3894 = vmatprep.subr.bf16.mxu0 %v3859
    %3895 = vmatpush1.bf16.msra.mxu0 %v3858
    %3896 = vmatprep.subr.bf16.mxu0 %v3855
    %3897 = vmatpush1.bf16.msra.mxu0 %v3854
    %3898 = vmatprep.subr.bf16.mxu0 %v3851
    %3899 = vmatpush1.bf16.msra.mxu0 %v3850
    %3900 = vmatprep.subr.bf16.mxu0 %v3847
    %3901 = vmatpush1.bf16.msra.mxu0 %v3846
    %3902 = vmatprep.subr.bf16.mxu0 %v3843
    %3903 = vmatpush1.bf16.msra.mxu0 %v3842
    %3904 = vmatprep.subr.bf16.mxu0 %v3839
    %3905 = vmatpush1.bf16.msra.mxu0 %v3838
    %3906 = vmatprep.subr.bf16.mxu0 %v3835
    %3907 = vmatpush1.bf16.msra.mxu0 %v3834
    %3908 = vmatprep.subr.bf16.mxu0 %v3831
    %3909 = vmatpush1.bf16.msra.mxu0 %v3830
    %3910 = vmatprep.subr.bf16.mxu0 %v3891
    %3911 = vmatpush2.bf16.msra.mxu0 %v3890
    %3912 = vmatprep.subr.bf16.mxu0 %v3887
    %3913 = vmatpush2.bf16.msra.mxu0 %v3886
    %3914 = vmatprep.subr.bf16.mxu0 %v3883
    %3915 = vmatpush2.bf16.msra.mxu0 %v3882
    %3916 = vmatprep.subr.bf16.mxu0 %v3879
    %3917 = vmatpush2.bf16.msra.mxu0 %v3878
    %3918 = vmatprep.subr.bf16.mxu0 %v3875
    %3919 = vmatpush2.bf16.msra.mxu0 %v3874
    %3920 = vmatprep.subr.bf16.mxu0 %v3871
    %3921 = vmatpush2.bf16.msra.mxu0 %v3870
    %3922 = vmatprep.subr.bf16.mxu0 %v3867
    %3923 = vmatpush2.bf16.msra.mxu0 %v3866
    %3924 = vmatprep.subr.bf16.mxu0 %v3863
    %3925 = vmatpush2.bf16.msra.mxu0 %v3862
    %3926 = vmatprep.mubr.bf16.mxu0 %v3829
    %3927 = vmatmul.mubr.bf16.gmra.mxu0 %v3828
    %v3928 = vpop.f32.mrf.mxu0
    %v3929 = vadd.f32 0.0, %v3928
    %v3930 = vpop.f32.mrf.mxu0
    %v3931 = vadd.f32 0.0, %v3930
    %v3932 = vpop.f32.mrf.mxu0
    %v3933 = vadd.f32 0.0, %v3932
    %v3934 = vpop.f32.mrf.mxu0
    %v3935 = vadd.f32 0.0, %v3934
    %3936 = vdwg.mxu0
    %3937 = vmatprep.subr.bf16.mxu0 %v3861
    %3938 = vmatpush1.bf16.msra.mxu0 %v3860
    %3939 = vmatprep.subr.bf16.mxu0 %v3857
    %3940 = vmatpush1.bf16.msra.mxu0 %v3856
    %3941 = vmatprep.subr.bf16.mxu0 %v3853
    %3942 = vmatpush1.bf16.msra.mxu0 %v3852
    %3943 = vmatprep.subr.bf16.mxu0 %v3849
    %3944 = vmatpush1.bf16.msra.mxu0 %v3848
    %3945 = vmatprep.subr.bf16.mxu0 %v3845
    %3946 = vmatpush1.bf16.msra.mxu0 %v3844
    %3947 = vmatprep.subr.bf16.mxu0 %v3841
    %3948 = vmatpush1.bf16.msra.mxu0 %v3840
    %3949 = vmatprep.subr.bf16.mxu0 %v3837
    %3950 = vmatpush1.bf16.msra.mxu0 %v3836
    %3951 = vmatprep.subr.bf16.mxu0 %v3833
    %3952 = vmatpush1.bf16.msra.mxu0 %v3832
    %3953 = vmatprep.subr.bf16.mxu0 %v3893
    %3954 = vmatpush2.bf16.msra.mxu0 %v3892
    %3955 = vmatprep.subr.bf16.mxu0 %v3889
    %3956 = vmatpush2.bf16.msra.mxu0 %v3888
    %3957 = vmatprep.subr.bf16.mxu0 %v3885
    %3958 = vmatpush2.bf16.msra.mxu0 %v3884
    %3959 = vmatprep.subr.bf16.mxu0 %v3881
    %3960 = vmatpush2.bf16.msra.mxu0 %v3880
    %3961 = vmatprep.subr.bf16.mxu0 %v3877
    %3962 = vmatpush2.bf16.msra.mxu0 %v3876
    %3963 = vmatprep.subr.bf16.mxu0 %v3873
    %3964 = vmatpush2.bf16.msra.mxu0 %v3872
    %3965 = vmatprep.subr.bf16.mxu0 %v3869
    %3966 = vmatpush2.bf16.msra.mxu0 %v3868
    %3967 = vmatprep.subr.bf16.mxu0 %v3865
    %3968 = vmatpush2.bf16.msra.mxu0 %v3864
    %3969 = vmatprep.mubr.bf16.mxu0 %v3829
    %3970 = vmatmul.mubr.bf16.gmra.mxu0 %v3828
    %v3971 = vpop.f32.mrf.mxu0
    %v3972 = vadd.f32 0.0, %v3971
    %v3973 = vpop.f32.mrf.mxu0
    %v3974 = vadd.f32 0.0, %v3973
    %v3975 = vpop.f32.mrf.mxu0
    %v3976 = vadd.f32 0.0, %v3975
    %v3977 = vpop.f32.mrf.mxu0
    %v3978 = vadd.f32 0.0, %v3977
    %3979 = vdwg.mxu0
    %v3984 = vcombine.low %v3972, %v3974
    %v3985 = vcombine.high %v3972, %v3974
    %v3987 = vunpack.c.l.s4 1966171168
    %v3988 = vunpack.c.0.s8 %v3987
    %v3989 = vlaneseq
    %v3990 = vshrl.u32 %v3989, 7
    %v3991 = vsub.s32 %v3988, %v3990
    %v3992 = vrot.slane %v3984, %v3991
    %v3994 = vunpack.c.l.s4 1966171168
    %v3995 = vunpack.c.0.s8 %v3994
    %v3996 = vlaneseq
    %v3997 = vshrl.u32 %v3996, 7
    %v3998 = vsub.s32 %v3995, %v3997
    %v3999 = vrot.slane %v3985, %v3998
    %v4000 = vcombine.high %v3992, %v3992
    %v4001 = vcombine.high %v3999, %v3999
    %v4003 = vunpack.c.l.s4 1966171168
    %v4004 = vunpack.c.0.s8 %v4003
    %v4005 = vlaneseq
    %v4006 = vshrl.u32 %v4005, 7
    %v4007 = vsub.s32 %v4004, %v4006
    %v4008 = vrot.slane %v3992, %v4007
    %v4010 = vunpack.c.l.s4 1966171168
    %v4011 = vunpack.c.0.s8 %v4010
    %v4012 = vlaneseq
    %v4013 = vshrl.u32 %v4012, 7
    %v4014 = vsub.s32 %v4011, %v4013
    %v4015 = vrot.slane %v3999, %v4014
    %v4017 = vunpack.c.l.s4 1966171168
    %v4018 = vunpack.c.0.s8 %v4017
    %v4019 = vlaneseq
    %v4020 = vshrl.u32 %v4019, 7
    %v4021 = vsub.s32 %v4018, %v4020
    %v4022 = vrot.slane %v4000, %v4021
    %v4024 = vunpack.c.l.s4 1966171168
    %v4025 = vunpack.c.0.s8 %v4024
    %v4026 = vlaneseq
    %v4027 = vshrl.u32 %v4026, 7
    %v4028 = vsub.s32 %v4025, %v4027
    %v4029 = vrot.slane %v4001, %v4028
    %v4030 = vcombine.high %v4008, %v4008
    %v4031 = vcombine.high %v4015, %v4015
    %v4032 = vcombine.high %v4022, %v4022
    %v4033 = vcombine.high %v4029, %v4029
    %v4034 = vcombine.low %v3976, %v3978
    %v4035 = vcombine.high %v3976, %v3978
    %v4037 = vunpack.c.l.s4 1966171168
    %v4038 = vunpack.c.0.s8 %v4037
    %v4039 = vlaneseq
    %v4040 = vshrl.u32 %v4039, 7
    %v4041 = vsub.s32 %v4038, %v4040
    %v4042 = vrot.slane %v4034, %v4041
    %v4044 = vunpack.c.l.s4 1966171168
    %v4045 = vunpack.c.0.s8 %v4044
    %v4046 = vlaneseq
    %v4047 = vshrl.u32 %v4046, 7
    %v4048 = vsub.s32 %v4045, %v4047
    %v4049 = vrot.slane %v4035, %v4048
    %v4050 = vcombine.high %v4042, %v4042
    %v4051 = vcombine.high %v4049, %v4049
    %v4053 = vunpack.c.l.s4 1966171168
    %v4054 = vunpack.c.0.s8 %v4053
    %v4055 = vlaneseq
    %v4056 = vshrl.u32 %v4055, 7
    %v4057 = vsub.s32 %v4054, %v4056
    %v4058 = vrot.slane %v4042, %v4057
    %v4060 = vunpack.c.l.s4 1966171168
    %v4061 = vunpack.c.0.s8 %v4060
    %v4062 = vlaneseq
    %v4063 = vshrl.u32 %v4062, 7
    %v4064 = vsub.s32 %v4061, %v4063
    %v4065 = vrot.slane %v4049, %v4064
    %v4067 = vunpack.c.l.s4 1966171168
    %v4068 = vunpack.c.0.s8 %v4067
    %v4069 = vlaneseq
    %v4070 = vshrl.u32 %v4069, 7
    %v4071 = vsub.s32 %v4068, %v4070
    %v4072 = vrot.slane %v4050, %v4071
    %v4074 = vunpack.c.l.s4 1966171168
    %v4075 = vunpack.c.0.s8 %v4074
    %v4076 = vlaneseq
    %v4077 = vshrl.u32 %v4076, 7
    %v4078 = vsub.s32 %v4075, %v4077
    %v4079 = vrot.slane %v4051, %v4078
    %v4080 = vcombine.high %v4058, %v4058
    %v4081 = vcombine.high %v4065, %v4065
    %v4082 = vcombine.high %v4072, %v4072
    %v4083 = vcombine.high %v4079, %v4079
    %v4084 = vlaneseq
    %v4085 = vshrl.u32 %v4084, 7
    %v4086 = vsub.s32 0, %v4085
    %v4087 = vrot.slane %v4008, %v4086
    %v4088 = vlaneseq
    %v4089 = vshrl.u32 %v4088, 7
    %v4090 = vsub.s32 1, %v4089
    %v4091 = vrot.slane %v4008, %v4090
    %v4092 = vlaneseq
    %v4093 = vshrl.u32 %v4092, 7
    %v4094 = vsub.s32 0, %v4093
    %v4095 = vrot.slane %v4022, %v4094
    %v4096 = vlaneseq
    %v4097 = vshrl.u32 %v4096, 7
    %v4098 = vsub.s32 1, %v4097
    %v4099 = vrot.slane %v4022, %v4098
    %v4100 = vlaneseq
    %v4101 = vshrl.u32 %v4100, 7
    %v4102 = vsub.s32 0, %v4101
    %v4103 = vrot.slane %v4030, %v4102
    %v4104 = vlaneseq
    %v4105 = vshrl.u32 %v4104, 7
    %v4106 = vsub.s32 1, %v4105
    %v4107 = vrot.slane %v4030, %v4106
    %v4108 = vlaneseq
    %v4109 = vshrl.u32 %v4108, 7
    %v4110 = vsub.s32 0, %v4109
    %v4111 = vrot.slane %v4032, %v4110
    %v4112 = vlaneseq
    %v4113 = vshrl.u32 %v4112, 7
    %v4114 = vsub.s32 1, %v4113
    %v4115 = vrot.slane %v4032, %v4114
    %v4116 = vlaneseq
    %v4117 = vshrl.u32 %v4116, 7
    %v4118 = vsub.s32 0, %v4117
    %v4119 = vrot.slane %v4015, %v4118
    %v4120 = vlaneseq
    %v4121 = vshrl.u32 %v4120, 7
    %v4122 = vsub.s32 1, %v4121
    %v4123 = vrot.slane %v4015, %v4122
    %v4124 = vlaneseq
    %v4125 = vshrl.u32 %v4124, 7
    %v4126 = vsub.s32 0, %v4125
    %v4127 = vrot.slane %v4029, %v4126
    %v4128 = vlaneseq
    %v4129 = vshrl.u32 %v4128, 7
    %v4130 = vsub.s32 1, %v4129
    %v4131 = vrot.slane %v4029, %v4130
    %v4132 = vlaneseq
    %v4133 = vshrl.u32 %v4132, 7
    %v4134 = vsub.s32 0, %v4133
    %v4135 = vrot.slane %v4031, %v4134
    %v4136 = vlaneseq
    %v4137 = vshrl.u32 %v4136, 7
    %v4138 = vsub.s32 1, %v4137
    %v4139 = vrot.slane %v4031, %v4138
    %v4140 = vlaneseq
    %v4141 = vshrl.u32 %v4140, 7
    %v4142 = vsub.s32 0, %v4141
    %v4143 = vrot.slane %v4033, %v4142
    %v4144 = vlaneseq
    %v4145 = vshrl.u32 %v4144, 7
    %v4146 = vsub.s32 1, %v4145
    %v4147 = vrot.slane %v4033, %v4146
    %v4148 = vlaneseq
    %v4149 = vshrl.u32 %v4148, 7
    %v4150 = vsub.s32 0, %v4149
    %v4151 = vrot.slane %v4058, %v4150
    %v4152 = vlaneseq
    %v4153 = vshrl.u32 %v4152, 7
    %v4154 = vsub.s32 1, %v4153
    %v4155 = vrot.slane %v4058, %v4154
    %v4156 = vlaneseq
    %v4157 = vshrl.u32 %v4156, 7
    %v4158 = vsub.s32 0, %v4157
    %v4159 = vrot.slane %v4072, %v4158
    %v4160 = vlaneseq
    %v4161 = vshrl.u32 %v4160, 7
    %v4162 = vsub.s32 1, %v4161
    %v4163 = vrot.slane %v4072, %v4162
    %v4164 = vlaneseq
    %v4165 = vshrl.u32 %v4164, 7
    %v4166 = vsub.s32 0, %v4165
    %v4167 = vrot.slane %v4080, %v4166
    %v4168 = vlaneseq
    %v4169 = vshrl.u32 %v4168, 7
    %v4170 = vsub.s32 1, %v4169
    %v4171 = vrot.slane %v4080, %v4170
    %v4172 = vlaneseq
    %v4173 = vshrl.u32 %v4172, 7
    %v4174 = vsub.s32 0, %v4173
    %v4175 = vrot.slane %v4082, %v4174
    %v4176 = vlaneseq
    %v4177 = vshrl.u32 %v4176, 7
    %v4178 = vsub.s32 1, %v4177
    %v4179 = vrot.slane %v4082, %v4178
    %v4180 = vlaneseq
    %v4181 = vshrl.u32 %v4180, 7
    %v4182 = vsub.s32 0, %v4181
    %v4183 = vrot.slane %v4065, %v4182
    %v4184 = vlaneseq
    %v4185 = vshrl.u32 %v4184, 7
    %v4186 = vsub.s32 1, %v4185
    %v4187 = vrot.slane %v4065, %v4186
    %v4188 = vlaneseq
    %v4189 = vshrl.u32 %v4188, 7
    %v4190 = vsub.s32 0, %v4189
    %v4191 = vrot.slane %v4079, %v4190
    %v4192 = vlaneseq
    %v4193 = vshrl.u32 %v4192, 7
    %v4194 = vsub.s32 1, %v4193
    %v4195 = vrot.slane %v4079, %v4194
    %v4196 = vlaneseq
    %v4197 = vshrl.u32 %v4196, 7
    %v4198 = vsub.s32 0, %v4197
    %v4199 = vrot.slane %v4081, %v4198
    %v4200 = vlaneseq
    %v4201 = vshrl.u32 %v4200, 7
    %v4202 = vsub.s32 1, %v4201
    %v4203 = vrot.slane %v4081, %v4202
    %v4204 = vlaneseq
    %v4205 = vshrl.u32 %v4204, 7
    %v4206 = vsub.s32 0, %v4205
    %v4207 = vrot.slane %v4083, %v4206
    %v4208 = vlaneseq
    %v4209 = vshrl.u32 %v4208, 7
    %v4210 = vsub.s32 1, %v4209
    %v4211 = vrot.slane %v4083, %v4210
    %v4244 = vadd.f32 %v4087, %v3929
    %v4245 = vadd.f32 %v4091, %v3931
    %v4246 = vadd.f32 %v4087, %v3933
    %v4247 = vadd.f32 %v4091, %v3935
    %v4248 = vadd.f32 %v4095, %v3929
    %v4249 = vadd.f32 %v4099, %v3931
    %v4250 = vadd.f32 %v4095, %v3933
    %v4251 = vadd.f32 %v4099, %v3935
    %v4252 = vadd.f32 %v4103, %v3929
    %v4253 = vadd.f32 %v4107, %v3931
    %v4254 = vadd.f32 %v4103, %v3933
    %v4255 = vadd.f32 %v4107, %v3935
    %v4256 = vadd.f32 %v4111, %v3929
    %v4257 = vadd.f32 %v4115, %v3931
    %v4258 = vadd.f32 %v4111, %v3933
    %v4259 = vadd.f32 %v4115, %v3935
    %v4260 = vadd.f32 %v4119, %v3929
    %v4261 = vadd.f32 %v4123, %v3931
    %v4262 = vadd.f32 %v4119, %v3933
    %v4263 = vadd.f32 %v4123, %v3935
    %v4264 = vadd.f32 %v4127, %v3929
    %v4265 = vadd.f32 %v4131, %v3931
    %v4266 = vadd.f32 %v4127, %v3933
    %v4267 = vadd.f32 %v4131, %v3935
    %v4268 = vadd.f32 %v4135, %v3929
    %v4269 = vadd.f32 %v4139, %v3931
    %v4270 = vadd.f32 %v4135, %v3933
    %v4271 = vadd.f32 %v4139, %v3935
    %v4272 = vadd.f32 %v4143, %v3929
    %v4273 = vadd.f32 %v4147, %v3931
    %v4274 = vadd.f32 %v4143, %v3933
    %v4275 = vadd.f32 %v4147, %v3935
    %v4276 = vadd.f32 %v4151, %v3929
    %v4277 = vadd.f32 %v4155, %v3931
    %v4278 = vadd.f32 %v4151, %v3933
    %v4279 = vadd.f32 %v4155, %v3935
    %v4280 = vadd.f32 %v4159, %v3929
    %v4281 = vadd.f32 %v4163, %v3931
    %v4282 = vadd.f32 %v4159, %v3933
    %v4283 = vadd.f32 %v4163, %v3935
    %v4284 = vadd.f32 %v4167, %v3929
    %v4285 = vadd.f32 %v4171, %v3931
    %v4286 = vadd.f32 %v4167, %v3933
    %v4287 = vadd.f32 %v4171, %v3935
    %v4288 = vadd.f32 %v4175, %v3929
    %v4289 = vadd.f32 %v4179, %v3931
    %v4290 = vadd.f32 %v4175, %v3933
    %v4291 = vadd.f32 %v4179, %v3935
    %v4292 = vadd.f32 %v4183, %v3929
    %v4293 = vadd.f32 %v4187, %v3931
    %v4294 = vadd.f32 %v4183, %v3933
    %v4295 = vadd.f32 %v4187, %v3935
    %v4296 = vadd.f32 %v4191, %v3929
    %v4297 = vadd.f32 %v4195, %v3931
    %v4298 = vadd.f32 %v4191, %v3933
    %v4299 = vadd.f32 %v4195, %v3935
    %v4300 = vadd.f32 %v4199, %v3929
    %v4301 = vadd.f32 %v4203, %v3931
    %v4302 = vadd.f32 %v4199, %v3933
    %v4303 = vadd.f32 %v4203, %v3935
    %v4304 = vadd.f32 %v4207, %v3929
    %v4305 = vadd.f32 %v4211, %v3931
    %v4306 = vadd.f32 %v4207, %v3933
    %v4307 = vadd.f32 %v4211, %v3935
    %vm4308 = vcmp.gt.f32.partialorder %v4244, 0.0
    %vm4309 = vcmp.gt.f32.partialorder %v4245, 0.0
    %vm4310 = vcmp.gt.f32.partialorder %v4246, 0.0
    %vm4311 = vcmp.gt.f32.partialorder %v4247, 0.0
    %vm4312 = vcmp.gt.f32.partialorder %v4248, 0.0
    %vm4313 = vcmp.gt.f32.partialorder %v4249, 0.0
    %vm4314 = vcmp.gt.f32.partialorder %v4250, 0.0
    %vm4315 = vcmp.gt.f32.partialorder %v4251, 0.0
    %vm4316 = vcmp.gt.f32.partialorder %v4252, 0.0
    %vm4317 = vcmp.gt.f32.partialorder %v4253, 0.0
    %vm4318 = vcmp.gt.f32.partialorder %v4254, 0.0
    %vm4319 = vcmp.gt.f32.partialorder %v4255, 0.0
    %vm4320 = vcmp.gt.f32.partialorder %v4256, 0.0
    %vm4321 = vcmp.gt.f32.partialorder %v4257, 0.0
    %vm4322 = vcmp.gt.f32.partialorder %v4258, 0.0
    %vm4323 = vcmp.gt.f32.partialorder %v4259, 0.0
    %vm4324 = vcmp.gt.f32.partialorder %v4260, 0.0
    %vm4325 = vcmp.gt.f32.partialorder %v4261, 0.0
    %vm4326 = vcmp.gt.f32.partialorder %v4262, 0.0
    %vm4327 = vcmp.gt.f32.partialorder %v4263, 0.0
    %vm4328 = vcmp.gt.f32.partialorder %v4264, 0.0
    %vm4329 = vcmp.gt.f32.partialorder %v4265, 0.0
    %vm4330 = vcmp.gt.f32.partialorder %v4266, 0.0
    %vm4331 = vcmp.gt.f32.partialorder %v4267, 0.0
    %vm4332 = vcmp.gt.f32.partialorder %v4268, 0.0
    %vm4333 = vcmp.gt.f32.partialorder %v4269, 0.0
    %vm4334 = vcmp.gt.f32.partialorder %v4270, 0.0
    %vm4335 = vcmp.gt.f32.partialorder %v4271, 0.0
    %vm4336 = vcmp.gt.f32.partialorder %v4272, 0.0
    %vm4337 = vcmp.gt.f32.partialorder %v4273, 0.0
    %vm4338 = vcmp.gt.f32.partialorder %v4274, 0.0
    %vm4339 = vcmp.gt.f32.partialorder %v4275, 0.0
    %vm4340 = vcmp.gt.f32.partialorder %v4276, 0.0
    %vm4341 = vcmp.gt.f32.partialorder %v4277, 0.0
    %vm4342 = vcmp.gt.f32.partialorder %v4278, 0.0
    %vm4343 = vcmp.gt.f32.partialorder %v4279, 0.0
    %vm4344 = vcmp.gt.f32.partialorder %v4280, 0.0
    %vm4345 = vcmp.gt.f32.partialorder %v4281, 0.0
    %vm4346 = vcmp.gt.f32.partialorder %v4282, 0.0
    %vm4347 = vcmp.gt.f32.partialorder %v4283, 0.0
    %vm4348 = vcmp.gt.f32.partialorder %v4284, 0.0
    %vm4349 = vcmp.gt.f32.partialorder %v4285, 0.0
    %vm4350 = vcmp.gt.f32.partialorder %v4286, 0.0
    %vm4351 = vcmp.gt.f32.partialorder %v4287, 0.0
    %vm4352 = vcmp.gt.f32.partialorder %v4288, 0.0
    %vm4353 = vcmp.gt.f32.partialorder %v4289, 0.0
    %vm4354 = vcmp.gt.f32.partialorder %v4290, 0.0
    %vm4355 = vcmp.gt.f32.partialorder %v4291, 0.0
    %vm4356 = vcmp.gt.f32.partialorder %v4292, 0.0
    %vm4357 = vcmp.gt.f32.partialorder %v4293, 0.0
    %vm4358 = vcmp.gt.f32.partialorder %v4294, 0.0
    %vm4359 = vcmp.gt.f32.partialorder %v4295, 0.0
    %vm4360 = vcmp.gt.f32.partialorder %v4296, 0.0
    %vm4361 = vcmp.gt.f32.partialorder %v4297, 0.0
    %vm4362 = vcmp.gt.f32.partialorder %v4298, 0.0
    %vm4363 = vcmp.gt.f32.partialorder %v4299, 0.0
    %vm4364 = vcmp.gt.f32.partialorder %v4300, 0.0
    %vm4365 = vcmp.gt.f32.partialorder %v4301, 0.0
    %vm4366 = vcmp.gt.f32.partialorder %v4302, 0.0
    %vm4367 = vcmp.gt.f32.partialorder %v4303, 0.0
    %vm4368 = vcmp.gt.f32.partialorder %v4304, 0.0
    %vm4369 = vcmp.gt.f32.partialorder %v4305, 0.0
    %vm4370 = vcmp.gt.f32.partialorder %v4306, 0.0
    %vm4371 = vcmp.gt.f32.partialorder %v4307, 0.0
    %v4372 = vmul.f32 %v4244, 0.2
    %v4373 = vmul.f32 %v4245, 0.2
    %v4374 = vmul.f32 %v4246, 0.2
    %v4375 = vmul.f32 %v4247, 0.2
    %v4376 = vmul.f32 %v4248, 0.2
    %v4377 = vmul.f32 %v4249, 0.2
    %v4378 = vmul.f32 %v4250, 0.2
    %v4379 = vmul.f32 %v4251, 0.2
    %v4380 = vmul.f32 %v4252, 0.2
    %v4381 = vmul.f32 %v4253, 0.2
    %v4382 = vmul.f32 %v4254, 0.2
    %v4383 = vmul.f32 %v4255, 0.2
    %v4384 = vmul.f32 %v4256, 0.2
    %v4385 = vmul.f32 %v4257, 0.2
    %v4386 = vmul.f32 %v4258, 0.2
    %v4387 = vmul.f32 %v4259, 0.2
    %v4388 = vmul.f32 %v4260, 0.2
    %v4389 = vmul.f32 %v4261, 0.2
    %v4390 = vmul.f32 %v4262, 0.2
    %v4391 = vmul.f32 %v4263, 0.2
    %v4392 = vmul.f32 %v4264, 0.2
    %v4393 = vmul.f32 %v4265, 0.2
    %v4394 = vmul.f32 %v4266, 0.2
    %v4395 = vmul.f32 %v4267, 0.2
    %v4396 = vmul.f32 %v4268, 0.2
    %v4397 = vmul.f32 %v4269, 0.2
    %v4398 = vmul.f32 %v4270, 0.2
    %v4399 = vmul.f32 %v4271, 0.2
    %v4400 = vmul.f32 %v4272, 0.2
    %v4401 = vmul.f32 %v4273, 0.2
    %v4402 = vmul.f32 %v4274, 0.2
    %v4403 = vmul.f32 %v4275, 0.2
    %v4404 = vmul.f32 %v4276, 0.2
    %v4405 = vmul.f32 %v4277, 0.2
    %v4406 = vmul.f32 %v4278, 0.2
    %v4407 = vmul.f32 %v4279, 0.2
    %v4408 = vmul.f32 %v4280, 0.2
    %v4409 = vmul.f32 %v4281, 0.2
    %v4410 = vmul.f32 %v4282, 0.2
    %v4411 = vmul.f32 %v4283, 0.2
    %v4412 = vmul.f32 %v4284, 0.2
    %v4413 = vmul.f32 %v4285, 0.2
    %v4414 = vmul.f32 %v4286, 0.2
    %v4415 = vmul.f32 %v4287, 0.2
    %v4416 = vmul.f32 %v4288, 0.2
    %v4417 = vmul.f32 %v4289, 0.2
    %v4418 = vmul.f32 %v4290, 0.2
    %v4419 = vmul.f32 %v4291, 0.2
    %v4420 = vmul.f32 %v4292, 0.2
    %v4421 = vmul.f32 %v4293, 0.2
    %v4422 = vmul.f32 %v4294, 0.2
    %v4423 = vmul.f32 %v4295, 0.2
    %v4424 = vmul.f32 %v4296, 0.2
    %v4425 = vmul.f32 %v4297, 0.2
    %v4426 = vmul.f32 %v4298, 0.2
    %v4427 = vmul.f32 %v4299, 0.2
    %v4428 = vmul.f32 %v4300, 0.2
    %v4429 = vmul.f32 %v4301, 0.2
    %v4430 = vmul.f32 %v4302, 0.2
    %v4431 = vmul.f32 %v4303, 0.2
    %v4432 = vmul.f32 %v4304, 0.2
    %v4433 = vmul.f32 %v4305, 0.2
    %v4434 = vmul.f32 %v4306, 0.2
    %v4435 = vmul.f32 %v4307, 0.2
    %v4436 = vsel %vm4308, %v4244, %v4372
    %v4437 = vsel %vm4309, %v4245, %v4373
    %v4438 = vsel %vm4310, %v4246, %v4374
    %v4439 = vsel %vm4311, %v4247, %v4375
    %v4440 = vsel %vm4312, %v4248, %v4376
    %v4441 = vsel %vm4313, %v4249, %v4377
    %v4442 = vsel %vm4314, %v4250, %v4378
    %v4443 = vsel %vm4315, %v4251, %v4379
    %v4444 = vsel %vm4316, %v4252, %v4380
    %v4445 = vsel %vm4317, %v4253, %v4381
    %v4446 = vsel %vm4318, %v4254, %v4382
    %v4447 = vsel %vm4319, %v4255, %v4383
    %v4448 = vsel %vm4320, %v4256, %v4384
    %v4449 = vsel %vm4321, %v4257, %v4385
    %v4450 = vsel %vm4322, %v4258, %v4386
    %v4451 = vsel %vm4323, %v4259, %v4387
    %v4452 = vsel %vm4324, %v4260, %v4388
    %v4453 = vsel %vm4325, %v4261, %v4389
    %v4454 = vsel %vm4326, %v4262, %v4390
    %v4455 = vsel %vm4327, %v4263, %v4391
    %v4456 = vsel %vm4328, %v4264, %v4392
    %v4457 = vsel %vm4329, %v4265, %v4393
    %v4458 = vsel %vm4330, %v4266, %v4394
    %v4459 = vsel %vm4331, %v4267, %v4395
    %v4460 = vsel %vm4332, %v4268, %v4396
    %v4461 = vsel %vm4333, %v4269, %v4397
    %v4462 = vsel %vm4334, %v4270, %v4398
    %v4463 = vsel %vm4335, %v4271, %v4399
    %v4464 = vsel %vm4336, %v4272, %v4400
    %v4465 = vsel %vm4337, %v4273, %v4401
    %v4466 = vsel %vm4338, %v4274, %v4402
    %v4467 = vsel %vm4339, %v4275, %v4403
    %v4468 = vsel %vm4340, %v4276, %v4404
    %v4469 = vsel %vm4341, %v4277, %v4405
    %v4470 = vsel %vm4342, %v4278, %v4406
    %v4471 = vsel %vm4343, %v4279, %v4407
    %v4472 = vsel %vm4344, %v4280, %v4408
    %v4473 = vsel %vm4345, %v4281, %v4409
    %v4474 = vsel %vm4346, %v4282, %v4410
    %v4475 = vsel %vm4347, %v4283, %v4411
    %v4476 = vsel %vm4348, %v4284, %v4412
    %v4477 = vsel %vm4349, %v4285, %v4413
    %v4478 = vsel %vm4350, %v4286, %v4414
    %v4479 = vsel %vm4351, %v4287, %v4415
    %v4480 = vsel %vm4352, %v4288, %v4416
    %v4481 = vsel %vm4353, %v4289, %v4417
    %v4482 = vsel %vm4354, %v4290, %v4418
    %v4483 = vsel %vm4355, %v4291, %v4419
    %v4484 = vsel %vm4356, %v4292, %v4420
    %v4485 = vsel %vm4357, %v4293, %v4421
    %v4486 = vsel %vm4358, %v4294, %v4422
    %v4487 = vsel %vm4359, %v4295, %v4423
    %v4488 = vsel %vm4360, %v4296, %v4424
    %v4489 = vsel %vm4361, %v4297, %v4425
    %v4490 = vsel %vm4362, %v4298, %v4426
    %v4491 = vsel %vm4363, %v4299, %v4427
    %v4492 = vsel %vm4364, %v4300, %v4428
    %v4493 = vsel %vm4365, %v4301, %v4429
    %v4494 = vsel %vm4366, %v4302, %v4430
    %v4495 = vsel %vm4367, %v4303, %v4431
    %v4496 = vsel %vm4368, %v4304, %v4432
    %v4497 = vsel %vm4369, %v4305, %v4433
    %v4498 = vsel %vm4370, %v4306, %v4434
    %v4499 = vsel %vm4371, %v4307, %v4435
    %v4501 = vlaneseq
    %v4502 = vshrl.u32 %v4501, 7
    %v4503 = vsub.s32 0, %v4502
    %v4504 = vrot.slane %v3826, %v4503
    %v4505 = vlaneseq
    %v4506 = vshrl.u32 %v4505, 7
    %v4507 = vsub.s32 1, %v4506
    %v4508 = vrot.slane %v3826, %v4507
    %v4511 = vmul.f32 %v4436, %v4504
    %v4512 = vmul.f32 %v4437, %v4508
    %v4513 = vmul.f32 %v4438, %v4504
    %v4514 = vmul.f32 %v4439, %v4508
    %v4515 = vmul.f32 %v4440, %v4504
    %v4516 = vmul.f32 %v4441, %v4508
    %v4517 = vmul.f32 %v4442, %v4504
    %v4518 = vmul.f32 %v4443, %v4508
    %v4519 = vmul.f32 %v4444, %v4504
    %v4520 = vmul.f32 %v4445, %v4508
    %v4521 = vmul.f32 %v4446, %v4504
    %v4522 = vmul.f32 %v4447, %v4508
    %v4523 = vmul.f32 %v4448, %v4504
    %v4524 = vmul.f32 %v4449, %v4508
    %v4525 = vmul.f32 %v4450, %v4504
    %v4526 = vmul.f32 %v4451, %v4508
    %v4527 = vmul.f32 %v4452, %v4504
    %v4528 = vmul.f32 %v4453, %v4508
    %v4529 = vmul.f32 %v4454, %v4504
    %v4530 = vmul.f32 %v4455, %v4508
    %v4531 = vmul.f32 %v4456, %v4504
    %v4532 = vmul.f32 %v4457, %v4508
    %v4533 = vmul.f32 %v4458, %v4504
    %v4534 = vmul.f32 %v4459, %v4508
    %v4535 = vmul.f32 %v4460, %v4504
    %v4536 = vmul.f32 %v4461, %v4508
    %v4537 = vmul.f32 %v4462, %v4504
    %v4538 = vmul.f32 %v4463, %v4508
    %v4539 = vmul.f32 %v4464, %v4504
    %v4540 = vmul.f32 %v4465, %v4508
    %v4541 = vmul.f32 %v4466, %v4504
    %v4542 = vmul.f32 %v4467, %v4508
    %v4543 = vmul.f32 %v4468, %v4504
    %v4544 = vmul.f32 %v4469, %v4508
    %v4545 = vmul.f32 %v4470, %v4504
    %v4546 = vmul.f32 %v4471, %v4508
    %v4547 = vmul.f32 %v4472, %v4504
    %v4548 = vmul.f32 %v4473, %v4508
    %v4549 = vmul.f32 %v4474, %v4504
    %v4550 = vmul.f32 %v4475, %v4508
    %v4551 = vmul.f32 %v4476, %v4504
    %v4552 = vmul.f32 %v4477, %v4508
    %v4553 = vmul.f32 %v4478, %v4504
    %v4554 = vmul.f32 %v4479, %v4508
    %v4555 = vmul.f32 %v4480, %v4504
    %v4556 = vmul.f32 %v4481, %v4508
    %v4557 = vmul.f32 %v4482, %v4504
    %v4558 = vmul.f32 %v4483, %v4508
    %v4559 = vmul.f32 %v4484, %v4504
    %v4560 = vmul.f32 %v4485, %v4508
    %v4561 = vmul.f32 %v4486, %v4504
    %v4562 = vmul.f32 %v4487, %v4508
    %v4563 = vmul.f32 %v4488, %v4504
    %v4564 = vmul.f32 %v4489, %v4508
    %v4565 = vmul.f32 %v4490, %v4504
    %v4566 = vmul.f32 %v4491, %v4508
    %v4567 = vmul.f32 %v4492, %v4504
    %v4568 = vmul.f32 %v4493, %v4508
    %v4569 = vmul.f32 %v4494, %v4504
    %v4570 = vmul.f32 %v4495, %v4508
    %v4571 = vmul.f32 %v4496, %v4504
    %v4572 = vmul.f32 %v4497, %v4508
    %v4573 = vmul.f32 %v4498, %v4504
    %v4574 = vmul.f32 %v4499, %v4508
    %4575 = vadd.xlane.f32.xlu0 %v4511
    %v4576 = vpop.xlane.xlu0 %4575
    %4577 = vadd.xlane.f32.xlu0 %v4513
    %v4578 = vpop.xlane.xlu0 %4577
    %4579 = vadd.xlane.f32.xlu0 %v4515
    %v4580 = vpop.xlane.xlu0 %4579
    %4581 = vadd.xlane.f32.xlu0 %v4517
    %v4582 = vpop.xlane.xlu0 %4581
    %4583 = vadd.xlane.f32.xlu0 %v4519
    %v4584 = vpop.xlane.xlu0 %4583
    %4585 = vadd.xlane.f32.xlu0 %v4521
    %v4586 = vpop.xlane.xlu0 %4585
    %4587 = vadd.xlane.f32.xlu0 %v4523
    %v4588 = vpop.xlane.xlu0 %4587
    %4589 = vadd.xlane.f32.xlu0 %v4525
    %v4590 = vpop.xlane.xlu0 %4589
    %4591 = vadd.xlane.f32.xlu0 %v4527
    %v4592 = vpop.xlane.xlu0 %4591
    %4593 = vadd.xlane.f32.xlu0 %v4529
    %v4594 = vpop.xlane.xlu0 %4593
    %4595 = vadd.xlane.f32.xlu0 %v4531
    %v4596 = vpop.xlane.xlu0 %4595
    %4597 = vadd.xlane.f32.xlu0 %v4533
    %v4598 = vpop.xlane.xlu0 %4597
    %4599 = vadd.xlane.f32.xlu0 %v4535
    %v4600 = vpop.xlane.xlu0 %4599
    %4601 = vadd.xlane.f32.xlu0 %v4537
    %v4602 = vpop.xlane.xlu0 %4601
    %4603 = vadd.xlane.f32.xlu0 %v4539
    %v4604 = vpop.xlane.xlu0 %4603
    %4605 = vadd.xlane.f32.xlu0 %v4541
    %v4606 = vpop.xlane.xlu0 %4605
    %4607 = vadd.xlane.f32.xlu0 %v4543
    %v4608 = vpop.xlane.xlu0 %4607
    %4609 = vadd.xlane.f32.xlu0 %v4545
    %v4610 = vpop.xlane.xlu0 %4609
    %4611 = vadd.xlane.f32.xlu0 %v4547
    %v4612 = vpop.xlane.xlu0 %4611
    %4613 = vadd.xlane.f32.xlu0 %v4549
    %v4614 = vpop.xlane.xlu0 %4613
    %4615 = vadd.xlane.f32.xlu0 %v4551
    %v4616 = vpop.xlane.xlu0 %4615
    %4617 = vadd.xlane.f32.xlu0 %v4553
    %v4618 = vpop.xlane.xlu0 %4617
    %4619 = vadd.xlane.f32.xlu0 %v4555
    %v4620 = vpop.xlane.xlu0 %4619
    %4621 = vadd.xlane.f32.xlu0 %v4557
    %v4622 = vpop.xlane.xlu0 %4621
    %4623 = vadd.xlane.f32.xlu0 %v4559
    %v4624 = vpop.xlane.xlu0 %4623
    %4625 = vadd.xlane.f32.xlu0 %v4561
    %v4626 = vpop.xlane.xlu0 %4625
    %4627 = vadd.xlane.f32.xlu0 %v4563
    %v4628 = vpop.xlane.xlu0 %4627
    %4629 = vadd.xlane.f32.xlu0 %v4565
    %v4630 = vpop.xlane.xlu0 %4629
    %4631 = vadd.xlane.f32.xlu0 %v4567
    %v4632 = vpop.xlane.xlu0 %4631
    %4633 = vadd.xlane.f32.xlu0 %v4569
    %v4634 = vpop.xlane.xlu0 %4633
    %4635 = vadd.xlane.f32.xlu0 %v4571
    %v4636 = vpop.xlane.xlu0 %4635
    %4637 = vadd.xlane.f32.xlu0 %v4573
    %v4638 = vpop.xlane.xlu0 %4637
    %v4639 = vadd.f32 %v4576, %v846
    %v4640 = vadd.f32 %v4578, %v850
    %v4641 = vadd.f32 %v4580, %v857
    %v4642 = vadd.f32 %v4582, %v861
    %v4643 = vadd.f32 %v4584, %v868
    %v4644 = vadd.f32 %v4586, %v872
    %v4645 = vadd.f32 %v4588, %v879
    %v4646 = vadd.f32 %v4590, %v883
    %v4647 = vadd.f32 %v4592, %v890
    %v4648 = vadd.f32 %v4594, %v894
    %v4649 = vadd.f32 %v4596, %v901
    %v4650 = vadd.f32 %v4598, %v905
    %v4651 = vadd.f32 %v4600, %v912
    %v4652 = vadd.f32 %v4602, %v916
    %v4653 = vadd.f32 %v4604, %v923
    %v4654 = vadd.f32 %v4606, %v927
    %v4655 = vadd.f32 %v4608, %v934
    %v4656 = vadd.f32 %v4610, %v938
    %v4657 = vadd.f32 %v4612, %v945
    %v4658 = vadd.f32 %v4614, %v949
    %v4659 = vadd.f32 %v4616, %v956
    %v4660 = vadd.f32 %v4618, %v960
    %v4661 = vadd.f32 %v4620, %v967
    %v4662 = vadd.f32 %v4622, %v971
    %v4663 = vadd.f32 %v4624, %v978
    %v4664 = vadd.f32 %v4626, %v982
    %v4665 = vadd.f32 %v4628, %v989
    %v4666 = vadd.f32 %v4630, %v993
    %v4667 = vadd.f32 %v4632, %v1000
    %v4668 = vadd.f32 %v4634, %v1004
    %v4669 = vadd.f32 %v4636, %v1011
    %v4670 = vadd.f32 %v4638, %v1015
    %4703 = vset.pattern.permute.xlu0 0
    %4704 = vperm.xlu0 %4703, %v4639
    %v4705 = vpop.permute.xlu0 %4704
    %4706 = vset.pattern.permute.xlu0 0
    %4707 = vperm.xlu0 %4706, %v4640
    %v4708 = vpop.permute.xlu0 %4707
    %4709 = vset.pattern.permute.xlu0 0
    %4710 = vperm.xlu0 %4709, %v4641
    %v4711 = vpop.permute.xlu0 %4710
    %4712 = vset.pattern.permute.xlu0 0
    %4713 = vperm.xlu0 %4712, %v4642
    %v4714 = vpop.permute.xlu0 %4713
    %4715 = vset.pattern.permute.xlu0 0
    %4716 = vperm.xlu0 %4715, %v4643
    %v4717 = vpop.permute.xlu0 %4716
    %4718 = vset.pattern.permute.xlu0 0
    %4719 = vperm.xlu0 %4718, %v4644
    %v4720 = vpop.permute.xlu0 %4719
    %4721 = vset.pattern.permute.xlu0 0
    %4722 = vperm.xlu0 %4721, %v4645
    %v4723 = vpop.permute.xlu0 %4722
    %4724 = vset.pattern.permute.xlu0 0
    %4725 = vperm.xlu0 %4724, %v4646
    %v4726 = vpop.permute.xlu0 %4725
    %4727 = vset.pattern.permute.xlu0 0
    %4728 = vperm.xlu0 %4727, %v4647
    %v4729 = vpop.permute.xlu0 %4728
    %4730 = vset.pattern.permute.xlu0 0
    %4731 = vperm.xlu0 %4730, %v4648
    %v4732 = vpop.permute.xlu0 %4731
    %4733 = vset.pattern.permute.xlu0 0
    %4734 = vperm.xlu0 %4733, %v4649
    %v4735 = vpop.permute.xlu0 %4734
    %4736 = vset.pattern.permute.xlu0 0
    %4737 = vperm.xlu0 %4736, %v4650
    %v4738 = vpop.permute.xlu0 %4737
    %4739 = vset.pattern.permute.xlu0 0
    %4740 = vperm.xlu0 %4739, %v4651
    %v4741 = vpop.permute.xlu0 %4740
    %4742 = vset.pattern.permute.xlu0 0
    %4743 = vperm.xlu0 %4742, %v4652
    %v4744 = vpop.permute.xlu0 %4743
    %4745 = vset.pattern.permute.xlu0 0
    %4746 = vperm.xlu0 %4745, %v4653
    %v4747 = vpop.permute.xlu0 %4746
    %4748 = vset.pattern.permute.xlu0 0
    %4749 = vperm.xlu0 %4748, %v4654
    %v4750 = vpop.permute.xlu0 %4749
    %4751 = vset.pattern.permute.xlu0 0
    %4752 = vperm.xlu0 %4751, %v4655
    %v4753 = vpop.permute.xlu0 %4752
    %4754 = vset.pattern.permute.xlu0 0
    %4755 = vperm.xlu0 %4754, %v4656
    %v4756 = vpop.permute.xlu0 %4755
    %4757 = vset.pattern.permute.xlu0 0
    %4758 = vperm.xlu0 %4757, %v4657
    %v4759 = vpop.permute.xlu0 %4758
    %4760 = vset.pattern.permute.xlu0 0
    %4761 = vperm.xlu0 %4760, %v4658
    %v4762 = vpop.permute.xlu0 %4761
    %4763 = vset.pattern.permute.xlu0 0
    %4764 = vperm.xlu0 %4763, %v4659
    %v4765 = vpop.permute.xlu0 %4764
    %4766 = vset.pattern.permute.xlu0 0
    %4767 = vperm.xlu0 %4766, %v4660
    %v4768 = vpop.permute.xlu0 %4767
    %4769 = vset.pattern.permute.xlu0 0
    %4770 = vperm.xlu0 %4769, %v4661
    %v4771 = vpop.permute.xlu0 %4770
    %4772 = vset.pattern.permute.xlu0 0
    %4773 = vperm.xlu0 %4772, %v4662
    %v4774 = vpop.permute.xlu0 %4773
    %4775 = vset.pattern.permute.xlu0 0
    %4776 = vperm.xlu0 %4775, %v4663
    %v4777 = vpop.permute.xlu0 %4776
    %4778 = vset.pattern.permute.xlu0 0
    %4779 = vperm.xlu0 %4778, %v4664
    %v4780 = vpop.permute.xlu0 %4779
    %4781 = vset.pattern.permute.xlu0 0
    %4782 = vperm.xlu0 %4781, %v4665
    %v4783 = vpop.permute.xlu0 %4782
    %4784 = vset.pattern.permute.xlu0 0
    %4785 = vperm.xlu0 %4784, %v4666
    %v4786 = vpop.permute.xlu0 %4785
    %4787 = vset.pattern.permute.xlu0 0
    %4788 = vperm.xlu0 %4787, %v4667
    %v4789 = vpop.permute.xlu0 %4788
    %4790 = vset.pattern.permute.xlu0 0
    %4791 = vperm.xlu0 %4790, %v4668
    %v4792 = vpop.permute.xlu0 %4791
    %4793 = vset.pattern.permute.xlu0 0
    %4794 = vperm.xlu0 %4793, %v4669
    %v4795 = vpop.permute.xlu0 %4794
    %4796 = vset.pattern.permute.xlu0 0
    %4797 = vperm.xlu0 %4796, %v4670
    %v4798 = vpop.permute.xlu0 %4797
    %v4799 = vlaneseq
    %v4800 = vshrl.u32 %v4799, 7
    %v4801 = vsub.s32 %v1209, %v4800
    %v4802 = vrot.slane %v4705, %v4801
    %v4803 = vlaneseq
    %v4804 = vshrl.u32 %v4803, 7
    %v4805 = vsub.s32 %v1214, %v4804
    %v4806 = vrot.slane %v4708, %v4805
    %v4807 = vsel %vm1219, %v4806, %v4802
    %v4808 = vlaneseq
    %v4809 = vshrl.u32 %v4808, 7
    %v4810 = vsub.s32 %v1209, %v4809
    %v4811 = vrot.slane %v4711, %v4810
    %v4812 = vlaneseq
    %v4813 = vshrl.u32 %v4812, 7
    %v4814 = vsub.s32 %v1214, %v4813
    %v4815 = vrot.slane %v4714, %v4814
    %v4816 = vsel %vm1219, %v4815, %v4811
    %v4817 = vlaneseq
    %v4818 = vshrl.u32 %v4817, 7
    %v4819 = vsub.s32 %v1209, %v4818
    %v4820 = vrot.slane %v4717, %v4819
    %v4821 = vlaneseq
    %v4822 = vshrl.u32 %v4821, 7
    %v4823 = vsub.s32 %v1214, %v4822
    %v4824 = vrot.slane %v4720, %v4823
    %v4825 = vsel %vm1219, %v4824, %v4820
    %v4826 = vlaneseq
    %v4827 = vshrl.u32 %v4826, 7
    %v4828 = vsub.s32 %v1209, %v4827
    %v4829 = vrot.slane %v4723, %v4828
    %v4830 = vlaneseq
    %v4831 = vshrl.u32 %v4830, 7
    %v4832 = vsub.s32 %v1214, %v4831
    %v4833 = vrot.slane %v4726, %v4832
    %v4834 = vsel %vm1219, %v4833, %v4829
    %v4835 = vlaneseq
    %v4836 = vshrl.u32 %v4835, 7
    %v4837 = vsub.s32 %v1209, %v4836
    %v4838 = vrot.slane %v4729, %v4837
    %v4839 = vlaneseq
    %v4840 = vshrl.u32 %v4839, 7
    %v4841 = vsub.s32 %v1214, %v4840
    %v4842 = vrot.slane %v4732, %v4841
    %v4843 = vsel %vm1219, %v4842, %v4838
    %v4844 = vlaneseq
    %v4845 = vshrl.u32 %v4844, 7
    %v4846 = vsub.s32 %v1209, %v4845
    %v4847 = vrot.slane %v4735, %v4846
    %v4848 = vlaneseq
    %v4849 = vshrl.u32 %v4848, 7
    %v4850 = vsub.s32 %v1214, %v4849
    %v4851 = vrot.slane %v4738, %v4850
    %v4852 = vsel %vm1219, %v4851, %v4847
    %v4853 = vlaneseq
    %v4854 = vshrl.u32 %v4853, 7
    %v4855 = vsub.s32 %v1209, %v4854
    %v4856 = vrot.slane %v4741, %v4855
    %v4857 = vlaneseq
    %v4858 = vshrl.u32 %v4857, 7
    %v4859 = vsub.s32 %v1214, %v4858
    %v4860 = vrot.slane %v4744, %v4859
    %v4861 = vsel %vm1219, %v4860, %v4856
    %v4862 = vlaneseq
    %v4863 = vshrl.u32 %v4862, 7
    %v4864 = vsub.s32 %v1209, %v4863
    %v4865 = vrot.slane %v4747, %v4864
    %v4866 = vlaneseq
    %v4867 = vshrl.u32 %v4866, 7
    %v4868 = vsub.s32 %v1214, %v4867
    %v4869 = vrot.slane %v4750, %v4868
    %v4870 = vsel %vm1219, %v4869, %v4865
    %v4871 = vlaneseq
    %v4872 = vshrl.u32 %v4871, 7
    %v4873 = vsub.s32 %v1209, %v4872
    %v4874 = vrot.slane %v4753, %v4873
    %v4875 = vlaneseq
    %v4876 = vshrl.u32 %v4875, 7
    %v4877 = vsub.s32 %v1214, %v4876
    %v4878 = vrot.slane %v4756, %v4877
    %v4879 = vsel %vm1219, %v4878, %v4874
    %v4880 = vlaneseq
    %v4881 = vshrl.u32 %v4880, 7
    %v4882 = vsub.s32 %v1209, %v4881
    %v4883 = vrot.slane %v4759, %v4882
    %v4884 = vlaneseq
    %v4885 = vshrl.u32 %v4884, 7
    %v4886 = vsub.s32 %v1214, %v4885
    %v4887 = vrot.slane %v4762, %v4886
    %v4888 = vsel %vm1219, %v4887, %v4883
    %v4889 = vlaneseq
    %v4890 = vshrl.u32 %v4889, 7
    %v4891 = vsub.s32 %v1209, %v4890
    %v4892 = vrot.slane %v4765, %v4891
    %v4893 = vlaneseq
    %v4894 = vshrl.u32 %v4893, 7
    %v4895 = vsub.s32 %v1214, %v4894
    %v4896 = vrot.slane %v4768, %v4895
    %v4897 = vsel %vm1219, %v4896, %v4892
    %v4898 = vlaneseq
    %v4899 = vshrl.u32 %v4898, 7
    %v4900 = vsub.s32 %v1209, %v4899
    %v4901 = vrot.slane %v4771, %v4900
    %v4902 = vlaneseq
    %v4903 = vshrl.u32 %v4902, 7
    %v4904 = vsub.s32 %v1214, %v4903
    %v4905 = vrot.slane %v4774, %v4904
    %v4906 = vsel %vm1219, %v4905, %v4901
    %v4907 = vlaneseq
    %v4908 = vshrl.u32 %v4907, 7
    %v4909 = vsub.s32 %v1209, %v4908
    %v4910 = vrot.slane %v4777, %v4909
    %v4911 = vlaneseq
    %v4912 = vshrl.u32 %v4911, 7
    %v4913 = vsub.s32 %v1214, %v4912
    %v4914 = vrot.slane %v4780, %v4913
    %v4915 = vsel %vm1219, %v4914, %v4910
    %v4916 = vlaneseq
    %v4917 = vshrl.u32 %v4916, 7
    %v4918 = vsub.s32 %v1209, %v4917
    %v4919 = vrot.slane %v4783, %v4918
    %v4920 = vlaneseq
    %v4921 = vshrl.u32 %v4920, 7
    %v4922 = vsub.s32 %v1214, %v4921
    %v4923 = vrot.slane %v4786, %v4922
    %v4924 = vsel %vm1219, %v4923, %v4919
    %v4925 = vlaneseq
    %v4926 = vshrl.u32 %v4925, 7
    %v4927 = vsub.s32 %v1209, %v4926
    %v4928 = vrot.slane %v4789, %v4927
    %v4929 = vlaneseq
    %v4930 = vshrl.u32 %v4929, 7
    %v4931 = vsub.s32 %v1214, %v4930
    %v4932 = vrot.slane %v4792, %v4931
    %v4933 = vsel %vm1219, %v4932, %v4928
    %v4934 = vlaneseq
    %v4935 = vshrl.u32 %v4934, 7
    %v4936 = vsub.s32 %v1209, %v4935
    %v4937 = vrot.slane %v4795, %v4936
    %v4938 = vlaneseq
    %v4939 = vshrl.u32 %v4938, 7
    %v4940 = vsub.s32 %v1214, %v4939
    %v4941 = vrot.slane %v4798, %v4940
    %v4942 = vsel %vm1219, %v4941, %v4937
    %v4943 = vsel %vm1356, %v4816, %v4807
    %v4944 = vsel %vm1358, %v4825, %v4943
    %v4945 = vsel %vm1360, %v4834, %v4944
    %v4946 = vsel %vm1362, %v4843, %v4945
    %v4947 = vsel %vm1364, %v4852, %v4946
    %v4948 = vsel %vm1366, %v4861, %v4947
    %v4949 = vsel %vm1368, %v4870, %v4948
    %v4950 = vsel %vm1356, %v4888, %v4879
    %v4951 = vsel %vm1358, %v4897, %v4950
    %v4952 = vsel %vm1360, %v4906, %v4951
    %v4953 = vsel %vm1362, %v4915, %v4952
    %v4954 = vsel %vm1364, %v4924, %v4953
    %v4955 = vsel %vm1366, %v4933, %v4954
    %v4956 = vsel %vm1368, %v4942, %v4955
    %v4959 = vsel %vm89, %v4949, -inf
    %4960 = vmax.xlane.f32.xlu0 %v4959
    %v4961 = vpop.xlane.xlu0 %4960
    %v4962 = vsel %vm89, %v4956, -inf
    %4963 = vmax.xlane.f32.xlu0 %v4962
    %v4964 = vpop.xlane.xlu0 %4963
    %v4967 = vlaneseq
    %v4968 = vshrl.u32 %v4967, 7
    %v4969 = vsub.s32 0, %v4968
    %v4970 = vrot.slane %v4961, %v4969
    %v4971 = vlaneseq
    %v4972 = vshrl.u32 %v4971, 7
    %v4973 = vsub.s32 1, %v4972
    %v4974 = vrot.slane %v4961, %v4973
    %v4975 = vlaneseq
    %v4976 = vshrl.u32 %v4975, 7
    %v4977 = vsub.s32 2, %v4976
    %v4978 = vrot.slane %v4961, %v4977
    %v4979 = vlaneseq
    %v4980 = vshrl.u32 %v4979, 7
    %v4981 = vsub.s32 3, %v4980
    %v4982 = vrot.slane %v4961, %v4981
    %v4983 = vlaneseq
    %v4984 = vshrl.u32 %v4983, 7
    %v4985 = vsub.s32 4, %v4984
    %v4986 = vrot.slane %v4961, %v4985
    %v4987 = vlaneseq
    %v4988 = vshrl.u32 %v4987, 7
    %v4989 = vsub.s32 5, %v4988
    %v4990 = vrot.slane %v4961, %v4989
    %v4991 = vlaneseq
    %v4992 = vshrl.u32 %v4991, 7
    %v4993 = vsub.s32 6, %v4992
    %v4994 = vrot.slane %v4961, %v4993
    %v4995 = vlaneseq
    %v4996 = vshrl.u32 %v4995, 7
    %v4997 = vsub.s32 7, %v4996
    %v4998 = vrot.slane %v4961, %v4997
    %v4999 = vlaneseq
    %v5000 = vshrl.u32 %v4999, 7
    %v5001 = vsub.s32 0, %v5000
    %v5002 = vrot.slane %v4964, %v5001
    %v5003 = vlaneseq
    %v5004 = vshrl.u32 %v5003, 7
    %v5005 = vsub.s32 1, %v5004
    %v5006 = vrot.slane %v4964, %v5005
    %v5007 = vlaneseq
    %v5008 = vshrl.u32 %v5007, 7
    %v5009 = vsub.s32 2, %v5008
    %v5010 = vrot.slane %v4964, %v5009
    %v5011 = vlaneseq
    %v5012 = vshrl.u32 %v5011, 7
    %v5013 = vsub.s32 3, %v5012
    %v5014 = vrot.slane %v4964, %v5013
    %v5015 = vlaneseq
    %v5016 = vshrl.u32 %v5015, 7
    %v5017 = vsub.s32 4, %v5016
    %v5018 = vrot.slane %v4964, %v5017
    %v5019 = vlaneseq
    %v5020 = vshrl.u32 %v5019, 7
    %v5021 = vsub.s32 5, %v5020
    %v5022 = vrot.slane %v4964, %v5021
    %v5023 = vlaneseq
    %v5024 = vshrl.u32 %v5023, 7
    %v5025 = vsub.s32 6, %v5024
    %v5026 = vrot.slane %v4964, %v5025
    %v5027 = vlaneseq
    %v5028 = vshrl.u32 %v5027, 7
    %v5029 = vsub.s32 7, %v5028
    %v5030 = vrot.slane %v4964, %v5029
    %v5047 = vsub.f32 %v4639, %v4970
    %v5048 = vsub.f32 %v4640, %v4970
    %v5049 = vsub.f32 %v4641, %v4974
    %v5050 = vsub.f32 %v4642, %v4974
    %v5051 = vsub.f32 %v4643, %v4978
    %v5052 = vsub.f32 %v4644, %v4978
    %v5053 = vsub.f32 %v4645, %v4982
    %v5054 = vsub.f32 %v4646, %v4982
    %v5055 = vsub.f32 %v4647, %v4986
    %v5056 = vsub.f32 %v4648, %v4986
    %v5057 = vsub.f32 %v4649, %v4990
    %v5058 = vsub.f32 %v4650, %v4990
    %v5059 = vsub.f32 %v4651, %v4994
    %v5060 = vsub.f32 %v4652, %v4994
    %v5061 = vsub.f32 %v4653, %v4998
    %v5062 = vsub.f32 %v4654, %v4998
    %v5063 = vsub.f32 %v4655, %v5002
    %v5064 = vsub.f32 %v4656, %v5002
    %v5065 = vsub.f32 %v4657, %v5006
    %v5066 = vsub.f32 %v4658, %v5006
    %v5067 = vsub.f32 %v4659, %v5010
    %v5068 = vsub.f32 %v4660, %v5010
    %v5069 = vsub.f32 %v4661, %v5014
    %v5070 = vsub.f32 %v4662, %v5014
    %v5071 = vsub.f32 %v4663, %v5018
    %v5072 = vsub.f32 %v4664, %v5018
    %v5073 = vsub.f32 %v4665, %v5022
    %v5074 = vsub.f32 %v4666, %v5022
    %v5075 = vsub.f32 %v4667, %v5026
    %v5076 = vsub.f32 %v4668, %v5026
    %v5077 = vsub.f32 %v4669, %v5030
    %v5078 = vsub.f32 %v4670, %v5030
    %v5079 = vmul.f32 %v5047, 1.442695
    %v5080 = vpow.pop %v5079
    %v5081 = vmul.f32 %v5048, 1.442695
    %v5082 = vpow.pop %v5081
    %v5083 = vmul.f32 %v5049, 1.442695
    %v5084 = vpow.pop %v5083
    %v5085 = vmul.f32 %v5050, 1.442695
    %v5086 = vpow.pop %v5085
    %v5087 = vmul.f32 %v5051, 1.442695
    %v5088 = vpow.pop %v5087
    %v5089 = vmul.f32 %v5052, 1.442695
    %v5090 = vpow.pop %v5089
    %v5091 = vmul.f32 %v5053, 1.442695
    %v5092 = vpow.pop %v5091
    %v5093 = vmul.f32 %v5054, 1.442695
    %v5094 = vpow.pop %v5093
    %v5095 = vmul.f32 %v5055, 1.442695
    %v5096 = vpow.pop %v5095
    %v5097 = vmul.f32 %v5056, 1.442695
    %v5098 = vpow.pop %v5097
    %v5099 = vmul.f32 %v5057, 1.442695
    %v5100 = vpow.pop %v5099
    %v5101 = vmul.f32 %v5058, 1.442695
    %v5102 = vpow.pop %v5101
    %v5103 = vmul.f32 %v5059, 1.442695
    %v5104 = vpow.pop %v5103
    %v5105 = vmul.f32 %v5060, 1.442695
    %v5106 = vpow.pop %v5105
    %v5107 = vmul.f32 %v5061, 1.442695
    %v5108 = vpow.pop %v5107
    %v5109 = vmul.f32 %v5062, 1.442695
    %v5110 = vpow.pop %v5109
    %v5111 = vmul.f32 %v5063, 1.442695
    %v5112 = vpow.pop %v5111
    %v5113 = vmul.f32 %v5064, 1.442695
    %v5114 = vpow.pop %v5113
    %v5115 = vmul.f32 %v5065, 1.442695
    %v5116 = vpow.pop %v5115
    %v5117 = vmul.f32 %v5066, 1.442695
    %v5118 = vpow.pop %v5117
    %v5119 = vmul.f32 %v5067, 1.442695
    %v5120 = vpow.pop %v5119
    %v5121 = vmul.f32 %v5068, 1.442695
    %v5122 = vpow.pop %v5121
    %v5123 = vmul.f32 %v5069, 1.442695
    %v5124 = vpow.pop %v5123
    %v5125 = vmul.f32 %v5070, 1.442695
    %v5126 = vpow.pop %v5125
    %v5127 = vmul.f32 %v5071, 1.442695
    %v5128 = vpow.pop %v5127
    %v5129 = vmul.f32 %v5072, 1.442695
    %v5130 = vpow.pop %v5129
    %v5131 = vmul.f32 %v5073, 1.442695
    %v5132 = vpow.pop %v5131
    %v5133 = vmul.f32 %v5074, 1.442695
    %v5134 = vpow.pop %v5133
    %v5135 = vmul.f32 %v5075, 1.442695
    %v5136 = vpow.pop %v5135
    %v5137 = vmul.f32 %v5076, 1.442695
    %v5138 = vpow.pop %v5137
    %v5139 = vmul.f32 %v5077, 1.442695
    %v5140 = vpow.pop %v5139
    %v5141 = vmul.f32 %v5078, 1.442695
    %v5142 = vpow.pop %v5141
    %5175 = vset.pattern.permute.xlu0 0
    %5176 = vperm.xlu0 %5175, %v5080
    %v5177 = vpop.permute.xlu0 %5176
    %5178 = vset.pattern.permute.xlu0 0
    %5179 = vperm.xlu0 %5178, %v5082
    %v5180 = vpop.permute.xlu0 %5179
    %5181 = vset.pattern.permute.xlu0 0
    %5182 = vperm.xlu0 %5181, %v5084
    %v5183 = vpop.permute.xlu0 %5182
    %5184 = vset.pattern.permute.xlu0 0
    %5185 = vperm.xlu0 %5184, %v5086
    %v5186 = vpop.permute.xlu0 %5185
    %5187 = vset.pattern.permute.xlu0 0
    %5188 = vperm.xlu0 %5187, %v5088
    %v5189 = vpop.permute.xlu0 %5188
    %5190 = vset.pattern.permute.xlu0 0
    %5191 = vperm.xlu0 %5190, %v5090
    %v5192 = vpop.permute.xlu0 %5191
    %5193 = vset.pattern.permute.xlu0 0
    %5194 = vperm.xlu0 %5193, %v5092
    %v5195 = vpop.permute.xlu0 %5194
    %5196 = vset.pattern.permute.xlu0 0
    %5197 = vperm.xlu0 %5196, %v5094
    %v5198 = vpop.permute.xlu0 %5197
    %5199 = vset.pattern.permute.xlu0 0
    %5200 = vperm.xlu0 %5199, %v5096
    %v5201 = vpop.permute.xlu0 %5200
    %5202 = vset.pattern.permute.xlu0 0
    %5203 = vperm.xlu0 %5202, %v5098
    %v5204 = vpop.permute.xlu0 %5203
    %5205 = vset.pattern.permute.xlu0 0
    %5206 = vperm.xlu0 %5205, %v5100
    %v5207 = vpop.permute.xlu0 %5206
    %5208 = vset.pattern.permute.xlu0 0
    %5209 = vperm.xlu0 %5208, %v5102
    %v5210 = vpop.permute.xlu0 %5209
    %5211 = vset.pattern.permute.xlu0 0
    %5212 = vperm.xlu0 %5211, %v5104
    %v5213 = vpop.permute.xlu0 %5212
    %5214 = vset.pattern.permute.xlu0 0
    %5215 = vperm.xlu0 %5214, %v5106
    %v5216 = vpop.permute.xlu0 %5215
    %5217 = vset.pattern.permute.xlu0 0
    %5218 = vperm.xlu0 %5217, %v5108
    %v5219 = vpop.permute.xlu0 %5218
    %5220 = vset.pattern.permute.xlu0 0
    %5221 = vperm.xlu0 %5220, %v5110
    %v5222 = vpop.permute.xlu0 %5221
    %5223 = vset.pattern.permute.xlu0 0
    %5224 = vperm.xlu0 %5223, %v5112
    %v5225 = vpop.permute.xlu0 %5224
    %5226 = vset.pattern.permute.xlu0 0
    %5227 = vperm.xlu0 %5226, %v5114
    %v5228 = vpop.permute.xlu0 %5227
    %5229 = vset.pattern.permute.xlu0 0
    %5230 = vperm.xlu0 %5229, %v5116
    %v5231 = vpop.permute.xlu0 %5230
    %5232 = vset.pattern.permute.xlu0 0
    %5233 = vperm.xlu0 %5232, %v5118
    %v5234 = vpop.permute.xlu0 %5233
    %5235 = vset.pattern.permute.xlu0 0
    %5236 = vperm.xlu0 %5235, %v5120
    %v5237 = vpop.permute.xlu0 %5236
    %5238 = vset.pattern.permute.xlu0 0
    %5239 = vperm.xlu0 %5238, %v5122
    %v5240 = vpop.permute.xlu0 %5239
    %5241 = vset.pattern.permute.xlu0 0
    %5242 = vperm.xlu0 %5241, %v5124
    %v5243 = vpop.permute.xlu0 %5242
    %5244 = vset.pattern.permute.xlu0 0
    %5245 = vperm.xlu0 %5244, %v5126
    %v5246 = vpop.permute.xlu0 %5245
    %5247 = vset.pattern.permute.xlu0 0
    %5248 = vperm.xlu0 %5247, %v5128
    %v5249 = vpop.permute.xlu0 %5248
    %5250 = vset.pattern.permute.xlu0 0
    %5251 = vperm.xlu0 %5250, %v5130
    %v5252 = vpop.permute.xlu0 %5251
    %5253 = vset.pattern.permute.xlu0 0
    %5254 = vperm.xlu0 %5253, %v5132
    %v5255 = vpop.permute.xlu0 %5254
    %5256 = vset.pattern.permute.xlu0 0
    %5257 = vperm.xlu0 %5256, %v5134
    %v5258 = vpop.permute.xlu0 %5257
    %5259 = vset.pattern.permute.xlu0 0
    %5260 = vperm.xlu0 %5259, %v5136
    %v5261 = vpop.permute.xlu0 %5260
    %5262 = vset.pattern.permute.xlu0 0
    %5263 = vperm.xlu0 %5262, %v5138
    %v5264 = vpop.permute.xlu0 %5263
    %5265 = vset.pattern.permute.xlu0 0
    %5266 = vperm.xlu0 %5265, %v5140
    %v5267 = vpop.permute.xlu0 %5266
    %5268 = vset.pattern.permute.xlu0 0
    %5269 = vperm.xlu0 %5268, %v5142
    %v5270 = vpop.permute.xlu0 %5269
    %v5271 = vlaneseq
    %v5272 = vshrl.u32 %v5271, 7
    %v5273 = vsub.s32 %v1209, %v5272
    %v5274 = vrot.slane %v5177, %v5273
    %v5275 = vlaneseq
    %v5276 = vshrl.u32 %v5275, 7
    %v5277 = vsub.s32 %v1214, %v5276
    %v5278 = vrot.slane %v5180, %v5277
    %v5279 = vsel %vm1219, %v5278, %v5274
    %v5280 = vlaneseq
    %v5281 = vshrl.u32 %v5280, 7
    %v5282 = vsub.s32 %v1209, %v5281
    %v5283 = vrot.slane %v5183, %v5282
    %v5284 = vlaneseq
    %v5285 = vshrl.u32 %v5284, 7
    %v5286 = vsub.s32 %v1214, %v5285
    %v5287 = vrot.slane %v5186, %v5286
    %v5288 = vsel %vm1219, %v5287, %v5283
    %v5289 = vlaneseq
    %v5290 = vshrl.u32 %v5289, 7
    %v5291 = vsub.s32 %v1209, %v5290
    %v5292 = vrot.slane %v5189, %v5291
    %v5293 = vlaneseq
    %v5294 = vshrl.u32 %v5293, 7
    %v5295 = vsub.s32 %v1214, %v5294
    %v5296 = vrot.slane %v5192, %v5295
    %v5297 = vsel %vm1219, %v5296, %v5292
    %v5298 = vlaneseq
    %v5299 = vshrl.u32 %v5298, 7
    %v5300 = vsub.s32 %v1209, %v5299
    %v5301 = vrot.slane %v5195, %v5300
    %v5302 = vlaneseq
    %v5303 = vshrl.u32 %v5302, 7
    %v5304 = vsub.s32 %v1214, %v5303
    %v5305 = vrot.slane %v5198, %v5304
    %v5306 = vsel %vm1219, %v5305, %v5301
    %v5307 = vlaneseq
    %v5308 = vshrl.u32 %v5307, 7
    %v5309 = vsub.s32 %v1209, %v5308
    %v5310 = vrot.slane %v5201, %v5309
    %v5311 = vlaneseq
    %v5312 = vshrl.u32 %v5311, 7
    %v5313 = vsub.s32 %v1214, %v5312
    %v5314 = vrot.slane %v5204, %v5313
    %v5315 = vsel %vm1219, %v5314, %v5310
    %v5316 = vlaneseq
    %v5317 = vshrl.u32 %v5316, 7
    %v5318 = vsub.s32 %v1209, %v5317
    %v5319 = vrot.slane %v5207, %v5318
    %v5320 = vlaneseq
    %v5321 = vshrl.u32 %v5320, 7
    %v5322 = vsub.s32 %v1214, %v5321
    %v5323 = vrot.slane %v5210, %v5322
    %v5324 = vsel %vm1219, %v5323, %v5319
    %v5325 = vlaneseq
    %v5326 = vshrl.u32 %v5325, 7
    %v5327 = vsub.s32 %v1209, %v5326
    %v5328 = vrot.slane %v5213, %v5327
    %v5329 = vlaneseq
    %v5330 = vshrl.u32 %v5329, 7
    %v5331 = vsub.s32 %v1214, %v5330
    %v5332 = vrot.slane %v5216, %v5331
    %v5333 = vsel %vm1219, %v5332, %v5328
    %v5334 = vlaneseq
    %v5335 = vshrl.u32 %v5334, 7
    %v5336 = vsub.s32 %v1209, %v5335
    %v5337 = vrot.slane %v5219, %v5336
    %v5338 = vlaneseq
    %v5339 = vshrl.u32 %v5338, 7
    %v5340 = vsub.s32 %v1214, %v5339
    %v5341 = vrot.slane %v5222, %v5340
    %v5342 = vsel %vm1219, %v5341, %v5337
    %v5343 = vlaneseq
    %v5344 = vshrl.u32 %v5343, 7
    %v5345 = vsub.s32 %v1209, %v5344
    %v5346 = vrot.slane %v5225, %v5345
    %v5347 = vlaneseq
    %v5348 = vshrl.u32 %v5347, 7
    %v5349 = vsub.s32 %v1214, %v5348
    %v5350 = vrot.slane %v5228, %v5349
    %v5351 = vsel %vm1219, %v5350, %v5346
    %v5352 = vlaneseq
    %v5353 = vshrl.u32 %v5352, 7
    %v5354 = vsub.s32 %v1209, %v5353
    %v5355 = vrot.slane %v5231, %v5354
    %v5356 = vlaneseq
    %v5357 = vshrl.u32 %v5356, 7
    %v5358 = vsub.s32 %v1214, %v5357
    %v5359 = vrot.slane %v5234, %v5358
    %v5360 = vsel %vm1219, %v5359, %v5355
    %v5361 = vlaneseq
    %v5362 = vshrl.u32 %v5361, 7
    %v5363 = vsub.s32 %v1209, %v5362
    %v5364 = vrot.slane %v5237, %v5363
    %v5365 = vlaneseq
    %v5366 = vshrl.u32 %v5365, 7
    %v5367 = vsub.s32 %v1214, %v5366
    %v5368 = vrot.slane %v5240, %v5367
    %v5369 = vsel %vm1219, %v5368, %v5364
    %v5370 = vlaneseq
    %v5371 = vshrl.u32 %v5370, 7
    %v5372 = vsub.s32 %v1209, %v5371
    %v5373 = vrot.slane %v5243, %v5372
    %v5374 = vlaneseq
    %v5375 = vshrl.u32 %v5374, 7
    %v5376 = vsub.s32 %v1214, %v5375
    %v5377 = vrot.slane %v5246, %v5376
    %v5378 = vsel %vm1219, %v5377, %v5373
    %v5379 = vlaneseq
    %v5380 = vshrl.u32 %v5379, 7
    %v5381 = vsub.s32 %v1209, %v5380
    %v5382 = vrot.slane %v5249, %v5381
    %v5383 = vlaneseq
    %v5384 = vshrl.u32 %v5383, 7
    %v5385 = vsub.s32 %v1214, %v5384
    %v5386 = vrot.slane %v5252, %v5385
    %v5387 = vsel %vm1219, %v5386, %v5382
    %v5388 = vlaneseq
    %v5389 = vshrl.u32 %v5388, 7
    %v5390 = vsub.s32 %v1209, %v5389
    %v5391 = vrot.slane %v5255, %v5390
    %v5392 = vlaneseq
    %v5393 = vshrl.u32 %v5392, 7
    %v5394 = vsub.s32 %v1214, %v5393
    %v5395 = vrot.slane %v5258, %v5394
    %v5396 = vsel %vm1219, %v5395, %v5391
    %v5397 = vlaneseq
    %v5398 = vshrl.u32 %v5397, 7
    %v5399 = vsub.s32 %v1209, %v5398
    %v5400 = vrot.slane %v5261, %v5399
    %v5401 = vlaneseq
    %v5402 = vshrl.u32 %v5401, 7
    %v5403 = vsub.s32 %v1214, %v5402
    %v5404 = vrot.slane %v5264, %v5403
    %v5405 = vsel %vm1219, %v5404, %v5400
    %v5406 = vlaneseq
    %v5407 = vshrl.u32 %v5406, 7
    %v5408 = vsub.s32 %v1209, %v5407
    %v5409 = vrot.slane %v5267, %v5408
    %v5410 = vlaneseq
    %v5411 = vshrl.u32 %v5410, 7
    %v5412 = vsub.s32 %v1214, %v5411
    %v5413 = vrot.slane %v5270, %v5412
    %v5414 = vsel %vm1219, %v5413, %v5409
    %v5415 = vsel %vm1356, %v5288, %v5279
    %v5416 = vsel %vm1358, %v5297, %v5415
    %v5417 = vsel %vm1360, %v5306, %v5416
    %v5418 = vsel %vm1362, %v5315, %v5417
    %v5419 = vsel %vm1364, %v5324, %v5418
    %v5420 = vsel %vm1366, %v5333, %v5419
    %v5421 = vsel %vm1368, %v5342, %v5420
    %v5422 = vsel %vm1356, %v5360, %v5351
    %v5423 = vsel %vm1358, %v5369, %v5422
    %v5424 = vsel %vm1360, %v5378, %v5423
    %v5425 = vsel %vm1362, %v5387, %v5424
    %v5426 = vsel %vm1364, %v5396, %v5425
    %v5427 = vsel %vm1366, %v5405, %v5426
    %v5428 = vsel %vm1368, %v5414, %v5427
    %v5431 = vsel %vm89, %v5421, 0.0
    %5432 = vadd.xlane.f32.xlu0 %v5431
    %v5433 = vpop.xlane.xlu0 %5432
    %v5434 = vsel %vm89, %v5428, 0.0
    %5435 = vadd.xlane.f32.xlu0 %v5434
    %v5436 = vpop.xlane.xlu0 %5435
    %v5437 = vrcp.pop %v5433
    %v5438 = vrcp.pop %v5436
    %v5441 = vlaneseq
    %v5442 = vshrl.u32 %v5441, 7
    %v5443 = vsub.s32 0, %v5442
    %v5444 = vrot.slane %v5437, %v5443
    %v5445 = vlaneseq
    %v5446 = vshrl.u32 %v5445, 7
    %v5447 = vsub.s32 1, %v5446
    %v5448 = vrot.slane %v5437, %v5447
    %v5449 = vlaneseq
    %v5450 = vshrl.u32 %v5449, 7
    %v5451 = vsub.s32 2, %v5450
    %v5452 = vrot.slane %v5437, %v5451
    %v5453 = vlaneseq
    %v5454 = vshrl.u32 %v5453, 7
    %v5455 = vsub.s32 3, %v5454
    %v5456 = vrot.slane %v5437, %v5455
    %v5457 = vlaneseq
    %v5458 = vshrl.u32 %v5457, 7
    %v5459 = vsub.s32 4, %v5458
    %v5460 = vrot.slane %v5437, %v5459
    %v5461 = vlaneseq
    %v5462 = vshrl.u32 %v5461, 7
    %v5463 = vsub.s32 5, %v5462
    %v5464 = vrot.slane %v5437, %v5463
    %v5465 = vlaneseq
    %v5466 = vshrl.u32 %v5465, 7
    %v5467 = vsub.s32 6, %v5466
    %v5468 = vrot.slane %v5437, %v5467
    %v5469 = vlaneseq
    %v5470 = vshrl.u32 %v5469, 7
    %v5471 = vsub.s32 7, %v5470
    %v5472 = vrot.slane %v5437, %v5471
    %v5473 = vlaneseq
    %v5474 = vshrl.u32 %v5473, 7
    %v5475 = vsub.s32 0, %v5474
    %v5476 = vrot.slane %v5438, %v5475
    %v5477 = vlaneseq
    %v5478 = vshrl.u32 %v5477, 7
    %v5479 = vsub.s32 1, %v5478
    %v5480 = vrot.slane %v5438, %v5479
    %v5481 = vlaneseq
    %v5482 = vshrl.u32 %v5481, 7
    %v5483 = vsub.s32 2, %v5482
    %v5484 = vrot.slane %v5438, %v5483
    %v5485 = vlaneseq
    %v5486 = vshrl.u32 %v5485, 7
    %v5487 = vsub.s32 3, %v5486
    %v5488 = vrot.slane %v5438, %v5487
    %v5489 = vlaneseq
    %v5490 = vshrl.u32 %v5489, 7
    %v5491 = vsub.s32 4, %v5490
    %v5492 = vrot.slane %v5438, %v5491
    %v5493 = vlaneseq
    %v5494 = vshrl.u32 %v5493, 7
    %v5495 = vsub.s32 5, %v5494
    %v5496 = vrot.slane %v5438, %v5495
    %v5497 = vlaneseq
    %v5498 = vshrl.u32 %v5497, 7
    %v5499 = vsub.s32 6, %v5498
    %v5500 = vrot.slane %v5438, %v5499
    %v5501 = vlaneseq
    %v5502 = vshrl.u32 %v5501, 7
    %v5503 = vsub.s32 7, %v5502
    %v5504 = vrot.slane %v5438, %v5503
    %v5521 = vmul.f32 %v5080, %v5444
    %v5522 = vmul.f32 %v5082, %v5444
    %v5523 = vmul.f32 %v5084, %v5448
    %v5524 = vmul.f32 %v5086, %v5448
    %v5525 = vmul.f32 %v5088, %v5452
    %v5526 = vmul.f32 %v5090, %v5452
    %v5527 = vmul.f32 %v5092, %v5456
    %v5528 = vmul.f32 %v5094, %v5456
    %v5529 = vmul.f32 %v5096, %v5460
    %v5530 = vmul.f32 %v5098, %v5460
    %v5531 = vmul.f32 %v5100, %v5464
    %v5532 = vmul.f32 %v5102, %v5464
    %v5533 = vmul.f32 %v5104, %v5468
    %v5534 = vmul.f32 %v5106, %v5468
    %v5535 = vmul.f32 %v5108, %v5472
    %v5536 = vmul.f32 %v5110, %v5472
    %v5537 = vmul.f32 %v5112, %v5476
    %v5538 = vmul.f32 %v5114, %v5476
    %v5539 = vmul.f32 %v5116, %v5480
    %v5540 = vmul.f32 %v5118, %v5480
    %v5541 = vmul.f32 %v5120, %v5484
    %v5542 = vmul.f32 %v5122, %v5484
    %v5543 = vmul.f32 %v5124, %v5488
    %v5544 = vmul.f32 %v5126, %v5488
    %v5545 = vmul.f32 %v5128, %v5492
    %v5546 = vmul.f32 %v5130, %v5492
    %v5547 = vmul.f32 %v5132, %v5496
    %v5548 = vmul.f32 %v5134, %v5496
    %v5549 = vmul.f32 %v5136, %v5500
    %v5550 = vmul.f32 %v5138, %v5500
    %v5551 = vmul.f32 %v5140, %v5504
    %v5552 = vmul.f32 %v5142, %v5504
    %v5553 = vpack.c.bf16 %v5522, %v5521
    %v5554 = vpack.c.bf16 %v5524, %v5523
    %v5555 = vpack.c.bf16 %v5526, %v5525
    %v5556 = vpack.c.bf16 %v5528, %v5527
    %v5557 = vpack.c.bf16 %v5530, %v5529
    %v5558 = vpack.c.bf16 %v5532, %v5531
    %v5559 = vpack.c.bf16 %v5534, %v5533
    %v5560 = vpack.c.bf16 %v5536, %v5535
    %v5561 = vpack.c.bf16 %v5538, %v5537
    %v5562 = vpack.c.bf16 %v5540, %v5539
    %v5563 = vpack.c.bf16 %v5542, %v5541
    %v5564 = vpack.c.bf16 %v5544, %v5543
    %v5565 = vpack.c.bf16 %v5546, %v5545
    %v5566 = vpack.c.bf16 %v5548, %v5547
    %v5567 = vpack.c.bf16 %v5550, %v5549
    %v5568 = vpack.c.bf16 %v5552, %v5551
    %v5569 = vpack.c.bf16 %v3933, %v3929
    %v5586 = vunpack.c.l.b16 %v5553
    %v5587 = vunpack.c.h.b16 %v5553
    %v5588 = vunpack.c.l.b16 %v5554
    %v5589 = vunpack.c.h.b16 %v5554
    %v5590 = vunpack.c.l.b16 %v5555
    %v5591 = vunpack.c.h.b16 %v5555
    %v5592 = vunpack.c.l.b16 %v5556
    %v5593 = vunpack.c.h.b16 %v5556
    %v5594 = vunpack.c.l.b16 %v5557
    %v5595 = vunpack.c.h.b16 %v5557
    %v5596 = vunpack.c.l.b16 %v5558
    %v5597 = vunpack.c.h.b16 %v5558
    %v5598 = vunpack.c.l.b16 %v5559
    %v5599 = vunpack.c.h.b16 %v5559
    %v5600 = vunpack.c.l.b16 %v5560
    %v5601 = vunpack.c.h.b16 %v5560
    %v5602 = vunpack.c.l.b16 %v5561
    %v5603 = vunpack.c.h.b16 %v5561
    %v5604 = vunpack.c.l.b16 %v5562
    %v5605 = vunpack.c.h.b16 %v5562
    %v5606 = vunpack.c.l.b16 %v5563
    %v5607 = vunpack.c.h.b16 %v5563
    %v5608 = vunpack.c.l.b16 %v5564
    %v5609 = vunpack.c.h.b16 %v5564
    %v5610 = vunpack.c.l.b16 %v5565
    %v5611 = vunpack.c.h.b16 %v5565
    %v5612 = vunpack.c.l.b16 %v5566
    %v5613 = vunpack.c.h.b16 %v5566
    %v5614 = vunpack.c.l.b16 %v5567
    %v5615 = vunpack.c.h.b16 %v5567
    %v5616 = vunpack.c.l.b16 %v5568
    %v5617 = vunpack.c.h.b16 %v5568
    %5618 = vset.pattern.permute.xlu0 0
    %5619 = vperm.xlu0 %5618, %v5586
    %v5620 = vpop.permute.xlu0 %5619
    %5621 = vset.pattern.permute.xlu0 0
    %5622 = vperm.xlu0 %5621, %v5587
    %v5623 = vpop.permute.xlu0 %5622
    %5624 = vset.pattern.permute.xlu0 0
    %5625 = vperm.xlu0 %5624, %v5588
    %v5626 = vpop.permute.xlu0 %5625
    %5627 = vset.pattern.permute.xlu0 0
    %5628 = vperm.xlu0 %5627, %v5589
    %v5629 = vpop.permute.xlu0 %5628
    %5630 = vset.pattern.permute.xlu0 0
    %5631 = vperm.xlu0 %5630, %v5590
    %v5632 = vpop.permute.xlu0 %5631
    %5633 = vset.pattern.permute.xlu0 0
    %5634 = vperm.xlu0 %5633, %v5591
    %v5635 = vpop.permute.xlu0 %5634
    %5636 = vset.pattern.permute.xlu0 0
    %5637 = vperm.xlu0 %5636, %v5592
    %v5638 = vpop.permute.xlu0 %5637
    %5639 = vset.pattern.permute.xlu0 0
    %5640 = vperm.xlu0 %5639, %v5593
    %v5641 = vpop.permute.xlu0 %5640
    %5642 = vset.pattern.permute.xlu0 0
    %5643 = vperm.xlu0 %5642, %v5594
    %v5644 = vpop.permute.xlu0 %5643
    %5645 = vset.pattern.permute.xlu0 0
    %5646 = vperm.xlu0 %5645, %v5595
    %v5647 = vpop.permute.xlu0 %5646
    %5648 = vset.pattern.permute.xlu0 0
    %5649 = vperm.xlu0 %5648, %v5596
    %v5650 = vpop.permute.xlu0 %5649
    %5651 = vset.pattern.permute.xlu0 0
    %5652 = vperm.xlu0 %5651, %v5597
    %v5653 = vpop.permute.xlu0 %5652
    %5654 = vset.pattern.permute.xlu0 0
    %5655 = vperm.xlu0 %5654, %v5598
    %v5656 = vpop.permute.xlu0 %5655
    %5657 = vset.pattern.permute.xlu0 0
    %5658 = vperm.xlu0 %5657, %v5599
    %v5659 = vpop.permute.xlu0 %5658
    %5660 = vset.pattern.permute.xlu0 0
    %5661 = vperm.xlu0 %5660, %v5600
    %v5662 = vpop.permute.xlu0 %5661
    %5663 = vset.pattern.permute.xlu0 0
    %5664 = vperm.xlu0 %5663, %v5601
    %v5665 = vpop.permute.xlu0 %5664
    %5666 = vset.pattern.permute.xlu0 0
    %5667 = vperm.xlu0 %5666, %v5602
    %v5668 = vpop.permute.xlu0 %5667
    %5669 = vset.pattern.permute.xlu0 0
    %5670 = vperm.xlu0 %5669, %v5603
    %v5671 = vpop.permute.xlu0 %5670
    %5672 = vset.pattern.permute.xlu0 0
    %5673 = vperm.xlu0 %5672, %v5604
    %v5674 = vpop.permute.xlu0 %5673
    %5675 = vset.pattern.permute.xlu0 0
    %5676 = vperm.xlu0 %5675, %v5605
    %v5677 = vpop.permute.xlu0 %5676
    %5678 = vset.pattern.permute.xlu0 0
    %5679 = vperm.xlu0 %5678, %v5606
    %v5680 = vpop.permute.xlu0 %5679
    %5681 = vset.pattern.permute.xlu0 0
    %5682 = vperm.xlu0 %5681, %v5607
    %v5683 = vpop.permute.xlu0 %5682
    %5684 = vset.pattern.permute.xlu0 0
    %5685 = vperm.xlu0 %5684, %v5608
    %v5686 = vpop.permute.xlu0 %5685
    %5687 = vset.pattern.permute.xlu0 0
    %5688 = vperm.xlu0 %5687, %v5609
    %v5689 = vpop.permute.xlu0 %5688
    %5690 = vset.pattern.permute.xlu0 0
    %5691 = vperm.xlu0 %5690, %v5610
    %v5692 = vpop.permute.xlu0 %5691
    %5693 = vset.pattern.permute.xlu0 0
    %5694 = vperm.xlu0 %5693, %v5611
    %v5695 = vpop.permute.xlu0 %5694
    %5696 = vset.pattern.permute.xlu0 0
    %5697 = vperm.xlu0 %5696, %v5612
    %v5698 = vpop.permute.xlu0 %5697
    %5699 = vset.pattern.permute.xlu0 0
    %5700 = vperm.xlu0 %5699, %v5613
    %v5701 = vpop.permute.xlu0 %5700
    %5702 = vset.pattern.permute.xlu0 0
    %5703 = vperm.xlu0 %5702, %v5614
    %v5704 = vpop.permute.xlu0 %5703
    %5705 = vset.pattern.permute.xlu0 0
    %5706 = vperm.xlu0 %5705, %v5615
    %v5707 = vpop.permute.xlu0 %5706
    %5708 = vset.pattern.permute.xlu0 0
    %5709 = vperm.xlu0 %5708, %v5616
    %v5710 = vpop.permute.xlu0 %5709
    %5711 = vset.pattern.permute.xlu0 0
    %5712 = vperm.xlu0 %5711, %v5617
    %v5713 = vpop.permute.xlu0 %5712
    %v5714 = vlaneseq
    %v5715 = vshrl.u32 %v5714, 7
    %v5716 = vsub.s32 %v1209, %v5715
    %v5717 = vrot.slane %v5620, %v5716
    %v5718 = vlaneseq
    %v5719 = vshrl.u32 %v5718, 7
    %v5720 = vsub.s32 %v1214, %v5719
    %v5721 = vrot.slane %v5623, %v5720
    %v5722 = vsel %vm1219, %v5721, %v5717
    %v5723 = vlaneseq
    %v5724 = vshrl.u32 %v5723, 7
    %v5725 = vsub.s32 %v1209, %v5724
    %v5726 = vrot.slane %v5626, %v5725
    %v5727 = vlaneseq
    %v5728 = vshrl.u32 %v5727, 7
    %v5729 = vsub.s32 %v1214, %v5728
    %v5730 = vrot.slane %v5629, %v5729
    %v5731 = vsel %vm1219, %v5730, %v5726
    %v5732 = vlaneseq
    %v5733 = vshrl.u32 %v5732, 7
    %v5734 = vsub.s32 %v1209, %v5733
    %v5735 = vrot.slane %v5632, %v5734
    %v5736 = vlaneseq
    %v5737 = vshrl.u32 %v5736, 7
    %v5738 = vsub.s32 %v1214, %v5737
    %v5739 = vrot.slane %v5635, %v5738
    %v5740 = vsel %vm1219, %v5739, %v5735
    %v5741 = vlaneseq
    %v5742 = vshrl.u32 %v5741, 7
    %v5743 = vsub.s32 %v1209, %v5742
    %v5744 = vrot.slane %v5638, %v5743
    %v5745 = vlaneseq
    %v5746 = vshrl.u32 %v5745, 7
    %v5747 = vsub.s32 %v1214, %v5746
    %v5748 = vrot.slane %v5641, %v5747
    %v5749 = vsel %vm1219, %v5748, %v5744
    %v5750 = vlaneseq
    %v5751 = vshrl.u32 %v5750, 7
    %v5752 = vsub.s32 %v1209, %v5751
    %v5753 = vrot.slane %v5644, %v5752
    %v5754 = vlaneseq
    %v5755 = vshrl.u32 %v5754, 7
    %v5756 = vsub.s32 %v1214, %v5755
    %v5757 = vrot.slane %v5647, %v5756
    %v5758 = vsel %vm1219, %v5757, %v5753
    %v5759 = vlaneseq
    %v5760 = vshrl.u32 %v5759, 7
    %v5761 = vsub.s32 %v1209, %v5760
    %v5762 = vrot.slane %v5650, %v5761
    %v5763 = vlaneseq
    %v5764 = vshrl.u32 %v5763, 7
    %v5765 = vsub.s32 %v1214, %v5764
    %v5766 = vrot.slane %v5653, %v5765
    %v5767 = vsel %vm1219, %v5766, %v5762
    %v5768 = vlaneseq
    %v5769 = vshrl.u32 %v5768, 7
    %v5770 = vsub.s32 %v1209, %v5769
    %v5771 = vrot.slane %v5656, %v5770
    %v5772 = vlaneseq
    %v5773 = vshrl.u32 %v5772, 7
    %v5774 = vsub.s32 %v1214, %v5773
    %v5775 = vrot.slane %v5659, %v5774
    %v5776 = vsel %vm1219, %v5775, %v5771
    %v5777 = vlaneseq
    %v5778 = vshrl.u32 %v5777, 7
    %v5779 = vsub.s32 %v1209, %v5778
    %v5780 = vrot.slane %v5662, %v5779
    %v5781 = vlaneseq
    %v5782 = vshrl.u32 %v5781, 7
    %v5783 = vsub.s32 %v1214, %v5782
    %v5784 = vrot.slane %v5665, %v5783
    %v5785 = vsel %vm1219, %v5784, %v5780
    %v5786 = vlaneseq
    %v5787 = vshrl.u32 %v5786, 7
    %v5788 = vsub.s32 %v1209, %v5787
    %v5789 = vrot.slane %v5668, %v5788
    %v5790 = vlaneseq
    %v5791 = vshrl.u32 %v5790, 7
    %v5792 = vsub.s32 %v1214, %v5791
    %v5793 = vrot.slane %v5671, %v5792
    %v5794 = vsel %vm1219, %v5793, %v5789
    %v5795 = vlaneseq
    %v5796 = vshrl.u32 %v5795, 7
    %v5797 = vsub.s32 %v1209, %v5796
    %v5798 = vrot.slane %v5674, %v5797
    %v5799 = vlaneseq
    %v5800 = vshrl.u32 %v5799, 7
    %v5801 = vsub.s32 %v1214, %v5800
    %v5802 = vrot.slane %v5677, %v5801
    %v5803 = vsel %vm1219, %v5802, %v5798
    %v5804 = vlaneseq
    %v5805 = vshrl.u32 %v5804, 7
    %v5806 = vsub.s32 %v1209, %v5805
    %v5807 = vrot.slane %v5680, %v5806
    %v5808 = vlaneseq
    %v5809 = vshrl.u32 %v5808, 7
    %v5810 = vsub.s32 %v1214, %v5809
    %v5811 = vrot.slane %v5683, %v5810
    %v5812 = vsel %vm1219, %v5811, %v5807
    %v5813 = vlaneseq
    %v5814 = vshrl.u32 %v5813, 7
    %v5815 = vsub.s32 %v1209, %v5814
    %v5816 = vrot.slane %v5686, %v5815
    %v5817 = vlaneseq
    %v5818 = vshrl.u32 %v5817, 7
    %v5819 = vsub.s32 %v1214, %v5818
    %v5820 = vrot.slane %v5689, %v5819
    %v5821 = vsel %vm1219, %v5820, %v5816
    %v5822 = vlaneseq
    %v5823 = vshrl.u32 %v5822, 7
    %v5824 = vsub.s32 %v1209, %v5823
    %v5825 = vrot.slane %v5692, %v5824
    %v5826 = vlaneseq
    %v5827 = vshrl.u32 %v5826, 7
    %v5828 = vsub.s32 %v1214, %v5827
    %v5829 = vrot.slane %v5695, %v5828
    %v5830 = vsel %vm1219, %v5829, %v5825
    %v5831 = vlaneseq
    %v5832 = vshrl.u32 %v5831, 7
    %v5833 = vsub.s32 %v1209, %v5832
    %v5834 = vrot.slane %v5698, %v5833
    %v5835 = vlaneseq
    %v5836 = vshrl.u32 %v5835, 7
    %v5837 = vsub.s32 %v1214, %v5836
    %v5838 = vrot.slane %v5701, %v5837
    %v5839 = vsel %vm1219, %v5838, %v5834
    %v5840 = vlaneseq
    %v5841 = vshrl.u32 %v5840, 7
    %v5842 = vsub.s32 %v1209, %v5841
    %v5843 = vrot.slane %v5704, %v5842
    %v5844 = vlaneseq
    %v5845 = vshrl.u32 %v5844, 7
    %v5846 = vsub.s32 %v1214, %v5845
    %v5847 = vrot.slane %v5707, %v5846
    %v5848 = vsel %vm1219, %v5847, %v5843
    %v5849 = vlaneseq
    %v5850 = vshrl.u32 %v5849, 7
    %v5851 = vsub.s32 %v1209, %v5850
    %v5852 = vrot.slane %v5710, %v5851
    %v5853 = vlaneseq
    %v5854 = vshrl.u32 %v5853, 7
    %v5855 = vsub.s32 %v1214, %v5854
    %v5856 = vrot.slane %v5713, %v5855
    %v5857 = vsel %vm1219, %v5856, %v5852
    %v5858 = vsel %vm1356, %v5731, %v5722
    %v5859 = vsel %vm1358, %v5740, %v5858
    %v5860 = vsel %vm1360, %v5749, %v5859
    %v5861 = vsel %vm1362, %v5758, %v5860
    %v5862 = vsel %vm1364, %v5767, %v5861
    %v5863 = vsel %vm1366, %v5776, %v5862
    %v5864 = vsel %vm1368, %v5785, %v5863
    %v5865 = vsel %vm1356, %v5803, %v5794
    %v5866 = vsel %vm1358, %v5812, %v5865
    %v5867 = vsel %vm1360, %v5821, %v5866
    %v5868 = vsel %vm1362, %v5830, %v5867
    %v5869 = vsel %vm1364, %v5839, %v5868
    %v5870 = vsel %vm1366, %v5848, %v5869
    %v5871 = vsel %vm1368, %v5857, %v5870
    %v5872 = vpack.c.b16 %v5871, %v5864
    %v5874 = vsel %vm89, %v5872, 0
    %5876 = vmatprep.subr.bf16.mxu0 0
    %5877 = vmatpush1.bf16.msra.mxu0 0
    %5878 = vmatprep.subr.bf16.mxu0 0
    %5879 = vmatpush1.bf16.msra.mxu0 0
    %5880 = vmatprep.subr.bf16.mxu0 0
    %5881 = vmatpush1.bf16.msra.mxu0 0
    %5882 = vmatprep.subr.bf16.mxu0 0
    %5883 = vmatpush1.bf16.msra.mxu0 0
    %5884 = vmatprep.subr.bf16.mxu0 0
    %5885 = vmatpush1.bf16.msra.mxu0 0
    %5886 = vmatprep.subr.bf16.mxu0 0
    %5887 = vmatpush1.bf16.msra.mxu0 0
    %5888 = vmatprep.subr.bf16.mxu0 0
    %5889 = vmatpush1.bf16.msra.mxu0 0
    %5890 = vmatprep.subr.bf16.mxu0 0
    %5891 = vmatpush1.bf16.msra.mxu0 %v5569
    %5892 = vmatprep.subr.bf16.mxu0 0
    %5893 = vmatpush2.bf16.msra.mxu0 0
    %5894 = vmatprep.subr.bf16.mxu0 0
    %5895 = vmatpush2.bf16.msra.mxu0 0
    %5896 = vmatprep.subr.bf16.mxu0 0
    %5897 = vmatpush2.bf16.msra.mxu0 0
    %5898 = vmatprep.subr.bf16.mxu0 0
    %5899 = vmatpush2.bf16.msra.mxu0 0
    %5900 = vmatprep.subr.bf16.mxu0 0
    %5901 = vmatpush2.bf16.msra.mxu0 0
    %5902 = vmatprep.subr.bf16.mxu0 0
    %5903 = vmatpush2.bf16.msra.mxu0 0
    %5904 = vmatprep.subr.bf16.mxu0 0
    %5905 = vmatpush2.bf16.msra.mxu0 0
    %5906 = vmatprep.subr.bf16.mxu0 0
    %5907 = vmatpush2.bf16.msra.mxu0 0
    %5908 = vmatprep.mubr.bf16.mxu0 0
    %5909 = vmatmul.mubr.bf16.gmra.mxu0 %v5874
    %v5910 = vpop.f32.mrf.mxu0
    %v5911 = vadd.f32 0.0, %v5910
    %v5912 = vpop.f32.mrf.mxu0
    %v5913 = vpop.f32.mrf.mxu0
    %v5914 = vadd.f32 0.0, %v5913
    %v5915 = vpop.f32.mrf.mxu0
    %5916 = vdwg.mxu0
    %5917 = vadd.xlane.f32.xlu0 %v4512
    %v5918 = vpop.xlane.xlu0 %5917
    %5919 = vadd.xlane.f32.xlu0 %v4514
    %v5920 = vpop.xlane.xlu0 %5919
    %5921 = vadd.xlane.f32.xlu0 %v4516
    %v5922 = vpop.xlane.xlu0 %5921
    %5923 = vadd.xlane.f32.xlu0 %v4518
    %v5924 = vpop.xlane.xlu0 %5923
    %5925 = vadd.xlane.f32.xlu0 %v4520
    %v5926 = vpop.xlane.xlu0 %5925
    %5927 = vadd.xlane.f32.xlu0 %v4522
    %v5928 = vpop.xlane.xlu0 %5927
    %5929 = vadd.xlane.f32.xlu0 %v4524
    %v5930 = vpop.xlane.xlu0 %5929
    %5931 = vadd.xlane.f32.xlu0 %v4526
    %v5932 = vpop.xlane.xlu0 %5931
    %5933 = vadd.xlane.f32.xlu0 %v4528
    %v5934 = vpop.xlane.xlu0 %5933
    %5935 = vadd.xlane.f32.xlu0 %v4530
    %v5936 = vpop.xlane.xlu0 %5935
    %5937 = vadd.xlane.f32.xlu0 %v4532
    %v5938 = vpop.xlane.xlu0 %5937
    %5939 = vadd.xlane.f32.xlu0 %v4534
    %v5940 = vpop.xlane.xlu0 %5939
    %5941 = vadd.xlane.f32.xlu0 %v4536
    %v5942 = vpop.xlane.xlu0 %5941
    %5943 = vadd.xlane.f32.xlu0 %v4538
    %v5944 = vpop.xlane.xlu0 %5943
    %5945 = vadd.xlane.f32.xlu0 %v4540
    %v5946 = vpop.xlane.xlu0 %5945
    %5947 = vadd.xlane.f32.xlu0 %v4542
    %v5948 = vpop.xlane.xlu0 %5947
    %5949 = vadd.xlane.f32.xlu0 %v4544
    %v5950 = vpop.xlane.xlu0 %5949
    %5951 = vadd.xlane.f32.xlu0 %v4546
    %v5952 = vpop.xlane.xlu0 %5951
    %5953 = vadd.xlane.f32.xlu0 %v4548
    %v5954 = vpop.xlane.xlu0 %5953
    %5955 = vadd.xlane.f32.xlu0 %v4550
    %v5956 = vpop.xlane.xlu0 %5955
    %5957 = vadd.xlane.f32.xlu0 %v4552
    %v5958 = vpop.xlane.xlu0 %5957
    %5959 = vadd.xlane.f32.xlu0 %v4554
    %v5960 = vpop.xlane.xlu0 %5959
    %5961 = vadd.xlane.f32.xlu0 %v4556
    %v5962 = vpop.xlane.xlu0 %5961
    %5963 = vadd.xlane.f32.xlu0 %v4558
    %v5964 = vpop.xlane.xlu0 %5963
    %5965 = vadd.xlane.f32.xlu0 %v4560
    %v5966 = vpop.xlane.xlu0 %5965
    %5967 = vadd.xlane.f32.xlu0 %v4562
    %v5968 = vpop.xlane.xlu0 %5967
    %5969 = vadd.xlane.f32.xlu0 %v4564
    %v5970 = vpop.xlane.xlu0 %5969
    %5971 = vadd.xlane.f32.xlu0 %v4566
    %v5972 = vpop.xlane.xlu0 %5971
    %5973 = vadd.xlane.f32.xlu0 %v4568
    %v5974 = vpop.xlane.xlu0 %5973
    %5975 = vadd.xlane.f32.xlu0 %v4570
    %v5976 = vpop.xlane.xlu0 %5975
    %5977 = vadd.xlane.f32.xlu0 %v4572
    %v5978 = vpop.xlane.xlu0 %5977
    %5979 = vadd.xlane.f32.xlu0 %v4574
    %v5980 = vpop.xlane.xlu0 %5979
    %v5981 = vadd.f32 %v5918, %v846
    %v5982 = vadd.f32 %v5920, %v850
    %v5983 = vadd.f32 %v5922, %v857
    %v5984 = vadd.f32 %v5924, %v861
    %v5985 = vadd.f32 %v5926, %v868
    %v5986 = vadd.f32 %v5928, %v872
    %v5987 = vadd.f32 %v5930, %v879
    %v5988 = vadd.f32 %v5932, %v883
    %v5989 = vadd.f32 %v5934, %v890
    %v5990 = vadd.f32 %v5936, %v894
    %v5991 = vadd.f32 %v5938, %v901
    %v5992 = vadd.f32 %v5940, %v905
    %v5993 = vadd.f32 %v5942, %v912
    %v5994 = vadd.f32 %v5944, %v916
    %v5995 = vadd.f32 %v5946, %v923
    %v5996 = vadd.f32 %v5948, %v927
    %v5997 = vadd.f32 %v5950, %v934
    %v5998 = vadd.f32 %v5952, %v938
    %v5999 = vadd.f32 %v5954, %v945
    %v6000 = vadd.f32 %v5956, %v949
    %v6001 = vadd.f32 %v5958, %v956
    %v6002 = vadd.f32 %v5960, %v960
    %v6003 = vadd.f32 %v5962, %v967
    %v6004 = vadd.f32 %v5964, %v971
    %v6005 = vadd.f32 %v5966, %v978
    %v6006 = vadd.f32 %v5968, %v982
    %v6007 = vadd.f32 %v5970, %v989
    %v6008 = vadd.f32 %v5972, %v993
    %v6009 = vadd.f32 %v5974, %v1000
    %v6010 = vadd.f32 %v5976, %v1004
    %v6011 = vadd.f32 %v5978, %v1011
    %v6012 = vadd.f32 %v5980, %v1015
    %6045 = vset.pattern.permute.xlu0 0
    %6046 = vperm.xlu0 %6045, %v5981
    %v6047 = vpop.permute.xlu0 %6046
    %6048 = vset.pattern.permute.xlu0 0
    %6049 = vperm.xlu0 %6048, %v5982
    %v6050 = vpop.permute.xlu0 %6049
    %6051 = vset.pattern.permute.xlu0 0
    %6052 = vperm.xlu0 %6051, %v5983
    %v6053 = vpop.permute.xlu0 %6052
    %6054 = vset.pattern.permute.xlu0 0
    %6055 = vperm.xlu0 %6054, %v5984
    %v6056 = vpop.permute.xlu0 %6055
    %6057 = vset.pattern.permute.xlu0 0
    %6058 = vperm.xlu0 %6057, %v5985
    %v6059 = vpop.permute.xlu0 %6058
    %6060 = vset.pattern.permute.xlu0 0
    %6061 = vperm.xlu0 %6060, %v5986
    %v6062 = vpop.permute.xlu0 %6061
    %6063 = vset.pattern.permute.xlu0 0
    %6064 = vperm.xlu0 %6063, %v5987
    %v6065 = vpop.permute.xlu0 %6064
    %6066 = vset.pattern.permute.xlu0 0
    %6067 = vperm.xlu0 %6066, %v5988
    %v6068 = vpop.permute.xlu0 %6067
    %6069 = vset.pattern.permute.xlu0 0
    %6070 = vperm.xlu0 %6069, %v5989
    %v6071 = vpop.permute.xlu0 %6070
    %6072 = vset.pattern.permute.xlu0 0
    %6073 = vperm.xlu0 %6072, %v5990
    %v6074 = vpop.permute.xlu0 %6073
    %6075 = vset.pattern.permute.xlu0 0
    %6076 = vperm.xlu0 %6075, %v5991
    %v6077 = vpop.permute.xlu0 %6076
    %6078 = vset.pattern.permute.xlu0 0
    %6079 = vperm.xlu0 %6078, %v5992
    %v6080 = vpop.permute.xlu0 %6079
    %6081 = vset.pattern.permute.xlu0 0
    %6082 = vperm.xlu0 %6081, %v5993
    %v6083 = vpop.permute.xlu0 %6082
    %6084 = vset.pattern.permute.xlu0 0
    %6085 = vperm.xlu0 %6084, %v5994
    %v6086 = vpop.permute.xlu0 %6085
    %6087 = vset.pattern.permute.xlu0 0
    %6088 = vperm.xlu0 %6087, %v5995
    %v6089 = vpop.permute.xlu0 %6088
    %6090 = vset.pattern.permute.xlu0 0
    %6091 = vperm.xlu0 %6090, %v5996
    %v6092 = vpop.permute.xlu0 %6091
    %6093 = vset.pattern.permute.xlu0 0
    %6094 = vperm.xlu0 %6093, %v5997
    %v6095 = vpop.permute.xlu0 %6094
    %6096 = vset.pattern.permute.xlu0 0
    %6097 = vperm.xlu0 %6096, %v5998
    %v6098 = vpop.permute.xlu0 %6097
    %6099 = vset.pattern.permute.xlu0 0
    %6100 = vperm.xlu0 %6099, %v5999
    %v6101 = vpop.permute.xlu0 %6100
    %6102 = vset.pattern.permute.xlu0 0
    %6103 = vperm.xlu0 %6102, %v6000
    %v6104 = vpop.permute.xlu0 %6103
    %6105 = vset.pattern.permute.xlu0 0
    %6106 = vperm.xlu0 %6105, %v6001
    %v6107 = vpop.permute.xlu0 %6106
    %6108 = vset.pattern.permute.xlu0 0
    %6109 = vperm.xlu0 %6108, %v6002
    %v6110 = vpop.permute.xlu0 %6109
    %6111 = vset.pattern.permute.xlu0 0
    %6112 = vperm.xlu0 %6111, %v6003
    %v6113 = vpop.permute.xlu0 %6112
    %6114 = vset.pattern.permute.xlu0 0
    %6115 = vperm.xlu0 %6114, %v6004
    %v6116 = vpop.permute.xlu0 %6115
    %6117 = vset.pattern.permute.xlu0 0
    %6118 = vperm.xlu0 %6117, %v6005
    %v6119 = vpop.permute.xlu0 %6118
    %6120 = vset.pattern.permute.xlu0 0
    %6121 = vperm.xlu0 %6120, %v6006
    %v6122 = vpop.permute.xlu0 %6121
    %6123 = vset.pattern.permute.xlu0 0
    %6124 = vperm.xlu0 %6123, %v6007
    %v6125 = vpop.permute.xlu0 %6124
    %6126 = vset.pattern.permute.xlu0 0
    %6127 = vperm.xlu0 %6126, %v6008
    %v6128 = vpop.permute.xlu0 %6127
    %6129 = vset.pattern.permute.xlu0 0
    %6130 = vperm.xlu0 %6129, %v6009
    %v6131 = vpop.permute.xlu0 %6130
    %6132 = vset.pattern.permute.xlu0 0
    %6133 = vperm.xlu0 %6132, %v6010
    %v6134 = vpop.permute.xlu0 %6133
    %6135 = vset.pattern.permute.xlu0 0
    %6136 = vperm.xlu0 %6135, %v6011
    %v6137 = vpop.permute.xlu0 %6136
    %6138 = vset.pattern.permute.xlu0 0
    %6139 = vperm.xlu0 %6138, %v6012
    %v6140 = vpop.permute.xlu0 %6139
    %v6141 = vlaneseq
    %v6142 = vshrl.u32 %v6141, 7
    %v6143 = vsub.s32 %v1209, %v6142
    %v6144 = vrot.slane %v6047, %v6143
    %v6145 = vlaneseq
    %v6146 = vshrl.u32 %v6145, 7
    %v6147 = vsub.s32 %v1214, %v6146
    %v6148 = vrot.slane %v6050, %v6147
    %v6149 = vsel %vm1219, %v6148, %v6144
    %v6150 = vlaneseq
    %v6151 = vshrl.u32 %v6150, 7
    %v6152 = vsub.s32 %v1209, %v6151
    %v6153 = vrot.slane %v6053, %v6152
    %v6154 = vlaneseq
    %v6155 = vshrl.u32 %v6154, 7
    %v6156 = vsub.s32 %v1214, %v6155
    %v6157 = vrot.slane %v6056, %v6156
    %v6158 = vsel %vm1219, %v6157, %v6153
    %v6159 = vlaneseq
    %v6160 = vshrl.u32 %v6159, 7
    %v6161 = vsub.s32 %v1209, %v6160
    %v6162 = vrot.slane %v6059, %v6161
    %v6163 = vlaneseq
    %v6164 = vshrl.u32 %v6163, 7
    %v6165 = vsub.s32 %v1214, %v6164
    %v6166 = vrot.slane %v6062, %v6165
    %v6167 = vsel %vm1219, %v6166, %v6162
    %v6168 = vlaneseq
    %v6169 = vshrl.u32 %v6168, 7
    %v6170 = vsub.s32 %v1209, %v6169
    %v6171 = vrot.slane %v6065, %v6170
    %v6172 = vlaneseq
    %v6173 = vshrl.u32 %v6172, 7
    %v6174 = vsub.s32 %v1214, %v6173
    %v6175 = vrot.slane %v6068, %v6174
    %v6176 = vsel %vm1219, %v6175, %v6171
    %v6177 = vlaneseq
    %v6178 = vshrl.u32 %v6177, 7
    %v6179 = vsub.s32 %v1209, %v6178
    %v6180 = vrot.slane %v6071, %v6179
    %v6181 = vlaneseq
    %v6182 = vshrl.u32 %v6181, 7
    %v6183 = vsub.s32 %v1214, %v6182
    %v6184 = vrot.slane %v6074, %v6183
    %v6185 = vsel %vm1219, %v6184, %v6180
    %v6186 = vlaneseq
    %v6187 = vshrl.u32 %v6186, 7
    %v6188 = vsub.s32 %v1209, %v6187
    %v6189 = vrot.slane %v6077, %v6188
    %v6190 = vlaneseq
    %v6191 = vshrl.u32 %v6190, 7
    %v6192 = vsub.s32 %v1214, %v6191
    %v6193 = vrot.slane %v6080, %v6192
    %v6194 = vsel %vm1219, %v6193, %v6189
    %v6195 = vlaneseq
    %v6196 = vshrl.u32 %v6195, 7
    %v6197 = vsub.s32 %v1209, %v6196
    %v6198 = vrot.slane %v6083, %v6197
    %v6199 = vlaneseq
    %v6200 = vshrl.u32 %v6199, 7
    %v6201 = vsub.s32 %v1214, %v6200
    %v6202 = vrot.slane %v6086, %v6201
    %v6203 = vsel %vm1219, %v6202, %v6198
    %v6204 = vlaneseq
    %v6205 = vshrl.u32 %v6204, 7
    %v6206 = vsub.s32 %v1209, %v6205
    %v6207 = vrot.slane %v6089, %v6206
    %v6208 = vlaneseq
    %v6209 = vshrl.u32 %v6208, 7
    %v6210 = vsub.s32 %v1214, %v6209
    %v6211 = vrot.slane %v6092, %v6210
    %v6212 = vsel %vm1219, %v6211, %v6207
    %v6213 = vlaneseq
    %v6214 = vshrl.u32 %v6213, 7
    %v6215 = vsub.s32 %v1209, %v6214
    %v6216 = vrot.slane %v6095, %v6215
    %v6217 = vlaneseq
    %v6218 = vshrl.u32 %v6217, 7
    %v6219 = vsub.s32 %v1214, %v6218
    %v6220 = vrot.slane %v6098, %v6219
    %v6221 = vsel %vm1219, %v6220, %v6216
    %v6222 = vlaneseq
    %v6223 = vshrl.u32 %v6222, 7
    %v6224 = vsub.s32 %v1209, %v6223
    %v6225 = vrot.slane %v6101, %v6224
    %v6226 = vlaneseq
    %v6227 = vshrl.u32 %v6226, 7
    %v6228 = vsub.s32 %v1214, %v6227
    %v6229 = vrot.slane %v6104, %v6228
    %v6230 = vsel %vm1219, %v6229, %v6225
    %v6231 = vlaneseq
    %v6232 = vshrl.u32 %v6231, 7
    %v6233 = vsub.s32 %v1209, %v6232
    %v6234 = vrot.slane %v6107, %v6233
    %v6235 = vlaneseq
    %v6236 = vshrl.u32 %v6235, 7
    %v6237 = vsub.s32 %v1214, %v6236
    %v6238 = vrot.slane %v6110, %v6237
    %v6239 = vsel %vm1219, %v6238, %v6234
    %v6240 = vlaneseq
    %v6241 = vshrl.u32 %v6240, 7
    %v6242 = vsub.s32 %v1209, %v6241
    %v6243 = vrot.slane %v6113, %v6242
    %v6244 = vlaneseq
    %v6245 = vshrl.u32 %v6244, 7
    %v6246 = vsub.s32 %v1214, %v6245
    %v6247 = vrot.slane %v6116, %v6246
    %v6248 = vsel %vm1219, %v6247, %v6243
    %v6249 = vlaneseq
    %v6250 = vshrl.u32 %v6249, 7
    %v6251 = vsub.s32 %v1209, %v6250
    %v6252 = vrot.slane %v6119, %v6251
    %v6253 = vlaneseq
    %v6254 = vshrl.u32 %v6253, 7
    %v6255 = vsub.s32 %v1214, %v6254
    %v6256 = vrot.slane %v6122, %v6255
    %v6257 = vsel %vm1219, %v6256, %v6252
    %v6258 = vlaneseq
    %v6259 = vshrl.u32 %v6258, 7
    %v6260 = vsub.s32 %v1209, %v6259
    %v6261 = vrot.slane %v6125, %v6260
    %v6262 = vlaneseq
    %v6263 = vshrl.u32 %v6262, 7
    %v6264 = vsub.s32 %v1214, %v6263
    %v6265 = vrot.slane %v6128, %v6264
    %v6266 = vsel %vm1219, %v6265, %v6261
    %v6267 = vlaneseq
    %v6268 = vshrl.u32 %v6267, 7
    %v6269 = vsub.s32 %v1209, %v6268
    %v6270 = vrot.slane %v6131, %v6269
    %v6271 = vlaneseq
    %v6272 = vshrl.u32 %v6271, 7
    %v6273 = vsub.s32 %v1214, %v6272
    %v6274 = vrot.slane %v6134, %v6273
    %v6275 = vsel %vm1219, %v6274, %v6270
    %v6276 = vlaneseq
    %v6277 = vshrl.u32 %v6276, 7
    %v6278 = vsub.s32 %v1209, %v6277
    %v6279 = vrot.slane %v6137, %v6278
    %v6280 = vlaneseq
    %v6281 = vshrl.u32 %v6280, 7
    %v6282 = vsub.s32 %v1214, %v6281
    %v6283 = vrot.slane %v6140, %v6282
    %v6284 = vsel %vm1219, %v6283, %v6279
    %v6285 = vsel %vm1356, %v6158, %v6149
    %v6286 = vsel %vm1358, %v6167, %v6285
    %v6287 = vsel %vm1360, %v6176, %v6286
    %v6288 = vsel %vm1362, %v6185, %v6287
    %v6289 = vsel %vm1364, %v6194, %v6288
    %v6290 = vsel %vm1366, %v6203, %v6289
    %v6291 = vsel %vm1368, %v6212, %v6290
    %v6292 = vsel %vm1356, %v6230, %v6221
    %v6293 = vsel %vm1358, %v6239, %v6292
    %v6294 = vsel %vm1360, %v6248, %v6293
    %v6295 = vsel %vm1362, %v6257, %v6294
    %v6296 = vsel %vm1364, %v6266, %v6295
    %v6297 = vsel %vm1366, %v6275, %v6296
    %v6298 = vsel %vm1368, %v6284, %v6297
    %v6301 = vsel %vm89, %v6291, -inf
    %6302 = vmax.xlane.f32.xlu0 %v6301
    %v6303 = vpop.xlane.xlu0 %6302
    %v6304 = vsel %vm89, %v6298, -inf
    %6305 = vmax.xlane.f32.xlu0 %v6304
    %v6306 = vpop.xlane.xlu0 %6305
    %v6309 = vlaneseq
    %v6310 = vshrl.u32 %v6309, 7
    %v6311 = vsub.s32 0, %v6310
    %v6312 = vrot.slane %v6303, %v6311
    %v6313 = vlaneseq
    %v6314 = vshrl.u32 %v6313, 7
    %v6315 = vsub.s32 1, %v6314
    %v6316 = vrot.slane %v6303, %v6315
    %v6317 = vlaneseq
    %v6318 = vshrl.u32 %v6317, 7
    %v6319 = vsub.s32 2, %v6318
    %v6320 = vrot.slane %v6303, %v6319
    %v6321 = vlaneseq
    %v6322 = vshrl.u32 %v6321, 7
    %v6323 = vsub.s32 3, %v6322
    %v6324 = vrot.slane %v6303, %v6323
    %v6325 = vlaneseq
    %v6326 = vshrl.u32 %v6325, 7
    %v6327 = vsub.s32 4, %v6326
    %v6328 = vrot.slane %v6303, %v6327
    %v6329 = vlaneseq
    %v6330 = vshrl.u32 %v6329, 7
    %v6331 = vsub.s32 5, %v6330
    %v6332 = vrot.slane %v6303, %v6331
    %v6333 = vlaneseq
    %v6334 = vshrl.u32 %v6333, 7
    %v6335 = vsub.s32 6, %v6334
    %v6336 = vrot.slane %v6303, %v6335
    %v6337 = vlaneseq
    %v6338 = vshrl.u32 %v6337, 7
    %v6339 = vsub.s32 7, %v6338
    %v6340 = vrot.slane %v6303, %v6339
    %v6341 = vlaneseq
    %v6342 = vshrl.u32 %v6341, 7
    %v6343 = vsub.s32 0, %v6342
    %v6344 = vrot.slane %v6306, %v6343
    %v6345 = vlaneseq
    %v6346 = vshrl.u32 %v6345, 7
    %v6347 = vsub.s32 1, %v6346
    %v6348 = vrot.slane %v6306, %v6347
    %v6349 = vlaneseq
    %v6350 = vshrl.u32 %v6349, 7
    %v6351 = vsub.s32 2, %v6350
    %v6352 = vrot.slane %v6306, %v6351
    %v6353 = vlaneseq
    %v6354 = vshrl.u32 %v6353, 7
    %v6355 = vsub.s32 3, %v6354
    %v6356 = vrot.slane %v6306, %v6355
    %v6357 = vlaneseq
    %v6358 = vshrl.u32 %v6357, 7
    %v6359 = vsub.s32 4, %v6358
    %v6360 = vrot.slane %v6306, %v6359
    %v6361 = vlaneseq
    %v6362 = vshrl.u32 %v6361, 7
    %v6363 = vsub.s32 5, %v6362
    %v6364 = vrot.slane %v6306, %v6363
    %v6365 = vlaneseq
    %v6366 = vshrl.u32 %v6365, 7
    %v6367 = vsub.s32 6, %v6366
    %v6368 = vrot.slane %v6306, %v6367
    %v6369 = vlaneseq
    %v6370 = vshrl.u32 %v6369, 7
    %v6371 = vsub.s32 7, %v6370
    %v6372 = vrot.slane %v6306, %v6371
    %v6389 = vsub.f32 %v5981, %v6312
    %v6390 = vsub.f32 %v5982, %v6312
    %v6391 = vsub.f32 %v5983, %v6316
    %v6392 = vsub.f32 %v5984, %v6316
    %v6393 = vsub.f32 %v5985, %v6320
    %v6394 = vsub.f32 %v5986, %v6320
    %v6395 = vsub.f32 %v5987, %v6324
    %v6396 = vsub.f32 %v5988, %v6324
    %v6397 = vsub.f32 %v5989, %v6328
    %v6398 = vsub.f32 %v5990, %v6328
    %v6399 = vsub.f32 %v5991, %v6332
    %v6400 = vsub.f32 %v5992, %v6332
    %v6401 = vsub.f32 %v5993, %v6336
    %v6402 = vsub.f32 %v5994, %v6336
    %v6403 = vsub.f32 %v5995, %v6340
    %v6404 = vsub.f32 %v5996, %v6340
    %v6405 = vsub.f32 %v5997, %v6344
    %v6406 = vsub.f32 %v5998, %v6344
    %v6407 = vsub.f32 %v5999, %v6348
    %v6408 = vsub.f32 %v6000, %v6348
    %v6409 = vsub.f32 %v6001, %v6352
    %v6410 = vsub.f32 %v6002, %v6352
    %v6411 = vsub.f32 %v6003, %v6356
    %v6412 = vsub.f32 %v6004, %v6356
    %v6413 = vsub.f32 %v6005, %v6360
    %v6414 = vsub.f32 %v6006, %v6360
    %v6415 = vsub.f32 %v6007, %v6364
    %v6416 = vsub.f32 %v6008, %v6364
    %v6417 = vsub.f32 %v6009, %v6368
    %v6418 = vsub.f32 %v6010, %v6368
    %v6419 = vsub.f32 %v6011, %v6372
    %v6420 = vsub.f32 %v6012, %v6372
    %v6421 = vmul.f32 %v6389, 1.442695
    %v6422 = vpow.pop %v6421
    %v6423 = vmul.f32 %v6390, 1.442695
    %v6424 = vpow.pop %v6423
    %v6425 = vmul.f32 %v6391, 1.442695
    %v6426 = vpow.pop %v6425
    %v6427 = vmul.f32 %v6392, 1.442695
    %v6428 = vpow.pop %v6427
    %v6429 = vmul.f32 %v6393, 1.442695
    %v6430 = vpow.pop %v6429
    %v6431 = vmul.f32 %v6394, 1.442695
    %v6432 = vpow.pop %v6431
    %v6433 = vmul.f32 %v6395, 1.442695
    %v6434 = vpow.pop %v6433
    %v6435 = vmul.f32 %v6396, 1.442695
    %v6436 = vpow.pop %v6435
    %v6437 = vmul.f32 %v6397, 1.442695
    %v6438 = vpow.pop %v6437
    %v6439 = vmul.f32 %v6398, 1.442695
    %v6440 = vpow.pop %v6439
    %v6441 = vmul.f32 %v6399, 1.442695
    %v6442 = vpow.pop %v6441
    %v6443 = vmul.f32 %v6400, 1.442695
    %v6444 = vpow.pop %v6443
    %v6445 = vmul.f32 %v6401, 1.442695
    %v6446 = vpow.pop %v6445
    %v6447 = vmul.f32 %v6402, 1.442695
    %v6448 = vpow.pop %v6447
    %v6449 = vmul.f32 %v6403, 1.442695
    %v6450 = vpow.pop %v6449
    %v6451 = vmul.f32 %v6404, 1.442695
    %v6452 = vpow.pop %v6451
    %v6453 = vmul.f32 %v6405, 1.442695
    %v6454 = vpow.pop %v6453
    %v6455 = vmul.f32 %v6406, 1.442695
    %v6456 = vpow.pop %v6455
    %v6457 = vmul.f32 %v6407, 1.442695
    %v6458 = vpow.pop %v6457
    %v6459 = vmul.f32 %v6408, 1.442695
    %v6460 = vpow.pop %v6459
    %v6461 = vmul.f32 %v6409, 1.442695
    %v6462 = vpow.pop %v6461
    %v6463 = vmul.f32 %v6410, 1.442695
    %v6464 = vpow.pop %v6463
    %v6465 = vmul.f32 %v6411, 1.442695
    %v6466 = vpow.pop %v6465
    %v6467 = vmul.f32 %v6412, 1.442695
    %v6468 = vpow.pop %v6467
    %v6469 = vmul.f32 %v6413, 1.442695
    %v6470 = vpow.pop %v6469
    %v6471 = vmul.f32 %v6414, 1.442695
    %v6472 = vpow.pop %v6471
    %v6473 = vmul.f32 %v6415, 1.442695
    %v6474 = vpow.pop %v6473
    %v6475 = vmul.f32 %v6416, 1.442695
    %v6476 = vpow.pop %v6475
    %v6477 = vmul.f32 %v6417, 1.442695
    %v6478 = vpow.pop %v6477
    %v6479 = vmul.f32 %v6418, 1.442695
    %v6480 = vpow.pop %v6479
    %v6481 = vmul.f32 %v6419, 1.442695
    %v6482 = vpow.pop %v6481
    %v6483 = vmul.f32 %v6420, 1.442695
    %v6484 = vpow.pop %v6483
    %6517 = vset.pattern.permute.xlu0 0
    %6518 = vperm.xlu0 %6517, %v6422
    %v6519 = vpop.permute.xlu0 %6518
    %6520 = vset.pattern.permute.xlu0 0
    %6521 = vperm.xlu0 %6520, %v6424
    %v6522 = vpop.permute.xlu0 %6521
    %6523 = vset.pattern.permute.xlu0 0
    %6524 = vperm.xlu0 %6523, %v6426
    %v6525 = vpop.permute.xlu0 %6524
    %6526 = vset.pattern.permute.xlu0 0
    %6527 = vperm.xlu0 %6526, %v6428
    %v6528 = vpop.permute.xlu0 %6527
    %6529 = vset.pattern.permute.xlu0 0
    %6530 = vperm.xlu0 %6529, %v6430
    %v6531 = vpop.permute.xlu0 %6530
    %6532 = vset.pattern.permute.xlu0 0
    %6533 = vperm.xlu0 %6532, %v6432
    %v6534 = vpop.permute.xlu0 %6533
    %6535 = vset.pattern.permute.xlu0 0
    %6536 = vperm.xlu0 %6535, %v6434
    %v6537 = vpop.permute.xlu0 %6536
    %6538 = vset.pattern.permute.xlu0 0
    %6539 = vperm.xlu0 %6538, %v6436
    %v6540 = vpop.permute.xlu0 %6539
    %6541 = vset.pattern.permute.xlu0 0
    %6542 = vperm.xlu0 %6541, %v6438
    %v6543 = vpop.permute.xlu0 %6542
    %6544 = vset.pattern.permute.xlu0 0
    %6545 = vperm.xlu0 %6544, %v6440
    %v6546 = vpop.permute.xlu0 %6545
    %6547 = vset.pattern.permute.xlu0 0
    %6548 = vperm.xlu0 %6547, %v6442
    %v6549 = vpop.permute.xlu0 %6548
    %6550 = vset.pattern.permute.xlu0 0
    %6551 = vperm.xlu0 %6550, %v6444
    %v6552 = vpop.permute.xlu0 %6551
    %6553 = vset.pattern.permute.xlu0 0
    %6554 = vperm.xlu0 %6553, %v6446
    %v6555 = vpop.permute.xlu0 %6554
    %6556 = vset.pattern.permute.xlu0 0
    %6557 = vperm.xlu0 %6556, %v6448
    %v6558 = vpop.permute.xlu0 %6557
    %6559 = vset.pattern.permute.xlu0 0
    %6560 = vperm.xlu0 %6559, %v6450
    %v6561 = vpop.permute.xlu0 %6560
    %6562 = vset.pattern.permute.xlu0 0
    %6563 = vperm.xlu0 %6562, %v6452
    %v6564 = vpop.permute.xlu0 %6563
    %6565 = vset.pattern.permute.xlu0 0
    %6566 = vperm.xlu0 %6565, %v6454
    %v6567 = vpop.permute.xlu0 %6566
    %6568 = vset.pattern.permute.xlu0 0
    %6569 = vperm.xlu0 %6568, %v6456
    %v6570 = vpop.permute.xlu0 %6569
    %6571 = vset.pattern.permute.xlu0 0
    %6572 = vperm.xlu0 %6571, %v6458
    %v6573 = vpop.permute.xlu0 %6572
    %6574 = vset.pattern.permute.xlu0 0
    %6575 = vperm.xlu0 %6574, %v6460
    %v6576 = vpop.permute.xlu0 %6575
    %6577 = vset.pattern.permute.xlu0 0
    %6578 = vperm.xlu0 %6577, %v6462
    %v6579 = vpop.permute.xlu0 %6578
    %6580 = vset.pattern.permute.xlu0 0
    %6581 = vperm.xlu0 %6580, %v6464
    %v6582 = vpop.permute.xlu0 %6581
    %6583 = vset.pattern.permute.xlu0 0
    %6584 = vperm.xlu0 %6583, %v6466
    %v6585 = vpop.permute.xlu0 %6584
    %6586 = vset.pattern.permute.xlu0 0
    %6587 = vperm.xlu0 %6586, %v6468
    %v6588 = vpop.permute.xlu0 %6587
    %6589 = vset.pattern.permute.xlu0 0
    %6590 = vperm.xlu0 %6589, %v6470
    %v6591 = vpop.permute.xlu0 %6590
    %6592 = vset.pattern.permute.xlu0 0
    %6593 = vperm.xlu0 %6592, %v6472
    %v6594 = vpop.permute.xlu0 %6593
    %6595 = vset.pattern.permute.xlu0 0
    %6596 = vperm.xlu0 %6595, %v6474
    %v6597 = vpop.permute.xlu0 %6596
    %6598 = vset.pattern.permute.xlu0 0
    %6599 = vperm.xlu0 %6598, %v6476
    %v6600 = vpop.permute.xlu0 %6599
    %6601 = vset.pattern.permute.xlu0 0
    %6602 = vperm.xlu0 %6601, %v6478
    %v6603 = vpop.permute.xlu0 %6602
    %6604 = vset.pattern.permute.xlu0 0
    %6605 = vperm.xlu0 %6604, %v6480
    %v6606 = vpop.permute.xlu0 %6605
    %6607 = vset.pattern.permute.xlu0 0
    %6608 = vperm.xlu0 %6607, %v6482
    %v6609 = vpop.permute.xlu0 %6608
    %6610 = vset.pattern.permute.xlu0 0
    %6611 = vperm.xlu0 %6610, %v6484
    %v6612 = vpop.permute.xlu0 %6611
    %v6613 = vlaneseq
    %v6614 = vshrl.u32 %v6613, 7
    %v6615 = vsub.s32 %v1209, %v6614
    %v6616 = vrot.slane %v6519, %v6615
    %v6617 = vlaneseq
    %v6618 = vshrl.u32 %v6617, 7
    %v6619 = vsub.s32 %v1214, %v6618
    %v6620 = vrot.slane %v6522, %v6619
    %v6621 = vsel %vm1219, %v6620, %v6616
    %v6622 = vlaneseq
    %v6623 = vshrl.u32 %v6622, 7
    %v6624 = vsub.s32 %v1209, %v6623
    %v6625 = vrot.slane %v6525, %v6624
    %v6626 = vlaneseq
    %v6627 = vshrl.u32 %v6626, 7
    %v6628 = vsub.s32 %v1214, %v6627
    %v6629 = vrot.slane %v6528, %v6628
    %v6630 = vsel %vm1219, %v6629, %v6625
    %v6631 = vlaneseq
    %v6632 = vshrl.u32 %v6631, 7
    %v6633 = vsub.s32 %v1209, %v6632
    %v6634 = vrot.slane %v6531, %v6633
    %v6635 = vlaneseq
    %v6636 = vshrl.u32 %v6635, 7
    %v6637 = vsub.s32 %v1214, %v6636
    %v6638 = vrot.slane %v6534, %v6637
    %v6639 = vsel %vm1219, %v6638, %v6634
    %v6640 = vlaneseq
    %v6641 = vshrl.u32 %v6640, 7
    %v6642 = vsub.s32 %v1209, %v6641
    %v6643 = vrot.slane %v6537, %v6642
    %v6644 = vlaneseq
    %v6645 = vshrl.u32 %v6644, 7
    %v6646 = vsub.s32 %v1214, %v6645
    %v6647 = vrot.slane %v6540, %v6646
    %v6648 = vsel %vm1219, %v6647, %v6643
    %v6649 = vlaneseq
    %v6650 = vshrl.u32 %v6649, 7
    %v6651 = vsub.s32 %v1209, %v6650
    %v6652 = vrot.slane %v6543, %v6651
    %v6653 = vlaneseq
    %v6654 = vshrl.u32 %v6653, 7
    %v6655 = vsub.s32 %v1214, %v6654
    %v6656 = vrot.slane %v6546, %v6655
    %v6657 = vsel %vm1219, %v6656, %v6652
    %v6658 = vlaneseq
    %v6659 = vshrl.u32 %v6658, 7
    %v6660 = vsub.s32 %v1209, %v6659
    %v6661 = vrot.slane %v6549, %v6660
    %v6662 = vlaneseq
    %v6663 = vshrl.u32 %v6662, 7
    %v6664 = vsub.s32 %v1214, %v6663
    %v6665 = vrot.slane %v6552, %v6664
    %v6666 = vsel %vm1219, %v6665, %v6661
    %v6667 = vlaneseq
    %v6668 = vshrl.u32 %v6667, 7
    %v6669 = vsub.s32 %v1209, %v6668
    %v6670 = vrot.slane %v6555, %v6669
    %v6671 = vlaneseq
    %v6672 = vshrl.u32 %v6671, 7
    %v6673 = vsub.s32 %v1214, %v6672
    %v6674 = vrot.slane %v6558, %v6673
    %v6675 = vsel %vm1219, %v6674, %v6670
    %v6676 = vlaneseq
    %v6677 = vshrl.u32 %v6676, 7
    %v6678 = vsub.s32 %v1209, %v6677
    %v6679 = vrot.slane %v6561, %v6678
    %v6680 = vlaneseq
    %v6681 = vshrl.u32 %v6680, 7
    %v6682 = vsub.s32 %v1214, %v6681
    %v6683 = vrot.slane %v6564, %v6682
    %v6684 = vsel %vm1219, %v6683, %v6679
    %v6685 = vlaneseq
    %v6686 = vshrl.u32 %v6685, 7
    %v6687 = vsub.s32 %v1209, %v6686
    %v6688 = vrot.slane %v6567, %v6687
    %v6689 = vlaneseq
    %v6690 = vshrl.u32 %v6689, 7
    %v6691 = vsub.s32 %v1214, %v6690
    %v6692 = vrot.slane %v6570, %v6691
    %v6693 = vsel %vm1219, %v6692, %v6688
    %v6694 = vlaneseq
    %v6695 = vshrl.u32 %v6694, 7
    %v6696 = vsub.s32 %v1209, %v6695
    %v6697 = vrot.slane %v6573, %v6696
    %v6698 = vlaneseq
    %v6699 = vshrl.u32 %v6698, 7
    %v6700 = vsub.s32 %v1214, %v6699
    %v6701 = vrot.slane %v6576, %v6700
    %v6702 = vsel %vm1219, %v6701, %v6697
    %v6703 = vlaneseq
    %v6704 = vshrl.u32 %v6703, 7
    %v6705 = vsub.s32 %v1209, %v6704
    %v6706 = vrot.slane %v6579, %v6705
    %v6707 = vlaneseq
    %v6708 = vshrl.u32 %v6707, 7
    %v6709 = vsub.s32 %v1214, %v6708
    %v6710 = vrot.slane %v6582, %v6709
    %v6711 = vsel %vm1219, %v6710, %v6706
    %v6712 = vlaneseq
    %v6713 = vshrl.u32 %v6712, 7
    %v6714 = vsub.s32 %v1209, %v6713
    %v6715 = vrot.slane %v6585, %v6714
    %v6716 = vlaneseq
    %v6717 = vshrl.u32 %v6716, 7
    %v6718 = vsub.s32 %v1214, %v6717
    %v6719 = vrot.slane %v6588, %v6718
    %v6720 = vsel %vm1219, %v6719, %v6715
    %v6721 = vlaneseq
    %v6722 = vshrl.u32 %v6721, 7
    %v6723 = vsub.s32 %v1209, %v6722
    %v6724 = vrot.slane %v6591, %v6723
    %v6725 = vlaneseq
    %v6726 = vshrl.u32 %v6725, 7
    %v6727 = vsub.s32 %v1214, %v6726
    %v6728 = vrot.slane %v6594, %v6727
    %v6729 = vsel %vm1219, %v6728, %v6724
    %v6730 = vlaneseq
    %v6731 = vshrl.u32 %v6730, 7
    %v6732 = vsub.s32 %v1209, %v6731
    %v6733 = vrot.slane %v6597, %v6732
    %v6734 = vlaneseq
    %v6735 = vshrl.u32 %v6734, 7
    %v6736 = vsub.s32 %v1214, %v6735
    %v6737 = vrot.slane %v6600, %v6736
    %v6738 = vsel %vm1219, %v6737, %v6733
    %v6739 = vlaneseq
    %v6740 = vshrl.u32 %v6739, 7
    %v6741 = vsub.s32 %v1209, %v6740
    %v6742 = vrot.slane %v6603, %v6741
    %v6743 = vlaneseq
    %v6744 = vshrl.u32 %v6743, 7
    %v6745 = vsub.s32 %v1214, %v6744
    %v6746 = vrot.slane %v6606, %v6745
    %v6747 = vsel %vm1219, %v6746, %v6742
    %v6748 = vlaneseq
    %v6749 = vshrl.u32 %v6748, 7
    %v6750 = vsub.s32 %v1209, %v6749
    %v6751 = vrot.slane %v6609, %v6750
    %v6752 = vlaneseq
    %v6753 = vshrl.u32 %v6752, 7
    %v6754 = vsub.s32 %v1214, %v6753
    %v6755 = vrot.slane %v6612, %v6754
    %v6756 = vsel %vm1219, %v6755, %v6751
    %v6757 = vsel %vm1356, %v6630, %v6621
    %v6758 = vsel %vm1358, %v6639, %v6757
    %v6759 = vsel %vm1360, %v6648, %v6758
    %v6760 = vsel %vm1362, %v6657, %v6759
    %v6761 = vsel %vm1364, %v6666, %v6760
    %v6762 = vsel %vm1366, %v6675, %v6761
    %v6763 = vsel %vm1368, %v6684, %v6762
    %v6764 = vsel %vm1356, %v6702, %v6693
    %v6765 = vsel %vm1358, %v6711, %v6764
    %v6766 = vsel %vm1360, %v6720, %v6765
    %v6767 = vsel %vm1362, %v6729, %v6766
    %v6768 = vsel %vm1364, %v6738, %v6767
    %v6769 = vsel %vm1366, %v6747, %v6768
    %v6770 = vsel %vm1368, %v6756, %v6769
    %v6773 = vsel %vm89, %v6763, 0.0
    %6774 = vadd.xlane.f32.xlu0 %v6773
    %v6775 = vpop.xlane.xlu0 %6774
    %v6776 = vsel %vm89, %v6770, 0.0
    %6777 = vadd.xlane.f32.xlu0 %v6776
    %v6778 = vpop.xlane.xlu0 %6777
    %v6779 = vrcp.pop %v6775
    %v6780 = vrcp.pop %v6778
    %v6783 = vlaneseq
    %v6784 = vshrl.u32 %v6783, 7
    %v6785 = vsub.s32 0, %v6784
    %v6786 = vrot.slane %v6779, %v6785
    %v6787 = vlaneseq
    %v6788 = vshrl.u32 %v6787, 7
    %v6789 = vsub.s32 1, %v6788
    %v6790 = vrot.slane %v6779, %v6789
    %v6791 = vlaneseq
    %v6792 = vshrl.u32 %v6791, 7
    %v6793 = vsub.s32 2, %v6792
    %v6794 = vrot.slane %v6779, %v6793
    %v6795 = vlaneseq
    %v6796 = vshrl.u32 %v6795, 7
    %v6797 = vsub.s32 3, %v6796
    %v6798 = vrot.slane %v6779, %v6797
    %v6799 = vlaneseq
    %v6800 = vshrl.u32 %v6799, 7
    %v6801 = vsub.s32 4, %v6800
    %v6802 = vrot.slane %v6779, %v6801
    %v6803 = vlaneseq
    %v6804 = vshrl.u32 %v6803, 7
    %v6805 = vsub.s32 5, %v6804
    %v6806 = vrot.slane %v6779, %v6805
    %v6807 = vlaneseq
    %v6808 = vshrl.u32 %v6807, 7
    %v6809 = vsub.s32 6, %v6808
    %v6810 = vrot.slane %v6779, %v6809
    %v6811 = vlaneseq
    %v6812 = vshrl.u32 %v6811, 7
    %v6813 = vsub.s32 7, %v6812
    %v6814 = vrot.slane %v6779, %v6813
    %v6815 = vlaneseq
    %v6816 = vshrl.u32 %v6815, 7
    %v6817 = vsub.s32 0, %v6816
    %v6818 = vrot.slane %v6780, %v6817
    %v6819 = vlaneseq
    %v6820 = vshrl.u32 %v6819, 7
    %v6821 = vsub.s32 1, %v6820
    %v6822 = vrot.slane %v6780, %v6821
    %v6823 = vlaneseq
    %v6824 = vshrl.u32 %v6823, 7
    %v6825 = vsub.s32 2, %v6824
    %v6826 = vrot.slane %v6780, %v6825
    %v6827 = vlaneseq
    %v6828 = vshrl.u32 %v6827, 7
    %v6829 = vsub.s32 3, %v6828
    %v6830 = vrot.slane %v6780, %v6829
    %v6831 = vlaneseq
    %v6832 = vshrl.u32 %v6831, 7
    %v6833 = vsub.s32 4, %v6832
    %v6834 = vrot.slane %v6780, %v6833
    %v6835 = vlaneseq
    %v6836 = vshrl.u32 %v6835, 7
    %v6837 = vsub.s32 5, %v6836
    %v6838 = vrot.slane %v6780, %v6837
    %v6839 = vlaneseq
    %v6840 = vshrl.u32 %v6839, 7
    %v6841 = vsub.s32 6, %v6840
    %v6842 = vrot.slane %v6780, %v6841
    %v6843 = vlaneseq
    %v6844 = vshrl.u32 %v6843, 7
    %v6845 = vsub.s32 7, %v6844
    %v6846 = vrot.slane %v6780, %v6845
    %v6863 = vmul.f32 %v6422, %v6786
    %v6864 = vmul.f32 %v6424, %v6786
    %v6865 = vmul.f32 %v6426, %v6790
    %v6866 = vmul.f32 %v6428, %v6790
    %v6867 = vmul.f32 %v6430, %v6794
    %v6868 = vmul.f32 %v6432, %v6794
    %v6869 = vmul.f32 %v6434, %v6798
    %v6870 = vmul.f32 %v6436, %v6798
    %v6871 = vmul.f32 %v6438, %v6802
    %v6872 = vmul.f32 %v6440, %v6802
    %v6873 = vmul.f32 %v6442, %v6806
    %v6874 = vmul.f32 %v6444, %v6806
    %v6875 = vmul.f32 %v6446, %v6810
    %v6876 = vmul.f32 %v6448, %v6810
    %v6877 = vmul.f32 %v6450, %v6814
    %v6878 = vmul.f32 %v6452, %v6814
    %v6879 = vmul.f32 %v6454, %v6818
    %v6880 = vmul.f32 %v6456, %v6818
    %v6881 = vmul.f32 %v6458, %v6822
    %v6882 = vmul.f32 %v6460, %v6822
    %v6883 = vmul.f32 %v6462, %v6826
    %v6884 = vmul.f32 %v6464, %v6826
    %v6885 = vmul.f32 %v6466, %v6830
    %v6886 = vmul.f32 %v6468, %v6830
    %v6887 = vmul.f32 %v6470, %v6834
    %v6888 = vmul.f32 %v6472, %v6834
    %v6889 = vmul.f32 %v6474, %v6838
    %v6890 = vmul.f32 %v6476, %v6838
    %v6891 = vmul.f32 %v6478, %v6842
    %v6892 = vmul.f32 %v6480, %v6842
    %v6893 = vmul.f32 %v6482, %v6846
    %v6894 = vmul.f32 %v6484, %v6846
    %v6895 = vpack.c.bf16 %v6864, %v6863
    %v6896 = vpack.c.bf16 %v6866, %v6865
    %v6897 = vpack.c.bf16 %v6868, %v6867
    %v6898 = vpack.c.bf16 %v6870, %v6869
    %v6899 = vpack.c.bf16 %v6872, %v6871
    %v6900 = vpack.c.bf16 %v6874, %v6873
    %v6901 = vpack.c.bf16 %v6876, %v6875
    %v6902 = vpack.c.bf16 %v6878, %v6877
    %v6903 = vpack.c.bf16 %v6880, %v6879
    %v6904 = vpack.c.bf16 %v6882, %v6881
    %v6905 = vpack.c.bf16 %v6884, %v6883
    %v6906 = vpack.c.bf16 %v6886, %v6885
    %v6907 = vpack.c.bf16 %v6888, %v6887
    %v6908 = vpack.c.bf16 %v6890, %v6889
    %v6909 = vpack.c.bf16 %v6892, %v6891
    %v6910 = vpack.c.bf16 %v6894, %v6893
    %v6911 = vpack.c.bf16 %v3935, %v3931
    %v6928 = vunpack.c.l.b16 %v6895
    %v6929 = vunpack.c.h.b16 %v6895
    %v6930 = vunpack.c.l.b16 %v6896
    %v6931 = vunpack.c.h.b16 %v6896
    %v6932 = vunpack.c.l.b16 %v6897
    %v6933 = vunpack.c.h.b16 %v6897
    %v6934 = vunpack.c.l.b16 %v6898
    %v6935 = vunpack.c.h.b16 %v6898
    %v6936 = vunpack.c.l.b16 %v6899
    %v6937 = vunpack.c.h.b16 %v6899
    %v6938 = vunpack.c.l.b16 %v6900
    %v6939 = vunpack.c.h.b16 %v6900
    %v6940 = vunpack.c.l.b16 %v6901
    %v6941 = vunpack.c.h.b16 %v6901
    %v6942 = vunpack.c.l.b16 %v6902
    %v6943 = vunpack.c.h.b16 %v6902
    %v6944 = vunpack.c.l.b16 %v6903
    %v6945 = vunpack.c.h.b16 %v6903
    %v6946 = vunpack.c.l.b16 %v6904
    %v6947 = vunpack.c.h.b16 %v6904
    %v6948 = vunpack.c.l.b16 %v6905
    %v6949 = vunpack.c.h.b16 %v6905
    %v6950 = vunpack.c.l.b16 %v6906
    %v6951 = vunpack.c.h.b16 %v6906
    %v6952 = vunpack.c.l.b16 %v6907
    %v6953 = vunpack.c.h.b16 %v6907
    %v6954 = vunpack.c.l.b16 %v6908
    %v6955 = vunpack.c.h.b16 %v6908
    %v6956 = vunpack.c.l.b16 %v6909
    %v6957 = vunpack.c.h.b16 %v6909
    %v6958 = vunpack.c.l.b16 %v6910
    %v6959 = vunpack.c.h.b16 %v6910
    %6960 = vset.pattern.permute.xlu0 0
    %6961 = vperm.xlu0 %6960, %v6928
    %v6962 = vpop.permute.xlu0 %6961
    %6963 = vset.pattern.permute.xlu0 0
    %6964 = vperm.xlu0 %6963, %v6929
    %v6965 = vpop.permute.xlu0 %6964
    %6966 = vset.pattern.permute.xlu0 0
    %6967 = vperm.xlu0 %6966, %v6930
    %v6968 = vpop.permute.xlu0 %6967
    %6969 = vset.pattern.permute.xlu0 0
    %6970 = vperm.xlu0 %6969, %v6931
    %v6971 = vpop.permute.xlu0 %6970
    %6972 = vset.pattern.permute.xlu0 0
    %6973 = vperm.xlu0 %6972, %v6932
    %v6974 = vpop.permute.xlu0 %6973
    %6975 = vset.pattern.permute.xlu0 0
    %6976 = vperm.xlu0 %6975, %v6933
    %v6977 = vpop.permute.xlu0 %6976
    %6978 = vset.pattern.permute.xlu0 0
    %6979 = vperm.xlu0 %6978, %v6934
    %v6980 = vpop.permute.xlu0 %6979
    %6981 = vset.pattern.permute.xlu0 0
    %6982 = vperm.xlu0 %6981, %v6935
    %v6983 = vpop.permute.xlu0 %6982
    %6984 = vset.pattern.permute.xlu0 0
    %6985 = vperm.xlu0 %6984, %v6936
    %v6986 = vpop.permute.xlu0 %6985
    %6987 = vset.pattern.permute.xlu0 0
    %6988 = vperm.xlu0 %6987, %v6937
    %v6989 = vpop.permute.xlu0 %6988
    %6990 = vset.pattern.permute.xlu0 0
    %6991 = vperm.xlu0 %6990, %v6938
    %v6992 = vpop.permute.xlu0 %6991
    %6993 = vset.pattern.permute.xlu0 0
    %6994 = vperm.xlu0 %6993, %v6939
    %v6995 = vpop.permute.xlu0 %6994
    %6996 = vset.pattern.permute.xlu0 0
    %6997 = vperm.xlu0 %6996, %v6940
    %v6998 = vpop.permute.xlu0 %6997
    %6999 = vset.pattern.permute.xlu0 0
    %7000 = vperm.xlu0 %6999, %v6941
    %v7001 = vpop.permute.xlu0 %7000
    %7002 = vset.pattern.permute.xlu0 0
    %7003 = vperm.xlu0 %7002, %v6942
    %v7004 = vpop.permute.xlu0 %7003
    %7005 = vset.pattern.permute.xlu0 0
    %7006 = vperm.xlu0 %7005, %v6943
    %v7007 = vpop.permute.xlu0 %7006
    %7008 = vset.pattern.permute.xlu0 0
    %7009 = vperm.xlu0 %7008, %v6944
    %v7010 = vpop.permute.xlu0 %7009
    %7011 = vset.pattern.permute.xlu0 0
    %7012 = vperm.xlu0 %7011, %v6945
    %v7013 = vpop.permute.xlu0 %7012
    %7014 = vset.pattern.permute.xlu0 0
    %7015 = vperm.xlu0 %7014, %v6946
    %v7016 = vpop.permute.xlu0 %7015
    %7017 = vset.pattern.permute.xlu0 0
    %7018 = vperm.xlu0 %7017, %v6947
    %v7019 = vpop.permute.xlu0 %7018
    %7020 = vset.pattern.permute.xlu0 0
    %7021 = vperm.xlu0 %7020, %v6948
    %v7022 = vpop.permute.xlu0 %7021
    %7023 = vset.pattern.permute.xlu0 0
    %7024 = vperm.xlu0 %7023, %v6949
    %v7025 = vpop.permute.xlu0 %7024
    %7026 = vset.pattern.permute.xlu0 0
    %7027 = vperm.xlu0 %7026, %v6950
    %v7028 = vpop.permute.xlu0 %7027
    %7029 = vset.pattern.permute.xlu0 0
    %7030 = vperm.xlu0 %7029, %v6951
    %v7031 = vpop.permute.xlu0 %7030
    %7032 = vset.pattern.permute.xlu0 0
    %7033 = vperm.xlu0 %7032, %v6952
    %v7034 = vpop.permute.xlu0 %7033
    %7035 = vset.pattern.permute.xlu0 0
    %7036 = vperm.xlu0 %7035, %v6953
    %v7037 = vpop.permute.xlu0 %7036
    %7038 = vset.pattern.permute.xlu0 0
    %7039 = vperm.xlu0 %7038, %v6954
    %v7040 = vpop.permute.xlu0 %7039
    %7041 = vset.pattern.permute.xlu0 0
    %7042 = vperm.xlu0 %7041, %v6955
    %v7043 = vpop.permute.xlu0 %7042
    %7044 = vset.pattern.permute.xlu0 0
    %7045 = vperm.xlu0 %7044, %v6956
    %v7046 = vpop.permute.xlu0 %7045
    %7047 = vset.pattern.permute.xlu0 0
    %7048 = vperm.xlu0 %7047, %v6957
    %v7049 = vpop.permute.xlu0 %7048
    %7050 = vset.pattern.permute.xlu0 0
    %7051 = vperm.xlu0 %7050, %v6958
    %v7052 = vpop.permute.xlu0 %7051
    %7053 = vset.pattern.permute.xlu0 0
    %7054 = vperm.xlu0 %7053, %v6959
    %v7055 = vpop.permute.xlu0 %7054
    %v7056 = vlaneseq
    %v7057 = vshrl.u32 %v7056, 7
    %v7058 = vsub.s32 %v1209, %v7057
    %v7059 = vrot.slane %v6962, %v7058
    %v7060 = vlaneseq
    %v7061 = vshrl.u32 %v7060, 7
    %v7062 = vsub.s32 %v1214, %v7061
    %v7063 = vrot.slane %v6965, %v7062
    %v7064 = vsel %vm1219, %v7063, %v7059
    %v7065 = vlaneseq
    %v7066 = vshrl.u32 %v7065, 7
    %v7067 = vsub.s32 %v1209, %v7066
    %v7068 = vrot.slane %v6968, %v7067
    %v7069 = vlaneseq
    %v7070 = vshrl.u32 %v7069, 7
    %v7071 = vsub.s32 %v1214, %v7070
    %v7072 = vrot.slane %v6971, %v7071
    %v7073 = vsel %vm1219, %v7072, %v7068
    %v7074 = vlaneseq
    %v7075 = vshrl.u32 %v7074, 7
    %v7076 = vsub.s32 %v1209, %v7075
    %v7077 = vrot.slane %v6974, %v7076
    %v7078 = vlaneseq
    %v7079 = vshrl.u32 %v7078, 7
    %v7080 = vsub.s32 %v1214, %v7079
    %v7081 = vrot.slane %v6977, %v7080
    %v7082 = vsel %vm1219, %v7081, %v7077
    %v7083 = vlaneseq
    %v7084 = vshrl.u32 %v7083, 7
    %v7085 = vsub.s32 %v1209, %v7084
    %v7086 = vrot.slane %v6980, %v7085
    %v7087 = vlaneseq
    %v7088 = vshrl.u32 %v7087, 7
    %v7089 = vsub.s32 %v1214, %v7088
    %v7090 = vrot.slane %v6983, %v7089
    %v7091 = vsel %vm1219, %v7090, %v7086
    %v7092 = vlaneseq
    %v7093 = vshrl.u32 %v7092, 7
    %v7094 = vsub.s32 %v1209, %v7093
    %v7095 = vrot.slane %v6986, %v7094
    %v7096 = vlaneseq
    %v7097 = vshrl.u32 %v7096, 7
    %v7098 = vsub.s32 %v1214, %v7097
    %v7099 = vrot.slane %v6989, %v7098
    %v7100 = vsel %vm1219, %v7099, %v7095
    %v7101 = vlaneseq
    %v7102 = vshrl.u32 %v7101, 7
    %v7103 = vsub.s32 %v1209, %v7102
    %v7104 = vrot.slane %v6992, %v7103
    %v7105 = vlaneseq
    %v7106 = vshrl.u32 %v7105, 7
    %v7107 = vsub.s32 %v1214, %v7106
    %v7108 = vrot.slane %v6995, %v7107
    %v7109 = vsel %vm1219, %v7108, %v7104
    %v7110 = vlaneseq
    %v7111 = vshrl.u32 %v7110, 7
    %v7112 = vsub.s32 %v1209, %v7111
    %v7113 = vrot.slane %v6998, %v7112
    %v7114 = vlaneseq
    %v7115 = vshrl.u32 %v7114, 7
    %v7116 = vsub.s32 %v1214, %v7115
    %v7117 = vrot.slane %v7001, %v7116
    %v7118 = vsel %vm1219, %v7117, %v7113
    %v7119 = vlaneseq
    %v7120 = vshrl.u32 %v7119, 7
    %v7121 = vsub.s32 %v1209, %v7120
    %v7122 = vrot.slane %v7004, %v7121
    %v7123 = vlaneseq
    %v7124 = vshrl.u32 %v7123, 7
    %v7125 = vsub.s32 %v1214, %v7124
    %v7126 = vrot.slane %v7007, %v7125
    %v7127 = vsel %vm1219, %v7126, %v7122
    %v7128 = vlaneseq
    %v7129 = vshrl.u32 %v7128, 7
    %v7130 = vsub.s32 %v1209, %v7129
    %v7131 = vrot.slane %v7010, %v7130
    %v7132 = vlaneseq
    %v7133 = vshrl.u32 %v7132, 7
    %v7134 = vsub.s32 %v1214, %v7133
    %v7135 = vrot.slane %v7013, %v7134
    %v7136 = vsel %vm1219, %v7135, %v7131
    %v7137 = vlaneseq
    %v7138 = vshrl.u32 %v7137, 7
    %v7139 = vsub.s32 %v1209, %v7138
    %v7140 = vrot.slane %v7016, %v7139
    %v7141 = vlaneseq
    %v7142 = vshrl.u32 %v7141, 7
    %v7143 = vsub.s32 %v1214, %v7142
    %v7144 = vrot.slane %v7019, %v7143
    %v7145 = vsel %vm1219, %v7144, %v7140
    %v7146 = vlaneseq
    %v7147 = vshrl.u32 %v7146, 7
    %v7148 = vsub.s32 %v1209, %v7147
    %v7149 = vrot.slane %v7022, %v7148
    %v7150 = vlaneseq
    %v7151 = vshrl.u32 %v7150, 7
    %v7152 = vsub.s32 %v1214, %v7151
    %v7153 = vrot.slane %v7025, %v7152
    %v7154 = vsel %vm1219, %v7153, %v7149
    %v7155 = vlaneseq
    %v7156 = vshrl.u32 %v7155, 7
    %v7157 = vsub.s32 %v1209, %v7156
    %v7158 = vrot.slane %v7028, %v7157
    %v7159 = vlaneseq
    %v7160 = vshrl.u32 %v7159, 7
    %v7161 = vsub.s32 %v1214, %v7160
    %v7162 = vrot.slane %v7031, %v7161
    %v7163 = vsel %vm1219, %v7162, %v7158
    %v7164 = vlaneseq
    %v7165 = vshrl.u32 %v7164, 7
    %v7166 = vsub.s32 %v1209, %v7165
    %v7167 = vrot.slane %v7034, %v7166
    %v7168 = vlaneseq
    %v7169 = vshrl.u32 %v7168, 7
    %v7170 = vsub.s32 %v1214, %v7169
    %v7171 = vrot.slane %v7037, %v7170
    %v7172 = vsel %vm1219, %v7171, %v7167
    %v7173 = vlaneseq
    %v7174 = vshrl.u32 %v7173, 7
    %v7175 = vsub.s32 %v1209, %v7174
    %v7176 = vrot.slane %v7040, %v7175
    %v7177 = vlaneseq
    %v7178 = vshrl.u32 %v7177, 7
    %v7179 = vsub.s32 %v1214, %v7178
    %v7180 = vrot.slane %v7043, %v7179
    %v7181 = vsel %vm1219, %v7180, %v7176
    %v7182 = vlaneseq
    %v7183 = vshrl.u32 %v7182, 7
    %v7184 = vsub.s32 %v1209, %v7183
    %v7185 = vrot.slane %v7046, %v7184
    %v7186 = vlaneseq
    %v7187 = vshrl.u32 %v7186, 7
    %v7188 = vsub.s32 %v1214, %v7187
    %v7189 = vrot.slane %v7049, %v7188
    %v7190 = vsel %vm1219, %v7189, %v7185
    %v7191 = vlaneseq
    %v7192 = vshrl.u32 %v7191, 7
    %v7193 = vsub.s32 %v1209, %v7192
    %v7194 = vrot.slane %v7052, %v7193
    %v7195 = vlaneseq
    %v7196 = vshrl.u32 %v7195, 7
    %v7197 = vsub.s32 %v1214, %v7196
    %v7198 = vrot.slane %v7055, %v7197
    %v7199 = vsel %vm1219, %v7198, %v7194
    %v7200 = vsel %vm1356, %v7073, %v7064
    %v7201 = vsel %vm1358, %v7082, %v7200
    %v7202 = vsel %vm1360, %v7091, %v7201
    %v7203 = vsel %vm1362, %v7100, %v7202
    %v7204 = vsel %vm1364, %v7109, %v7203
    %v7205 = vsel %vm1366, %v7118, %v7204
    %v7206 = vsel %vm1368, %v7127, %v7205
    %v7207 = vsel %vm1356, %v7145, %v7136
    %v7208 = vsel %vm1358, %v7154, %v7207
    %v7209 = vsel %vm1360, %v7163, %v7208
    %v7210 = vsel %vm1362, %v7172, %v7209
    %v7211 = vsel %vm1364, %v7181, %v7210
    %v7212 = vsel %vm1366, %v7190, %v7211
    %v7213 = vsel %vm1368, %v7199, %v7212
    %v7214 = vpack.c.b16 %v7213, %v7206
    %v7216 = vsel %vm89, %v7214, 0
    %7218 = vmatprep.subr.bf16.mxu0 0
    %7219 = vmatpush1.bf16.msra.mxu0 0
    %7220 = vmatprep.subr.bf16.mxu0 0
    %7221 = vmatpush1.bf16.msra.mxu0 0
    %7222 = vmatprep.subr.bf16.mxu0 0
    %7223 = vmatpush1.bf16.msra.mxu0 0
    %7224 = vmatprep.subr.bf16.mxu0 0
    %7225 = vmatpush1.bf16.msra.mxu0 0
    %7226 = vmatprep.subr.bf16.mxu0 0
    %7227 = vmatpush1.bf16.msra.mxu0 0
    %7228 = vmatprep.subr.bf16.mxu0 0
    %7229 = vmatpush1.bf16.msra.mxu0 0
    %7230 = vmatprep.subr.bf16.mxu0 0
    %7231 = vmatpush1.bf16.msra.mxu0 0
    %7232 = vmatprep.subr.bf16.mxu0 0
    %7233 = vmatpush1.bf16.msra.mxu0 %v6911
    %7234 = vmatprep.subr.bf16.mxu0 0
    %7235 = vmatpush2.bf16.msra.mxu0 0
    %7236 = vmatprep.subr.bf16.mxu0 0
    %7237 = vmatpush2.bf16.msra.mxu0 0
    %7238 = vmatprep.subr.bf16.mxu0 0
    %7239 = vmatpush2.bf16.msra.mxu0 0
    %7240 = vmatprep.subr.bf16.mxu0 0
    %7241 = vmatpush2.bf16.msra.mxu0 0
    %7242 = vmatprep.subr.bf16.mxu0 0
    %7243 = vmatpush2.bf16.msra.mxu0 0
    %7244 = vmatprep.subr.bf16.mxu0 0
    %7245 = vmatpush2.bf16.msra.mxu0 0
    %7246 = vmatprep.subr.bf16.mxu0 0
    %7247 = vmatpush2.bf16.msra.mxu0 0
    %7248 = vmatprep.subr.bf16.mxu0 0
    %7249 = vmatpush2.bf16.msra.mxu0 0
    %7250 = vmatprep.mubr.bf16.mxu0 0
    %7251 = vmatmul.mubr.bf16.gmra.mxu0 %v7216
    %v7252 = vpop.f32.mrf.mxu0
    %v7253 = vadd.f32 0.0, %v7252
    %v7254 = vpop.f32.mrf.mxu0
    %v7255 = vpop.f32.mrf.mxu0
    %v7256 = vadd.f32 0.0, %v7255
    %v7257 = vpop.f32.mrf.mxu0
    %7258 = vdwg.mxu0
    %v7260 = vlaneseq
    %v7261 = vshrl.u32 %v7260, 7
    %v7262 = vsub.s32 0, %v7261
    %v7263 = vrot.slane %v3827, %v7262
    %v7264 = vlaneseq
    %v7265 = vshrl.u32 %v7264, 7
    %v7266 = vsub.s32 1, %v7265
    %v7267 = vrot.slane %v3827, %v7266
    %v7270 = vadd.f32 %v5911, %v7263
    %v7271 = vadd.f32 %v7253, %v7267
    %v7272 = vadd.f32 %v5914, %v7263
    %v7273 = vadd.f32 %v7256, %v7267
    %v7274 = vmax.f32 %v7270, 0.0
    %v7275 = vmax.f32 %v7271, 0.0
    %v7276 = vmax.f32 %v7272, 0.0
    %v7277 = vmax.f32 %v7273, 0.0
    %v7278 = vpack.c.bf16 %v7276, %v7274
    %v7279 = vpack.c.bf16 %v7277, %v7275
    %v7280 = vld [vmem:[#allocation4] sm:$0xff]
    %v7281 = vld [vmem:[#allocation4 + $0x8] sm:$0xff]
    %v7282 = vld [vmem:[#allocation4 + $0x10] sm:$0xff]
    %v7283 = vld [vmem:[#allocation4 + $0x18] sm:$0xff]
    %v7284 = vld [vmem:[#allocation4 + $0x20] sm:$0xff]
    %v7285 = vld [vmem:[#allocation4 + $0x28] sm:$0xff]
    %v7286 = vld [vmem:[#allocation4 + $0x30] sm:$0xff]
    %v7287 = vld [vmem:[#allocation4 + $0x38] sm:$0xff]
    %v7288 = vld [vmem:[#allocation4 + $0x40] sm:$0xff]
    %v7289 = vld [vmem:[#allocation4 + $0x48] sm:$0xff]
    %v7290 = vld [vmem:[#allocation4 + $0x50] sm:$0xff]
    %v7291 = vld [vmem:[#allocation4 + $0x58] sm:$0xff]
    %v7292 = vld [vmem:[#allocation4 + $0x60] sm:$0xff]
    %v7293 = vld [vmem:[#allocation4 + $0x68] sm:$0xff]
    %v7294 = vld [vmem:[#allocation4 + $0x70] sm:$0xff]
    %v7295 = vld [vmem:[#allocation4 + $0x78] sm:$0xff]
    %v7296 = vld [vmem:[#allocation4 + $0x80] sm:$0xff]
    %v7297 = vld [vmem:[#allocation4 + $0x88] sm:$0xff]
    %v7298 = vld [vmem:[#allocation4 + $0x90] sm:$0xff]
    %v7299 = vld [vmem:[#allocation4 + $0x98] sm:$0xff]
    %v7300 = vld [vmem:[#allocation4 + $0xa0] sm:$0xff]
    %v7301 = vld [vmem:[#allocation4 + $0xa8] sm:$0xff]
    %v7302 = vld [vmem:[#allocation4 + $0xb0] sm:$0xff]
    %v7303 = vld [vmem:[#allocation4 + $0xb8] sm:$0xff]
    %v7304 = vld [vmem:[#allocation4 + $0xc0] sm:$0xff]
    %v7305 = vld [vmem:[#allocation4 + $0xc8] sm:$0xff]
    %v7306 = vld [vmem:[#allocation4 + $0xd0] sm:$0xff]
    %v7307 = vld [vmem:[#allocation4 + $0xd8] sm:$0xff]
    %v7308 = vld [vmem:[#allocation4 + $0xe0] sm:$0xff]
    %v7309 = vld [vmem:[#allocation4 + $0xe8] sm:$0xff]
    %v7310 = vld [vmem:[#allocation4 + $0xf0] sm:$0xff]
    %v7311 = vld [vmem:[#allocation4 + $0xf8] sm:$0xff]
    %v7312 = vpack.c.bf16 %v7281, %v7280
    %v7313 = vpack.c.bf16 %v7283, %v7282
    %v7314 = vpack.c.bf16 %v7285, %v7284
    %v7315 = vpack.c.bf16 %v7287, %v7286
    %v7316 = vpack.c.bf16 %v7289, %v7288
    %v7317 = vpack.c.bf16 %v7291, %v7290
    %v7318 = vpack.c.bf16 %v7293, %v7292
    %v7319 = vpack.c.bf16 %v7295, %v7294
    %v7320 = vpack.c.bf16 %v7297, %v7296
    %v7321 = vpack.c.bf16 %v7299, %v7298
    %v7322 = vpack.c.bf16 %v7301, %v7300
    %v7323 = vpack.c.bf16 %v7303, %v7302
    %v7324 = vpack.c.bf16 %v7305, %v7304
    %v7325 = vpack.c.bf16 %v7307, %v7306
    %v7326 = vpack.c.bf16 %v7309, %v7308
    %v7327 = vpack.c.bf16 %v7311, %v7310
    %v7328 = vld [vmem:[%s9] sm:$0x1]
    %v7330 = vlaneseq
    %v7331 = vshrl.u32 %v7330, 7
    %v7332 = vsub.s32 0, %v7331
    %v7333 = vrot.slane %v7328, %v7332
    %7335 = vmatprep.subr.bf16.mxu0 0
    %7336 = vmatpush1.bf16.msra.mxu0 %v7319
    %7337 = vmatprep.subr.bf16.mxu0 0
    %7338 = vmatpush1.bf16.msra.mxu0 %v7318
    %7339 = vmatprep.subr.bf16.mxu0 0
    %7340 = vmatpush1.bf16.msra.mxu0 %v7317
    %7341 = vmatprep.subr.bf16.mxu0 0
    %7342 = vmatpush1.bf16.msra.mxu0 %v7316
    %7343 = vmatprep.subr.bf16.mxu0 0
    %7344 = vmatpush1.bf16.msra.mxu0 %v7315
    %7345 = vmatprep.subr.bf16.mxu0 0
    %7346 = vmatpush1.bf16.msra.mxu0 %v7314
    %7347 = vmatprep.subr.bf16.mxu0 0
    %7348 = vmatpush1.bf16.msra.mxu0 %v7313
    %7349 = vmatprep.subr.bf16.mxu0 0
    %7350 = vmatpush1.bf16.msra.mxu0 %v7312
    %7351 = vmatprep.subr.bf16.mxu0 0
    %7352 = vmatpush2.bf16.msra.mxu0 %v7327
    %7353 = vmatprep.subr.bf16.mxu0 0
    %7354 = vmatpush2.bf16.msra.mxu0 %v7326
    %7355 = vmatprep.subr.bf16.mxu0 0
    %7356 = vmatpush2.bf16.msra.mxu0 %v7325
    %7357 = vmatprep.subr.bf16.mxu0 0
    %7358 = vmatpush2.bf16.msra.mxu0 %v7324
    %7359 = vmatprep.subr.bf16.mxu0 0
    %7360 = vmatpush2.bf16.msra.mxu0 %v7323
    %7361 = vmatprep.subr.bf16.mxu0 0
    %7362 = vmatpush2.bf16.msra.mxu0 %v7322
    %7363 = vmatprep.subr.bf16.mxu0 0
    %7364 = vmatpush2.bf16.msra.mxu0 %v7321
    %7365 = vmatprep.subr.bf16.mxu0 0
    %7366 = vmatpush2.bf16.msra.mxu0 %v7320
    %7367 = vmatprep.mubr.bf16.mxu0 %v7279
    %7368 = vmatmul.mubr.bf16.gmra.mxu0 %v7278
    %v7369 = vpop.f32.mrf.mxu0
    %v7370 = vadd.f32 %v7333, %v7369
    %v7371 = vpop.f32.mrf.mxu0
    %v7372 = vpop.f32.mrf.mxu0
    %v7373 = vadd.f32 %v7333, %v7372
    %v7374 = vpop.f32.mrf.mxu0
    %7375 = vdwg.mxu0
    %v7376 = vpack.c.bf16 %v7373, %v7370
    %v7377 = vld [vmem:[%s10] sm:$0xff]
    %v7378 = vld [vmem:[%s10 + $0x8] sm:$0xff]
    %v7379 = vld [vmem:[%s10 + $0x10] sm:$0xff]
    %v7380 = vld [vmem:[%s10 + $0x18] sm:$0xff]
    %v7381 = vld [vmem:[%s10 + $0x20] sm:$0xff]
    %v7382 = vld [vmem:[%s10 + $0x28] sm:$0xff]
    %v7383 = vld [vmem:[%s10 + $0x30] sm:$0xff]
    %v7384 = vld [vmem:[%s10 + $0x38] sm:$0xff]
    %v7385 = vld [vmem:[%s10 + $0x40] sm:$0xff]
    %v7386 = vld [vmem:[%s10 + $0x48] sm:$0xff]
    %v7387 = vld [vmem:[%s10 + $0x50] sm:$0xff]
    %v7388 = vld [vmem:[%s10 + $0x58] sm:$0xff]
    %v7389 = vld [vmem:[%s10 + $0x60] sm:$0xff]
    %v7390 = vld [vmem:[%s10 + $0x68] sm:$0xff]
    %v7391 = vld [vmem:[%s10 + $0x70] sm:$0xff]
    %v7392 = vld [vmem:[%s10 + $0x78] sm:$0xff]
    %v7393 = vpack.c.bf16 %v7378, %v7377
    %v7394 = vpack.c.bf16 %v7380, %v7379
    %v7395 = vpack.c.bf16 %v7382, %v7381
    %v7396 = vpack.c.bf16 %v7384, %v7383
    %v7397 = vpack.c.bf16 %v7386, %v7385
    %v7398 = vpack.c.bf16 %v7388, %v7387
    %v7399 = vpack.c.bf16 %v7390, %v7389
    %v7400 = vpack.c.bf16 %v7392, %v7391
    %v7401 = vld [vmem:[%s11] sm:$0x1]
    %v7403 = vlaneseq
    %v7404 = vshrl.u32 %v7403, 7
    %v7405 = vsub.s32 0, %v7404
    %v7406 = vrot.slane %v7401, %v7405
    %7408 = vmatprep.subr.bf16.mxu0 0
    %7409 = vmatpush1.bf16.msra.mxu0 %v7400
    %7410 = vmatprep.subr.bf16.mxu0 0
    %7411 = vmatpush1.bf16.msra.mxu0 %v7399
    %7412 = vmatprep.subr.bf16.mxu0 0
    %7413 = vmatpush1.bf16.msra.mxu0 %v7398
    %7414 = vmatprep.subr.bf16.mxu0 0
    %7415 = vmatpush1.bf16.msra.mxu0 %v7397
    %7416 = vmatprep.subr.bf16.mxu0 0
    %7417 = vmatpush1.bf16.msra.mxu0 %v7396
    %7418 = vmatprep.subr.bf16.mxu0 0
    %7419 = vmatpush1.bf16.msra.mxu0 %v7395
    %7420 = vmatprep.subr.bf16.mxu0 0
    %7421 = vmatpush1.bf16.msra.mxu0 %v7394
    %7422 = vmatprep.subr.bf16.mxu0 0
    %7423 = vmatpush1.bf16.msra.mxu0 %v7393
    %7424 = vmatprep.subr.bf16.mxu0 0
    %7425 = vmatpush2.bf16.msra.mxu0 0
    %7426 = vmatprep.subr.bf16.mxu0 0
    %7427 = vmatpush2.bf16.msra.mxu0 0
    %7428 = vmatprep.subr.bf16.mxu0 0
    %7429 = vmatpush2.bf16.msra.mxu0 0
    %7430 = vmatprep.subr.bf16.mxu0 0
    %7431 = vmatpush2.bf16.msra.mxu0 0
    %7432 = vmatprep.subr.bf16.mxu0 0
    %7433 = vmatpush2.bf16.msra.mxu0 0
    %7434 = vmatprep.subr.bf16.mxu0 0
    %7435 = vmatpush2.bf16.msra.mxu0 0
    %7436 = vmatprep.subr.bf16.mxu0 0
    %7437 = vmatpush2.bf16.msra.mxu0 0
    %7438 = vmatprep.subr.bf16.mxu0 0
    %7439 = vmatpush2.bf16.msra.mxu0 0
    %7440 = vmatprep.mubr.bf16.mxu0 0
    %7441 = vmatmul.mubr.bf16.gmra.mxu0 %v7376
    %v7442 = vpop.f32.mrf.mxu0
    %v7443 = vadd.f32 %v7406, %v7442
    %v7444 = vpop.f32.mrf.mxu0
    %v7445 = vpop.f32.mrf.mxu0
    %v7446 = vadd.f32 %v7406, %v7445
    %v7447 = vpop.f32.mrf.mxu0
    %7448 = vdwg.mxu0
    %v7449 = vsub.f32 0.0, %v7443
    %v7450 = vsub.f32 0.0, %v7446
    %v7451 = vmul.f32 %v7449, 1.442695
    %v7452 = vpow.pop %v7451
    %v7453 = vmul.f32 %v7450, 1.442695
    %v7454 = vpow.pop %v7453
    %v7455 = vadd.f32 %v7452, 1.0
    %v7456 = vadd.f32 %v7454, 1.0
    %v7457 = vrcp.pop %v7455
    %v7458 = vmul.f32 1.0, %v7457
    %v7459 = vrcp.pop %v7456
    %v7460 = vmul.f32 1.0, %v7459
    %vm7461 = vcmask 31744
    %7462 = vst.msk [vmem:[%s12] sm:$0xff] %vm7461, %v7458
    %7463 = vst.msk [vmem:[%s12 + $0x8] sm:$0xff] %vm7461, %v7460
    // Predicated region
    $region58: #{gatv2_forward.1} parent=1 // pred_check
      _
    $region59: #{gatv2_forward.1} parent=1 // pred_check_branch
      %7465 = sbr.rel (0) target = $region61
    $region60: #{gatv2_forward.1} parent=1 // pred_region
      _
    $region61: #{gatv2_forward.1} parent=1 // pred_fallthru
      _
    // Predicated region
    $region62: #{gatv2_forward.1} parent=1 // pred_check
      _
    $region63: #{gatv2_forward.1} parent=1 // pred_check_branch
      %7467 = sbr.rel (0) target = $region65
    $region64: #{gatv2_forward.1} parent=1 // pred_region
      _
    $region65: #{gatv2_forward.1} parent=1 // pred_fallthru
      _
    %7468 = vsyncpa [#allocation3], 1
    %7469 = vsyncpa [#allocation5], 1

</llo_original>
